<compile_context>
chip_gen: v7x
topology: tpu7x:2x2x1
jax: 0.10.0
libtpu: 0.0.40
codegen_flags: <defaults>
</compile_context>

<pallas_src>
import numpy as np
import jax
import jax.numpy as jnp
from jax.experimental import pallas as pl
from jax.experimental.pallas import tpu as pltpu

CHARB_EPS = 1e-6
_LANES = 128
_MAX_TILE_ROWS = 512                    # 512*128*4B = 256 KiB per input block


# ---------------------------------------------------------------------------
# generation-aware sizing
# ---------------------------------------------------------------------------
def _gen_config():
    try:
        kind = jax.devices()[0].device_kind.lower()
    except Exception:
        kind = ""
    if "v7" in kind or "7x" in kind:              # 64 MiB physical VMEM
        return 48 * 1024 * 1024, 512_000
    if "v5" in kind or "v6" in kind:              # 128 MiB physical VMEM
        return 80 * 1024 * 1024, 1_000_000
    return 32 * 1024 * 1024, 400_000              # conservative default


_VMEM_LIMIT, _CONV_BLOCK_ELEMS = _gen_config()


def _cparams(*sem):
    return pltpu.CompilerParams(dimension_semantics=sem,
                                vmem_limit_bytes=_VMEM_LIMIT)


# ---------------------------------------------------------------------------
# small helpers (static Python shape plumbing)
# ---------------------------------------------------------------------------
def _round_up(x, m):
    return ((x + m - 1) // m) * m


def _largest_divisor_leq(n, cap):
    cap = max(1, min(n, cap))
    for d in range(cap, 0, -1):
        if n % d == 0:
            return d
    return 1


def _reduce_layout(n):
    """(tile_rows, padded_rows, split) for a flat (rows, 128) f32 reduction.

    Prefers layouts with NO wrapper padding (free reshape) and a 2-way
    'parallel' split of the row blocks (both v7x TensorCores).
    """
    rows = -(-n // _LANES)
    cap = min(_MAX_TILE_ROWS, max(8, (rows // 8) * 8))
    for padded in (rows, _round_up(rows, 8), _round_up(rows, 16)):
        for split in (2, 1):
            t = cap
            while t >= 8:
                if padded % (t * split) == 0:
                    return t, padded, split
                t -= 8
    return 8, _round_up(rows, 16), 2              # unreachable in practice


def _as_rows(x, padded_rows):
    """Flatten to (padded_rows, 128) keeping dtype; pads only the rare tiny tail."""
    flat = x.reshape(-1)
    total = padded_rows * _LANES
    if total != flat.shape[0]:
        flat = jnp.pad(flat, (0, total - flat.shape[0]))
    return flat.reshape(padded_rows, _LANES)


# ---------------------------------------------------------------------------
# Fused 4-way Charbonnier reduction (one pallas_call for all four terms)
# ---------------------------------------------------------------------------
def _make_charb4_kernel(n, tile_rows, gsteps, needs_mask):
    def kernel(a0, b0, a1, b1, a2, b2, a3, b3, o_ref):
        @pl.when(pl.program_id(1) == 0)
        def _():
            o_ref[...] = jnp.zeros_like(o_ref)

        if needs_mask:
            blk = pl.program_id(0) * gsteps + pl.program_id(1)
            base = blk * (tile_rows * _LANES)
            idx = (jax.lax.broadcasted_iota(jnp.int32, (tile_rows, _LANES), 0) * _LANES
                   + jax.lax.broadcasted_iota(jnp.int32, (tile_rows, _LANES), 1)
                   + base)
            mask = idx < n

        parts = []
        for a_ref, b_ref in ((a0, b0), (a1, b1), (a2, b2), (a3, b3)):
            d = a_ref[...].astype(jnp.float32) - b_ref[...].astype(jnp.float32)
            v = jnp.sqrt(d * d + CHARB_EPS)
            if needs_mask:
                v = jnp.where(mask, v, 0.0)
            # (tile_rows,128) -> (tile_rows/8, 8, 128); axis-0 sum = pure vreg adds
            parts.append(jnp.sum(v.reshape(-1, 8, _LANES), axis=0))
        # single resident read-modify-write per grid step
        o_ref[0] = o_ref[0] + jnp.stack(parts, axis=0)

    return kernel


def charbonnier_losses(pairs):
    """pairs: list of 4 (a, b) tuples, all with the same size. Returns (4,) means."""
    n = pairs[0][0].size
    for a, b in pairs:
        assert a.size == n and b.size == n, "fused Charbonnier expects equal sizes"

    tile_rows, padded_rows, split = _reduce_layout(n)
    gsteps = padded_rows // (split * tile_rows)
    needs_mask = padded_rows * _LANES != n

    flats = []
    for a, b in pairs:
        flats.append(_as_rows(a, padded_rows))
        flats.append(_as_rows(b, padded_rows))

    in_spec = pl.BlockSpec((tile_rows, _LANES), lambda c, i, g=gsteps: (c * g + i, 0))
    out = pl.pallas_call(
        _make_charb4_kernel(n, tile_rows, gsteps, needs_mask),
        out_shape=jax.ShapeDtypeStruct((split, 4, 8, _LANES), jnp.float32),
        grid_spec=pltpu.PrefetchScalarGridSpec(
            num_scalar_prefetch=0,
            grid=(split, gsteps),
            in_specs=[in_spec] * 8,
            out_specs=pl.BlockSpec((1, 4, 8, _LANES), lambda c, i: (c, 0, 0, 0))),
        compiler_params=_cparams("parallel", "arbitrary"),
    )(*flats)

    return jnp.sum(out, axis=(0, 2, 3)) / jnp.float32(n)


# ---------------------------------------------------------------------------
# Flow smoothness (first-order TV): one read of flow, lane-dense partial maps
# ---------------------------------------------------------------------------
def _smooth_kernel(f_ref, odh_ref, odw_ref):
    @pl.when(pl.program_id(1) == 0)
    def _():
        odh_ref[...] = jnp.zeros_like(odh_ref)
        odw_ref[...] = jnp.zeros_like(odw_ref)
    f = f_ref[...].astype(jnp.float32)                  # (ppb, H, W)
    dh = jnp.abs(f[:, 1:, :] - f[:, :-1, :])            # (ppb, H-1, W)
    dw = jnp.abs(f[:, :, 1:] - f[:, :, :-1])            # (ppb, H, W-1)
    odh_ref[0] = odh_ref[0] + jnp.sum(dh, axis=0)       # plane-axis sum = VPU adds
    odw_ref[0] = odw_ref[0] + jnp.sum(dw, axis=0)


def smooth_loss(flow):
    B, C, H, W = flow.shape
    planes = B * C
    f = flow.reshape(planes, H, W)
    split = 2 if planes % 2 == 0 else 1
    per = planes // split
    ppb = _largest_divisor_leq(per, max(1, _CONV_BLOCK_ELEMS // (H * W)))
    gsteps = per // ppb
    sdh, sdw = pl.pallas_call(
        _smooth_kernel,
        out_shape=(jax.ShapeDtypeStruct((split, H - 1, W), jnp.float32),
                   jax.ShapeDtypeStruct((split, H, W - 1), jnp.float32)),
        grid_spec=pltpu.PrefetchScalarGridSpec(
            num_scalar_prefetch=0,
            grid=(split, gsteps),
            in_specs=[pl.BlockSpec((ppb, H, W),
                                   lambda c, i, g=gsteps: (c * g + i, 0, 0))],
            out_specs=(pl.BlockSpec((1, H - 1, W), lambda c, i: (c, 0, 0)),
                       pl.BlockSpec((1, H, W - 1), lambda c, i: (c, 0, 0)))),
        compiler_params=_cparams("parallel", "arbitrary"),
    )(f)
    mean_dh = jnp.sum(sdh) / jnp.float32(planes * (H - 1) * W)
    mean_dw = jnp.sum(sdw) / jnp.float32(planes * H * (W - 1))
    return mean_dh + mean_dw


# ---------------------------------------------------------------------------
# Constant operator matrices for one pyramid level (built in numpy, tiny)
#   dwm (w, w/2):  horizontal 5-tap Gaussian blur + stride-2 decimation, with
#                  the 2-px reflect padding folded in (column operator).
#   hup (w/2, w):  horizontal part of the zero-stuffed x2 upsample with the
#                  4*Gaussian kernel, reflect padding folded in.
# ---------------------------------------------------------------------------
def _build_pyr_mats(h, w):
    k = np.array([1.0, 4.0, 6.0, 4.0, 1.0], np.float64) / 16.0

    def reflect(i, size):
        if i < 0:
            return -i
        if i >= size:
            return 2 * size - 2 - i
        return i

    w2 = w // 2
    dwm = np.zeros((w, w2), np.float64)
    for j in range(w2):
        for dx in range(5):
            dwm[reflect(2 * j + dx - 2, w), j] += k[dx]

    ku = np.array([1.0, 4.0, 6.0, 4.0, 1.0], np.float64) / 8.0

    def dresolve(j):                 # reflect of the zero-stuffed grid onto d columns
        if j < 0:
            return -j
        if j >= w2:
            return w2 - 1
        return j

    hup = np.zeros((w2, w), np.float64)
    for j in range(w2):
        x = 2 * j                    # even output col: taps (1,6,1)/8
        hup[dresolve(j - 1), x] += ku[0]
        hup[dresolve(j), x] += ku[2]
        hup[dresolve(j + 1), x] += ku[4]
        x = 2 * j + 1                # odd output col: taps (4,4)/8
        hup[dresolve(j), x] += ku[1]
        hup[dresolve(j + 1), x] += ku[3]

    return jnp.asarray(dwm, jnp.float32), jnp.asarray(hup, jnp.float32)


# ---------------------------------------------------------------------------
# One fully-fused Laplacian pyramid level:
#   blur + decimate + polyphase upsample + Laplacian diff + L1, in one kernel.
# Inputs are the row-parity-split images (even rows, odd rows), which makes
# every in-kernel access unit-stride; the vertical passes are shifted adds,
# the horizontal passes are matmuls against the constant operator matrices.
# ---------------------------------------------------------------------------
def _make_lap_level_kernel(ppb, h2, w, w2):
    def kernel(cae_ref, cao_ref, cbe_ref, cbo_ref, dwm_ref, hup_ref,
               da_ref, db_ref, acc_ref, tpe_scr, tpo_scr, sp_scr):
        @pl.when(pl.program_id(1) == 0)
        def _():
            acc_ref[...] = jnp.zeros_like(acc_ref)

        dwm = dwm_ref[...]                                   # (w, w2)
        hup = hup_ref[...]                                   # (w2, w)

        def blur_down(xe, xo):
            # horizontal reflect-pad blur + column decimation as one matmul
            te = jnp.dot(xe.reshape(ppb * h2, w), dwm,
                         preferred_element_type=jnp.float32).reshape(ppb, h2, w2)
            to = jnp.dot(xo.reshape(ppb * h2, w), dwm,
                         preferred_element_type=jnp.float32).reshape(ppb, h2, w2)
            # vertical reflect-pad blur + row decimation via parity-split taps
            tpe_scr[:, 1:h2 + 1, :] = te
            tpe_scr[:, 0:1, :] = te[:, 1:2, :]
            tpe_scr[:, h2 + 1:h2 + 2, :] = te[:, h2 - 1:h2, :]
            tpo_scr[:, 1:h2 + 1, :] = to
            tpo_scr[:, 0:1, :] = to[:, 0:1, :]
            tpe = tpe_scr[...]
            tpo = tpo_scr[...]
            return (tpe[:, 0:h2, :] + 6.0 * tpe[:, 1:h2 + 1, :] + tpe[:, 2:h2 + 2, :]
                    + 4.0 * (tpo[:, 0:h2, :] + tpo[:, 1:h2 + 1, :])) * (1.0 / 16.0)

        def upsample(d):
            # polyphase upsample of the zero-stuffed image with the 4*kernel:
            # horizontal phases via matmul, vertical phases via shifted adds
            s = jnp.dot(d.reshape(ppb * h2, w2), hup,
                        preferred_element_type=jnp.float32).reshape(ppb, h2, w)
            sp_scr[:, 1:h2 + 1, :] = s
            sp_scr[:, 0:1, :] = s[:, 1:2, :]
            sp_scr[:, h2 + 1:h2 + 2, :] = s[:, h2 - 1:h2, :]
            sp = sp_scr[...]
            u_even = (sp[:, 0:h2, :] + 6.0 * sp[:, 1:h2 + 1, :]
                      + sp[:, 2:h2 + 2, :]) * 0.125
            u_odd = (sp[:, 1:h2 + 1, :] + sp[:, 2:h2 + 2, :]) * 0.5
            return u_even, u_odd

        cae = cae_ref[...].astype(jnp.float32)
        cao = cao_ref[...].astype(jnp.float32)
        cbe = cbe_ref[...].astype(jnp.float32)
        cbo = cbo_ref[...].astype(jnp.float32)

        da = blur_down(cae, cao)
        uae, uao = upsample(da)
        da_ref[...] = da

        db = blur_down(cbe, cbo)
        ube, ubo = upsample(db)
        db_ref[...] = db

        de = (cae - uae) - (cbe - ube)
        do = (cao - uao) - (cbo - ubo)
        acc_ref[0] = acc_ref[0] + jnp.sum(jnp.abs(de) + jnp.abs(do), axis=0)

    return kernel


def _lap_level(cae, cao, cbe, cbo, h, w):
    planes, h2, _ = cae.shape
    w2 = w // 2
    dwm, hup = _build_pyr_mats(h, w)

    split = 2 if planes % 2 == 0 else 1
    per = planes // split
    ppb = _largest_divisor_leq(per, max(1, (_CONV_BLOCK_ELEMS // 4) // max(1, h2 * w)))
    gsteps = per // ppb

    img_spec = pl.BlockSpec((ppb, h2, w), lambda c, i, g=gsteps: (c * g + i, 0, 0))
    dec_spec = pl.BlockSpec((ppb, h2, w2), lambda c, i, g=gsteps: (c * g + i, 0, 0))

    da, db, acc = pl.pallas_call(
        _make_lap_level_kernel(ppb, h2, w, w2),
        out_shape=(jax.ShapeDtypeStruct((planes, h2, w2), jnp.float32),
                   jax.ShapeDtypeStruct((planes, h2, w2), jnp.float32),
                   jax.ShapeDtypeStruct((split, h2, w), jnp.float32)),
        grid_spec=pltpu.PrefetchScalarGridSpec(
            num_scalar_prefetch=0,
            grid=(split, gsteps),
            in_specs=[img_spec, img_spec, img_spec, img_spec,
                      pl.BlockSpec((w, w2), lambda c, i: (0, 0)),
                      pl.BlockSpec((w2, w), lambda c, i: (0, 0))],
            out_specs=(dec_spec, dec_spec,
                       pl.BlockSpec((1, h2, w), lambda c, i: (c, 0, 0))),
            scratch_shapes=[pltpu.VMEM((ppb, h2 + 2, w2), jnp.float32),
                            pltpu.VMEM((ppb, h2 + 1, w2), jnp.float32),
                            pltpu.VMEM((ppb, h2 + 2, w), jnp.float32)]),
        compiler_params=_cparams("parallel", "arbitrary"),
    )(cae, cao, cbe, cbo, dwm, hup)

    l1 = jnp.sum(acc) / jnp.float32(planes * h * w)
    return da, db, l1


# ---------------------------------------------------------------------------
# Laplacian pyramid loss
# ---------------------------------------------------------------------------
def _auto_levels(H, W, max_levels=5):
    lv, h, w = 0, H, W
    while lv < max_levels and min(h, w) >= 4 and h % 2 == 0 and w % 2 == 0:
        lv += 1
        h //= 2
        w //= 2
    return lv


def lap_loss(pred, gt):
    B, C, H, W = pred.shape
    planes = B * C
    levels = _auto_levels(H, W)          # 3 at 16x16 (demo), 5 at 256x256 (real size)
    if levels == 0:
        return jnp.float32(0.0)
    ca = pred.reshape(planes, H, W)
    cb = gt.reshape(planes, H, W)
    total = jnp.float32(0.0)
    h, w = H, W
    for _ in range(levels):
        # TODO(synk): row-parity split is the one remaining wrapper op; it could
        # be folded into the previous level's outputs with strided DMA writes.
        cae, cao = ca[:, 0::2, :], ca[:, 1::2, :]
        cbe, cbo = cb[:, 0::2, :], cb[:, 1::2, :]
        da, db, l1 = _lap_level(cae, cao, cbe, cbo, h, w)
        total = total + l1
        ca, cb = da, db
        h, w = h // 2, w // 2
    return total


# ---------------------------------------------------------------------------
# Total_Loss.forward
# ---------------------------------------------------------------------------
def total_loss(pred, gt, extra_info, imgs):
    weights = [1.0, 0.5]
    charb = charbonnier_losses([
        (pred, gt),
        (extra_info["warped_r_to_l"], imgs[:, :3]),
        (extra_info["warped_l_to_r"], imgs[:, 3:6]),
        (extra_info["warped_img0"], extra_info["warped_img1"]),
    ])

    init_pred_loss = charb[0] * weights[0] + lap_loss(pred, gt) * weights[1]
    # TODO(synk): reference returns host floats (.detach().cpu().item()); JAX
    # scalars are returned instead so the whole loss stays jittable.
    loss_dict = {"init_pred_loss": init_pred_loss}

    warped_r_to_l_loss = charb[1] * 0.2
    loss_dict["warped_r_to_l_loss"] = warped_r_to_l_loss

    warped_l_to_r_loss = charb[2] * 0.2
    loss_dict["warped_l_to_r_loss"] = warped_l_to_r_loss

    warped_mid_loss = charb[3] * 0.2
    loss_dict["warped_mid_loss"] = warped_mid_loss

    reg_loss = smooth_loss(extra_info["flow"]) * 0.01
    loss_dict["reg_loss"] = reg_loss

    loss = (init_pred_loss + warped_r_to_l_loss + warped_l_to_r_loss
            + warped_mid_loss + reg_loss)
    return loss, loss_dict


if __name__ == "__main__":
    key = jax.random.PRNGKey(0)
    B, H, W = 2, 16, 16
    ks = jax.random.split(key, 8)
    pred = jax.random.uniform(ks[0], (B, 3, H, W), jnp.float32)
    gt = jax.random.uniform(ks[1], (B, 3, H, W), jnp.float32)
    imgs = jax.random.uniform(ks[2], (B, 6, H, W), jnp.float32)
    extra_info = {
        "warped_r_to_l": jax.random.uniform(ks[3], (B, 3, H, W), jnp.float32),
        "warped_l_to_r": jax.random.uniform(ks[4], (B, 3, H, W), jnp.float32),
        "warped_img0":   jax.random.uniform(ks[5], (B, 3, H, W), jnp.float32),
        "warped_img1":   jax.random.uniform(ks[6], (B, 3, H, W), jnp.float32),
        "flow":          jax.random.normal(ks[7], (B, 4, H, W), jnp.float32),
    }

    loss, loss_dict = jax.jit(total_loss)(pred, gt, extra_info, imgs)
    jax.block_until_ready(loss)
    for v in loss_dict.values():
        jax.block_until_ready(v)
    print("KERNEL_OK")
</pallas_src>

<mosaic_0001>
module attributes {stable_mosaic.version = 11 : i64} {
  func.func @kernel(%arg0: i32, %arg1: i32, %arg2: memref<3x8x16xf32, #tpu.memory_space<vmem>>, %arg3: memref<3x8x16xf32, #tpu.memory_space<vmem>>, %arg4: memref<3x8x16xf32, #tpu.memory_space<vmem>>, %arg5: memref<3x8x16xf32, #tpu.memory_space<vmem>>, %arg6: memref<16x8xf32, #tpu.memory_space<vmem>>, %arg7: memref<8x16xf32, #tpu.memory_space<vmem>>, %arg8: memref<3x8x8xf32, #tpu.memory_space<vmem>>, %arg9: memref<3x8x8xf32, #tpu.memory_space<vmem>>, %arg10: memref<1x8x16xf32, #tpu.memory_space<vmem>>, %arg11: memref<3x10x8xf32, #tpu.memory_space<vmem>>, %arg12: memref<3x9x8xf32, #tpu.memory_space<vmem>>, %arg13: memref<3x10x16xf32, #tpu.memory_space<vmem>>) attributes {dimension_semantics = [#tpu.dimension_semantics<parallel>, #tpu.dimension_semantics<arbitrary>], iteration_bounds = array<i64: 2, 1>, scalar_prefetch = 0 : i64, scratch_operands = 3 : i64, tpu.core_type = #tpu.core_type<tc>, window_params = [{transform_indices = @transform_0, window_bounds = array<i64: 3, 8, 16>}, {transform_indices = @transform_1, window_bounds = array<i64: 3, 8, 16>}, {transform_indices = @transform_2, window_bounds = array<i64: 3, 8, 16>}, {transform_indices = @transform_3, window_bounds = array<i64: 3, 8, 16>}, {pipeline_mode = #tpu.pipeline_mode<synchronous>, transform_indices = @transform_4, window_bounds = array<i64: 16, 8>}, {pipeline_mode = #tpu.pipeline_mode<synchronous>, transform_indices = @transform_5, window_bounds = array<i64: 8, 16>}, {transform_indices = @transform_6, window_bounds = array<i64: 3, 8, 8>}, {transform_indices = @transform_7, window_bounds = array<i64: 3, 8, 8>}, {transform_indices = @transform_8, window_bounds = array<i64: 1, 8, 16>}]} {
    %c0_i32 = arith.constant 0 : i32
    %0 = arith.cmpi eq, %arg1, %c0_i32 : i32
    %1 = arith.extui %0 : i1 to i32
    %c0_i32_0 = arith.constant 0 : i32
    %2 = arith.cmpi ne, %1, %c0_i32_0 : i32
    scf.if %2 {
      %cst_110 = arith.constant 0.000000e+00 : f32
      %135 = vector.broadcast %cst_110 : f32 to vector<1x8x16xf32>
      %c0_111 = arith.constant 0 : index
      %c0_112 = arith.constant 0 : index
      %c0_113 = arith.constant 0 : index
      %136 = vector.load %arg10[%c0_111, %c0_112, %c0_113] : memref<1x8x16xf32, #tpu.memory_space<vmem>>, vector<1x8x16xf32>
      tpu.vector_store %arg10[%c0_111, %c0_112, %c0_113], %135 {strides = array<i32>} : memref<1x8x16xf32, #tpu.memory_space<vmem>>, vector<1x8x16xf32>,
    } else {
    }
    %c0 = arith.constant 0 : index
    %c0_1 = arith.constant 0 : index
    %3 = vector.load %arg6[%c0, %c0_1] : memref<16x8xf32, #tpu.memory_space<vmem>>, vector<16x8xf32>
    %c0_2 = arith.constant 0 : index
    %c0_3 = arith.constant 0 : index
    %4 = vector.load %arg7[%c0_2, %c0_3] : memref<8x16xf32, #tpu.memory_space<vmem>>, vector<8x16xf32>
    %c0_4 = arith.constant 0 : index
    %c0_5 = arith.constant 0 : index
    %c0_6 = arith.constant 0 : index
    %5 = vector.load %arg2[%c0_4, %c0_5, %c0_6] : memref<3x8x16xf32, #tpu.memory_space<vmem>>, vector<3x8x16xf32>
    %c0_7 = arith.constant 0 : index
    %c0_8 = arith.constant 0 : index
    %c0_9 = arith.constant 0 : index
    %6 = vector.load %arg3[%c0_7, %c0_8, %c0_9] : memref<3x8x16xf32, #tpu.memory_space<vmem>>, vector<3x8x16xf32>
    %c0_10 = arith.constant 0 : index
    %c0_11 = arith.constant 0 : index
    %c0_12 = arith.constant 0 : index
    %7 = vector.load %arg4[%c0_10, %c0_11, %c0_12] : memref<3x8x16xf32, #tpu.memory_space<vmem>>, vector<3x8x16xf32>
    %c0_13 = arith.constant 0 : index
    %c0_14 = arith.constant 0 : index
    %c0_15 = arith.constant 0 : index
    %8 = vector.load %arg5[%c0_13, %c0_14, %c0_15] : memref<3x8x16xf32, #tpu.memory_space<vmem>>, vector<3x8x16xf32>
    %9 = vector.shape_cast %5 : vector<3x8x16xf32> to vector<24x16xf32>
    %cst = arith.constant dense<0.000000e+00> : vector<24x8xf32>
    %10 = tpu.matmul %9, %3, %cst {dimension_numbers = #tpu.dot_dimension_numbers<[1], [0], [0], [1], [0, 0, 1, 1], [], []>} : vector<24x16xf32>, vector<16x8xf32>, vector<24x8xf32> -> vector<24x8xf32>
    %11 = vector.shape_cast %10 : vector<24x8xf32> to vector<3x8x8xf32>
    %12 = vector.shape_cast %6 : vector<3x8x16xf32> to vector<24x16xf32>
    %cst_16 = arith.constant dense<0.000000e+00> : vector<24x8xf32>
    %13 = tpu.matmul %12, %3, %cst_16 {dimension_numbers = #tpu.dot_dimension_numbers<[1], [0], [0], [1], [0, 0, 1, 1], [], []>} : vector<24x16xf32>, vector<16x8xf32>, vector<24x8xf32> -> vector<24x8xf32>
    %14 = vector.shape_cast %13 : vector<24x8xf32> to vector<3x8x8xf32>
    %c0_17 = arith.constant 0 : index
    %c1 = arith.constant 1 : index
    %c0_18 = arith.constant 0 : index
    %15 = vector.load %arg11[%c0_17, %c1, %c0_18] : memref<3x10x8xf32, #tpu.memory_space<vmem>>, vector<3x8x8xf32>
    tpu.vector_store %arg11[%c0_17, %c1, %c0_18], %11 {strides = array<i32>} : memref<3x10x8xf32, #tpu.memory_space<vmem>>, vector<3x8x8xf32>,
    %16 = vector.extract_strided_slice %11 {offsets = [0, 1, 0], sizes = [3, 1, 8], strides = [1, 1, 1]} : vector<3x8x8xf32> to vector<3x1x8xf32>
    %c0_19 = arith.constant 0 : index
    %c0_20 = arith.constant 0 : index
    %c0_21 = arith.constant 0 : index
    %17 = vector.load %arg11[%c0_19, %c0_20, %c0_21] : memref<3x10x8xf32, #tpu.memory_space<vmem>>, vector<3x1x8xf32>
    tpu.vector_store %arg11[%c0_19, %c0_20, %c0_21], %16 {strides = array<i32>} : memref<3x10x8xf32, #tpu.memory_space<vmem>>, vector<3x1x8xf32>,
    %18 = vector.extract_strided_slice %11 {offsets = [0, 7, 0], sizes = [3, 1, 8], strides = [1, 1, 1]} : vector<3x8x8xf32> to vector<3x1x8xf32>
    %c0_22 = arith.constant 0 : index
    %c9 = arith.constant 9 : index
    %c0_23 = arith.constant 0 : index
    %19 = vector.load %arg11[%c0_22, %c9, %c0_23] : memref<3x10x8xf32, #tpu.memory_space<vmem>>, vector<3x1x8xf32>
    tpu.vector_store %arg11[%c0_22, %c9, %c0_23], %18 {strides = array<i32>} : memref<3x10x8xf32, #tpu.memory_space<vmem>>, vector<3x1x8xf32>,
    %c0_24 = arith.constant 0 : index
    %c1_25 = arith.constant 1 : index
    %c0_26 = arith.constant 0 : index
    %20 = vector.load %arg12[%c0_24, %c1_25, %c0_26] : memref<3x9x8xf32, #tpu.memory_space<vmem>>, vector<3x8x8xf32>
    tpu.vector_store %arg12[%c0_24, %c1_25, %c0_26], %14 {strides = array<i32>} : memref<3x9x8xf32, #tpu.memory_space<vmem>>, vector<3x8x8xf32>,
    %21 = vector.extract_strided_slice %14 {offsets = [0, 0, 0], sizes = [3, 1, 8], strides = [1, 1, 1]} : vector<3x8x8xf32> to vector<3x1x8xf32>
    %c0_27 = arith.constant 0 : index
    %c0_28 = arith.constant 0 : index
    %c0_29 = arith.constant 0 : index
    %22 = vector.load %arg12[%c0_27, %c0_28, %c0_29] : memref<3x9x8xf32, #tpu.memory_space<vmem>>, vector<3x1x8xf32>
    tpu.vector_store %arg12[%c0_27, %c0_28, %c0_29], %21 {strides = array<i32>} : memref<3x9x8xf32, #tpu.memory_space<vmem>>, vector<3x1x8xf32>,
    %c0_30 = arith.constant 0 : index
    %c0_31 = arith.constant 0 : index
    %c0_32 = arith.constant 0 : index
    %23 = vector.load %arg11[%c0_30, %c0_31, %c0_32] : memref<3x10x8xf32, #tpu.memory_space<vmem>>, vector<3x10x8xf32>
    %c0_33 = arith.constant 0 : index
    %c0_34 = arith.constant 0 : index
    %c0_35 = arith.constant 0 : index
    %24 = vector.load %arg12[%c0_33, %c0_34, %c0_35] : memref<3x9x8xf32, #tpu.memory_space<vmem>>, vector<3x9x8xf32>
    %25 = vector.extract_strided_slice %23 {offsets = [0, 0, 0], sizes = [3, 8, 8], strides = [1, 1, 1]} : vector<3x10x8xf32> to vector<3x8x8xf32>
    %26 = vector.extract_strided_slice %23 {offsets = [0, 1, 0], sizes = [3, 8, 8], strides = [1, 1, 1]} : vector<3x10x8xf32> to vector<3x8x8xf32>
    %cst_36 = arith.constant 6.000000e+00 : f32
    %27 = vector.broadcast %cst_36 : f32 to vector<3x8x8xf32>
    %28 = arith.mulf %27, %26 : vector<3x8x8xf32>
    %29 = arith.addf %25, %28 : vector<3x8x8xf32>
    %30 = vector.extract_strided_slice %23 {offsets = [0, 2, 0], sizes = [3, 8, 8], strides = [1, 1, 1]} : vector<3x10x8xf32> to vector<3x8x8xf32>
    %31 = arith.addf %29, %30 : vector<3x8x8xf32>
    %32 = vector.extract_strided_slice %24 {offsets = [0, 0, 0], sizes = [3, 8, 8], strides = [1, 1, 1]} : vector<3x9x8xf32> to vector<3x8x8xf32>
    %33 = vector.extract_strided_slice %24 {offsets = [0, 1, 0], sizes = [3, 8, 8], strides = [1, 1, 1]} : vector<3x9x8xf32> to vector<3x8x8xf32>
    %34 = arith.addf %32, %33 : vector<3x8x8xf32>
    %cst_37 = arith.constant 4.000000e+00 : f32
    %35 = vector.broadcast %cst_37 : f32 to vector<3x8x8xf32>
    %36 = arith.mulf %35, %34 : vector<3x8x8xf32>
    %37 = arith.addf %31, %36 : vector<3x8x8xf32>
    %cst_38 = arith.constant 6.250000e-02 : f32
    %38 = vector.broadcast %cst_38 : f32 to vector<3x8x8xf32>
    %39 = arith.mulf %37, %38 : vector<3x8x8xf32>
    %40 = vector.shape_cast %39 : vector<3x8x8xf32> to vector<24x8xf32>
    %cst_39 = arith.constant dense<0.000000e+00> : vector<24x16xf32>
    %41 = tpu.matmul %40, %4, %cst_39 {dimension_numbers = #tpu.dot_dimension_numbers<[1], [0], [0], [1], [0, 0, 1, 1], [], []>} : vector<24x8xf32>, vector<8x16xf32>, vector<24x16xf32> -> vector<24x16xf32>
    %42 = vector.shape_cast %41 : vector<24x16xf32> to vector<3x8x16xf32>
    %c0_40 = arith.constant 0 : index
    %c1_41 = arith.constant 1 : index
    %c0_42 = arith.constant 0 : index
    %43 = vector.load %arg13[%c0_40, %c1_41, %c0_42] : memref<3x10x16xf32, #tpu.memory_space<vmem>>, vector<3x8x16xf32>
    tpu.vector_store %arg13[%c0_40, %c1_41, %c0_42], %42 {strides = array<i32>} : memref<3x10x16xf32, #tpu.memory_space<vmem>>, vector<3x8x16xf32>,
    %44 = vector.extract_strided_slice %42 {offsets = [0, 1, 0], sizes = [3, 1, 16], strides = [1, 1, 1]} : vector<3x8x16xf32> to vector<3x1x16xf32>
    %c0_43 = arith.constant 0 : index
    %c0_44 = arith.constant 0 : index
    %c0_45 = arith.constant 0 : index
    %45 = vector.load %arg13[%c0_43, %c0_44, %c0_45] : memref<3x10x16xf32, #tpu.memory_space<vmem>>, vector<3x1x16xf32>
    tpu.vector_store %arg13[%c0_43, %c0_44, %c0_45], %44 {strides = array<i32>} : memref<3x10x16xf32, #tpu.memory_space<vmem>>, vector<3x1x16xf32>,
    %46 = vector.extract_strided_slice %42 {offsets = [0, 7, 0], sizes = [3, 1, 16], strides = [1, 1, 1]} : vector<3x8x16xf32> to vector<3x1x16xf32>
    %c0_46 = arith.constant 0 : index
    %c9_47 = arith.constant 9 : index
    %c0_48 = arith.constant 0 : index
    %47 = vector.load %arg13[%c0_46, %c9_47, %c0_48] : memref<3x10x16xf32, #tpu.memory_space<vmem>>, vector<3x1x16xf32>
    tpu.vector_store %arg13[%c0_46, %c9_47, %c0_48], %46 {strides = array<i32>} : memref<3x10x16xf32, #tpu.memory_space<vmem>>, vector<3x1x16xf32>,
    %c0_49 = arith.constant 0 : index
    %c0_50 = arith.constant 0 : index
    %c0_51 = arith.constant 0 : index
    %48 = vector.load %arg13[%c0_49, %c0_50, %c0_51] : memref<3x10x16xf32, #tpu.memory_space<vmem>>, vector<3x10x16xf32>
    %49 = vector.extract_strided_slice %48 {offsets = [0, 0, 0], sizes = [3, 8, 16], strides = [1, 1, 1]} : vector<3x10x16xf32> to vector<3x8x16xf32>
    %50 = vector.extract_strided_slice %48 {offsets = [0, 1, 0], sizes = [3, 8, 16], strides = [1, 1, 1]} : vector<3x10x16xf32> to vector<3x8x16xf32>
    %cst_52 = arith.constant 6.000000e+00 : f32
    %51 = vector.broadcast %cst_52 : f32 to vector<3x8x16xf32>
    %52 = arith.mulf %51, %50 : vector<3x8x16xf32>
    %53 = arith.addf %49, %52 : vector<3x8x16xf32>
    %54 = vector.extract_strided_slice %48 {offsets = [0, 2, 0], sizes = [3, 8, 16], strides = [1, 1, 1]} : vector<3x10x16xf32> to vector<3x8x16xf32>
    %55 = arith.addf %53, %54 : vector<3x8x16xf32>
    %cst_53 = arith.constant 1.250000e-01 : f32
    %56 = vector.broadcast %cst_53 : f32 to vector<3x8x16xf32>
    %57 = arith.mulf %55, %56 : vector<3x8x16xf32>
    %58 = vector.extract_strided_slice %48 {offsets = [0, 1, 0], sizes = [3, 8, 16], strides = [1, 1, 1]} : vector<3x10x16xf32> to vector<3x8x16xf32>
    %59 = vector.extract_strided_slice %48 {offsets = [0, 2, 0], sizes = [3, 8, 16], strides = [1, 1, 1]} : vector<3x10x16xf32> to vector<3x8x16xf32>
    %60 = arith.addf %58, %59 : vector<3x8x16xf32>
    %cst_54 = arith.constant 5.000000e-01 : f32
    %61 = vector.broadcast %cst_54 : f32 to vector<3x8x16xf32>
    %62 = arith.mulf %60, %61 : vector<3x8x16xf32>
    %c0_55 = arith.constant 0 : index
    %c0_56 = arith.constant 0 : index
    %c0_57 = arith.constant 0 : index
    %63 = vector.load %arg8[%c0_55, %c0_56, %c0_57] : memref<3x8x8xf32, #tpu.memory_space<vmem>>, vector<3x8x8xf32>
    tpu.vector_store %arg8[%c0_55, %c0_56, %c0_57], %39 {strides = array<i32>} : memref<3x8x8xf32, #tpu.memory_space<vmem>>, vector<3x8x8xf32>,
    %64 = vector.shape_cast %7 : vector<3x8x16xf32> to vector<24x16xf32>
    %cst_58 = arith.constant dense<0.000000e+00> : vector<24x8xf32>
    %65 = tpu.matmul %64, %3, %cst_58 {dimension_numbers = #tpu.dot_dimension_numbers<[1], [0], [0], [1], [0, 0, 1, 1], [], []>} : vector<24x16xf32>, vector<16x8xf32>, vector<24x8xf32> -> vector<24x8xf32>
    %66 = vector.shape_cast %65 : vector<24x8xf32> to vector<3x8x8xf32>
    %67 = vector.shape_cast %8 : vector<3x8x16xf32> to vector<24x16xf32>
    %cst_59 = arith.constant dense<0.000000e+00> : vector<24x8xf32>
    %68 = tpu.matmul %67, %3, %cst_59 {dimension_numbers = #tpu.dot_dimension_numbers<[1], [0], [0], [1], [0, 0, 1, 1], [], []>} : vector<24x16xf32>, vector<16x8xf32>, vector<24x8xf32> -> vector<24x8xf32>
    %69 = vector.shape_cast %68 : vector<24x8xf32> to vector<3x8x8xf32>
    %c0_60 = arith.constant 0 : index
    %c1_61 = arith.constant 1 : index
    %c0_62 = arith.constant 0 : index
    %70 = vector.load %arg11[%c0_60, %c1_61, %c0_62] : memref<3x10x8xf32, #tpu.memory_space<vmem>>, vector<3x8x8xf32>
    tpu.vector_store %arg11[%c0_60, %c1_61, %c0_62], %66 {strides = array<i32>} : memref<3x10x8xf32, #tpu.memory_space<vmem>>, vector<3x8x8xf32>,
    %71 = vector.extract_strided_slice %66 {offsets = [0, 1, 0], sizes = [3, 1, 8], strides = [1, 1, 1]} : vector<3x8x8xf32> to vector<3x1x8xf32>
    %c0_63 = arith.constant 0 : index
    %c0_64 = arith.constant 0 : index
    %c0_65 = arith.constant 0 : index
    %72 = vector.load %arg11[%c0_63, %c0_64, %c0_65] : memref<3x10x8xf32, #tpu.memory_space<vmem>>, vector<3x1x8xf32>
    tpu.vector_store %arg11[%c0_63, %c0_64, %c0_65], %71 {strides = array<i32>} : memref<3x10x8xf32, #tpu.memory_space<vmem>>, vector<3x1x8xf32>,
    %73 = vector.extract_strided_slice %66 {offsets = [0, 7, 0], sizes = [3, 1, 8], strides = [1, 1, 1]} : vector<3x8x8xf32> to vector<3x1x8xf32>
    %c0_66 = arith.constant 0 : index
    %c9_67 = arith.constant 9 : index
    %c0_68 = arith.constant 0 : index
    %74 = vector.load %arg11[%c0_66, %c9_67, %c0_68] : memref<3x10x8xf32, #tpu.memory_space<vmem>>, vector<3x1x8xf32>
    tpu.vector_store %arg11[%c0_66, %c9_67, %c0_68], %73 {strides = array<i32>} : memref<3x10x8xf32, #tpu.memory_space<vmem>>, vector<3x1x8xf32>,
    %c0_69 = arith.constant 0 : index
    %c1_70 = arith.constant 1 : index
    %c0_71 = arith.constant 0 : index
    %75 = vector.load %arg12[%c0_69, %c1_70, %c0_71] : memref<3x9x8xf32, #tpu.memory_space<vmem>>, vector<3x8x8xf32>
    tpu.vector_store %arg12[%c0_69, %c1_70, %c0_71], %69 {strides = array<i32>} : memref<3x9x8xf32, #tpu.memory_space<vmem>>, vector<3x8x8xf32>,
    %76 = vector.extract_strided_slice %69 {offsets = [0, 0, 0], sizes = [3, 1, 8], strides = [1, 1, 1]} : vector<3x8x8xf32> to vector<3x1x8xf32>
    %c0_72 = arith.constant 0 : index
    %c0_73 = arith.constant 0 : index
    %c0_74 = arith.constant 0 : index
    %77 = vector.load %arg12[%c0_72, %c0_73, %c0_74] : memref<3x9x8xf32, #tpu.memory_space<vmem>>, vector<3x1x8xf32>
    tpu.vector_store %arg12[%c0_72, %c0_73, %c0_74], %76 {strides = array<i32>} : memref<3x9x8xf32, #tpu.memory_space<vmem>>, vector<3x1x8xf32>,
    %c0_75 = arith.constant 0 : index
    %c0_76 = arith.constant 0 : index
    %c0_77 = arith.constant 0 : index
    %78 = vector.load %arg11[%c0_75, %c0_76, %c0_77] : memref<3x10x8xf32, #tpu.memory_space<vmem>>, vector<3x10x8xf32>
    %c0_78 = arith.constant 0 : index
    %c0_79 = arith.constant 0 : index
    %c0_80 = arith.constant 0 : index
    %79 = vector.load %arg12[%c0_78, %c0_79, %c0_80] : memref<3x9x8xf32, #tpu.memory_space<vmem>>, vector<3x9x8xf32>
    %80 = vector.extract_strided_slice %78 {offsets = [0, 0, 0], sizes = [3, 8, 8], strides = [1, 1, 1]} : vector<3x10x8xf32> to vector<3x8x8xf32>
    %81 = vector.extract_strided_slice %78 {offsets = [0, 1, 0], sizes = [3, 8, 8], strides = [1, 1, 1]} : vector<3x10x8xf32> to vector<3x8x8xf32>
    %cst_81 = arith.constant 6.000000e+00 : f32
    %82 = vector.broadcast %cst_81 : f32 to vector<3x8x8xf32>
    %83 = arith.mulf %82, %81 : vector<3x8x8xf32>
    %84 = arith.addf %80, %83 : vector<3x8x8xf32>
    %85 = vector.extract_strided_slice %78 {offsets = [0, 2, 0], sizes = [3, 8, 8], strides = [1, 1, 1]} : vector<3x10x8xf32> to vector<3x8x8xf32>
    %86 = arith.addf %84, %85 : vector<3x8x8xf32>
    %87 = vector.extract_strided_slice %79 {offsets = [0, 0, 0], sizes = [3, 8, 8], strides = [1, 1, 1]} : vector<3x9x8xf32> to vector<3x8x8xf32>
    %88 = vector.extract_strided_slice %79 {offsets = [0, 1, 0], sizes = [3, 8, 8], strides = [1, 1, 1]} : vector<3x9x8xf32> to vector<3x8x8xf32>
    %89 = arith.addf %87, %88 : vector<3x8x8xf32>
    %cst_82 = arith.constant 4.000000e+00 : f32
    %90 = vector.broadcast %cst_82 : f32 to vector<3x8x8xf32>
    %91 = arith.mulf %90, %89 : vector<3x8x8xf32>
    %92 = arith.addf %86, %91 : vector<3x8x8xf32>
    %cst_83 = arith.constant 6.250000e-02 : f32
    %93 = vector.broadcast %cst_83 : f32 to vector<3x8x8xf32>
    %94 = arith.mulf %92, %93 : vector<3x8x8xf32>
    %95 = vector.shape_cast %94 : vector<3x8x8xf32> to vector<24x8xf32>
    %cst_84 = arith.constant dense<0.000000e+00> : vector<24x16xf32>
    %96 = tpu.matmul %95, %4, %cst_84 {dimension_numbers = #tpu.dot_dimension_numbers<[1], [0], [0], [1], [0, 0, 1, 1], [], []>} : vector<24x8xf32>, vector<8x16xf32>, vector<24x16xf32> -> vector<24x16xf32>
    %97 = vector.shape_cast %96 : vector<24x16xf32> to vector<3x8x16xf32>
    %c0_85 = arith.constant 0 : index
    %c1_86 = arith.constant 1 : index
    %c0_87 = arith.constant 0 : index
    %98 = vector.load %arg13[%c0_85, %c1_86, %c0_87] : memref<3x10x16xf32, #tpu.memory_space<vmem>>, vector<3x8x16xf32>
    tpu.vector_store %arg13[%c0_85, %c1_86, %c0_87], %97 {strides = array<i32>} : memref<3x10x16xf32, #tpu.memory_space<vmem>>, vector<3x8x16xf32>,
    %99 = vector.extract_strided_slice %97 {offsets = [0, 1, 0], sizes = [3, 1, 16], strides = [1, 1, 1]} : vector<3x8x16xf32> to vector<3x1x16xf32>
    %c0_88 = arith.constant 0 : index
    %c0_89 = arith.constant 0 : index
    %c0_90 = arith.constant 0 : index
    %100 = vector.load %arg13[%c0_88, %c0_89, %c0_90] : memref<3x10x16xf32, #tpu.memory_space<vmem>>, vector<3x1x16xf32>
    tpu.vector_store %arg13[%c0_88, %c0_89, %c0_90], %99 {strides = array<i32>} : memref<3x10x16xf32, #tpu.memory_space<vmem>>, vector<3x1x16xf32>,
    %101 = vector.extract_strided_slice %97 {offsets = [0, 7, 0], sizes = [3, 1, 16], strides = [1, 1, 1]} : vector<3x8x16xf32> to vector<3x1x16xf32>
    %c0_91 = arith.constant 0 : index
    %c9_92 = arith.constant 9 : index
    %c0_93 = arith.constant 0 : index
    %102 = vector.load %arg13[%c0_91, %c9_92, %c0_93] : memref<3x10x16xf32, #tpu.memory_space<vmem>>, vector<3x1x16xf32>
    tpu.vector_store %arg13[%c0_91, %c9_92, %c0_93], %101 {strides = array<i32>} : memref<3x10x16xf32, #tpu.memory_space<vmem>>, vector<3x1x16xf32>,
    %c0_94 = arith.constant 0 : index
    %c0_95 = arith.constant 0 : index
    %c0_96 = arith.constant 0 : index
    %103 = vector.load %arg13[%c0_94, %c0_95, %c0_96] : memref<3x10x16xf32, #tpu.memory_space<vmem>>, vector<3x10x16xf32>
    %104 = vector.extract_strided_slice %103 {offsets = [0, 0, 0], sizes = [3, 8, 16], strides = [1, 1, 1]} : vector<3x10x16xf32> to vector<3x8x16xf32>
    %105 = vector.extract_strided_slice %103 {offsets = [0, 1, 0], sizes = [3, 8, 16], strides = [1, 1, 1]} : vector<3x10x16xf32> to vector<3x8x16xf32>
    %cst_97 = arith.constant 6.000000e+00 : f32
    %106 = vector.broadcast %cst_97 : f32 to vector<3x8x16xf32>
    %107 = arith.mulf %106, %105 : vector<3x8x16xf32>
    %108 = arith.addf %104, %107 : vector<3x8x16xf32>
    %109 = vector.extract_strided_slice %103 {offsets = [0, 2, 0], sizes = [3, 8, 16], strides = [1, 1, 1]} : vector<3x10x16xf32> to vector<3x8x16xf32>
    %110 = arith.addf %108, %109 : vector<3x8x16xf32>
    %cst_98 = arith.constant 1.250000e-01 : f32
    %111 = vector.broadcast %cst_98 : f32 to vector<3x8x16xf32>
    %112 = arith.mulf %110, %111 : vector<3x8x16xf32>
    %113 = vector.extract_strided_slice %103 {offsets = [0, 1, 0], sizes = [3, 8, 16], strides = [1, 1, 1]} : vector<3x10x16xf32> to vector<3x8x16xf32>
    %114 = vector.extract_strided_slice %103 {offsets = [0, 2, 0], sizes = [3, 8, 16], strides = [1, 1, 1]} : vector<3x10x16xf32> to vector<3x8x16xf32>
    %115 = arith.addf %113, %114 : vector<3x8x16xf32>
    %cst_99 = arith.constant 5.000000e-01 : f32
    %116 = vector.broadcast %cst_99 : f32 to vector<3x8x16xf32>
    %117 = arith.mulf %115, %116 : vector<3x8x16xf32>
    %c0_100 = arith.constant 0 : index
    %c0_101 = arith.constant 0 : index
    %c0_102 = arith.constant 0 : index
    %118 = vector.load %arg9[%c0_100, %c0_101, %c0_102] : memref<3x8x8xf32, #tpu.memory_space<vmem>>, vector<3x8x8xf32>
    tpu.vector_store %arg9[%c0_100, %c0_101, %c0_102], %94 {strides = array<i32>} : memref<3x8x8xf32, #tpu.memory_space<vmem>>, vector<3x8x8xf32>,
    %119 = arith.subf %5, %57 : vector<3x8x16xf32>
    %120 = arith.subf %7, %112 : vector<3x8x16xf32>
    %121 = arith.subf %119, %120 : vector<3x8x16xf32>
    %122 = arith.subf %6, %62 : vector<3x8x16xf32>
    %123 = arith.subf %8, %117 : vector<3x8x16xf32>
    %124 = arith.subf %122, %123 : vector<3x8x16xf32>
    %c0_103 = arith.constant 0 : index
    %c0_104 = arith.constant 0 : index
    %c0_105 = arith.constant 0 : index
    %125 = vector.load %arg10[%c0_103, %c0_104, %c0_105] : memref<1x8x16xf32, #tpu.memory_space<vmem>>, vector<1x8x16xf32>
    %126 = vector.shape_cast %125 : vector<1x8x16xf32> to vector<8x16xf32>
    %127 = math.absf %121 : vector<3x8x16xf32>
    %128 = math.absf %124 : vector<3x8x16xf32>
    %129 = arith.addf %127, %128 : vector<3x8x16xf32>
    %cst_106 = arith.constant dense<0.000000e+00> : vector<8x16xf32>
    %130 = vector.multi_reduction <add>, %129, %cst_106 [0] : vector<3x8x16xf32> to vector<8x16xf32>
    %131 = arith.addf %126, %130 : vector<8x16xf32>
    %c0_107 = arith.constant 0 : index
    %c0_108 = arith.constant 0 : index
    %c0_109 = arith.constant 0 : index
    %132 = vector.load %arg10[%c0_107, %c0_108, %c0_109] : memref<1x8x16xf32, #tpu.memory_space<vmem>>, vector<1x8x16xf32>
    %133 = vector.shape_cast %132 : vector<1x8x16xf32> to vector<8x16xf32>
    %134 = vector.shape_cast %131 : vector<8x16xf32> to vector<1x8x16xf32>
    tpu.vector_store %arg10[%c0_107, %c0_108, %c0_109], %134 {strides = array<i32>} : memref<1x8x16xf32, #tpu.memory_space<vmem>>, vector<1x8x16xf32>,
    return
  }
  func.func @transform_0(%arg0: i32, %arg1: i32) -> (i32, i32, i32) {
    %c1_i32 = arith.constant 1 : i32
    %0 = arith.muli %arg0, %c1_i32 : i32
    %1 = arith.addi %0, %arg1 : i32
    %c0_i32 = arith.constant 0 : i32
    %c0_i32_0 = arith.constant 0 : i32
    %c0_i32_1 = arith.constant 0 : i32
    return %1, %c0_i32, %c0_i32_0 : i32, i32, i32
  }
  func.func @transform_1(%arg0: i32, %arg1: i32) -> (i32, i32, i32) {
    %c1_i32 = arith.constant 1 : i32
    %0 = arith.muli %arg0, %c1_i32 : i32
    %1 = arith.addi %0, %arg1 : i32
    %c0_i32 = arith.constant 0 : i32
    %c0_i32_0 = arith.constant 0 : i32
    %c0_i32_1 = arith.constant 0 : i32
    return %1, %c0_i32, %c0_i32_0 : i32, i32, i32
  }
  func.func @transform_2(%arg0: i32, %arg1: i32) -> (i32, i32, i32) {
    %c1_i32 = arith.constant 1 : i32
    %0 = arith.muli %arg0, %c1_i32 : i32
    %1 = arith.addi %0, %arg1 : i32
    %c0_i32 = arith.constant 0 : i32
    %c0_i32_0 = arith.constant 0 : i32
    %c0_i32_1 = arith.constant 0 : i32
    return %1, %c0_i32, %c0_i32_0 : i32, i32, i32
  }
  func.func @transform_3(%arg0: i32, %arg1: i32) -> (i32, i32, i32) {
    %c1_i32 = arith.constant 1 : i32
    %0 = arith.muli %arg0, %c1_i32 : i32
    %1 = arith.addi %0, %arg1 : i32
    %c0_i32 = arith.constant 0 : i32
    %c0_i32_0 = arith.constant 0 : i32
    %c0_i32_1 = arith.constant 0 : i32
    return %1, %c0_i32, %c0_i32_0 : i32, i32, i32
  }
  func.func @transform_4(%arg0: i32, %arg1: i32) -> (i32, i32) {
    %c0_i32 = arith.constant 0 : i32
    %c0_i32_0 = arith.constant 0 : i32
    %c0_i32_1 = arith.constant 0 : i32
    return %c0_i32, %c0_i32_0 : i32, i32
  }
  func.func @transform_5(%arg0: i32, %arg1: i32) -> (i32, i32) {
    %c0_i32 = arith.constant 0 : i32
    %c0_i32_0 = arith.constant 0 : i32
    %c0_i32_1 = arith.constant 0 : i32
    return %c0_i32, %c0_i32_0 : i32, i32
  }
  func.func @transform_6(%arg0: i32, %arg1: i32) -> (i32, i32, i32) {
    %c1_i32 = arith.constant 1 : i32
    %0 = arith.muli %arg0, %c1_i32 : i32
    %1 = arith.addi %0, %arg1 : i32
    %c0_i32 = arith.constant 0 : i32
    %c0_i32_0 = arith.constant 0 : i32
    %c0_i32_1 = arith.constant 0 : i32
    return %1, %c0_i32, %c0_i32_0 : i32, i32, i32
  }
  func.func @transform_7(%arg0: i32, %arg1: i32) -> (i32, i32, i32) {
    %c1_i32 = arith.constant 1 : i32
    %0 = arith.muli %arg0, %c1_i32 : i32
    %1 = arith.addi %0, %arg1 : i32
    %c0_i32 = arith.constant 0 : i32
    %c0_i32_0 = arith.constant 0 : i32
    %c0_i32_1 = arith.constant 0 : i32
    return %1, %c0_i32, %c0_i32_0 : i32, i32, i32
  }
  func.func @transform_8(%arg0: i32, %arg1: i32) -> (i32, i32, i32) {
    %c0_i32 = arith.constant 0 : i32
    %c0_i32_0 = arith.constant 0 : i32
    %c0_i32_1 = arith.constant 0 : i32
    return %arg0, %c0_i32, %c0_i32_0 : i32, i32, i32
  }
}

module attributes {stable_mosaic.version = 11 : i64} {
  func.func @kernel(%arg0: i32, %arg1: i32, %arg2: memref<3x4x8xf32, #tpu.memory_space<vmem>>, %arg3: memref<3x4x8xf32, #tpu.memory_space<vmem>>, %arg4: memref<3x4x8xf32, #tpu.memory_space<vmem>>, %arg5: memref<3x4x8xf32, #tpu.memory_space<vmem>>, %arg6: memref<8x4xf32, #tpu.memory_space<vmem>>, %arg7: memref<4x8xf32, #tpu.memory_space<vmem>>, %arg8: memref<3x4x4xf32, #tpu.memory_space<vmem>>, %arg9: memref<3x4x4xf32, #tpu.memory_space<vmem>>, %arg10: memref<1x4x8xf32, #tpu.memory_space<vmem>>, %arg11: memref<3x6x4xf32, #tpu.memory_space<vmem>>, %arg12: memref<3x5x4xf32, #tpu.memory_space<vmem>>, %arg13: memref<3x6x8xf32, #tpu.memory_space<vmem>>) attributes {dimension_semantics = [#tpu.dimension_semantics<parallel>, #tpu.dimension_semantics<arbitrary>], iteration_bounds = array<i64: 2, 1>, scalar_prefetch = 0 : i64, scratch_operands = 3 : i64, tpu.core_type = #tpu.core_type<tc>, window_params = [{transform_indices = @transform_0, window_bounds = array<i64: 3, 4, 8>}, {transform_indices = @transform_1, window_bounds = array<i64: 3, 4, 8>}, {transform_indices = @transform_2, window_bounds = array<i64: 3, 4, 8>}, {transform_indices = @transform_3, window_bounds = array<i64: 3, 4, 8>}, {pipeline_mode = #tpu.pipeline_mode<synchronous>, transform_indices = @transform_4, window_bounds = array<i64: 8, 4>}, {pipeline_mode = #tpu.pipeline_mode<synchronous>, transform_indices = @transform_5, window_bounds = array<i64: 4, 8>}, {transform_indices = @transform_6, window_bounds = array<i64: 3, 4, 4>}, {transform_indices = @transform_7, window_bounds = array<i64: 3, 4, 4>}, {transform_indices = @transform_8, window_bounds = array<i64: 1, 4, 8>}]} {
    %c0_i32 = arith.constant 0 : i32
    %0 = arith.cmpi eq, %arg1, %c0_i32 : i32
    %1 = arith.extui %0 : i1 to i32
    %c0_i32_0 = arith.constant 0 : i32
    %2 = arith.cmpi ne, %1, %c0_i32_0 : i32
    scf.if %2 {
      %cst_110 = arith.constant 0.000000e+00 : f32
      %135 = vector.broadcast %cst_110 : f32 to vector<1x4x8xf32>
      %c0_111 = arith.constant 0 : index
      %c0_112 = arith.constant 0 : index
      %c0_113 = arith.constant 0 : index
      %136 = vector.load %arg10[%c0_111, %c0_112, %c0_113] : memref<1x4x8xf32, #tpu.memory_space<vmem>>, vector<1x4x8xf32>
      tpu.vector_store %arg10[%c0_111, %c0_112, %c0_113], %135 {strides = array<i32>} : memref<1x4x8xf32, #tpu.memory_space<vmem>>, vector<1x4x8xf32>,
    } else {
    }
    %c0 = arith.constant 0 : index
    %c0_1 = arith.constant 0 : index
    %3 = vector.load %arg6[%c0, %c0_1] : memref<8x4xf32, #tpu.memory_space<vmem>>, vector<8x4xf32>
    %c0_2 = arith.constant 0 : index
    %c0_3 = arith.constant 0 : index
    %4 = vector.load %arg7[%c0_2, %c0_3] : memref<4x8xf32, #tpu.memory_space<vmem>>, vector<4x8xf32>
    %c0_4 = arith.constant 0 : index
    %c0_5 = arith.constant 0 : index
    %c0_6 = arith.constant 0 : index
    %5 = vector.load %arg2[%c0_4, %c0_5, %c0_6] : memref<3x4x8xf32, #tpu.memory_space<vmem>>, vector<3x4x8xf32>
    %c0_7 = arith.constant 0 : index
    %c0_8 = arith.constant 0 : index
    %c0_9 = arith.constant 0 : index
    %6 = vector.load %arg3[%c0_7, %c0_8, %c0_9] : memref<3x4x8xf32, #tpu.memory_space<vmem>>, vector<3x4x8xf32>
    %c0_10 = arith.constant 0 : index
    %c0_11 = arith.constant 0 : index
    %c0_12 = arith.constant 0 : index
    %7 = vector.load %arg4[%c0_10, %c0_11, %c0_12] : memref<3x4x8xf32, #tpu.memory_space<vmem>>, vector<3x4x8xf32>
    %c0_13 = arith.constant 0 : index
    %c0_14 = arith.constant 0 : index
    %c0_15 = arith.constant 0 : index
    %8 = vector.load %arg5[%c0_13, %c0_14, %c0_15] : memref<3x4x8xf32, #tpu.memory_space<vmem>>, vector<3x4x8xf32>
    %9 = vector.shape_cast %5 : vector<3x4x8xf32> to vector<12x8xf32>
    %cst = arith.constant dense<0.000000e+00> : vector<12x4xf32>
    %10 = tpu.matmul %9, %3, %cst {dimension_numbers = #tpu.dot_dimension_numbers<[1], [0], [0], [1], [0, 0, 1, 1], [], []>} : vector<12x8xf32>, vector<8x4xf32>, vector<12x4xf32> -> vector<12x4xf32>
    %11 = vector.shape_cast %10 : vector<12x4xf32> to vector<3x4x4xf32>
    %12 = vector.shape_cast %6 : vector<3x4x8xf32> to vector<12x8xf32>
    %cst_16 = arith.constant dense<0.000000e+00> : vector<12x4xf32>
    %13 = tpu.matmul %12, %3, %cst_16 {dimension_numbers = #tpu.dot_dimension_numbers<[1], [0], [0], [1], [0, 0, 1, 1], [], []>} : vector<12x8xf32>, vector<8x4xf32>, vector<12x4xf32> -> vector<12x4xf32>
    %14 = vector.shape_cast %13 : vector<12x4xf32> to vector<3x4x4xf32>
    %c0_17 = arith.constant 0 : index
    %c1 = arith.constant 1 : index
    %c0_18 = arith.constant 0 : index
    %15 = vector.load %arg11[%c0_17, %c1, %c0_18] : memref<3x6x4xf32, #tpu.memory_space<vmem>>, vector<3x4x4xf32>
    tpu.vector_store %arg11[%c0_17, %c1, %c0_18], %11 {strides = array<i32>} : memref<3x6x4xf32, #tpu.memory_space<vmem>>, vector<3x4x4xf32>,
    %16 = vector.extract_strided_slice %11 {offsets = [0, 1, 0], sizes = [3, 1, 4], strides = [1, 1, 1]} : vector<3x4x4xf32> to vector<3x1x4xf32>
    %c0_19 = arith.constant 0 : index
    %c0_20 = arith.constant 0 : index
    %c0_21 = arith.constant 0 : index
    %17 = vector.load %arg11[%c0_19, %c0_20, %c0_21] : memref<3x6x4xf32, #tpu.memory_space<vmem>>, vector<3x1x4xf32>
    tpu.vector_store %arg11[%c0_19, %c0_20, %c0_21], %16 {strides = array<i32>} : memref<3x6x4xf32, #tpu.memory_space<vmem>>, vector<3x1x4xf32>,
    %18 = vector.extract_strided_slice %11 {offsets = [0, 3, 0], sizes = [3, 1, 4], strides = [1, 1, 1]} : vector<3x4x4xf32> to vector<3x1x4xf32>
    %c0_22 = arith.constant 0 : index
    %c5 = arith.constant 5 : index
    %c0_23 = arith.constant 0 : index
    %19 = vector.load %arg11[%c0_22, %c5, %c0_23] : memref<3x6x4xf32, #tpu.memory_space<vmem>>, vector<3x1x4xf32>
    tpu.vector_store %arg11[%c0_22, %c5, %c0_23], %18 {strides = array<i32>} : memref<3x6x4xf32, #tpu.memory_space<vmem>>, vector<3x1x4xf32>,
    %c0_24 = arith.constant 0 : index
    %c1_25 = arith.constant 1 : index
    %c0_26 = arith.constant 0 : index
    %20 = vector.load %arg12[%c0_24, %c1_25, %c0_26] : memref<3x5x4xf32, #tpu.memory_space<vmem>>, vector<3x4x4xf32>
    tpu.vector_store %arg12[%c0_24, %c1_25, %c0_26], %14 {strides = array<i32>} : memref<3x5x4xf32, #tpu.memory_space<vmem>>, vector<3x4x4xf32>,
    %21 = vector.extract_strided_slice %14 {offsets = [0, 0, 0], sizes = [3, 1, 4], strides = [1, 1, 1]} : vector<3x4x4xf32> to vector<3x1x4xf32>
    %c0_27 = arith.constant 0 : index
    %c0_28 = arith.constant 0 : index
    %c0_29 = arith.constant 0 : index
    %22 = vector.load %arg12[%c0_27, %c0_28, %c0_29] : memref<3x5x4xf32, #tpu.memory_space<vmem>>, vector<3x1x4xf32>
    tpu.vector_store %arg12[%c0_27, %c0_28, %c0_29], %21 {strides = array<i32>} : memref<3x5x4xf32, #tpu.memory_space<vmem>>, vector<3x1x4xf32>,
    %c0_30 = arith.constant 0 : index
    %c0_31 = arith.constant 0 : index
    %c0_32 = arith.constant 0 : index
    %23 = vector.load %arg11[%c0_30, %c0_31, %c0_32] : memref<3x6x4xf32, #tpu.memory_space<vmem>>, vector<3x6x4xf32>
    %c0_33 = arith.constant 0 : index
    %c0_34 = arith.constant 0 : index
    %c0_35 = arith.constant 0 : index
    %24 = vector.load %arg12[%c0_33, %c0_34, %c0_35] : memref<3x5x4xf32, #tpu.memory_space<vmem>>, vector<3x5x4xf32>
    %25 = vector.extract_strided_slice %23 {offsets = [0, 0, 0], sizes = [3, 4, 4], strides = [1, 1, 1]} : vector<3x6x4xf32> to vector<3x4x4xf32>
    %26 = vector.extract_strided_slice %23 {offsets = [0, 1, 0], sizes = [3, 4, 4], strides = [1, 1, 1]} : vector<3x6x4xf32> to vector<3x4x4xf32>
    %cst_36 = arith.constant 6.000000e+00 : f32
    %27 = vector.broadcast %cst_36 : f32 to vector<3x4x4xf32>
    %28 = arith.mulf %27, %26 : vector<3x4x4xf32>
    %29 = arith.addf %25, %28 : vector<3x4x4xf32>
    %30 = vector.extract_strided_slice %23 {offsets = [0, 2, 0], sizes = [3, 4, 4], strides = [1, 1, 1]} : vector<3x6x4xf32> to vector<3x4x4xf32>
    %31 = arith.addf %29, %30 : vector<3x4x4xf32>
    %32 = vector.extract_strided_slice %24 {offsets = [0, 0, 0], sizes = [3, 4, 4], strides = [1, 1, 1]} : vector<3x5x4xf32> to vector<3x4x4xf32>
    %33 = vector.extract_strided_slice %24 {offsets = [0, 1, 0], sizes = [3, 4, 4], strides = [1, 1, 1]} : vector<3x5x4xf32> to vector<3x4x4xf32>
    %34 = arith.addf %32, %33 : vector<3x4x4xf32>
    %cst_37 = arith.constant 4.000000e+00 : f32
    %35 = vector.broadcast %cst_37 : f32 to vector<3x4x4xf32>
    %36 = arith.mulf %35, %34 : vector<3x4x4xf32>
    %37 = arith.addf %31, %36 : vector<3x4x4xf32>
    %cst_38 = arith.constant 6.250000e-02 : f32
    %38 = vector.broadcast %cst_38 : f32 to vector<3x4x4xf32>
    %39 = arith.mulf %37, %38 : vector<3x4x4xf32>
    %40 = vector.shape_cast %39 : vector<3x4x4xf32> to vector<12x4xf32>
    %cst_39 = arith.constant dense<0.000000e+00> : vector<12x8xf32>
    %41 = tpu.matmul %40, %4, %cst_39 {dimension_numbers = #tpu.dot_dimension_numbers<[1], [0], [0], [1], [0, 0, 1, 1], [], []>} : vector<12x4xf32>, vector<4x8xf32>, vector<12x8xf32> -> vector<12x8xf32>
    %42 = vector.shape_cast %41 : vector<12x8xf32> to vector<3x4x8xf32>
    %c0_40 = arith.constant 0 : index
    %c1_41 = arith.constant 1 : index
    %c0_42 = arith.constant 0 : index
    %43 = vector.load %arg13[%c0_40, %c1_41, %c0_42] : memref<3x6x8xf32, #tpu.memory_space<vmem>>, vector<3x4x8xf32>
    tpu.vector_store %arg13[%c0_40, %c1_41, %c0_42], %42 {strides = array<i32>} : memref<3x6x8xf32, #tpu.memory_space<vmem>>, vector<3x4x8xf32>,
    %44 = vector.extract_strided_slice %42 {offsets = [0, 1, 0], sizes = [3, 1, 8], strides = [1, 1, 1]} : vector<3x4x8xf32> to vector<3x1x8xf32>
    %c0_43 = arith.constant 0 : index
    %c0_44 = arith.constant 0 : index
    %c0_45 = arith.constant 0 : index
    %45 = vector.load %arg13[%c0_43, %c0_44, %c0_45] : memref<3x6x8xf32, #tpu.memory_space<vmem>>, vector<3x1x8xf32>
    tpu.vector_store %arg13[%c0_43, %c0_44, %c0_45], %44 {strides = array<i32>} : memref<3x6x8xf32, #tpu.memory_space<vmem>>, vector<3x1x8xf32>,
    %46 = vector.extract_strided_slice %42 {offsets = [0, 3, 0], sizes = [3, 1, 8], strides = [1, 1, 1]} : vector<3x4x8xf32> to vector<3x1x8xf32>
    %c0_46 = arith.constant 0 : index
    %c5_47 = arith.constant 5 : index
    %c0_48 = arith.constant 0 : index
    %47 = vector.load %arg13[%c0_46, %c5_47, %c0_48] : memref<3x6x8xf32, #tpu.memory_space<vmem>>, vector<3x1x8xf32>
    tpu.vector_store %arg13[%c0_46, %c5_47, %c0_48], %46 {strides = array<i32>} : memref<3x6x8xf32, #tpu.memory_space<vmem>>, vector<3x1x8xf32>,
    %c0_49 = arith.constant 0 : index
    %c0_50 = arith.constant 0 : index
    %c0_51 = arith.constant 0 : index
    %48 = vector.load %arg13[%c0_49, %c0_50, %c0_51] : memref<3x6x8xf32, #tpu.memory_space<vmem>>, vector<3x6x8xf32>
    %49 = vector.extract_strided_slice %48 {offsets = [0, 0, 0], sizes = [3, 4, 8], strides = [1, 1, 1]} : vector<3x6x8xf32> to vector<3x4x8xf32>
    %50 = vector.extract_strided_slice %48 {offsets = [0, 1, 0], sizes = [3, 4, 8], strides = [1, 1, 1]} : vector<3x6x8xf32> to vector<3x4x8xf32>
    %cst_52 = arith.constant 6.000000e+00 : f32
    %51 = vector.broadcast %cst_52 : f32 to vector<3x4x8xf32>
    %52 = arith.mulf %51, %50 : vector<3x4x8xf32>
    %53 = arith.addf %49, %52 : vector<3x4x8xf32>
    %54 = vector.extract_strided_slice %48 {offsets = [0, 2, 0], sizes = [3, 4, 8], strides = [1, 1, 1]} : vector<3x6x8xf32> to vector<3x4x8xf32>
    %55 = arith.addf %53, %54 : vector<3x4x8xf32>
    %cst_53 = arith.constant 1.250000e-01 : f32
    %56 = vector.broadcast %cst_53 : f32 to vector<3x4x8xf32>
    %57 = arith.mulf %55, %56 : vector<3x4x8xf32>
    %58 = vector.extract_strided_slice %48 {offsets = [0, 1, 0], sizes = [3, 4, 8], strides = [1, 1, 1]} : vector<3x6x8xf32> to vector<3x4x8xf32>
    %59 = vector.extract_strided_slice %48 {offsets = [0, 2, 0], sizes = [3, 4, 8], strides = [1, 1, 1]} : vector<3x6x8xf32> to vector<3x4x8xf32>
    %60 = arith.addf %58, %59 : vector<3x4x8xf32>
    %cst_54 = arith.constant 5.000000e-01 : f32
    %61 = vector.broadcast %cst_54 : f32 to vector<3x4x8xf32>
    %62 = arith.mulf %60, %61 : vector<3x4x8xf32>
    %c0_55 = arith.constant 0 : index
    %c0_56 = arith.constant 0 : index
    %c0_57 = arith.constant 0 : index
    %63 = vector.load %arg8[%c0_55, %c0_56, %c0_57] : memref<3x4x4xf32, #tpu.memory_space<vmem>>, vector<3x4x4xf32>
    tpu.vector_store %arg8[%c0_55, %c0_56, %c0_57], %39 {strides = array<i32>} : memref<3x4x4xf32, #tpu.memory_space<vmem>>, vector<3x4x4xf32>,
    %64 = vector.shape_cast %7 : vector<3x4x8xf32> to vector<12x8xf32>
    %cst_58 = arith.constant dense<0.000000e+00> : vector<12x4xf32>
    %65 = tpu.matmul %64, %3, %cst_58 {dimension_numbers = #tpu.dot_dimension_numbers<[1], [0], [0], [1], [0, 0, 1, 1], [], []>} : vector<12x8xf32>, vector<8x4xf32>, vector<12x4xf32> -> vector<12x4xf32>
    %66 = vector.shape_cast %65 : vector<12x4xf32> to vector<3x4x4xf32>
    %67 = vector.shape_cast %8 : vector<3x4x8xf32> to vector<12x8xf32>
    %cst_59 = arith.constant dense<0.000000e+00> : vector<12x4xf32>
    %68 = tpu.matmul %67, %3, %cst_59 {dimension_numbers = #tpu.dot_dimension_numbers<[1], [0], [0], [1], [0, 0, 1, 1], [], []>} : vector<12x8xf32>, vector<8x4xf32>, vector<12x4xf32> -> vector<12x4xf32>
    %69 = vector.shape_cast %68 : vector<12x4xf32> to vector<3x4x4xf32>
    %c0_60 = arith.constant 0 : index
    %c1_61 = arith.constant 1 : index
    %c0_62 = arith.constant 0 : index
    %70 = vector.load %arg11[%c0_60, %c1_61, %c0_62] : memref<3x6x4xf32, #tpu.memory_space<vmem>>, vector<3x4x4xf32>
    tpu.vector_store %arg11[%c0_60, %c1_61, %c0_62], %66 {strides = array<i32>} : memref<3x6x4xf32, #tpu.memory_space<vmem>>, vector<3x4x4xf32>,
    %71 = vector.extract_strided_slice %66 {offsets = [0, 1, 0], sizes = [3, 1, 4], strides = [1, 1, 1]} : vector<3x4x4xf32> to vector<3x1x4xf32>
    %c0_63 = arith.constant 0 : index
    %c0_64 = arith.constant 0 : index
    %c0_65 = arith.constant 0 : index
    %72 = vector.load %arg11[%c0_63, %c0_64, %c0_65] : memref<3x6x4xf32, #tpu.memory_space<vmem>>, vector<3x1x4xf32>
    tpu.vector_store %arg11[%c0_63, %c0_64, %c0_65], %71 {strides = array<i32>} : memref<3x6x4xf32, #tpu.memory_space<vmem>>, vector<3x1x4xf32>,
    %73 = vector.extract_strided_slice %66 {offsets = [0, 3, 0], sizes = [3, 1, 4], strides = [1, 1, 1]} : vector<3x4x4xf32> to vector<3x1x4xf32>
    %c0_66 = arith.constant 0 : index
    %c5_67 = arith.constant 5 : index
    %c0_68 = arith.constant 0 : index
    %74 = vector.load %arg11[%c0_66, %c5_67, %c0_68] : memref<3x6x4xf32, #tpu.memory_space<vmem>>, vector<3x1x4xf32>
    tpu.vector_store %arg11[%c0_66, %c5_67, %c0_68], %73 {strides = array<i32>} : memref<3x6x4xf32, #tpu.memory_space<vmem>>, vector<3x1x4xf32>,
    %c0_69 = arith.constant 0 : index
    %c1_70 = arith.constant 1 : index
    %c0_71 = arith.constant 0 : index
    %75 = vector.load %arg12[%c0_69, %c1_70, %c0_71] : memref<3x5x4xf32, #tpu.memory_space<vmem>>, vector<3x4x4xf32>
    tpu.vector_store %arg12[%c0_69, %c1_70, %c0_71], %69 {strides = array<i32>} : memref<3x5x4xf32, #tpu.memory_space<vmem>>, vector<3x4x4xf32>,
    %76 = vector.extract_strided_slice %69 {offsets = [0, 0, 0], sizes = [3, 1, 4], strides = [1, 1, 1]} : vector<3x4x4xf32> to vector<3x1x4xf32>
    %c0_72 = arith.constant 0 : index
    %c0_73 = arith.constant 0 : index
    %c0_74 = arith.constant 0 : index
    %77 = vector.load %arg12[%c0_72, %c0_73, %c0_74] : memref<3x5x4xf32, #tpu.memory_space<vmem>>, vector<3x1x4xf32>
    tpu.vector_store %arg12[%c0_72, %c0_73, %c0_74], %76 {strides = array<i32>} : memref<3x5x4xf32, #tpu.memory_space<vmem>>, vector<3x1x4xf32>,
    %c0_75 = arith.constant 0 : index
    %c0_76 = arith.constant 0 : index
    %c0_77 = arith.constant 0 : index
    %78 = vector.load %arg11[%c0_75, %c0_76, %c0_77] : memref<3x6x4xf32, #tpu.memory_space<vmem>>, vector<3x6x4xf32>
    %c0_78 = arith.constant 0 : index
    %c0_79 = arith.constant 0 : index
    %c0_80 = arith.constant 0 : index
    %79 = vector.load %arg12[%c0_78, %c0_79, %c0_80] : memref<3x5x4xf32, #tpu.memory_space<vmem>>, vector<3x5x4xf32>
    %80 = vector.extract_strided_slice %78 {offsets = [0, 0, 0], sizes = [3, 4, 4], strides = [1, 1, 1]} : vector<3x6x4xf32> to vector<3x4x4xf32>
    %81 = vector.extract_strided_slice %78 {offsets = [0, 1, 0], sizes = [3, 4, 4], strides = [1, 1, 1]} : vector<3x6x4xf32> to vector<3x4x4xf32>
    %cst_81 = arith.constant 6.000000e+00 : f32
    %82 = vector.broadcast %cst_81 : f32 to vector<3x4x4xf32>
    %83 = arith.mulf %82, %81 : vector<3x4x4xf32>
    %84 = arith.addf %80, %83 : vector<3x4x4xf32>
    %85 = vector.extract_strided_slice %78 {offsets = [0, 2, 0], sizes = [3, 4, 4], strides = [1, 1, 1]} : vector<3x6x4xf32> to vector<3x4x4xf32>
    %86 = arith.addf %84, %85 : vector<3x4x4xf32>
    %87 = vector.extract_strided_slice %79 {offsets = [0, 0, 0], sizes = [3, 4, 4], strides = [1, 1, 1]} : vector<3x5x4xf32> to vector<3x4x4xf32>
    %88 = vector.extract_strided_slice %79 {offsets = [0, 1, 0], sizes = [3, 4, 4], strides = [1, 1, 1]} : vector<3x5x4xf32> to vector<3x4x4xf32>
    %89 = arith.addf %87, %88 : vector<3x4x4xf32>
    %cst_82 = arith.constant 4.000000e+00 : f32
    %90 = vector.broadcast %cst_82 : f32 to vector<3x4x4xf32>
    %91 = arith.mulf %90, %89 : vector<3x4x4xf32>
    %92 = arith.addf %86, %91 : vector<3x4x4xf32>
    %cst_83 = arith.constant 6.250000e-02 : f32
    %93 = vector.broadcast %cst_83 : f32 to vector<3x4x4xf32>
    %94 = arith.mulf %92, %93 : vector<3x4x4xf32>
    %95 = vector.shape_cast %94 : vector<3x4x4xf32> to vector<12x4xf32>
    %cst_84 = arith.constant dense<0.000000e+00> : vector<12x8xf32>
    %96 = tpu.matmul %95, %4, %cst_84 {dimension_numbers = #tpu.dot_dimension_numbers<[1], [0], [0], [1], [0, 0, 1, 1], [], []>} : vector<12x4xf32>, vector<4x8xf32>, vector<12x8xf32> -> vector<12x8xf32>
    %97 = vector.shape_cast %96 : vector<12x8xf32> to vector<3x4x8xf32>
    %c0_85 = arith.constant 0 : index
    %c1_86 = arith.constant 1 : index
    %c0_87 = arith.constant 0 : index
    %98 = vector.load %arg13[%c0_85, %c1_86, %c0_87] : memref<3x6x8xf32, #tpu.memory_space<vmem>>, vector<3x4x8xf32>
    tpu.vector_store %arg13[%c0_85, %c1_86, %c0_87], %97 {strides = array<i32>} : memref<3x6x8xf32, #tpu.memory_space<vmem>>, vector<3x4x8xf32>,
    %99 = vector.extract_strided_slice %97 {offsets = [0, 1, 0], sizes = [3, 1, 8], strides = [1, 1, 1]} : vector<3x4x8xf32> to vector<3x1x8xf32>
    %c0_88 = arith.constant 0 : index
    %c0_89 = arith.constant 0 : index
    %c0_90 = arith.constant 0 : index
    %100 = vector.load %arg13[%c0_88, %c0_89, %c0_90] : memref<3x6x8xf32, #tpu.memory_space<vmem>>, vector<3x1x8xf32>
    tpu.vector_store %arg13[%c0_88, %c0_89, %c0_90], %99 {strides = array<i32>} : memref<3x6x8xf32, #tpu.memory_space<vmem>>, vector<3x1x8xf32>,
    %101 = vector.extract_strided_slice %97 {offsets = [0, 3, 0], sizes = [3, 1, 8], strides = [1, 1, 1]} : vector<3x4x8xf32> to vector<3x1x8xf32>
    %c0_91 = arith.constant 0 : index
    %c5_92 = arith.constant 5 : index
    %c0_93 = arith.constant 0 : index
    %102 = vector.load %arg13[%c0_91, %c5_92, %c0_93] : memref<3x6x8xf32, #tpu.memory_space<vmem>>, vector<3x1x8xf32>
    tpu.vector_store %arg13[%c0_91, %c5_92, %c0_93], %101 {strides = array<i32>} : memref<3x6x8xf32, #tpu.memory_space<vmem>>, vector<3x1x8xf32>,
    %c0_94 = arith.constant 0 : index
    %c0_95 = arith.constant 0 : index
    %c0_96 = arith.constant 0 : index
    %103 = vector.load %arg13[%c0_94, %c0_95, %c0_96] : memref<3x6x8xf32, #tpu.memory_space<vmem>>, vector<3x6x8xf32>
    %104 = vector.extract_strided_slice %103 {offsets = [0, 0, 0], sizes = [3, 4, 8], strides = [1, 1, 1]} : vector<3x6x8xf32> to vector<3x4x8xf32>
    %105 = vector.extract_strided_slice %103 {offsets = [0, 1, 0], sizes = [3, 4, 8], strides = [1, 1, 1]} : vector<3x6x8xf32> to vector<3x4x8xf32>
    %cst_97 = arith.constant 6.000000e+00 : f32
    %106 = vector.broadcast %cst_97 : f32 to vector<3x4x8xf32>
    %107 = arith.mulf %106, %105 : vector<3x4x8xf32>
    %108 = arith.addf %104, %107 : vector<3x4x8xf32>
    %109 = vector.extract_strided_slice %103 {offsets = [0, 2, 0], sizes = [3, 4, 8], strides = [1, 1, 1]} : vector<3x6x8xf32> to vector<3x4x8xf32>
    %110 = arith.addf %108, %109 : vector<3x4x8xf32>
    %cst_98 = arith.constant 1.250000e-01 : f32
    %111 = vector.broadcast %cst_98 : f32 to vector<3x4x8xf32>
    %112 = arith.mulf %110, %111 : vector<3x4x8xf32>
    %113 = vector.extract_strided_slice %103 {offsets = [0, 1, 0], sizes = [3, 4, 8], strides = [1, 1, 1]} : vector<3x6x8xf32> to vector<3x4x8xf32>
    %114 = vector.extract_strided_slice %103 {offsets = [0, 2, 0], sizes = [3, 4, 8], strides = [1, 1, 1]} : vector<3x6x8xf32> to vector<3x4x8xf32>
    %115 = arith.addf %113, %114 : vector<3x4x8xf32>
    %cst_99 = arith.constant 5.000000e-01 : f32
    %116 = vector.broadcast %cst_99 : f32 to vector<3x4x8xf32>
    %117 = arith.mulf %115, %116 : vector<3x4x8xf32>
    %c0_100 = arith.constant 0 : index
    %c0_101 = arith.constant 0 : index
    %c0_102 = arith.constant 0 : index
    %118 = vector.load %arg9[%c0_100, %c0_101, %c0_102] : memref<3x4x4xf32, #tpu.memory_space<vmem>>, vector<3x4x4xf32>
    tpu.vector_store %arg9[%c0_100, %c0_101, %c0_102], %94 {strides = array<i32>} : memref<3x4x4xf32, #tpu.memory_space<vmem>>, vector<3x4x4xf32>,
    %119 = arith.subf %5, %57 : vector<3x4x8xf32>
    %120 = arith.subf %7, %112 : vector<3x4x8xf32>
    %121 = arith.subf %119, %120 : vector<3x4x8xf32>
    %122 = arith.subf %6, %62 : vector<3x4x8xf32>
    %123 = arith.subf %8, %117 : vector<3x4x8xf32>
    %124 = arith.subf %122, %123 : vector<3x4x8xf32>
    %c0_103 = arith.constant 0 : index
    %c0_104 = arith.constant 0 : index
    %c0_105 = arith.constant 0 : index
    %125 = vector.load %arg10[%c0_103, %c0_104, %c0_105] : memref<1x4x8xf32, #tpu.memory_space<vmem>>, vector<1x4x8xf32>
    %126 = vector.shape_cast %125 : vector<1x4x8xf32> to vector<4x8xf32>
    %127 = math.absf %121 : vector<3x4x8xf32>
    %128 = math.absf %124 : vector<3x4x8xf32>
    %129 = arith.addf %127, %128 : vector<3x4x8xf32>
    %cst_106 = arith.constant dense<0.000000e+00> : vector<4x8xf32>
    %130 = vector.multi_reduction <add>, %129, %cst_106 [0] : vector<3x4x8xf32> to vector<4x8xf32>
    %131 = arith.addf %126, %130 : vector<4x8xf32>
    %c0_107 = arith.constant 0 : index
    %c0_108 = arith.constant 0 : index
    %c0_109 = arith.constant 0 : index
    %132 = vector.load %arg10[%c0_107, %c0_108, %c0_109] : memref<1x4x8xf32, #tpu.memory_space<vmem>>, vector<1x4x8xf32>
    %133 = vector.shape_cast %132 : vector<1x4x8xf32> to vector<4x8xf32>
    %134 = vector.shape_cast %131 : vector<4x8xf32> to vector<1x4x8xf32>
    tpu.vector_store %arg10[%c0_107, %c0_108, %c0_109], %134 {strides = array<i32>} : memref<1x4x8xf32, #tpu.memory_space<vmem>>, vector<1x4x8xf32>,
    return
  }
  func.func @transform_0(%arg0: i32, %arg1: i32) -> (i32, i32, i32) {
    %c1_i32 = arith.constant 1 : i32
    %0 = arith.muli %arg0, %c1_i32 : i32
    %1 = arith.addi %0, %arg1 : i32
    %c0_i32 = arith.constant 0 : i32
    %c0_i32_0 = arith.constant 0 : i32
    %c0_i32_1 = arith.constant 0 : i32
    return %1, %c0_i32, %c0_i32_0 : i32, i32, i32
  }
  func.func @transform_1(%arg0: i32, %arg1: i32) -> (i32, i32, i32) {
    %c1_i32 = arith.constant 1 : i32
    %0 = arith.muli %arg0, %c1_i32 : i32
    %1 = arith.addi %0, %arg1 : i32
    %c0_i32 = arith.constant 0 : i32
    %c0_i32_0 = arith.constant 0 : i32
    %c0_i32_1 = arith.constant 0 : i32
    return %1, %c0_i32, %c0_i32_0 : i32, i32, i32
  }
  func.func @transform_2(%arg0: i32, %arg1: i32) -> (i32, i32, i32) {
    %c1_i32 = arith.constant 1 : i32
    %0 = arith.muli %arg0, %c1_i32 : i32
    %1 = arith.addi %0, %arg1 : i32
    %c0_i32 = arith.constant 0 : i32
    %c0_i32_0 = arith.constant 0 : i32
    %c0_i32_1 = arith.constant 0 : i32
    return %1, %c0_i32, %c0_i32_0 : i32, i32, i32
  }
  func.func @transform_3(%arg0: i32, %arg1: i32) -> (i32, i32, i32) {
    %c1_i32 = arith.constant 1 : i32
    %0 = arith.muli %arg0, %c1_i32 : i32
    %1 = arith.addi %0, %arg1 : i32
    %c0_i32 = arith.constant 0 : i32
    %c0_i32_0 = arith.constant 0 : i32
    %c0_i32_1 = arith.constant 0 : i32
    return %1, %c0_i32, %c0_i32_0 : i32, i32, i32
  }
  func.func @transform_4(%arg0: i32, %arg1: i32) -> (i32, i32) {
    %c0_i32 = arith.constant 0 : i32
    %c0_i32_0 = arith.constant 0 : i32
    %c0_i32_1 = arith.constant 0 : i32
    return %c0_i32, %c0_i32_0 : i32, i32
  }
  func.func @transform_5(%arg0: i32, %arg1: i32) -> (i32, i32) {
    %c0_i32 = arith.constant 0 : i32
    %c0_i32_0 = arith.constant 0 : i32
    %c0_i32_1 = arith.constant 0 : i32
    return %c0_i32, %c0_i32_0 : i32, i32
  }
  func.func @transform_6(%arg0: i32, %arg1: i32) -> (i32, i32, i32) {
    %c1_i32 = arith.constant 1 : i32
    %0 = arith.muli %arg0, %c1_i32 : i32
    %1 = arith.addi %0, %arg1 : i32
    %c0_i32 = arith.constant 0 : i32
    %c0_i32_0 = arith.constant 0 : i32
    %c0_i32_1 = arith.constant 0 : i32
    return %1, %c0_i32, %c0_i32_0 : i32, i32, i32
  }
  func.func @transform_7(%arg0: i32, %arg1: i32) -> (i32, i32, i32) {
    %c1_i32 = arith.constant 1 : i32
    %0 = arith.muli %arg0, %c1_i32 : i32
    %1 = arith.addi %0, %arg1 : i32
    %c0_i32 = arith.constant 0 : i32
    %c0_i32_0 = arith.constant 0 : i32
    %c0_i32_1 = arith.constant 0 : i32
    return %1, %c0_i32, %c0_i32_0 : i32, i32, i32
  }
  func.func @transform_8(%arg0: i32, %arg1: i32) -> (i32, i32, i32) {
    %c0_i32 = arith.constant 0 : i32
    %c0_i32_0 = arith.constant 0 : i32
    %c0_i32_1 = arith.constant 0 : i32
    return %arg0, %c0_i32, %c0_i32_0 : i32, i32, i32
  }
}

module attributes {stable_mosaic.version = 11 : i64} {
  func.func @kernel(%arg0: i32, %arg1: i32, %arg2: memref<3x2x4xf32, #tpu.memory_space<vmem>>, %arg3: memref<3x2x4xf32, #tpu.memory_space<vmem>>, %arg4: memref<3x2x4xf32, #tpu.memory_space<vmem>>, %arg5: memref<3x2x4xf32, #tpu.memory_space<vmem>>, %arg6: memref<4x2xf32, #tpu.memory_space<vmem>>, %arg7: memref<2x4xf32, #tpu.memory_space<vmem>>, %arg8: memref<3x2x2xf32, #tpu.memory_space<vmem>>, %arg9: memref<3x2x2xf32, #tpu.memory_space<vmem>>, %arg10: memref<1x2x4xf32, #tpu.memory_space<vmem>>, %arg11: memref<3x4x2xf32, #tpu.memory_space<vmem>>, %arg12: memref<3x3x2xf32, #tpu.memory_space<vmem>>, %arg13: memref<3x4x4xf32, #tpu.memory_space<vmem>>) attributes {dimension_semantics = [#tpu.dimension_semantics<parallel>, #tpu.dimension_semantics<arbitrary>], iteration_bounds = array<i64: 2, 1>, scalar_prefetch = 0 : i64, scratch_operands = 3 : i64, tpu.core_type = #tpu.core_type<tc>, window_params = [{transform_indices = @transform_0, window_bounds = array<i64: 3, 2, 4>}, {transform_indices = @transform_1, window_bounds = array<i64: 3, 2, 4>}, {transform_indices = @transform_2, window_bounds = array<i64: 3, 2, 4>}, {transform_indices = @transform_3, window_bounds = array<i64: 3, 2, 4>}, {pipeline_mode = #tpu.pipeline_mode<synchronous>, transform_indices = @transform_4, window_bounds = array<i64: 4, 2>}, {pipeline_mode = #tpu.pipeline_mode<synchronous>, transform_indices = @transform_5, window_bounds = array<i64: 2, 4>}, {transform_indices = @transform_6, window_bounds = array<i64: 3, 2, 2>}, {transform_indices = @transform_7, window_bounds = array<i64: 3, 2, 2>}, {transform_indices = @transform_8, window_bounds = array<i64: 1, 2, 4>}]} {
    %c0_i32 = arith.constant 0 : i32
    %0 = arith.cmpi eq, %arg1, %c0_i32 : i32
    %1 = arith.extui %0 : i1 to i32
    %c0_i32_0 = arith.constant 0 : i32
    %2 = arith.cmpi ne, %1, %c0_i32_0 : i32
    scf.if %2 {
      %cst_110 = arith.constant 0.000000e+00 : f32
      %135 = vector.broadcast %cst_110 : f32 to vector<1x2x4xf32>
      %c0_111 = arith.constant 0 : index
      %c0_112 = arith.constant 0 : index
      %c0_113 = arith.constant 0 : index
      %136 = vector.load %arg10[%c0_111, %c0_112, %c0_113] : memref<1x2x4xf32, #tpu.memory_space<vmem>>, vector<1x2x4xf32>
      tpu.vector_store %arg10[%c0_111, %c0_112, %c0_113], %135 {strides = array<i32>} : memref<1x2x4xf32, #tpu.memory_space<vmem>>, vector<1x2x4xf32>,
    } else {
    }
    %c0 = arith.constant 0 : index
    %c0_1 = arith.constant 0 : index
    %3 = vector.load %arg6[%c0, %c0_1] : memref<4x2xf32, #tpu.memory_space<vmem>>, vector<4x2xf32>
    %c0_2 = arith.constant 0 : index
    %c0_3 = arith.constant 0 : index
    %4 = vector.load %arg7[%c0_2, %c0_3] : memref<2x4xf32, #tpu.memory_space<vmem>>, vector<2x4xf32>
    %c0_4 = arith.constant 0 : index
    %c0_5 = arith.constant 0 : index
    %c0_6 = arith.constant 0 : index
    %5 = vector.load %arg2[%c0_4, %c0_5, %c0_6] : memref<3x2x4xf32, #tpu.memory_space<vmem>>, vector<3x2x4xf32>
    %c0_7 = arith.constant 0 : index
    %c0_8 = arith.constant 0 : index
    %c0_9 = arith.constant 0 : index
    %6 = vector.load %arg3[%c0_7, %c0_8, %c0_9] : memref<3x2x4xf32, #tpu.memory_space<vmem>>, vector<3x2x4xf32>
    %c0_10 = arith.constant 0 : index
    %c0_11 = arith.constant 0 : index
    %c0_12 = arith.constant 0 : index
    %7 = vector.load %arg4[%c0_10, %c0_11, %c0_12] : memref<3x2x4xf32, #tpu.memory_space<vmem>>, vector<3x2x4xf32>
    %c0_13 = arith.constant 0 : index
    %c0_14 = arith.constant 0 : index
    %c0_15 = arith.constant 0 : index
    %8 = vector.load %arg5[%c0_13, %c0_14, %c0_15] : memref<3x2x4xf32, #tpu.memory_space<vmem>>, vector<3x2x4xf32>
    %9 = vector.shape_cast %5 : vector<3x2x4xf32> to vector<6x4xf32>
    %cst = arith.constant dense<0.000000e+00> : vector<6x2xf32>
    %10 = tpu.matmul %9, %3, %cst {dimension_numbers = #tpu.dot_dimension_numbers<[1], [0], [0], [1], [0, 0, 1, 1], [], []>} : vector<6x4xf32>, vector<4x2xf32>, vector<6x2xf32> -> vector<6x2xf32>
    %11 = vector.shape_cast %10 : vector<6x2xf32> to vector<3x2x2xf32>
    %12 = vector.shape_cast %6 : vector<3x2x4xf32> to vector<6x4xf32>
    %cst_16 = arith.constant dense<0.000000e+00> : vector<6x2xf32>
    %13 = tpu.matmul %12, %3, %cst_16 {dimension_numbers = #tpu.dot_dimension_numbers<[1], [0], [0], [1], [0, 0, 1, 1], [], []>} : vector<6x4xf32>, vector<4x2xf32>, vector<6x2xf32> -> vector<6x2xf32>
    %14 = vector.shape_cast %13 : vector<6x2xf32> to vector<3x2x2xf32>
    %c0_17 = arith.constant 0 : index
    %c1 = arith.constant 1 : index
    %c0_18 = arith.constant 0 : index
    %15 = vector.load %arg11[%c0_17, %c1, %c0_18] : memref<3x4x2xf32, #tpu.memory_space<vmem>>, vector<3x2x2xf32>
    tpu.vector_store %arg11[%c0_17, %c1, %c0_18], %11 {strides = array<i32>} : memref<3x4x2xf32, #tpu.memory_space<vmem>>, vector<3x2x2xf32>,
    %16 = vector.extract_strided_slice %11 {offsets = [0, 1, 0], sizes = [3, 1, 2], strides = [1, 1, 1]} : vector<3x2x2xf32> to vector<3x1x2xf32>
    %c0_19 = arith.constant 0 : index
    %c0_20 = arith.constant 0 : index
    %c0_21 = arith.constant 0 : index
    %17 = vector.load %arg11[%c0_19, %c0_20, %c0_21] : memref<3x4x2xf32, #tpu.memory_space<vmem>>, vector<3x1x2xf32>
    tpu.vector_store %arg11[%c0_19, %c0_20, %c0_21], %16 {strides = array<i32>} : memref<3x4x2xf32, #tpu.memory_space<vmem>>, vector<3x1x2xf32>,
    %18 = vector.extract_strided_slice %11 {offsets = [0, 1, 0], sizes = [3, 1, 2], strides = [1, 1, 1]} : vector<3x2x2xf32> to vector<3x1x2xf32>
    %c0_22 = arith.constant 0 : index
    %c3 = arith.constant 3 : index
    %c0_23 = arith.constant 0 : index
    %19 = vector.load %arg11[%c0_22, %c3, %c0_23] : memref<3x4x2xf32, #tpu.memory_space<vmem>>, vector<3x1x2xf32>
    tpu.vector_store %arg11[%c0_22, %c3, %c0_23], %18 {strides = array<i32>} : memref<3x4x2xf32, #tpu.memory_space<vmem>>, vector<3x1x2xf32>,
    %c0_24 = arith.constant 0 : index
    %c1_25 = arith.constant 1 : index
    %c0_26 = arith.constant 0 : index
    %20 = vector.load %arg12[%c0_24, %c1_25, %c0_26] : memref<3x3x2xf32, #tpu.memory_space<vmem>>, vector<3x2x2xf32>
    tpu.vector_store %arg12[%c0_24, %c1_25, %c0_26], %14 {strides = array<i32>} : memref<3x3x2xf32, #tpu.memory_space<vmem>>, vector<3x2x2xf32>,
    %21 = vector.extract_strided_slice %14 {offsets = [0, 0, 0], sizes = [3, 1, 2], strides = [1, 1, 1]} : vector<3x2x2xf32> to vector<3x1x2xf32>
    %c0_27 = arith.constant 0 : index
    %c0_28 = arith.constant 0 : index
    %c0_29 = arith.constant 0 : index
    %22 = vector.load %arg12[%c0_27, %c0_28, %c0_29] : memref<3x3x2xf32, #tpu.memory_space<vmem>>, vector<3x1x2xf32>
    tpu.vector_store %arg12[%c0_27, %c0_28, %c0_29], %21 {strides = array<i32>} : memref<3x3x2xf32, #tpu.memory_space<vmem>>, vector<3x1x2xf32>,
    %c0_30 = arith.constant 0 : index
    %c0_31 = arith.constant 0 : index
    %c0_32 = arith.constant 0 : index
    %23 = vector.load %arg11[%c0_30, %c0_31, %c0_32] : memref<3x4x2xf32, #tpu.memory_space<vmem>>, vector<3x4x2xf32>
    %c0_33 = arith.constant 0 : index
    %c0_34 = arith.constant 0 : index
    %c0_35 = arith.constant 0 : index
    %24 = vector.load %arg12[%c0_33, %c0_34, %c0_35] : memref<3x3x2xf32, #tpu.memory_space<vmem>>, vector<3x3x2xf32>
    %25 = vector.extract_strided_slice %23 {offsets = [0, 0, 0], sizes = [3, 2, 2], strides = [1, 1, 1]} : vector<3x4x2xf32> to vector<3x2x2xf32>
    %26 = vector.extract_strided_slice %23 {offsets = [0, 1, 0], sizes = [3, 2, 2], strides = [1, 1, 1]} : vector<3x4x2xf32> to vector<3x2x2xf32>
    %cst_36 = arith.constant 6.000000e+00 : f32
    %27 = vector.broadcast %cst_36 : f32 to vector<3x2x2xf32>
    %28 = arith.mulf %27, %26 : vector<3x2x2xf32>
    %29 = arith.addf %25, %28 : vector<3x2x2xf32>
    %30 = vector.extract_strided_slice %23 {offsets = [0, 2, 0], sizes = [3, 2, 2], strides = [1, 1, 1]} : vector<3x4x2xf32> to vector<3x2x2xf32>
    %31 = arith.addf %29, %30 : vector<3x2x2xf32>
    %32 = vector.extract_strided_slice %24 {offsets = [0, 0, 0], sizes = [3, 2, 2], strides = [1, 1, 1]} : vector<3x3x2xf32> to vector<3x2x2xf32>
    %33 = vector.extract_strided_slice %24 {offsets = [0, 1, 0], sizes = [3, 2, 2], strides = [1, 1, 1]} : vector<3x3x2xf32> to vector<3x2x2xf32>
    %34 = arith.addf %32, %33 : vector<3x2x2xf32>
    %cst_37 = arith.constant 4.000000e+00 : f32
    %35 = vector.broadcast %cst_37 : f32 to vector<3x2x2xf32>
    %36 = arith.mulf %35, %34 : vector<3x2x2xf32>
    %37 = arith.addf %31, %36 : vector<3x2x2xf32>
    %cst_38 = arith.constant 6.250000e-02 : f32
    %38 = vector.broadcast %cst_38 : f32 to vector<3x2x2xf32>
    %39 = arith.mulf %37, %38 : vector<3x2x2xf32>
    %40 = vector.shape_cast %39 : vector<3x2x2xf32> to vector<6x2xf32>
    %cst_39 = arith.constant dense<0.000000e+00> : vector<6x4xf32>
    %41 = tpu.matmul %40, %4, %cst_39 {dimension_numbers = #tpu.dot_dimension_numbers<[1], [0], [0], [1], [0, 0, 1, 1], [], []>} : vector<6x2xf32>, vector<2x4xf32>, vector<6x4xf32> -> vector<6x4xf32>
    %42 = vector.shape_cast %41 : vector<6x4xf32> to vector<3x2x4xf32>
    %c0_40 = arith.constant 0 : index
    %c1_41 = arith.constant 1 : index
    %c0_42 = arith.constant 0 : index
    %43 = vector.load %arg13[%c0_40, %c1_41, %c0_42] : memref<3x4x4xf32, #tpu.memory_space<vmem>>, vector<3x2x4xf32>
    tpu.vector_store %arg13[%c0_40, %c1_41, %c0_42], %42 {strides = array<i32>} : memref<3x4x4xf32, #tpu.memory_space<vmem>>, vector<3x2x4xf32>,
    %44 = vector.extract_strided_slice %42 {offsets = [0, 1, 0], sizes = [3, 1, 4], strides = [1, 1, 1]} : vector<3x2x4xf32> to vector<3x1x4xf32>
    %c0_43 = arith.constant 0 : index
    %c0_44 = arith.constant 0 : index
    %c0_45 = arith.constant 0 : index
    %45 = vector.load %arg13[%c0_43, %c0_44, %c0_45] : memref<3x4x4xf32, #tpu.memory_space<vmem>>, vector<3x1x4xf32>
    tpu.vector_store %arg13[%c0_43, %c0_44, %c0_45], %44 {strides = array<i32>} : memref<3x4x4xf32, #tpu.memory_space<vmem>>, vector<3x1x4xf32>,
    %46 = vector.extract_strided_slice %42 {offsets = [0, 1, 0], sizes = [3, 1, 4], strides = [1, 1, 1]} : vector<3x2x4xf32> to vector<3x1x4xf32>
    %c0_46 = arith.constant 0 : index
    %c3_47 = arith.constant 3 : index
    %c0_48 = arith.constant 0 : index
    %47 = vector.load %arg13[%c0_46, %c3_47, %c0_48] : memref<3x4x4xf32, #tpu.memory_space<vmem>>, vector<3x1x4xf32>
    tpu.vector_store %arg13[%c0_46, %c3_47, %c0_48], %46 {strides = array<i32>} : memref<3x4x4xf32, #tpu.memory_space<vmem>>, vector<3x1x4xf32>,
    %c0_49 = arith.constant 0 : index
    %c0_50 = arith.constant 0 : index
    %c0_51 = arith.constant 0 : index
    %48 = vector.load %arg13[%c0_49, %c0_50, %c0_51] : memref<3x4x4xf32, #tpu.memory_space<vmem>>, vector<3x4x4xf32>
    %49 = vector.extract_strided_slice %48 {offsets = [0, 0, 0], sizes = [3, 2, 4], strides = [1, 1, 1]} : vector<3x4x4xf32> to vector<3x2x4xf32>
    %50 = vector.extract_strided_slice %48 {offsets = [0, 1, 0], sizes = [3, 2, 4], strides = [1, 1, 1]} : vector<3x4x4xf32> to vector<3x2x4xf32>
    %cst_52 = arith.constant 6.000000e+00 : f32
    %51 = vector.broadcast %cst_52 : f32 to vector<3x2x4xf32>
    %52 = arith.mulf %51, %50 : vector<3x2x4xf32>
    %53 = arith.addf %49, %52 : vector<3x2x4xf32>
    %54 = vector.extract_strided_slice %48 {offsets = [0, 2, 0], sizes = [3, 2, 4], strides = [1, 1, 1]} : vector<3x4x4xf32> to vector<3x2x4xf32>
    %55 = arith.addf %53, %54 : vector<3x2x4xf32>
    %cst_53 = arith.constant 1.250000e-01 : f32
    %56 = vector.broadcast %cst_53 : f32 to vector<3x2x4xf32>
    %57 = arith.mulf %55, %56 : vector<3x2x4xf32>
    %58 = vector.extract_strided_slice %48 {offsets = [0, 1, 0], sizes = [3, 2, 4], strides = [1, 1, 1]} : vector<3x4x4xf32> to vector<3x2x4xf32>
    %59 = vector.extract_strided_slice %48 {offsets = [0, 2, 0], sizes = [3, 2, 4], strides = [1, 1, 1]} : vector<3x4x4xf32> to vector<3x2x4xf32>
    %60 = arith.addf %58, %59 : vector<3x2x4xf32>
    %cst_54 = arith.constant 5.000000e-01 : f32
    %61 = vector.broadcast %cst_54 : f32 to vector<3x2x4xf32>
    %62 = arith.mulf %60, %61 : vector<3x2x4xf32>
    %c0_55 = arith.constant 0 : index
    %c0_56 = arith.constant 0 : index
    %c0_57 = arith.constant 0 : index
    %63 = vector.load %arg8[%c0_55, %c0_56, %c0_57] : memref<3x2x2xf32, #tpu.memory_space<vmem>>, vector<3x2x2xf32>
    tpu.vector_store %arg8[%c0_55, %c0_56, %c0_57], %39 {strides = array<i32>} : memref<3x2x2xf32, #tpu.memory_space<vmem>>, vector<3x2x2xf32>,
    %64 = vector.shape_cast %7 : vector<3x2x4xf32> to vector<6x4xf32>
    %cst_58 = arith.constant dense<0.000000e+00> : vector<6x2xf32>
    %65 = tpu.matmul %64, %3, %cst_58 {dimension_numbers = #tpu.dot_dimension_numbers<[1], [0], [0], [1], [0, 0, 1, 1], [], []>} : vector<6x4xf32>, vector<4x2xf32>, vector<6x2xf32> -> vector<6x2xf32>
    %66 = vector.shape_cast %65 : vector<6x2xf32> to vector<3x2x2xf32>
    %67 = vector.shape_cast %8 : vector<3x2x4xf32> to vector<6x4xf32>
    %cst_59 = arith.constant dense<0.000000e+00> : vector<6x2xf32>
    %68 = tpu.matmul %67, %3, %cst_59 {dimension_numbers = #tpu.dot_dimension_numbers<[1], [0], [0], [1], [0, 0, 1, 1], [], []>} : vector<6x4xf32>, vector<4x2xf32>, vector<6x2xf32> -> vector<6x2xf32>
    %69 = vector.shape_cast %68 : vector<6x2xf32> to vector<3x2x2xf32>
    %c0_60 = arith.constant 0 : index
    %c1_61 = arith.constant 1 : index
    %c0_62 = arith.constant 0 : index
    %70 = vector.load %arg11[%c0_60, %c1_61, %c0_62] : memref<3x4x2xf32, #tpu.memory_space<vmem>>, vector<3x2x2xf32>
    tpu.vector_store %arg11[%c0_60, %c1_61, %c0_62], %66 {strides = array<i32>} : memref<3x4x2xf32, #tpu.memory_space<vmem>>, vector<3x2x2xf32>,
    %71 = vector.extract_strided_slice %66 {offsets = [0, 1, 0], sizes = [3, 1, 2], strides = [1, 1, 1]} : vector<3x2x2xf32> to vector<3x1x2xf32>
    %c0_63 = arith.constant 0 : index
    %c0_64 = arith.constant 0 : index
    %c0_65 = arith.constant 0 : index
    %72 = vector.load %arg11[%c0_63, %c0_64, %c0_65] : memref<3x4x2xf32, #tpu.memory_space<vmem>>, vector<3x1x2xf32>
    tpu.vector_store %arg11[%c0_63, %c0_64, %c0_65], %71 {strides = array<i32>} : memref<3x4x2xf32, #tpu.memory_space<vmem>>, vector<3x1x2xf32>,
    %73 = vector.extract_strided_slice %66 {offsets = [0, 1, 0], sizes = [3, 1, 2], strides = [1, 1, 1]} : vector<3x2x2xf32> to vector<3x1x2xf32>
    %c0_66 = arith.constant 0 : index
    %c3_67 = arith.constant 3 : index
    %c0_68 = arith.constant 0 : index
    %74 = vector.load %arg11[%c0_66, %c3_67, %c0_68] : memref<3x4x2xf32, #tpu.memory_space<vmem>>, vector<3x1x2xf32>
    tpu.vector_store %arg11[%c0_66, %c3_67, %c0_68], %73 {strides = array<i32>} : memref<3x4x2xf32, #tpu.memory_space<vmem>>, vector<3x1x2xf32>,
    %c0_69 = arith.constant 0 : index
    %c1_70 = arith.constant 1 : index
    %c0_71 = arith.constant 0 : index
    %75 = vector.load %arg12[%c0_69, %c1_70, %c0_71] : memref<3x3x2xf32, #tpu.memory_space<vmem>>, vector<3x2x2xf32>
    tpu.vector_store %arg12[%c0_69, %c1_70, %c0_71], %69 {strides = array<i32>} : memref<3x3x2xf32, #tpu.memory_space<vmem>>, vector<3x2x2xf32>,
    %76 = vector.extract_strided_slice %69 {offsets = [0, 0, 0], sizes = [3, 1, 2], strides = [1, 1, 1]} : vector<3x2x2xf32> to vector<3x1x2xf32>
    %c0_72 = arith.constant 0 : index
    %c0_73 = arith.constant 0 : index
    %c0_74 = arith.constant 0 : index
    %77 = vector.load %arg12[%c0_72, %c0_73, %c0_74] : memref<3x3x2xf32, #tpu.memory_space<vmem>>, vector<3x1x2xf32>
    tpu.vector_store %arg12[%c0_72, %c0_73, %c0_74], %76 {strides = array<i32>} : memref<3x3x2xf32, #tpu.memory_space<vmem>>, vector<3x1x2xf32>,
    %c0_75 = arith.constant 0 : index
    %c0_76 = arith.constant 0 : index
    %c0_77 = arith.constant 0 : index
    %78 = vector.load %arg11[%c0_75, %c0_76, %c0_77] : memref<3x4x2xf32, #tpu.memory_space<vmem>>, vector<3x4x2xf32>
    %c0_78 = arith.constant 0 : index
    %c0_79 = arith.constant 0 : index
    %c0_80 = arith.constant 0 : index
    %79 = vector.load %arg12[%c0_78, %c0_79, %c0_80] : memref<3x3x2xf32, #tpu.memory_space<vmem>>, vector<3x3x2xf32>
    %80 = vector.extract_strided_slice %78 {offsets = [0, 0, 0], sizes = [3, 2, 2], strides = [1, 1, 1]} : vector<3x4x2xf32> to vector<3x2x2xf32>
    %81 = vector.extract_strided_slice %78 {offsets = [0, 1, 0], sizes = [3, 2, 2], strides = [1, 1, 1]} : vector<3x4x2xf32> to vector<3x2x2xf32>
    %cst_81 = arith.constant 6.000000e+00 : f32
    %82 = vector.broadcast %cst_81 : f32 to vector<3x2x2xf32>
    %83 = arith.mulf %82, %81 : vector<3x2x2xf32>
    %84 = arith.addf %80, %83 : vector<3x2x2xf32>
    %85 = vector.extract_strided_slice %78 {offsets = [0, 2, 0], sizes = [3, 2, 2], strides = [1, 1, 1]} : vector<3x4x2xf32> to vector<3x2x2xf32>
    %86 = arith.addf %84, %85 : vector<3x2x2xf32>
    %87 = vector.extract_strided_slice %79 {offsets = [0, 0, 0], sizes = [3, 2, 2], strides = [1, 1, 1]} : vector<3x3x2xf32> to vector<3x2x2xf32>
    %88 = vector.extract_strided_slice %79 {offsets = [0, 1, 0], sizes = [3, 2, 2], strides = [1, 1, 1]} : vector<3x3x2xf32> to vector<3x2x2xf32>
    %89 = arith.addf %87, %88 : vector<3x2x2xf32>
    %cst_82 = arith.constant 4.000000e+00 : f32
    %90 = vector.broadcast %cst_82 : f32 to vector<3x2x2xf32>
    %91 = arith.mulf %90, %89 : vector<3x2x2xf32>
    %92 = arith.addf %86, %91 : vector<3x2x2xf32>
    %cst_83 = arith.constant 6.250000e-02 : f32
    %93 = vector.broadcast %cst_83 : f32 to vector<3x2x2xf32>
    %94 = arith.mulf %92, %93 : vector<3x2x2xf32>
    %95 = vector.shape_cast %94 : vector<3x2x2xf32> to vector<6x2xf32>
    %cst_84 = arith.constant dense<0.000000e+00> : vector<6x4xf32>
    %96 = tpu.matmul %95, %4, %cst_84 {dimension_numbers = #tpu.dot_dimension_numbers<[1], [0], [0], [1], [0, 0, 1, 1], [], []>} : vector<6x2xf32>, vector<2x4xf32>, vector<6x4xf32> -> vector<6x4xf32>
    %97 = vector.shape_cast %96 : vector<6x4xf32> to vector<3x2x4xf32>
    %c0_85 = arith.constant 0 : index
    %c1_86 = arith.constant 1 : index
    %c0_87 = arith.constant 0 : index
    %98 = vector.load %arg13[%c0_85, %c1_86, %c0_87] : memref<3x4x4xf32, #tpu.memory_space<vmem>>, vector<3x2x4xf32>
    tpu.vector_store %arg13[%c0_85, %c1_86, %c0_87], %97 {strides = array<i32>} : memref<3x4x4xf32, #tpu.memory_space<vmem>>, vector<3x2x4xf32>,
    %99 = vector.extract_strided_slice %97 {offsets = [0, 1, 0], sizes = [3, 1, 4], strides = [1, 1, 1]} : vector<3x2x4xf32> to vector<3x1x4xf32>
    %c0_88 = arith.constant 0 : index
    %c0_89 = arith.constant 0 : index
    %c0_90 = arith.constant 0 : index
    %100 = vector.load %arg13[%c0_88, %c0_89, %c0_90] : memref<3x4x4xf32, #tpu.memory_space<vmem>>, vector<3x1x4xf32>
    tpu.vector_store %arg13[%c0_88, %c0_89, %c0_90], %99 {strides = array<i32>} : memref<3x4x4xf32, #tpu.memory_space<vmem>>, vector<3x1x4xf32>,
    %101 = vector.extract_strided_slice %97 {offsets = [0, 1, 0], sizes = [3, 1, 4], strides = [1, 1, 1]} : vector<3x2x4xf32> to vector<3x1x4xf32>
    %c0_91 = arith.constant 0 : index
    %c3_92 = arith.constant 3 : index
    %c0_93 = arith.constant 0 : index
    %102 = vector.load %arg13[%c0_91, %c3_92, %c0_93] : memref<3x4x4xf32, #tpu.memory_space<vmem>>, vector<3x1x4xf32>
    tpu.vector_store %arg13[%c0_91, %c3_92, %c0_93], %101 {strides = array<i32>} : memref<3x4x4xf32, #tpu.memory_space<vmem>>, vector<3x1x4xf32>,
    %c0_94 = arith.constant 0 : index
    %c0_95 = arith.constant 0 : index
    %c0_96 = arith.constant 0 : index
    %103 = vector.load %arg13[%c0_94, %c0_95, %c0_96] : memref<3x4x4xf32, #tpu.memory_space<vmem>>, vector<3x4x4xf32>
    %104 = vector.extract_strided_slice %103 {offsets = [0, 0, 0], sizes = [3, 2, 4], strides = [1, 1, 1]} : vector<3x4x4xf32> to vector<3x2x4xf32>
    %105 = vector.extract_strided_slice %103 {offsets = [0, 1, 0], sizes = [3, 2, 4], strides = [1, 1, 1]} : vector<3x4x4xf32> to vector<3x2x4xf32>
    %cst_97 = arith.constant 6.000000e+00 : f32
    %106 = vector.broadcast %cst_97 : f32 to vector<3x2x4xf32>
    %107 = arith.mulf %106, %105 : vector<3x2x4xf32>
    %108 = arith.addf %104, %107 : vector<3x2x4xf32>
    %109 = vector.extract_strided_slice %103 {offsets = [0, 2, 0], sizes = [3, 2, 4], strides = [1, 1, 1]} : vector<3x4x4xf32> to vector<3x2x4xf32>
    %110 = arith.addf %108, %109 : vector<3x2x4xf32>
    %cst_98 = arith.constant 1.250000e-01 : f32
    %111 = vector.broadcast %cst_98 : f32 to vector<3x2x4xf32>
    %112 = arith.mulf %110, %111 : vector<3x2x4xf32>
    %113 = vector.extract_strided_slice %103 {offsets = [0, 1, 0], sizes = [3, 2, 4], strides = [1, 1, 1]} : vector<3x4x4xf32> to vector<3x2x4xf32>
    %114 = vector.extract_strided_slice %103 {offsets = [0, 2, 0], sizes = [3, 2, 4], strides = [1, 1, 1]} : vector<3x4x4xf32> to vector<3x2x4xf32>
    %115 = arith.addf %113, %114 : vector<3x2x4xf32>
    %cst_99 = arith.constant 5.000000e-01 : f32
    %116 = vector.broadcast %cst_99 : f32 to vector<3x2x4xf32>
    %117 = arith.mulf %115, %116 : vector<3x2x4xf32>
    %c0_100 = arith.constant 0 : index
    %c0_101 = arith.constant 0 : index
    %c0_102 = arith.constant 0 : index
    %118 = vector.load %arg9[%c0_100, %c0_101, %c0_102] : memref<3x2x2xf32, #tpu.memory_space<vmem>>, vector<3x2x2xf32>
    tpu.vector_store %arg9[%c0_100, %c0_101, %c0_102], %94 {strides = array<i32>} : memref<3x2x2xf32, #tpu.memory_space<vmem>>, vector<3x2x2xf32>,
    %119 = arith.subf %5, %57 : vector<3x2x4xf32>
    %120 = arith.subf %7, %112 : vector<3x2x4xf32>
    %121 = arith.subf %119, %120 : vector<3x2x4xf32>
    %122 = arith.subf %6, %62 : vector<3x2x4xf32>
    %123 = arith.subf %8, %117 : vector<3x2x4xf32>
    %124 = arith.subf %122, %123 : vector<3x2x4xf32>
    %c0_103 = arith.constant 0 : index
    %c0_104 = arith.constant 0 : index
    %c0_105 = arith.constant 0 : index
    %125 = vector.load %arg10[%c0_103, %c0_104, %c0_105] : memref<1x2x4xf32, #tpu.memory_space<vmem>>, vector<1x2x4xf32>
    %126 = vector.shape_cast %125 : vector<1x2x4xf32> to vector<2x4xf32>
    %127 = math.absf %121 : vector<3x2x4xf32>
    %128 = math.absf %124 : vector<3x2x4xf32>
    %129 = arith.addf %127, %128 : vector<3x2x4xf32>
    %cst_106 = arith.constant dense<0.000000e+00> : vector<2x4xf32>
    %130 = vector.multi_reduction <add>, %129, %cst_106 [0] : vector<3x2x4xf32> to vector<2x4xf32>
    %131 = arith.addf %126, %130 : vector<2x4xf32>
    %c0_107 = arith.constant 0 : index
    %c0_108 = arith.constant 0 : index
    %c0_109 = arith.constant 0 : index
    %132 = vector.load %arg10[%c0_107, %c0_108, %c0_109] : memref<1x2x4xf32, #tpu.memory_space<vmem>>, vector<1x2x4xf32>
    %133 = vector.shape_cast %132 : vector<1x2x4xf32> to vector<2x4xf32>
    %134 = vector.shape_cast %131 : vector<2x4xf32> to vector<1x2x4xf32>
    tpu.vector_store %arg10[%c0_107, %c0_108, %c0_109], %134 {strides = array<i32>} : memref<1x2x4xf32, #tpu.memory_space<vmem>>, vector<1x2x4xf32>,
    return
  }
  func.func @transform_0(%arg0: i32, %arg1: i32) -> (i32, i32, i32) {
    %c1_i32 = arith.constant 1 : i32
    %0 = arith.muli %arg0, %c1_i32 : i32
    %1 = arith.addi %0, %arg1 : i32
    %c0_i32 = arith.constant 0 : i32
    %c0_i32_0 = arith.constant 0 : i32
    %c0_i32_1 = arith.constant 0 : i32
    return %1, %c0_i32, %c0_i32_0 : i32, i32, i32
  }
  func.func @transform_1(%arg0: i32, %arg1: i32) -> (i32, i32, i32) {
    %c1_i32 = arith.constant 1 : i32
    %0 = arith.muli %arg0, %c1_i32 : i32
    %1 = arith.addi %0, %arg1 : i32
    %c0_i32 = arith.constant 0 : i32
    %c0_i32_0 = arith.constant 0 : i32
    %c0_i32_1 = arith.constant 0 : i32
    return %1, %c0_i32, %c0_i32_0 : i32, i32, i32
  }
  func.func @transform_2(%arg0: i32, %arg1: i32) -> (i32, i32, i32) {
    %c1_i32 = arith.constant 1 : i32
    %0 = arith.muli %arg0, %c1_i32 : i32
    %1 = arith.addi %0, %arg1 : i32
    %c0_i32 = arith.constant 0 : i32
    %c0_i32_0 = arith.constant 0 : i32
    %c0_i32_1 = arith.constant 0 : i32
    return %1, %c0_i32, %c0_i32_0 : i32, i32, i32
  }
  func.func @transform_3(%arg0: i32, %arg1: i32) -> (i32, i32, i32) {
    %c1_i32 = arith.constant 1 : i32
    %0 = arith.muli %arg0, %c1_i32 : i32
    %1 = arith.addi %0, %arg1 : i32
    %c0_i32 = arith.constant 0 : i32
    %c0_i32_0 = arith.constant 0 : i32
    %c0_i32_1 = arith.constant 0 : i32
    return %1, %c0_i32, %c0_i32_0 : i32, i32, i32
  }
  func.func @transform_4(%arg0: i32, %arg1: i32) -> (i32, i32) {
    %c0_i32 = arith.constant 0 : i32
    %c0_i32_0 = arith.constant 0 : i32
    %c0_i32_1 = arith.constant 0 : i32
    return %c0_i32, %c0_i32_0 : i32, i32
  }
  func.func @transform_5(%arg0: i32, %arg1: i32) -> (i32, i32) {
    %c0_i32 = arith.constant 0 : i32
    %c0_i32_0 = arith.constant 0 : i32
    %c0_i32_1 = arith.constant 0 : i32
    return %c0_i32, %c0_i32_0 : i32, i32
  }
  func.func @transform_6(%arg0: i32, %arg1: i32) -> (i32, i32, i32) {
    %c1_i32 = arith.constant 1 : i32
    %0 = arith.muli %arg0, %c1_i32 : i32
    %1 = arith.addi %0, %arg1 : i32
    %c0_i32 = arith.constant 0 : i32
    %c0_i32_0 = arith.constant 0 : i32
    %c0_i32_1 = arith.constant 0 : i32
    return %1, %c0_i32, %c0_i32_0 : i32, i32, i32
  }
  func.func @transform_7(%arg0: i32, %arg1: i32) -> (i32, i32, i32) {
    %c1_i32 = arith.constant 1 : i32
    %0 = arith.muli %arg0, %c1_i32 : i32
    %1 = arith.addi %0, %arg1 : i32
    %c0_i32 = arith.constant 0 : i32
    %c0_i32_0 = arith.constant 0 : i32
    %c0_i32_1 = arith.constant 0 : i32
    return %1, %c0_i32, %c0_i32_0 : i32, i32, i32
  }
  func.func @transform_8(%arg0: i32, %arg1: i32) -> (i32, i32, i32) {
    %c0_i32 = arith.constant 0 : i32
    %c0_i32_0 = arith.constant 0 : i32
    %c0_i32_1 = arith.constant 0 : i32
    return %arg0, %c0_i32, %c0_i32_0 : i32, i32, i32
  }
}

module attributes {stable_mosaic.version = 11 : i64} {
  func.func @kernel(%arg0: i32, %arg1: i32, %arg2: memref<8x128xf32, #tpu.memory_space<vmem>>, %arg3: memref<8x128xf32, #tpu.memory_space<vmem>>, %arg4: memref<8x128xf32, #tpu.memory_space<vmem>>, %arg5: memref<8x128xf32, #tpu.memory_space<vmem>>, %arg6: memref<8x128xf32, #tpu.memory_space<vmem>>, %arg7: memref<8x128xf32, #tpu.memory_space<vmem>>, %arg8: memref<8x128xf32, #tpu.memory_space<vmem>>, %arg9: memref<8x128xf32, #tpu.memory_space<vmem>>, %arg10: memref<1x4x8x128xf32, #tpu.memory_space<vmem>>) attributes {dimension_semantics = [#tpu.dimension_semantics<parallel>, #tpu.dimension_semantics<arbitrary>], iteration_bounds = array<i64: 2, 1>, scalar_prefetch = 0 : i64, scratch_operands = 0 : i64, tpu.core_type = #tpu.core_type<tc>, window_params = [{transform_indices = @transform_0, window_bounds = array<i64: 8, 128>}, {transform_indices = @transform_1, window_bounds = array<i64: 8, 128>}, {transform_indices = @transform_2, window_bounds = array<i64: 8, 128>}, {transform_indices = @transform_3, window_bounds = array<i64: 8, 128>}, {transform_indices = @transform_4, window_bounds = array<i64: 8, 128>}, {transform_indices = @transform_5, window_bounds = array<i64: 8, 128>}, {transform_indices = @transform_6, window_bounds = array<i64: 8, 128>}, {transform_indices = @transform_7, window_bounds = array<i64: 8, 128>}, {transform_indices = @transform_8, window_bounds = array<i64: 1, 4, 8, 128>}]} {
    %c0_i32 = arith.constant 0 : i32
    %0 = arith.cmpi eq, %arg1, %c0_i32 : i32
    %1 = arith.extui %0 : i1 to i32
    %c0_i32_0 = arith.constant 0 : i32
    %2 = arith.cmpi ne, %1, %c0_i32_0 : i32
    scf.if %2 {
      %cst_35 = arith.constant 0.000000e+00 : f32
      %70 = vector.broadcast %cst_35 : f32 to vector<1x4x8x128xf32>
      %c0_36 = arith.constant 0 : index
      %c0_37 = arith.constant 0 : index
      %c0_38 = arith.constant 0 : index
      %c0_39 = arith.constant 0 : index
      %71 = vector.load %arg10[%c0_36, %c0_37, %c0_38, %c0_39] : memref<1x4x8x128xf32, #tpu.memory_space<vmem>>, vector<1x4x8x128xf32>
      tpu.vector_store %arg10[%c0_36, %c0_37, %c0_38, %c0_39], %70 {strides = array<i32>} : memref<1x4x8x128xf32, #tpu.memory_space<vmem>>, vector<1x4x8x128xf32>,
    } else {
    }
    %c1_i32 = arith.constant 1 : i32
    %3 = arith.muli %arg0, %c1_i32 : i32
    %4 = arith.addi %3, %arg1 : i32
    %c1024_i32 = arith.constant 1024 : i32
    %5 = arith.muli %4, %c1024_i32 : i32
    %6 = tpu.iota {dimensions = array<i32: 0>} : vector<8x128xi32>
    %c128_i32 = arith.constant 128 : i32
    %7 = vector.broadcast %c128_i32 : i32 to vector<8x128xi32>
    %8 = arith.muli %6, %7 : vector<8x128xi32>
    %9 = tpu.iota {dimensions = array<i32: 1>} : vector<8x128xi32>
    %10 = arith.addi %8, %9 : vector<8x128xi32>
    %11 = vector.broadcast %5 : i32 to vector<8x128xi32>
    %12 = arith.addi %10, %11 : vector<8x128xi32>
    %c1536_i32 = arith.constant 1536 : i32
    %13 = vector.broadcast %c1536_i32 : i32 to vector<8x128xi32>
    %14 = arith.cmpi slt, %12, %13 : vector<8x128xi32>
    %c0 = arith.constant 0 : index
    %c0_1 = arith.constant 0 : index
    %15 = vector.load %arg2[%c0, %c0_1] : memref<8x128xf32, #tpu.memory_space<vmem>>, vector<8x128xf32>
    %c0_2 = arith.constant 0 : index
    %c0_3 = arith.constant 0 : index
    %16 = vector.load %arg3[%c0_2, %c0_3] : memref<8x128xf32, #tpu.memory_space<vmem>>, vector<8x128xf32>
    %17 = arith.subf %15, %16 : vector<8x128xf32>
    %18 = arith.mulf %17, %17 : vector<8x128xf32>
    %cst = arith.constant 9.99999997E-7 : f32
    %19 = vector.broadcast %cst : f32 to vector<8x128xf32>
    %20 = arith.addf %18, %19 : vector<8x128xf32>
    %21 = math.sqrt %20 : vector<8x128xf32>
    %cst_4 = arith.constant 0.000000e+00 : f32
    %22 = vector.broadcast %cst_4 : f32 to vector<8x128xf32>
    %23 = arith.select %14, %21, %22 : vector<8x128xi1>, vector<8x128xf32>
    %24 = vector.shape_cast %23 : vector<8x128xf32> to vector<1x8x128xf32>
    %cst_5 = arith.constant dense<0.000000e+00> : vector<8x128xf32>
    %25 = vector.multi_reduction <add>, %24, %cst_5 [0] : vector<1x8x128xf32> to vector<8x128xf32>
    %c0_6 = arith.constant 0 : index
    %c0_7 = arith.constant 0 : index
    %26 = vector.load %arg4[%c0_6, %c0_7] : memref<8x128xf32, #tpu.memory_space<vmem>>, vector<8x128xf32>
    %c0_8 = arith.constant 0 : index
    %c0_9 = arith.constant 0 : index
    %27 = vector.load %arg5[%c0_8, %c0_9] : memref<8x128xf32, #tpu.memory_space<vmem>>, vector<8x128xf32>
    %28 = arith.subf %26, %27 : vector<8x128xf32>
    %29 = arith.mulf %28, %28 : vector<8x128xf32>
    %cst_10 = arith.constant 9.99999997E-7 : f32
    %30 = vector.broadcast %cst_10 : f32 to vector<8x128xf32>
    %31 = arith.addf %29, %30 : vector<8x128xf32>
    %32 = math.sqrt %31 : vector<8x128xf32>
    %cst_11 = arith.constant 0.000000e+00 : f32
    %33 = vector.broadcast %cst_11 : f32 to vector<8x128xf32>
    %34 = arith.select %14, %32, %33 : vector<8x128xi1>, vector<8x128xf32>
    %35 = vector.shape_cast %34 : vector<8x128xf32> to vector<1x8x128xf32>
    %cst_12 = arith.constant dense<0.000000e+00> : vector<8x128xf32>
    %36 = vector.multi_reduction <add>, %35, %cst_12 [0] : vector<1x8x128xf32> to vector<8x128xf32>
    %c0_13 = arith.constant 0 : index
    %c0_14 = arith.constant 0 : index
    %37 = vector.load %arg6[%c0_13, %c0_14] : memref<8x128xf32, #tpu.memory_space<vmem>>, vector<8x128xf32>
    %c0_15 = arith.constant 0 : index
    %c0_16 = arith.constant 0 : index
    %38 = vector.load %arg7[%c0_15, %c0_16] : memref<8x128xf32, #tpu.memory_space<vmem>>, vector<8x128xf32>
    %39 = arith.subf %37, %38 : vector<8x128xf32>
    %40 = arith.mulf %39, %39 : vector<8x128xf32>
    %cst_17 = arith.constant 9.99999997E-7 : f32
    %41 = vector.broadcast %cst_17 : f32 to vector<8x128xf32>
    %42 = arith.addf %40, %41 : vector<8x128xf32>
    %43 = math.sqrt %42 : vector<8x128xf32>
    %cst_18 = arith.constant 0.000000e+00 : f32
    %44 = vector.broadcast %cst_18 : f32 to vector<8x128xf32>
    %45 = arith.select %14, %43, %44 : vector<8x128xi1>, vector<8x128xf32>
    %46 = vector.shape_cast %45 : vector<8x128xf32> to vector<1x8x128xf32>
    %cst_19 = arith.constant dense<0.000000e+00> : vector<8x128xf32>
    %47 = vector.multi_reduction <add>, %46, %cst_19 [0] : vector<1x8x128xf32> to vector<8x128xf32>
    %c0_20 = arith.constant 0 : index
    %c0_21 = arith.constant 0 : index
    %48 = vector.load %arg8[%c0_20, %c0_21] : memref<8x128xf32, #tpu.memory_space<vmem>>, vector<8x128xf32>
    %c0_22 = arith.constant 0 : index
    %c0_23 = arith.constant 0 : index
    %49 = vector.load %arg9[%c0_22, %c0_23] : memref<8x128xf32, #tpu.memory_space<vmem>>, vector<8x128xf32>
    %50 = arith.subf %48, %49 : vector<8x128xf32>
    %51 = arith.mulf %50, %50 : vector<8x128xf32>
    %cst_24 = arith.constant 9.99999997E-7 : f32
    %52 = vector.broadcast %cst_24 : f32 to vector<8x128xf32>
    %53 = arith.addf %51, %52 : vector<8x128xf32>
    %54 = math.sqrt %53 : vector<8x128xf32>
    %cst_25 = arith.constant 0.000000e+00 : f32
    %55 = vector.broadcast %cst_25 : f32 to vector<8x128xf32>
    %56 = arith.select %14, %54, %55 : vector<8x128xi1>, vector<8x128xf32>
    %57 = vector.shape_cast %56 : vector<8x128xf32> to vector<1x8x128xf32>
    %cst_26 = arith.constant dense<0.000000e+00> : vector<8x128xf32>
    %58 = vector.multi_reduction <add>, %57, %cst_26 [0] : vector<1x8x128xf32> to vector<8x128xf32>
    %c0_27 = arith.constant 0 : index
    %c0_28 = arith.constant 0 : index
    %c0_29 = arith.constant 0 : index
    %c0_30 = arith.constant 0 : index
    %59 = vector.load %arg10[%c0_27, %c0_28, %c0_29, %c0_30] : memref<1x4x8x128xf32, #tpu.memory_space<vmem>>, vector<1x4x8x128xf32>
    %60 = vector.shape_cast %59 : vector<1x4x8x128xf32> to vector<4x8x128xf32>
    %61 = vector.shape_cast %25 : vector<8x128xf32> to vector<1x8x128xf32>
    %62 = vector.shape_cast %36 : vector<8x128xf32> to vector<1x8x128xf32>
    %63 = vector.shape_cast %47 : vector<8x128xf32> to vector<1x8x128xf32>
    %64 = vector.shape_cast %58 : vector<8x128xf32> to vector<1x8x128xf32>
    %65 = tpu.concatenate %61, %62, %63, %64 in 0 : vector<1x8x128xf32>, vector<1x8x128xf32>, vector<1x8x128xf32>, vector<1x8x128xf32> -> vector<4x8x128xf32>
    %66 = arith.addf %60, %65 : vector<4x8x128xf32>
    %c0_31 = arith.constant 0 : index
    %c0_32 = arith.constant 0 : index
    %c0_33 = arith.constant 0 : index
    %c0_34 = arith.constant 0 : index
    %67 = vector.load %arg10[%c0_31, %c0_32, %c0_33, %c0_34] : memref<1x4x8x128xf32, #tpu.memory_space<vmem>>, vector<1x4x8x128xf32>
    %68 = vector.shape_cast %67 : vector<1x4x8x128xf32> to vector<4x8x128xf32>
    %69 = vector.shape_cast %66 : vector<4x8x128xf32> to vector<1x4x8x128xf32>
    tpu.vector_store %arg10[%c0_31, %c0_32, %c0_33, %c0_34], %69 {strides = array<i32>} : memref<1x4x8x128xf32, #tpu.memory_space<vmem>>, vector<1x4x8x128xf32>,
    return
  }
  func.func @transform_0(%arg0: i32, %arg1: i32) -> (i32, i32) {
    %c1_i32 = arith.constant 1 : i32
    %0 = arith.muli %arg0, %c1_i32 : i32
    %1 = arith.addi %0, %arg1 : i32
    %c0_i32 = arith.constant 0 : i32
    %c0_i32_0 = arith.constant 0 : i32
    return %1, %c0_i32 : i32, i32
  }
  func.func @transform_1(%arg0: i32, %arg1: i32) -> (i32, i32) {
    %c1_i32 = arith.constant 1 : i32
    %0 = arith.muli %arg0, %c1_i32 : i32
    %1 = arith.addi %0, %arg1 : i32
    %c0_i32 = arith.constant 0 : i32
    %c0_i32_0 = arith.constant 0 : i32
    return %1, %c0_i32 : i32, i32
  }
  func.func @transform_2(%arg0: i32, %arg1: i32) -> (i32, i32) {
    %c1_i32 = arith.constant 1 : i32
    %0 = arith.muli %arg0, %c1_i32 : i32
    %1 = arith.addi %0, %arg1 : i32
    %c0_i32 = arith.constant 0 : i32
    %c0_i32_0 = arith.constant 0 : i32
    return %1, %c0_i32 : i32, i32
  }
  func.func @transform_3(%arg0: i32, %arg1: i32) -> (i32, i32) {
    %c1_i32 = arith.constant 1 : i32
    %0 = arith.muli %arg0, %c1_i32 : i32
    %1 = arith.addi %0, %arg1 : i32
    %c0_i32 = arith.constant 0 : i32
    %c0_i32_0 = arith.constant 0 : i32
    return %1, %c0_i32 : i32, i32
  }
  func.func @transform_4(%arg0: i32, %arg1: i32) -> (i32, i32) {
    %c1_i32 = arith.constant 1 : i32
    %0 = arith.muli %arg0, %c1_i32 : i32
    %1 = arith.addi %0, %arg1 : i32
    %c0_i32 = arith.constant 0 : i32
    %c0_i32_0 = arith.constant 0 : i32
    return %1, %c0_i32 : i32, i32
  }
  func.func @transform_5(%arg0: i32, %arg1: i32) -> (i32, i32) {
    %c1_i32 = arith.constant 1 : i32
    %0 = arith.muli %arg0, %c1_i32 : i32
    %1 = arith.addi %0, %arg1 : i32
    %c0_i32 = arith.constant 0 : i32
    %c0_i32_0 = arith.constant 0 : i32
    return %1, %c0_i32 : i32, i32
  }
  func.func @transform_6(%arg0: i32, %arg1: i32) -> (i32, i32) {
    %c1_i32 = arith.constant 1 : i32
    %0 = arith.muli %arg0, %c1_i32 : i32
    %1 = arith.addi %0, %arg1 : i32
    %c0_i32 = arith.constant 0 : i32
    %c0_i32_0 = arith.constant 0 : i32
    return %1, %c0_i32 : i32, i32
  }
  func.func @transform_7(%arg0: i32, %arg1: i32) -> (i32, i32) {
    %c1_i32 = arith.constant 1 : i32
    %0 = arith.muli %arg0, %c1_i32 : i32
    %1 = arith.addi %0, %arg1 : i32
    %c0_i32 = arith.constant 0 : i32
    %c0_i32_0 = arith.constant 0 : i32
    return %1, %c0_i32 : i32, i32
  }
  func.func @transform_8(%arg0: i32, %arg1: i32) -> (i32, i32, i32, i32) {
    %c0_i32 = arith.constant 0 : i32
    %c0_i32_0 = arith.constant 0 : i32
    %c0_i32_1 = arith.constant 0 : i32
    %c0_i32_2 = arith.constant 0 : i32
    return %arg0, %c0_i32, %c0_i32_0, %c0_i32_1 : i32, i32, i32, i32
  }
}

module attributes {stable_mosaic.version = 11 : i64} {
  func.func @_smooth_kernel(%arg0: i32, %arg1: i32, %arg2: memref<4x16x16xf32, #tpu.memory_space<vmem>>, %arg3: memref<1x15x16xf32, #tpu.memory_space<vmem>>, %arg4: memref<1x16x15xf32, #tpu.memory_space<vmem>>) attributes {dimension_semantics = [#tpu.dimension_semantics<parallel>, #tpu.dimension_semantics<arbitrary>], iteration_bounds = array<i64: 2, 1>, scalar_prefetch = 0 : i64, scratch_operands = 0 : i64, tpu.core_type = #tpu.core_type<tc>, window_params = [{transform_indices = @transform_0, window_bounds = array<i64: 4, 16, 16>}, {transform_indices = @transform_1, window_bounds = array<i64: 1, 15, 16>}, {transform_indices = @transform_2, window_bounds = array<i64: 1, 16, 15>}]} {
    %c0_i32 = arith.constant 0 : i32
    %0 = arith.cmpi eq, %arg1, %c0_i32 : i32
    %1 = arith.extui %0 : i1 to i32
    %c0_i32_0 = arith.constant 0 : i32
    %2 = arith.cmpi ne, %1, %c0_i32_0 : i32
    scf.if %2 {
      %cst_16 = arith.constant 0.000000e+00 : f32
      %26 = vector.broadcast %cst_16 : f32 to vector<1x15x16xf32>
      %c0_17 = arith.constant 0 : index
      %c0_18 = arith.constant 0 : index
      %c0_19 = arith.constant 0 : index
      %27 = vector.load %arg3[%c0_17, %c0_18, %c0_19] : memref<1x15x16xf32, #tpu.memory_space<vmem>>, vector<1x15x16xf32>
      tpu.vector_store %arg3[%c0_17, %c0_18, %c0_19], %26 {strides = array<i32>} : memref<1x15x16xf32, #tpu.memory_space<vmem>>, vector<1x15x16xf32>,
      %cst_20 = arith.constant 0.000000e+00 : f32
      %28 = vector.broadcast %cst_20 : f32 to vector<1x16x15xf32>
      %c0_21 = arith.constant 0 : index
      %c0_22 = arith.constant 0 : index
      %c0_23 = arith.constant 0 : index
      %29 = vector.load %arg4[%c0_21, %c0_22, %c0_23] : memref<1x16x15xf32, #tpu.memory_space<vmem>>, vector<1x16x15xf32>
      tpu.vector_store %arg4[%c0_21, %c0_22, %c0_23], %28 {strides = array<i32>} : memref<1x16x15xf32, #tpu.memory_space<vmem>>, vector<1x16x15xf32>,
    } else {
    }
    %c0 = arith.constant 0 : index
    %c0_1 = arith.constant 0 : index
    %c0_2 = arith.constant 0 : index
    %3 = vector.load %arg2[%c0, %c0_1, %c0_2] : memref<4x16x16xf32, #tpu.memory_space<vmem>>, vector<4x16x16xf32>
    %4 = vector.extract_strided_slice %3 {offsets = [0, 1, 0], sizes = [4, 15, 16], strides = [1, 1, 1]} : vector<4x16x16xf32> to vector<4x15x16xf32>
    %5 = vector.extract_strided_slice %3 {offsets = [0, 0, 0], sizes = [4, 15, 16], strides = [1, 1, 1]} : vector<4x16x16xf32> to vector<4x15x16xf32>
    %6 = arith.subf %4, %5 : vector<4x15x16xf32>
    %7 = math.absf %6 : vector<4x15x16xf32>
    %8 = vector.extract_strided_slice %3 {offsets = [0, 0, 1], sizes = [4, 16, 15], strides = [1, 1, 1]} : vector<4x16x16xf32> to vector<4x16x15xf32>
    %9 = vector.extract_strided_slice %3 {offsets = [0, 0, 0], sizes = [4, 16, 15], strides = [1, 1, 1]} : vector<4x16x16xf32> to vector<4x16x15xf32>
    %10 = arith.subf %8, %9 : vector<4x16x15xf32>
    %11 = math.absf %10 : vector<4x16x15xf32>
    %c0_3 = arith.constant 0 : index
    %c0_4 = arith.constant 0 : index
    %c0_5 = arith.constant 0 : index
    %12 = vector.load %arg3[%c0_3, %c0_4, %c0_5] : memref<1x15x16xf32, #tpu.memory_space<vmem>>, vector<1x15x16xf32>
    %13 = vector.shape_cast %12 : vector<1x15x16xf32> to vector<15x16xf32>
    %cst = arith.constant dense<0.000000e+00> : vector<15x16xf32>
    %14 = vector.multi_reduction <add>, %7, %cst [0] : vector<4x15x16xf32> to vector<15x16xf32>
    %15 = arith.addf %13, %14 : vector<15x16xf32>
    %c0_6 = arith.constant 0 : index
    %c0_7 = arith.constant 0 : index
    %c0_8 = arith.constant 0 : index
    %16 = vector.load %arg3[%c0_6, %c0_7, %c0_8] : memref<1x15x16xf32, #tpu.memory_space<vmem>>, vector<1x15x16xf32>
    %17 = vector.shape_cast %16 : vector<1x15x16xf32> to vector<15x16xf32>
    %18 = vector.shape_cast %15 : vector<15x16xf32> to vector<1x15x16xf32>
    tpu.vector_store %arg3[%c0_6, %c0_7, %c0_8], %18 {strides = array<i32>} : memref<1x15x16xf32, #tpu.memory_space<vmem>>, vector<1x15x16xf32>,
    %c0_9 = arith.constant 0 : index
    %c0_10 = arith.constant 0 : index
    %c0_11 = arith.constant 0 : index
    %19 = vector.load %arg4[%c0_9, %c0_10, %c0_11] : memref<1x16x15xf32, #tpu.memory_space<vmem>>, vector<1x16x15xf32>
    %20 = vector.shape_cast %19 : vector<1x16x15xf32> to vector<16x15xf32>
    %cst_12 = arith.constant dense<0.000000e+00> : vector<16x15xf32>
    %21 = vector.multi_reduction <add>, %11, %cst_12 [0] : vector<4x16x15xf32> to vector<16x15xf32>
    %22 = arith.addf %20, %21 : vector<16x15xf32>
    %c0_13 = arith.constant 0 : index
    %c0_14 = arith.constant 0 : index
    %c0_15 = arith.constant 0 : index
    %23 = vector.load %arg4[%c0_13, %c0_14, %c0_15] : memref<1x16x15xf32, #tpu.memory_space<vmem>>, vector<1x16x15xf32>
    %24 = vector.shape_cast %23 : vector<1x16x15xf32> to vector<16x15xf32>
    %25 = vector.shape_cast %22 : vector<16x15xf32> to vector<1x16x15xf32>
    tpu.vector_store %arg4[%c0_13, %c0_14, %c0_15], %25 {strides = array<i32>} : memref<1x16x15xf32, #tpu.memory_space<vmem>>, vector<1x16x15xf32>,
    return
  }
  func.func @transform_0(%arg0: i32, %arg1: i32) -> (i32, i32, i32) {
    %c1_i32 = arith.constant 1 : i32
    %0 = arith.muli %arg0, %c1_i32 : i32
    %1 = arith.addi %0, %arg1 : i32
    %c0_i32 = arith.constant 0 : i32
    %c0_i32_0 = arith.constant 0 : i32
    %c0_i32_1 = arith.constant 0 : i32
    return %1, %c0_i32, %c0_i32_0 : i32, i32, i32
  }
  func.func @transform_1(%arg0: i32, %arg1: i32) -> (i32, i32, i32) {
    %c0_i32 = arith.constant 0 : i32
    %c0_i32_0 = arith.constant 0 : i32
    %c0_i32_1 = arith.constant 0 : i32
    return %arg0, %c0_i32, %c0_i32_0 : i32, i32, i32
  }
  func.func @transform_2(%arg0: i32, %arg1: i32) -> (i32, i32, i32) {
    %c0_i32 = arith.constant 0 : i32
    %c0_i32_0 = arith.constant 0 : i32
    %c0_i32_1 = arith.constant 0 : i32
    return %arg0, %c0_i32, %c0_i32_0 : i32, i32, i32
  }
}

</mosaic_0001>

<llo_original>
// kernel: total_loss.6
$region0: #{total_loss.6}
  #allocation0 [shape = 'u32[]', space=smem, size = 0x4, offset = 0x4, fixed_abs, tag = 'smem constant byte address 0x4 - core index']
  #allocation1 [shape = 'u32[144,128]{1,0:T(1,128)}', space=vmem, size = 0x12000, scoped, tag = 'internal scratch']
  #allocation2 [shape = 'f32[3,10,8]{2,1,0:T(8,128)}', space=vmem, size = 0x6000, scoped, tag = 'scratch operand']
  #allocation3 [shape = 'f32[3,9,8]{2,1,0:T(8,128)}', space=vmem, size = 0x6000, scoped, tag = 'scratch operand']
  #allocation4 [shape = 'f32[3,10,16]{2,1,0:T(8,128)}', space=vmem, size = 0x6000, scoped, tag = 'scratch operand']
  %s0 = inlined_call_operand.vmem [shape: f32[6,8,16], index: 0, kind: input, shape index: {}]
  %s1 = inlined_call_operand.vmem [shape: f32[6,8,16], index: 1, kind: input, shape index: {}]
  %s2 = inlined_call_operand.vmem [shape: f32[6,8,16], index: 2, kind: input, shape index: {}]
  %s3 = inlined_call_operand.vmem [shape: f32[6,8,16], index: 3, kind: input, shape index: {}]
  %s4 = inlined_call_operand.vmem [shape: f32[16,8], index: 4, kind: input, shape index: {}]
  %s5 = inlined_call_operand.vmem [shape: f32[8,16], index: 5, kind: input, shape index: {}]
  %s6 = inlined_call_operand.vmem [shape: f32[6,8,8], index: 6, kind: output, shape index: {0}]
  %s7 = inlined_call_operand.vmem [shape: f32[6,8,8], index: 7, kind: output, shape index: {1}]
  %s8 = inlined_call_operand.vmem [shape: f32[2,8,16], index: 8, kind: output, shape index: {2}]
  %9 = xla_tuple %s6, %s7, %s8
  %s10 = sld [smem:[#allocation0]]
  $region77: #{total_loss.6} parent=0
    _
  %s12 = ssub.s32 1, %s10
  %s13 = scalar_select 0, %s12, %s10
  loop: start=0, step=1, limit=4
  $region2: #{total_loss.6} parent=0 // loop_pre_header
    _
  $region3: #{total_loss.6} parent=0 // loop_header
    %s15 = sphi 0, %s19
    %p16 = scmp.ge.s32.totalorder %s15, 4
    %s22 = sphi 0, %s34
    %s23 = sphi 0, %s30
    %s24 = sphi 0, %s22
    %s25 = sphi 0, %s23
    %s26 = sphi 0, %s24
    %s27 = sphi 0, %s25
    %s39 = sphi 0, %s41
    %s42 = sphi 0, %s39
    %s43 = sphi 0, %s42
    %s59 = sphi 0, %s43
    %s67 = sphi 0, %s69
    %s70 = sphi 0, %s67
    %s71 = sphi 0, %s70
    %s87 = sphi 0, %s71
    %s95 = sphi 0, %s97
    %s98 = sphi 0, %s95
    %s99 = sphi 0, %s98
    %s115 = sphi 0, %s99
    %s123 = sphi 0, %s125
    %s126 = sphi 0, %s123
    %s127 = sphi 0, %s126
    %s143 = sphi 0, %s127
    %s147 = sphi 0, %s147
    %s149 = sphi 0, %s147
    %s150 = sphi 0, %s149
    %s164 = sphi 0, %s150
    %s168 = sphi 0, %s168
    %s170 = sphi 0, %s168
    %s171 = sphi 0, %s170
    %s185 = sphi 0, %s171
    %s193 = sphi 0, %s195
    %s196 = sphi 0, %s193
    %s197 = sphi 0, %s196
    %s213 = sphi 0, %s197
    %s221 = sphi 0, %s223
    %s224 = sphi 0, %s221
    %s225 = sphi 0, %s224
    %s241 = sphi 0, %s225
    %s247 = sphi 0, %s249
    %s250 = sphi 0, %s247
    %s251 = sphi 0, %s250
    %s267 = sphi 0, %s251
  $region4: #{total_loss.6} parent=0 // loop_header_branch
    %18 = sbr.rel (%p16) target = $region8
  $region5: #{total_loss.6} parent=0 // loop_body
    %s20 = ssub.s32 %s15, 1
    %s21 = ssub.s32 %s15, 2
    %s28 = sadd.s32 1, %s23
    %p29 = scmp.ge.s32.totalorder %s28, 1
    %s30 = scalar_select %p29, 0, %s28
    %s31 = sadd.s32 1, %s22
    %s32 = scalar_select %p29, %s31, %s22
    %p33 = scmp.ge.s32.totalorder %s32, 2
    %s34 = scalar_select %p33, 0, %s32
    %s35 = sadd.s32 %s22, %s23
    %s36 = sadd.s32 %s34, %s30
    %s37 = ssub.s32 %s35, %s36
    %p38 = scmp.eq.s32.totalorder %s37, 0
    %s40 = sadd.s32 %s39, 1
    %s41 = scalar_select %p38, %s39, %s40
    %p44 = pneg %p38
    %p45 = scmp.eq.s32.totalorder %s15, 1
    %p46 = por %p44, %p45
    %p47 = scmp.ne.s32.totalorder %s39, %s42
    %p48 = scmp.eq.s32.totalorder %s15, 0
    %p49 = por %p47, %p48
    %p50 = scmp.ne.s32.totalorder %s39, %s42
    %p51 = scmp.eq.s32.totalorder %s20, 1
    %p52 = por %p50, %p51
    %p53 = scmp.ne.s32.totalorder %s42, %s43
    %p54 = scmp.eq.s32.totalorder %s20, 0
    %p55 = por %p53, %p54
    %p56 = scmp.ne.s32.totalorder %s42, %s43
    %p57 = scmp.eq.s32.totalorder %s21, 1
    %p58 = por %p56, %p57
    %p60 = scmp.ne.s32.totalorder %s43, %s59
    %p61 = scmp.eq.s32.totalorder %s21, 0
    %p62 = por %p60, %p61
    %s63 = sadd.s32 %s22, %s23
    %s64 = sadd.s32 %s34, %s30
    %s65 = ssub.s32 %s63, %s64
    %p66 = scmp.eq.s32.totalorder %s65, 0
    %s68 = sadd.s32 %s67, 1
    %s69 = scalar_select %p66, %s67, %s68
    %p72 = pneg %p66
    %p73 = scmp.eq.s32.totalorder %s15, 1
    %p74 = por %p72, %p73
    %p75 = scmp.ne.s32.totalorder %s67, %s70
    %p76 = scmp.eq.s32.totalorder %s15, 0
    %p77 = por %p75, %p76
    %p78 = scmp.ne.s32.totalorder %s67, %s70
    %p79 = scmp.eq.s32.totalorder %s20, 1
    %p80 = por %p78, %p79
    %p81 = scmp.ne.s32.totalorder %s70, %s71
    %p82 = scmp.eq.s32.totalorder %s20, 0
    %p83 = por %p81, %p82
    %p84 = scmp.ne.s32.totalorder %s70, %s71
    %p85 = scmp.eq.s32.totalorder %s21, 1
    %p86 = por %p84, %p85
    %p88 = scmp.ne.s32.totalorder %s71, %s87
    %p89 = scmp.eq.s32.totalorder %s21, 0
    %p90 = por %p88, %p89
    %s91 = sadd.s32 %s22, %s23
    %s92 = sadd.s32 %s34, %s30
    %s93 = ssub.s32 %s91, %s92
    %p94 = scmp.eq.s32.totalorder %s93, 0
    %s96 = sadd.s32 %s95, 1
    %s97 = scalar_select %p94, %s95, %s96
    %p100 = pneg %p94
    %p101 = scmp.eq.s32.totalorder %s15, 1
    %p102 = por %p100, %p101
    %p103 = scmp.ne.s32.totalorder %s95, %s98
    %p104 = scmp.eq.s32.totalorder %s15, 0
    %p105 = por %p103, %p104
    %p106 = scmp.ne.s32.totalorder %s95, %s98
    %p107 = scmp.eq.s32.totalorder %s20, 1
    %p108 = por %p106, %p107
    %p109 = scmp.ne.s32.totalorder %s98, %s99
    %p110 = scmp.eq.s32.totalorder %s20, 0
    %p111 = por %p109, %p110
    %p112 = scmp.ne.s32.totalorder %s98, %s99
    %p113 = scmp.eq.s32.totalorder %s21, 1
    %p114 = por %p112, %p113
    %p116 = scmp.ne.s32.totalorder %s99, %s115
    %p117 = scmp.eq.s32.totalorder %s21, 0
    %p118 = por %p116, %p117
    %s119 = sadd.s32 %s22, %s23
    %s120 = sadd.s32 %s34, %s30
    %s121 = ssub.s32 %s119, %s120
    %p122 = scmp.eq.s32.totalorder %s121, 0
    %s124 = sadd.s32 %s123, 1
    %s125 = scalar_select %p122, %s123, %s124
    %p128 = pneg %p122
    %p129 = scmp.eq.s32.totalorder %s15, 1
    %p130 = por %p128, %p129
    %p131 = scmp.ne.s32.totalorder %s123, %s126
    %p132 = scmp.eq.s32.totalorder %s15, 0
    %p133 = por %p131, %p132
    %p134 = scmp.ne.s32.totalorder %s123, %s126
    %p135 = scmp.eq.s32.totalorder %s20, 1
    %p136 = por %p134, %p135
    %p137 = scmp.ne.s32.totalorder %s126, %s127
    %p138 = scmp.eq.s32.totalorder %s20, 0
    %p139 = por %p137, %p138
    %p140 = scmp.ne.s32.totalorder %s126, %s127
    %p141 = scmp.eq.s32.totalorder %s21, 1
    %p142 = por %p140, %p141
    %p144 = scmp.ne.s32.totalorder %s127, %s143
    %p145 = scmp.eq.s32.totalorder %s21, 0
    %p146 = por %p144, %p145
    %s148 = sadd.s32 %s147, 1
    %p151 = scmp.eq.s32.totalorder %s15, 1
    %p152 = scmp.ne.s32.totalorder %s147, %s149
    %p153 = scmp.eq.s32.totalorder %s15, 0
    %p154 = por %p152, %p153
    %p155 = scmp.ne.s32.totalorder %s147, %s149
    %p156 = scmp.eq.s32.totalorder %s20, 1
    %p157 = por %p155, %p156
    %p158 = scmp.ne.s32.totalorder %s149, %s150
    %p159 = scmp.eq.s32.totalorder %s20, 0
    %p160 = por %p158, %p159
    %p161 = scmp.ne.s32.totalorder %s149, %s150
    %p162 = scmp.eq.s32.totalorder %s21, 1
    %p163 = por %p161, %p162
    %p165 = scmp.ne.s32.totalorder %s150, %s164
    %p166 = scmp.eq.s32.totalorder %s21, 0
    %p167 = por %p165, %p166
    %s169 = sadd.s32 %s168, 1
    %p172 = scmp.eq.s32.totalorder %s15, 1
    %p173 = scmp.ne.s32.totalorder %s168, %s170
    %p174 = scmp.eq.s32.totalorder %s15, 0
    %p175 = por %p173, %p174
    %p176 = scmp.ne.s32.totalorder %s168, %s170
    %p177 = scmp.eq.s32.totalorder %s20, 1
    %p178 = por %p176, %p177
    %p179 = scmp.ne.s32.totalorder %s170, %s171
    %p180 = scmp.eq.s32.totalorder %s20, 0
    %p181 = por %p179, %p180
    %p182 = scmp.ne.s32.totalorder %s170, %s171
    %p183 = scmp.eq.s32.totalorder %s21, 1
    %p184 = por %p182, %p183
    %p186 = scmp.ne.s32.totalorder %s171, %s185
    %p187 = scmp.eq.s32.totalorder %s21, 0
    %p188 = por %p186, %p187
    %s189 = sadd.s32 %s22, %s23
    %s190 = sadd.s32 %s34, %s30
    %s191 = ssub.s32 %s189, %s190
    %p192 = scmp.eq.s32.totalorder %s191, 0
    %s194 = sadd.s32 %s193, 1
    %s195 = scalar_select %p192, %s193, %s194
    %p198 = pneg %p192
    %p199 = scmp.eq.s32.totalorder %s15, 1
    %p200 = por %p198, %p199
    %p201 = scmp.ne.s32.totalorder %s193, %s196
    %p202 = scmp.eq.s32.totalorder %s15, 0
    %p203 = por %p201, %p202
    %p204 = scmp.ne.s32.totalorder %s193, %s196
    %p205 = scmp.eq.s32.totalorder %s20, 1
    %p206 = por %p204, %p205
    %p207 = scmp.ne.s32.totalorder %s196, %s197
    %p208 = scmp.eq.s32.totalorder %s20, 0
    %p209 = por %p207, %p208
    %p210 = scmp.ne.s32.totalorder %s196, %s197
    %p211 = scmp.eq.s32.totalorder %s21, 1
    %p212 = por %p210, %p211
    %p214 = scmp.ne.s32.totalorder %s197, %s213
    %p215 = scmp.eq.s32.totalorder %s21, 0
    %p216 = por %p214, %p215
    %s217 = sadd.s32 %s22, %s23
    %s218 = sadd.s32 %s34, %s30
    %s219 = ssub.s32 %s217, %s218
    %p220 = scmp.eq.s32.totalorder %s219, 0
    %s222 = sadd.s32 %s221, 1
    %s223 = scalar_select %p220, %s221, %s222
    %p226 = pneg %p220
    %p227 = scmp.eq.s32.totalorder %s15, 1
    %p228 = por %p226, %p227
    %p229 = scmp.ne.s32.totalorder %s221, %s224
    %p230 = scmp.eq.s32.totalorder %s15, 0
    %p231 = por %p229, %p230
    %p232 = scmp.ne.s32.totalorder %s221, %s224
    %p233 = scmp.eq.s32.totalorder %s20, 1
    %p234 = por %p232, %p233
    %p235 = scmp.ne.s32.totalorder %s224, %s225
    %p236 = scmp.eq.s32.totalorder %s20, 0
    %p237 = por %p235, %p236
    %p238 = scmp.ne.s32.totalorder %s224, %s225
    %p239 = scmp.eq.s32.totalorder %s21, 1
    %p240 = por %p238, %p239
    %p242 = scmp.ne.s32.totalorder %s225, %s241
    %p243 = scmp.eq.s32.totalorder %s21, 0
    %p244 = por %p242, %p243
    %s245 = ssub.s32 %s22, %s34
    %p246 = scmp.eq.s32.totalorder %s245, 0
    %s248 = sadd.s32 %s247, 1
    %s249 = scalar_select %p246, %s247, %s248
    %p252 = pneg %p246
    %p253 = scmp.eq.s32.totalorder %s15, 1
    %p254 = por %p252, %p253
    %p255 = scmp.ne.s32.totalorder %s247, %s250
    %p256 = scmp.eq.s32.totalorder %s15, 0
    %p257 = por %p255, %p256
    %p258 = scmp.ne.s32.totalorder %s247, %s250
    %p259 = scmp.eq.s32.totalorder %s20, 1
    %p260 = por %p258, %p259
    %p261 = scmp.ne.s32.totalorder %s250, %s251
    %p262 = scmp.eq.s32.totalorder %s20, 0
    %p263 = por %p261, %p262
    %p264 = scmp.ne.s32.totalorder %s250, %s251
    %p265 = scmp.eq.s32.totalorder %s21, 1
    %p266 = por %p264, %p265
    %p268 = scmp.ne.s32.totalorder %s251, %s267
    %p269 = scmp.eq.s32.totalorder %s21, 0
    %p270 = por %p268, %p269
    %p271 = scmp.le.s32.totalorder 1, %s15
    %p272 = scmp.lt.s32.totalorder %s15, 3
    %p273 = pnand %p271, %p272
    %p274 = pneg %p273
    // Predicated region
    $region9: #{total_loss.6} parent=5 // pred_check
      _
    $region10: #{total_loss.6} parent=5 // pred_check_branch
      %276 = sbr.rel (%p273) target = $region12
    $region11: #{total_loss.6} parent=5 // pred_region
      %s277 = ssub.s32 %s15, 1
      // Predicated region
      $region13: #{total_loss.6} parent=11 // pred_check
        %p278 = pneg %p160
      $region14: #{total_loss.6} parent=11 // pred_check_branch
        %280 = sbr.rel (%p278) target = $region16
      $region15: #{total_loss.6} parent=11 // pred_region
        _
      $region16: #{total_loss.6} parent=11 // pred_fallthru
        _
      // Predicated region
      $region17: #{total_loss.6} parent=11 // pred_check
        %p281 = pneg %p181
      $region18: #{total_loss.6} parent=11 // pred_check_branch
        %283 = sbr.rel (%p281) target = $region20
      $region19: #{total_loss.6} parent=11 // pred_region
        _
      $region20: #{total_loss.6} parent=11 // pred_fallthru
        _
    $region12: #{total_loss.6} parent=5 // pred_fallthru
      _
    %p284 = scmp.lt.s32.totalorder %s15, 2
    // Predicated region
    $region21: #{total_loss.6} parent=5 // pred_check
      %p285 = pneg %p284
    $region22: #{total_loss.6} parent=5 // pred_check_branch
      %287 = sbr.rel (%p285) target = $region24
    $region23: #{total_loss.6} parent=5 // pred_region
      // Predicated region
      $region25: #{total_loss.6} parent=23 // pred_check
        %p288 = pneg %p49
      $region26: #{total_loss.6} parent=23 // pred_check_branch
        %290 = sbr.rel (%p288) target = $region28
      $region27: #{total_loss.6} parent=23 // pred_region
        %s291 = sadd.s32 %s22, %s23
        %s292 = smul.u32 3, %s291
        %p293 = scmp.lt.s32.totalorder %s292, 5
        %s294 = scalar_select %p293, %s292, 5
        %s295 = smul.addr %s294, 8
        %s296 = scalar_lea.vmem %s0, %s295
        %s297 = sadd.s32 %s22, %s23
        %s298 = smul.u32 3, %s297
      $region28: #{total_loss.6} parent=23 // pred_fallthru
        _
      // Predicated region
      $region29: #{total_loss.6} parent=23 // pred_check
        %p299 = pneg %p77
      $region30: #{total_loss.6} parent=23 // pred_check_branch
        %301 = sbr.rel (%p299) target = $region32
      $region31: #{total_loss.6} parent=23 // pred_region
        %s302 = sadd.s32 %s22, %s23
        %s303 = smul.u32 3, %s302
        %p304 = scmp.lt.s32.totalorder %s303, 5
        %s305 = scalar_select %p304, %s303, 5
        %s306 = smul.addr %s305, 8
        %s307 = scalar_lea.vmem %s1, %s306
        %s308 = sadd.s32 %s22, %s23
        %s309 = smul.u32 3, %s308
      $region32: #{total_loss.6} parent=23 // pred_fallthru
        _
      // Predicated region
      $region33: #{total_loss.6} parent=23 // pred_check
        %p310 = pneg %p105
      $region34: #{total_loss.6} parent=23 // pred_check_branch
        %312 = sbr.rel (%p310) target = $region36
      $region35: #{total_loss.6} parent=23 // pred_region
        %s313 = sadd.s32 %s22, %s23
        %s314 = smul.u32 3, %s313
        %p315 = scmp.lt.s32.totalorder %s314, 5
        %s316 = scalar_select %p315, %s314, 5
        %s317 = smul.addr %s316, 8
        %s318 = scalar_lea.vmem %s2, %s317
        %s319 = sadd.s32 %s22, %s23
        %s320 = smul.u32 3, %s319
      $region36: #{total_loss.6} parent=23 // pred_fallthru
        _
      // Predicated region
      $region37: #{total_loss.6} parent=23 // pred_check
        %p321 = pneg %p133
      $region38: #{total_loss.6} parent=23 // pred_check_branch
        %323 = sbr.rel (%p321) target = $region40
      $region39: #{total_loss.6} parent=23 // pred_region
        %s324 = sadd.s32 %s22, %s23
        %s325 = smul.u32 3, %s324
        %p326 = scmp.lt.s32.totalorder %s325, 5
        %s327 = scalar_select %p326, %s325, 5
        %s328 = smul.addr %s327, 8
        %s329 = scalar_lea.vmem %s3, %s328
        %s330 = sadd.s32 %s22, %s23
        %s331 = smul.u32 3, %s330
      $region40: #{total_loss.6} parent=23 // pred_fallthru
        _
    $region24: #{total_loss.6} parent=5 // pred_fallthru
      _
    %p332 = scmp.le.s32.totalorder 1, %s15
    %p333 = scmp.lt.s32.totalorder %s15, 3
    %p334 = pnand %p332, %p333
    %p335 = pneg %p334
    // Predicated region
    $region41: #{total_loss.6} parent=5 // pred_check
      _
    $region42: #{total_loss.6} parent=5 // pred_check_branch
      %337 = sbr.rel (%p334) target = $region44
    $region43: #{total_loss.6} parent=5 // pred_region
      %s338 = ssub.s32 %s15, 1
      %s339 = sadd.s32 %s24, %s25
      %s340 = smul.u32 3, %s339
      %p341 = scmp.lt.s32.totalorder %s340, 5
      %s342 = scalar_select %p341, %s340, 5
      %s343 = smul.addr %s342, 8
      %s344 = scalar_lea.vmem %s0, %s343
      %p345 = pneg %p55
      %p346 = pneg %p52
      %s347 = sadd.s32 %s24, %s25
      %s348 = smul.u32 3, %s347
      %p349 = scmp.lt.s32.totalorder %s348, 5
      %s350 = scalar_select %p349, %s348, 5
      %s351 = smul.addr %s350, 8
      %s352 = scalar_lea.vmem %s1, %s351
      %p353 = pneg %p83
      %p354 = pneg %p80
      %s355 = sadd.s32 %s24, %s25
      %s356 = smul.u32 3, %s355
      %p357 = scmp.lt.s32.totalorder %s356, 5
      %s358 = scalar_select %p357, %s356, 5
      %s359 = smul.addr %s358, 8
      %s360 = scalar_lea.vmem %s2, %s359
      %p361 = pneg %p111
      %p362 = pneg %p108
      %s363 = sadd.s32 %s24, %s25
      %s364 = smul.u32 3, %s363
      %p365 = scmp.lt.s32.totalorder %s364, 5
      %s366 = scalar_select %p365, %s364, 5
      %s367 = smul.addr %s366, 8
      %s368 = scalar_lea.vmem %s3, %s367
      %p369 = pneg %p139
      %p370 = pneg %p136
      %p371 = pneg %p160
      %p372 = pneg %p157
      %p373 = pneg %p181
      %p374 = pneg %p178
      %p375 = pneg %p209
      %p376 = pneg %p206
      %s377 = sadd.s32 %s24, %s25
      %s378 = smul.u32 3, %s377
      %p379 = scmp.lt.s32.totalorder %s378, 5
      %s380 = scalar_select %p379, %s378, 5
      %s381 = smul.addr %s380, 8
      %s382 = scalar_lea.vmem %s6, %s381
      %p383 = pneg %p237
      %p384 = pneg %p234
      %s385 = sadd.s32 %s24, %s25
      %s386 = smul.u32 3, %s385
      %p387 = scmp.lt.s32.totalorder %s386, 5
      %s388 = scalar_select %p387, %s386, 5
      %s389 = smul.addr %s388, 8
      %s390 = scalar_lea.vmem %s7, %s389
      %p391 = pneg %p263
      %p392 = pneg %p260
      %p393 = scmp.lt.s32.totalorder %s24, 1
      %s394 = scalar_select %p393, %s24, 1
      %s395 = smul.addr %s394, 8
      %s396 = scalar_lea.vmem %s8, %s395
      %s397 = sadd.s32 %s24, %s25
      %s398 = smul.u32 3, %s397
      %p399 = scmp.lt.s32.totalorder %s398, 5
      %s400 = scalar_select %p399, %s398, 5
      %s401 = smul.addr %s400, 8
      %s402 = scalar_lea.vmem %s0, %s401
      %s403 = sadd.s32 %s24, %s25
      %s404 = smul.u32 3, %s403
      %s405 = sadd.s32 %s24, %s25
      %s406 = smul.u32 3, %s405
      %p407 = scmp.lt.s32.totalorder %s406, 5
      %s408 = scalar_select %p407, %s406, 5
      %s409 = smul.addr %s408, 8
      %s410 = scalar_lea.vmem %s1, %s409
      %s411 = sadd.s32 %s24, %s25
      %s412 = smul.u32 3, %s411
      %s413 = sadd.s32 %s24, %s25
      %s414 = smul.u32 3, %s413
      %p415 = scmp.lt.s32.totalorder %s414, 5
      %s416 = scalar_select %p415, %s414, 5
      %s417 = smul.addr %s416, 8
      %s418 = scalar_lea.vmem %s2, %s417
      %s419 = sadd.s32 %s24, %s25
      %s420 = smul.u32 3, %s419
      %s421 = sadd.s32 %s24, %s25
      %s422 = smul.u32 3, %s421
      %p423 = scmp.lt.s32.totalorder %s422, 5
      %s424 = scalar_select %p423, %s422, 5
      %s425 = smul.addr %s424, 8
      %s426 = scalar_lea.vmem %s3, %s425
      %s427 = sadd.s32 %s24, %s25
      %s428 = smul.u32 3, %s427
      %s429 = sadd.s32 %s24, %s25
      %s430 = smul.u32 3, %s429
      %p431 = scmp.lt.s32.totalorder %s430, 5
      %s432 = scalar_select %p431, %s430, 5
      %s433 = smul.addr %s432, 8
      %s434 = scalar_lea.vmem %s6, %s433
      %s435 = sadd.s32 %s24, %s25
      %s436 = smul.u32 3, %s435
      %s437 = sadd.s32 %s24, %s25
      %s438 = smul.u32 3, %s437
      %p439 = scmp.lt.s32.totalorder %s438, 5
      %s440 = scalar_select %p439, %s438, 5
      %s441 = smul.addr %s440, 8
      %s442 = scalar_lea.vmem %s7, %s441
      %s443 = sadd.s32 %s24, %s25
      %s444 = smul.u32 3, %s443
      %p445 = scmp.lt.s32.totalorder %s24, 1
      %s446 = scalar_select %p445, %s24, 1
      %s447 = smul.addr %s446, 8
      %s448 = scalar_lea.vmem %s8, %s447
      %p449 = scmp.eq.s32.totalorder %s25, 0
      // Predicated region
      $region45: #{total_loss.6} parent=43 // pred_check
        %p450 = pneg %p449
      $region46: #{total_loss.6} parent=43 // pred_check_branch
        %452 = sbr.rel (%p450) target = $region48
      $region47: #{total_loss.6} parent=43 // pred_region
        %vm453 = vcmask 130048
        %454 = vst.msk [vmem:[%s448] sm:$0xff] %vm453, 0.0
      $region48: #{total_loss.6} parent=43 // pred_fallthru
        _
      %v455 = vld [vmem:[%s4] sm:$0xff]
      %v456 = vld [vmem:[%s4 + $0x8] sm:$0xff]
      %v457 = vld [vmem:[%s5] sm:$0xff]
      %v458 = vld [vmem:[%s402] sm:$0xff]
      %v459 = vld [vmem:[%s402 + $0x8] sm:$0xff]
      %v460 = vld [vmem:[%s402 + $0x10] sm:$0xff]
      %v461 = vld [vmem:[%s410] sm:$0xff]
      %v462 = vld [vmem:[%s410 + $0x8] sm:$0xff]
      %v463 = vld [vmem:[%s410 + $0x10] sm:$0xff]
      %v464 = vld [vmem:[%s418] sm:$0xff]
      %v465 = vld [vmem:[%s418 + $0x8] sm:$0xff]
      %v466 = vld [vmem:[%s418 + $0x10] sm:$0xff]
      %v467 = vld [vmem:[%s426] sm:$0xff]
      %v468 = vld [vmem:[%s426 + $0x8] sm:$0xff]
      %v469 = vld [vmem:[%s426 + $0x10] sm:$0xff]
      %vm470 = vcmask 130048
      %v472 = vsel %vm470, %v458, 0
      %v475 = vsel %vm470, %v459, 0
      %v478 = vsel %vm470, %v460, 0
      %480 = vmatprep.subr.mxu0 0.0
      %481 = vmatpush1.msra.mxu0 %v455
      %482 = vmatprep.subr.mxu0 0.0
      %483 = vmatpush1.msra.mxu0 %v456
      %484 = vmatprep.subr.mxu0 0.0
      %485 = vmatpush1.msra.mxu0 0.0
      %486 = vmatprep.subr.mxu0 0.0
      %487 = vmatpush1.msra.mxu0 0.0
      %488 = vmatprep.subr.mxu0 0.0
      %489 = vmatpush1.msra.mxu0 0.0
      %490 = vmatprep.subr.mxu0 0.0
      %491 = vmatpush1.msra.mxu0 0.0
      %492 = vmatprep.subr.mxu0 0.0
      %493 = vmatpush1.msra.mxu0 0.0
      %494 = vmatprep.subr.mxu0 0.0
      %495 = vmatpush1.msra.mxu0 0.0
      %496 = vmatprep.subr.mxu0 0.0
      %497 = vmatpush1.msra.mxu0 0.0
      %498 = vmatprep.subr.mxu0 0.0
      %499 = vmatpush1.msra.mxu0 0.0
      %500 = vmatprep.subr.mxu0 0.0
      %501 = vmatpush1.msra.mxu0 0.0
      %502 = vmatprep.subr.mxu0 0.0
      %503 = vmatpush1.msra.mxu0 0.0
      %504 = vmatprep.subr.mxu0 0.0
      %505 = vmatpush1.msra.mxu0 0.0
      %506 = vmatprep.subr.mxu0 0.0
      %507 = vmatpush1.msra.mxu0 0.0
      %508 = vmatprep.subr.mxu0 0.0
      %509 = vmatpush1.msra.mxu0 0.0
      %510 = vmatprep.subr.mxu0 0.0
      %511 = vmatpush1.msra.mxu0 0.0
      %512 = vmatprep.subr.mxu0 0.0
      %513 = vmatpush1.msra.mxu0 0.0
      %514 = vmatprep.subr.mxu0 0.0
      %515 = vmatpush1.msra.mxu0 0.0
      %516 = vmatprep.subr.mxu0 0.0
      %517 = vmatpush1.msra.mxu0 0.0
      %518 = vmatprep.subr.mxu0 0.0
      %519 = vmatpush1.msra.mxu0 0.0
      %520 = vmatprep.subr.mxu0 0.0
      %521 = vmatpush1.msra.mxu0 0.0
      %522 = vmatprep.subr.mxu0 0.0
      %523 = vmatpush1.msra.mxu0 0.0
      %524 = vmatprep.subr.mxu0 0.0
      %525 = vmatpush1.msra.mxu0 0.0
      %526 = vmatprep.subr.mxu0 0.0
      %527 = vmatpush1.msra.mxu0 0.0
      %528 = vmatprep.subr.mxu0 0.0
      %529 = vmatpush1.msra.mxu0 0.0
      %530 = vmatprep.subr.mxu0 0.0
      %531 = vmatpush1.msra.mxu0 0.0
      %532 = vmatprep.subr.mxu0 0.0
      %533 = vmatpush1.msra.mxu0 0.0
      %534 = vmatprep.subr.mxu0 0.0
      %535 = vmatpush1.msra.mxu0 0.0
      %536 = vmatprep.subr.mxu0 0.0
      %537 = vmatpush1.msra.mxu0 0.0
      %538 = vmatprep.subr.mxu0 0.0
      %539 = vmatpush1.msra.mxu0 0.0
      %540 = vmatprep.subr.mxu0 0.0
      %541 = vmatpush1.msra.mxu0 0.0
      %542 = vmatprep.subr.mxu0 0.0
      %543 = vmatpush1.msra.mxu0 0.0
      %544 = vmatprep.mubr.f32.mxu0 0.0
      %545 = vmatmul.mubr.f32.gmra.mrb[0].mxu0 %v472
      %v546 = vpop.f32.mrb[0].mxu0
      %v547 = vadd.f32 0.0, %v546
      %v548 = vpop.f32.mrb[0].mxu0
      %549 = vmatprep.mubr.f32.mxu0 0.0
      %550 = vmatmul.mubr.f32.gmra.mrb[0].mxu0 %v475
      %v551 = vpop.f32.mrb[0].mxu0
      %v552 = vadd.f32 0.0, %v551
      %v553 = vpop.f32.mrb[0].mxu0
      %554 = vmatprep.mubr.f32.mxu0 0.0
      %555 = vmatmul.mubr.f32.gmra.mrb[0].mxu0 %v478
      %v556 = vpop.f32.mrb[0].mxu0
      %v557 = vadd.f32 0.0, %v556
      %v558 = vpop.f32.mrb[0].mxu0
      %559 = vdwg.mxu0
      %v561 = vsel %vm470, %v461, 0
      %v564 = vsel %vm470, %v462, 0
      %v567 = vsel %vm470, %v463, 0
      %569 = vmatprep.subr.mxu0 0.0
      %570 = vmatpush1.msra.mxu0 %v455
      %571 = vmatprep.subr.mxu0 0.0
      %572 = vmatpush1.msra.mxu0 %v456
      %573 = vmatprep.subr.mxu0 0.0
      %574 = vmatpush1.msra.mxu0 0.0
      %575 = vmatprep.subr.mxu0 0.0
      %576 = vmatpush1.msra.mxu0 0.0
      %577 = vmatprep.subr.mxu0 0.0
      %578 = vmatpush1.msra.mxu0 0.0
      %579 = vmatprep.subr.mxu0 0.0
      %580 = vmatpush1.msra.mxu0 0.0
      %581 = vmatprep.subr.mxu0 0.0
      %582 = vmatpush1.msra.mxu0 0.0
      %583 = vmatprep.subr.mxu0 0.0
      %584 = vmatpush1.msra.mxu0 0.0
      %585 = vmatprep.subr.mxu0 0.0
      %586 = vmatpush1.msra.mxu0 0.0
      %587 = vmatprep.subr.mxu0 0.0
      %588 = vmatpush1.msra.mxu0 0.0
      %589 = vmatprep.subr.mxu0 0.0
      %590 = vmatpush1.msra.mxu0 0.0
      %591 = vmatprep.subr.mxu0 0.0
      %592 = vmatpush1.msra.mxu0 0.0
      %593 = vmatprep.subr.mxu0 0.0
      %594 = vmatpush1.msra.mxu0 0.0
      %595 = vmatprep.subr.mxu0 0.0
      %596 = vmatpush1.msra.mxu0 0.0
      %597 = vmatprep.subr.mxu0 0.0
      %598 = vmatpush1.msra.mxu0 0.0
      %599 = vmatprep.subr.mxu0 0.0
      %600 = vmatpush1.msra.mxu0 0.0
      %601 = vmatprep.subr.mxu0 0.0
      %602 = vmatpush1.msra.mxu0 0.0
      %603 = vmatprep.subr.mxu0 0.0
      %604 = vmatpush1.msra.mxu0 0.0
      %605 = vmatprep.subr.mxu0 0.0
      %606 = vmatpush1.msra.mxu0 0.0
      %607 = vmatprep.subr.mxu0 0.0
      %608 = vmatpush1.msra.mxu0 0.0
      %609 = vmatprep.subr.mxu0 0.0
      %610 = vmatpush1.msra.mxu0 0.0
      %611 = vmatprep.subr.mxu0 0.0
      %612 = vmatpush1.msra.mxu0 0.0
      %613 = vmatprep.subr.mxu0 0.0
      %614 = vmatpush1.msra.mxu0 0.0
      %615 = vmatprep.subr.mxu0 0.0
      %616 = vmatpush1.msra.mxu0 0.0
      %617 = vmatprep.subr.mxu0 0.0
      %618 = vmatpush1.msra.mxu0 0.0
      %619 = vmatprep.subr.mxu0 0.0
      %620 = vmatpush1.msra.mxu0 0.0
      %621 = vmatprep.subr.mxu0 0.0
      %622 = vmatpush1.msra.mxu0 0.0
      %623 = vmatprep.subr.mxu0 0.0
      %624 = vmatpush1.msra.mxu0 0.0
      %625 = vmatprep.subr.mxu0 0.0
      %626 = vmatpush1.msra.mxu0 0.0
      %627 = vmatprep.subr.mxu0 0.0
      %628 = vmatpush1.msra.mxu0 0.0
      %629 = vmatprep.subr.mxu0 0.0
      %630 = vmatpush1.msra.mxu0 0.0
      %631 = vmatprep.subr.mxu0 0.0
      %632 = vmatpush1.msra.mxu0 0.0
      %633 = vmatprep.mubr.f32.mxu0 0.0
      %634 = vmatmul.mubr.f32.gmra.mrb[0].mxu0 %v561
      %v635 = vpop.f32.mrb[0].mxu0
      %v636 = vadd.f32 0.0, %v635
      %v637 = vpop.f32.mrb[0].mxu0
      %638 = vmatprep.mubr.f32.mxu0 0.0
      %639 = vmatmul.mubr.f32.gmra.mrb[0].mxu0 %v564
      %v640 = vpop.f32.mrb[0].mxu0
      %v641 = vadd.f32 0.0, %v640
      %v642 = vpop.f32.mrb[0].mxu0
      %643 = vmatprep.mubr.f32.mxu0 0.0
      %644 = vmatmul.mubr.f32.gmra.mrb[0].mxu0 %v567
      %v645 = vpop.f32.mrb[0].mxu0
      %v646 = vadd.f32 0.0, %v645
      %v647 = vpop.f32.mrb[0].mxu0
      %648 = vdwg.mxu0
      %vm649 = vcmask 64512
      %650 = vst.msk [vmem:[#allocation2 + $0x1] sm:$0xff] %vm649, %v547
      %651 = vst.msk [vmem:[#allocation2 + $0x11] sm:$0xff] %vm649, %v552
      %652 = vst.msk [vmem:[#allocation2 + $0x21] sm:$0xff] %vm649, %v557
      %vm653 = vcmask 58369
      %654 = vst.msk [vmem:[#allocation2 - $0x1] sm:$0x2] %vm653, %v547
      %655 = vst.msk [vmem:[#allocation2 + $0xf] sm:$0x2] %vm653, %v552
      %656 = vst.msk [vmem:[#allocation2 + $0x1f] sm:$0x2] %vm653, %v557
      %vm657 = vcmask 64519
      %658 = vst.msk [vmem:[#allocation2 + $0x2] sm:$0x80] %vm657, %v547
      %659 = vst.msk [vmem:[#allocation2 + $0x12] sm:$0x80] %vm657, %v552
      %660 = vst.msk [vmem:[#allocation2 + $0x22] sm:$0x80] %vm657, %v557
      %661 = vst.msk [vmem:[#allocation3 + $0x1] sm:$0xff] %vm649, %v636
      %662 = vst.msk [vmem:[#allocation3 + $0x11] sm:$0xff] %vm649, %v641
      %663 = vst.msk [vmem:[#allocation3 + $0x21] sm:$0xff] %vm649, %v646
      %vm664 = vcmask 57344
      %665 = vst.msk [vmem:[#allocation3] sm:$0x1] %vm664, %v636
      %666 = vst.msk [vmem:[#allocation3 + $0x10] sm:$0x1] %vm664, %v641
      %667 = vst.msk [vmem:[#allocation3 + $0x20] sm:$0x1] %vm664, %v646
      %v668 = vld [vmem:[#allocation2] sm:$0xff]
      %v669 = vld [vmem:[#allocation2 + $0x8] sm:$0x3]
      %v670 = vld [vmem:[#allocation2 + $0x10] sm:$0xff]
      %v671 = vld [vmem:[#allocation2 + $0x18] sm:$0x3]
      %v672 = vld [vmem:[#allocation2 + $0x20] sm:$0xff]
      %v673 = vld [vmem:[#allocation2 + $0x28] sm:$0x3]
      %v674 = vld [vmem:[#allocation3] sm:$0xff]
      %v675 = vld [vmem:[#allocation3 + $0x8] sm:$0x1]
      %v676 = vld [vmem:[#allocation3 + $0x10] sm:$0xff]
      %v677 = vld [vmem:[#allocation3 + $0x18] sm:$0x1]
      %v678 = vld [vmem:[#allocation3 + $0x20] sm:$0xff]
      %v679 = vld [vmem:[#allocation3 + $0x28] sm:$0x1]
      %v680 = vmul.f32 %v668, 6.0
      %v681 = vmul.f32 %v669, 6.0
      %v682 = vmul.f32 %v670, 6.0
      %v683 = vmul.f32 %v671, 6.0
      %v684 = vmul.f32 %v672, 6.0
      %v685 = vmul.f32 %v673, 6.0
      %vm692 = vcmask 1046528
      %v693 = vrot.slane %v680, 1
      %v694 = vrot.slane %v681, 1
      %v695 = vsel %vm692, %v693, %v694
      %v696 = vrot.slane %v682, 1
      %v697 = vrot.slane %v683, 1
      %v698 = vsel %vm692, %v696, %v697
      %v699 = vrot.slane %v684, 1
      %v700 = vrot.slane %v685, 1
      %v701 = vsel %vm692, %v699, %v700
      %v705 = vadd.f32 %v668, %v695
      %v706 = vadd.f32 %v670, %v698
      %v707 = vadd.f32 %v672, %v701
      %vm714 = vcmask 1045504
      %v715 = vrot.slane %v668, 2
      %v716 = vrot.slane %v669, 2
      %v717 = vsel %vm714, %v715, %v716
      %v718 = vrot.slane %v670, 2
      %v719 = vrot.slane %v671, 2
      %v720 = vsel %vm714, %v718, %v719
      %v721 = vrot.slane %v672, 2
      %v722 = vrot.slane %v673, 2
      %v723 = vsel %vm714, %v721, %v722
      %v727 = vadd.f32 %v705, %v717
      %v728 = vadd.f32 %v706, %v720
      %v729 = vadd.f32 %v707, %v723
      %v736 = vrot.slane %v674, 1
      %v737 = vrot.slane %v675, 1
      %v738 = vsel %vm692, %v736, %v737
      %v739 = vrot.slane %v676, 1
      %v740 = vrot.slane %v677, 1
      %v741 = vsel %vm692, %v739, %v740
      %v742 = vrot.slane %v678, 1
      %v743 = vrot.slane %v679, 1
      %v744 = vsel %vm692, %v742, %v743
      %v748 = vadd.f32 %v674, %v738
      %v749 = vadd.f32 %v676, %v741
      %v750 = vadd.f32 %v678, %v744
      %v751 = vmul.f32 %v748, 4.0
      %v752 = vmul.f32 %v749, 4.0
      %v753 = vmul.f32 %v750, 4.0
      %v754 = vadd.f32 %v727, %v751
      %v755 = vadd.f32 %v728, %v752
      %v756 = vadd.f32 %v729, %v753
      %v757 = vmul.f32 %v754, 0.0625
      %v758 = vmul.f32 %v755, 0.0625
      %v759 = vmul.f32 %v756, 0.0625
      %v761 = vsel %vm649, %v757, 0
      %v764 = vsel %vm649, %v758, 0
      %v767 = vsel %vm649, %v759, 0
      %769 = vmatprep.subr.mxu0 0.0
      %770 = vmatpush1.msra.mxu0 %v457
      %771 = vmatprep.subr.mxu0 0.0
      %772 = vmatpush1.msra.mxu0 0.0
      %773 = vmatprep.subr.mxu0 0.0
      %774 = vmatpush1.msra.mxu0 0.0
      %775 = vmatprep.subr.mxu0 0.0
      %776 = vmatpush1.msra.mxu0 0.0
      %777 = vmatprep.subr.mxu0 0.0
      %778 = vmatpush1.msra.mxu0 0.0
      %779 = vmatprep.subr.mxu0 0.0
      %780 = vmatpush1.msra.mxu0 0.0
      %781 = vmatprep.subr.mxu0 0.0
      %782 = vmatpush1.msra.mxu0 0.0
      %783 = vmatprep.subr.mxu0 0.0
      %784 = vmatpush1.msra.mxu0 0.0
      %785 = vmatprep.subr.mxu0 0.0
      %786 = vmatpush1.msra.mxu0 0.0
      %787 = vmatprep.subr.mxu0 0.0
      %788 = vmatpush1.msra.mxu0 0.0
      %789 = vmatprep.subr.mxu0 0.0
      %790 = vmatpush1.msra.mxu0 0.0
      %791 = vmatprep.subr.mxu0 0.0
      %792 = vmatpush1.msra.mxu0 0.0
      %793 = vmatprep.subr.mxu0 0.0
      %794 = vmatpush1.msra.mxu0 0.0
      %795 = vmatprep.subr.mxu0 0.0
      %796 = vmatpush1.msra.mxu0 0.0
      %797 = vmatprep.subr.mxu0 0.0
      %798 = vmatpush1.msra.mxu0 0.0
      %799 = vmatprep.subr.mxu0 0.0
      %800 = vmatpush1.msra.mxu0 0.0
      %801 = vmatprep.subr.mxu0 0.0
      %802 = vmatpush1.msra.mxu0 0.0
      %803 = vmatprep.subr.mxu0 0.0
      %804 = vmatpush1.msra.mxu0 0.0
      %805 = vmatprep.subr.mxu0 0.0
      %806 = vmatpush1.msra.mxu0 0.0
      %807 = vmatprep.subr.mxu0 0.0
      %808 = vmatpush1.msra.mxu0 0.0
      %809 = vmatprep.subr.mxu0 0.0
      %810 = vmatpush1.msra.mxu0 0.0
      %811 = vmatprep.subr.mxu0 0.0
      %812 = vmatpush1.msra.mxu0 0.0
      %813 = vmatprep.subr.mxu0 0.0
      %814 = vmatpush1.msra.mxu0 0.0
      %815 = vmatprep.subr.mxu0 0.0
      %816 = vmatpush1.msra.mxu0 0.0
      %817 = vmatprep.subr.mxu0 0.0
      %818 = vmatpush1.msra.mxu0 0.0
      %819 = vmatprep.subr.mxu0 0.0
      %820 = vmatpush1.msra.mxu0 0.0
      %821 = vmatprep.subr.mxu0 0.0
      %822 = vmatpush1.msra.mxu0 0.0
      %823 = vmatprep.subr.mxu0 0.0
      %824 = vmatpush1.msra.mxu0 0.0
      %825 = vmatprep.subr.mxu0 0.0
      %826 = vmatpush1.msra.mxu0 0.0
      %827 = vmatprep.subr.mxu0 0.0
      %828 = vmatpush1.msra.mxu0 0.0
      %829 = vmatprep.subr.mxu0 0.0
      %830 = vmatpush1.msra.mxu0 0.0
      %831 = vmatprep.subr.mxu0 0.0
      %832 = vmatpush1.msra.mxu0 0.0
      %833 = vmatprep.mubr.f32.mxu0 0.0
      %834 = vmatmul.mubr.f32.gmra.mrb[0].mxu0 %v761
      %v835 = vpop.f32.mrb[0].mxu0
      %v836 = vadd.f32 0.0, %v835
      %v837 = vpop.f32.mrb[0].mxu0
      %838 = vmatprep.mubr.f32.mxu0 0.0
      %839 = vmatmul.mubr.f32.gmra.mrb[0].mxu0 %v764
      %v840 = vpop.f32.mrb[0].mxu0
      %v841 = vadd.f32 0.0, %v840
      %v842 = vpop.f32.mrb[0].mxu0
      %843 = vmatprep.mubr.f32.mxu0 0.0
      %844 = vmatmul.mubr.f32.gmra.mrb[0].mxu0 %v767
      %v845 = vpop.f32.mrb[0].mxu0
      %v846 = vadd.f32 0.0, %v845
      %v847 = vpop.f32.mrb[0].mxu0
      %848 = vdwg.mxu0
      %849 = vst.msk [vmem:[#allocation4 + $0x1] sm:$0xff] %vm470, %v836
      %850 = vst.msk [vmem:[#allocation4 + $0x11] sm:$0xff] %vm470, %v841
      %851 = vst.msk [vmem:[#allocation4 + $0x21] sm:$0xff] %vm470, %v846
      %vm852 = vcmask 123905
      %853 = vst.msk [vmem:[#allocation4 - $0x1] sm:$0x2] %vm852, %v836
      %854 = vst.msk [vmem:[#allocation4 + $0xf] sm:$0x2] %vm852, %v841
      %855 = vst.msk [vmem:[#allocation4 + $0x1f] sm:$0x2] %vm852, %v846
      %vm856 = vcmask 130055
      %857 = vst.msk [vmem:[#allocation4 + $0x2] sm:$0x80] %vm856, %v836
      %858 = vst.msk [vmem:[#allocation4 + $0x12] sm:$0x80] %vm856, %v841
      %859 = vst.msk [vmem:[#allocation4 + $0x22] sm:$0x80] %vm856, %v846
      %v860 = vld [vmem:[#allocation4] sm:$0xff]
      %v861 = vld [vmem:[#allocation4 + $0x8] sm:$0x3]
      %v862 = vld [vmem:[#allocation4 + $0x10] sm:$0xff]
      %v863 = vld [vmem:[#allocation4 + $0x18] sm:$0x3]
      %v864 = vld [vmem:[#allocation4 + $0x20] sm:$0xff]
      %v865 = vld [vmem:[#allocation4 + $0x28] sm:$0x3]
      %v866 = vmul.f32 %v860, 6.0
      %v867 = vmul.f32 %v861, 6.0
      %v868 = vmul.f32 %v862, 6.0
      %v869 = vmul.f32 %v863, 6.0
      %v870 = vmul.f32 %v864, 6.0
      %v871 = vmul.f32 %v865, 6.0
      %v878 = vrot.slane %v866, 1
      %v879 = vrot.slane %v867, 1
      %v880 = vsel %vm692, %v878, %v879
      %v881 = vrot.slane %v868, 1
      %v882 = vrot.slane %v869, 1
      %v883 = vsel %vm692, %v881, %v882
      %v884 = vrot.slane %v870, 1
      %v885 = vrot.slane %v871, 1
      %v886 = vsel %vm692, %v884, %v885
      %v890 = vadd.f32 %v860, %v880
      %v891 = vadd.f32 %v862, %v883
      %v892 = vadd.f32 %v864, %v886
      %v899 = vrot.slane %v860, 2
      %v900 = vrot.slane %v861, 2
      %v901 = vsel %vm714, %v899, %v900
      %v902 = vrot.slane %v862, 2
      %v903 = vrot.slane %v863, 2
      %v904 = vsel %vm714, %v902, %v903
      %v905 = vrot.slane %v864, 2
      %v906 = vrot.slane %v865, 2
      %v907 = vsel %vm714, %v905, %v906
      %v911 = vadd.f32 %v890, %v901
      %v912 = vadd.f32 %v891, %v904
      %v913 = vadd.f32 %v892, %v907
      %v914 = vmul.f32 %v911, 0.125
      %v915 = vmul.f32 %v912, 0.125
      %v916 = vmul.f32 %v913, 0.125
      %v917 = vrot.slane %v860, 1
      %v918 = vrot.slane %v861, 1
      %v919 = vsel %vm692, %v917, %v918
      %v920 = vrot.slane %v862, 1
      %v921 = vrot.slane %v863, 1
      %v922 = vsel %vm692, %v920, %v921
      %v923 = vrot.slane %v864, 1
      %v924 = vrot.slane %v865, 1
      %v925 = vsel %vm692, %v923, %v924
      %v932 = vadd.f32 %v860, %v919
      %v933 = vadd.f32 %v861, %v918
      %v934 = vadd.f32 %v862, %v922
      %v935 = vadd.f32 %v863, %v921
      %v936 = vadd.f32 %v864, %v925
      %v937 = vadd.f32 %v865, %v924
      %v938 = vmul.f32 %v932, 0.5
      %v939 = vmul.f32 %v933, 0.5
      %v940 = vmul.f32 %v934, 0.5
      %v941 = vmul.f32 %v935, 0.5
      %v942 = vmul.f32 %v936, 0.5
      %v943 = vmul.f32 %v937, 0.5
      %944 = vst.msk [vmem:[%s434] sm:$0xff] %vm649, %v757
      %945 = vst.msk [vmem:[%s434 + $0x8] sm:$0xff] %vm649, %v758
      %946 = vst.msk [vmem:[%s434 + $0x10] sm:$0xff] %vm649, %v759
      %v948 = vsel %vm470, %v464, 0
      %v951 = vsel %vm470, %v465, 0
      %v954 = vsel %vm470, %v466, 0
      %956 = vmatprep.subr.mxu0 0.0
      %957 = vmatpush1.msra.mxu0 %v455
      %958 = vmatprep.subr.mxu0 0.0
      %959 = vmatpush1.msra.mxu0 %v456
      %960 = vmatprep.subr.mxu0 0.0
      %961 = vmatpush1.msra.mxu0 0.0
      %962 = vmatprep.subr.mxu0 0.0
      %963 = vmatpush1.msra.mxu0 0.0
      %964 = vmatprep.subr.mxu0 0.0
      %965 = vmatpush1.msra.mxu0 0.0
      %966 = vmatprep.subr.mxu0 0.0
      %967 = vmatpush1.msra.mxu0 0.0
      %968 = vmatprep.subr.mxu0 0.0
      %969 = vmatpush1.msra.mxu0 0.0
      %970 = vmatprep.subr.mxu0 0.0
      %971 = vmatpush1.msra.mxu0 0.0
      %972 = vmatprep.subr.mxu0 0.0
      %973 = vmatpush1.msra.mxu0 0.0
      %974 = vmatprep.subr.mxu0 0.0
      %975 = vmatpush1.msra.mxu0 0.0
      %976 = vmatprep.subr.mxu0 0.0
      %977 = vmatpush1.msra.mxu0 0.0
      %978 = vmatprep.subr.mxu0 0.0
      %979 = vmatpush1.msra.mxu0 0.0
      %980 = vmatprep.subr.mxu0 0.0
      %981 = vmatpush1.msra.mxu0 0.0
      %982 = vmatprep.subr.mxu0 0.0
      %983 = vmatpush1.msra.mxu0 0.0
      %984 = vmatprep.subr.mxu0 0.0
      %985 = vmatpush1.msra.mxu0 0.0
      %986 = vmatprep.subr.mxu0 0.0
      %987 = vmatpush1.msra.mxu0 0.0
      %988 = vmatprep.subr.mxu0 0.0
      %989 = vmatpush1.msra.mxu0 0.0
      %990 = vmatprep.subr.mxu0 0.0
      %991 = vmatpush1.msra.mxu0 0.0
      %992 = vmatprep.subr.mxu0 0.0
      %993 = vmatpush1.msra.mxu0 0.0
      %994 = vmatprep.subr.mxu0 0.0
      %995 = vmatpush1.msra.mxu0 0.0
      %996 = vmatprep.subr.mxu0 0.0
      %997 = vmatpush1.msra.mxu0 0.0
      %998 = vmatprep.subr.mxu0 0.0
      %999 = vmatpush1.msra.mxu0 0.0
      %1000 = vmatprep.subr.mxu0 0.0
      %1001 = vmatpush1.msra.mxu0 0.0
      %1002 = vmatprep.subr.mxu0 0.0
      %1003 = vmatpush1.msra.mxu0 0.0
      %1004 = vmatprep.subr.mxu0 0.0
      %1005 = vmatpush1.msra.mxu0 0.0
      %1006 = vmatprep.subr.mxu0 0.0
      %1007 = vmatpush1.msra.mxu0 0.0
      %1008 = vmatprep.subr.mxu0 0.0
      %1009 = vmatpush1.msra.mxu0 0.0
      %1010 = vmatprep.subr.mxu0 0.0
      %1011 = vmatpush1.msra.mxu0 0.0
      %1012 = vmatprep.subr.mxu0 0.0
      %1013 = vmatpush1.msra.mxu0 0.0
      %1014 = vmatprep.subr.mxu0 0.0
      %1015 = vmatpush1.msra.mxu0 0.0
      %1016 = vmatprep.subr.mxu0 0.0
      %1017 = vmatpush1.msra.mxu0 0.0
      %1018 = vmatprep.subr.mxu0 0.0
      %1019 = vmatpush1.msra.mxu0 0.0
      %1020 = vmatprep.mubr.f32.mxu0 0.0
      %1021 = vmatmul.mubr.f32.gmra.mrb[0].mxu0 %v948
      %v1022 = vpop.f32.mrb[0].mxu0
      %v1023 = vadd.f32 0.0, %v1022
      %v1024 = vpop.f32.mrb[0].mxu0
      %1025 = vmatprep.mubr.f32.mxu0 0.0
      %1026 = vmatmul.mubr.f32.gmra.mrb[0].mxu0 %v951
      %v1027 = vpop.f32.mrb[0].mxu0
      %v1028 = vadd.f32 0.0, %v1027
      %v1029 = vpop.f32.mrb[0].mxu0
      %1030 = vmatprep.mubr.f32.mxu0 0.0
      %1031 = vmatmul.mubr.f32.gmra.mrb[0].mxu0 %v954
      %v1032 = vpop.f32.mrb[0].mxu0
      %v1033 = vadd.f32 0.0, %v1032
      %v1034 = vpop.f32.mrb[0].mxu0
      %1035 = vdwg.mxu0
      %v1037 = vsel %vm470, %v467, 0
      %v1040 = vsel %vm470, %v468, 0
      %v1043 = vsel %vm470, %v469, 0
      %1045 = vmatprep.subr.mxu0 0.0
      %1046 = vmatpush1.msra.mxu0 %v455
      %1047 = vmatprep.subr.mxu0 0.0
      %1048 = vmatpush1.msra.mxu0 %v456
      %1049 = vmatprep.subr.mxu0 0.0
      %1050 = vmatpush1.msra.mxu0 0.0
      %1051 = vmatprep.subr.mxu0 0.0
      %1052 = vmatpush1.msra.mxu0 0.0
      %1053 = vmatprep.subr.mxu0 0.0
      %1054 = vmatpush1.msra.mxu0 0.0
      %1055 = vmatprep.subr.mxu0 0.0
      %1056 = vmatpush1.msra.mxu0 0.0
      %1057 = vmatprep.subr.mxu0 0.0
      %1058 = vmatpush1.msra.mxu0 0.0
      %1059 = vmatprep.subr.mxu0 0.0
      %1060 = vmatpush1.msra.mxu0 0.0
      %1061 = vmatprep.subr.mxu0 0.0
      %1062 = vmatpush1.msra.mxu0 0.0
      %1063 = vmatprep.subr.mxu0 0.0
      %1064 = vmatpush1.msra.mxu0 0.0
      %1065 = vmatprep.subr.mxu0 0.0
      %1066 = vmatpush1.msra.mxu0 0.0
      %1067 = vmatprep.subr.mxu0 0.0
      %1068 = vmatpush1.msra.mxu0 0.0
      %1069 = vmatprep.subr.mxu0 0.0
      %1070 = vmatpush1.msra.mxu0 0.0
      %1071 = vmatprep.subr.mxu0 0.0
      %1072 = vmatpush1.msra.mxu0 0.0
      %1073 = vmatprep.subr.mxu0 0.0
      %1074 = vmatpush1.msra.mxu0 0.0
      %1075 = vmatprep.subr.mxu0 0.0
      %1076 = vmatpush1.msra.mxu0 0.0
      %1077 = vmatprep.subr.mxu0 0.0
      %1078 = vmatpush1.msra.mxu0 0.0
      %1079 = vmatprep.subr.mxu0 0.0
      %1080 = vmatpush1.msra.mxu0 0.0
      %1081 = vmatprep.subr.mxu0 0.0
      %1082 = vmatpush1.msra.mxu0 0.0
      %1083 = vmatprep.subr.mxu0 0.0
      %1084 = vmatpush1.msra.mxu0 0.0
      %1085 = vmatprep.subr.mxu0 0.0
      %1086 = vmatpush1.msra.mxu0 0.0
      %1087 = vmatprep.subr.mxu0 0.0
      %1088 = vmatpush1.msra.mxu0 0.0
      %1089 = vmatprep.subr.mxu0 0.0
      %1090 = vmatpush1.msra.mxu0 0.0
      %1091 = vmatprep.subr.mxu0 0.0
      %1092 = vmatpush1.msra.mxu0 0.0
      %1093 = vmatprep.subr.mxu0 0.0
      %1094 = vmatpush1.msra.mxu0 0.0
      %1095 = vmatprep.subr.mxu0 0.0
      %1096 = vmatpush1.msra.mxu0 0.0
      %1097 = vmatprep.subr.mxu0 0.0
      %1098 = vmatpush1.msra.mxu0 0.0
      %1099 = vmatprep.subr.mxu0 0.0
      %1100 = vmatpush1.msra.mxu0 0.0
      %1101 = vmatprep.subr.mxu0 0.0
      %1102 = vmatpush1.msra.mxu0 0.0
      %1103 = vmatprep.subr.mxu0 0.0
      %1104 = vmatpush1.msra.mxu0 0.0
      %1105 = vmatprep.subr.mxu0 0.0
      %1106 = vmatpush1.msra.mxu0 0.0
      %1107 = vmatprep.subr.mxu0 0.0
      %1108 = vmatpush1.msra.mxu0 0.0
      %1109 = vmatprep.mubr.f32.mxu0 0.0
      %1110 = vmatmul.mubr.f32.gmra.mrb[0].mxu0 %v1037
      %v1111 = vpop.f32.mrb[0].mxu0
      %v1112 = vadd.f32 0.0, %v1111
      %v1113 = vpop.f32.mrb[0].mxu0
      %1114 = vmatprep.mubr.f32.mxu0 0.0
      %1115 = vmatmul.mubr.f32.gmra.mrb[0].mxu0 %v1040
      %v1116 = vpop.f32.mrb[0].mxu0
      %v1117 = vadd.f32 0.0, %v1116
      %v1118 = vpop.f32.mrb[0].mxu0
      %1119 = vmatprep.mubr.f32.mxu0 0.0
      %1120 = vmatmul.mubr.f32.gmra.mrb[0].mxu0 %v1043
      %v1121 = vpop.f32.mrb[0].mxu0
      %v1122 = vadd.f32 0.0, %v1121
      %v1123 = vpop.f32.mrb[0].mxu0
      %1124 = vdwg.mxu0
      %1125 = vst.msk [vmem:[#allocation2 + $0x1] sm:$0xff] %vm649, %v1023
      %1126 = vst.msk [vmem:[#allocation2 + $0x11] sm:$0xff] %vm649, %v1028
      %1127 = vst.msk [vmem:[#allocation2 + $0x21] sm:$0xff] %vm649, %v1033
      %1128 = vst.msk [vmem:[#allocation2 - $0x1] sm:$0x2] %vm653, %v1023
      %1129 = vst.msk [vmem:[#allocation2 + $0xf] sm:$0x2] %vm653, %v1028
      %1130 = vst.msk [vmem:[#allocation2 + $0x1f] sm:$0x2] %vm653, %v1033
      %1131 = vst.msk [vmem:[#allocation2 + $0x2] sm:$0x80] %vm657, %v1023
      %1132 = vst.msk [vmem:[#allocation2 + $0x12] sm:$0x80] %vm657, %v1028
      %1133 = vst.msk [vmem:[#allocation2 + $0x22] sm:$0x80] %vm657, %v1033
      %1134 = vst.msk [vmem:[#allocation3 + $0x1] sm:$0xff] %vm649, %v1112
      %1135 = vst.msk [vmem:[#allocation3 + $0x11] sm:$0xff] %vm649, %v1117
      %1136 = vst.msk [vmem:[#allocation3 + $0x21] sm:$0xff] %vm649, %v1122
      %1137 = vst.msk [vmem:[#allocation3] sm:$0x1] %vm664, %v1112
      %1138 = vst.msk [vmem:[#allocation3 + $0x10] sm:$0x1] %vm664, %v1117
      %1139 = vst.msk [vmem:[#allocation3 + $0x20] sm:$0x1] %vm664, %v1122
      %v1140 = vld [vmem:[#allocation2] sm:$0xff]
      %v1141 = vld [vmem:[#allocation2 + $0x8] sm:$0x3]
      %v1142 = vld [vmem:[#allocation2 + $0x10] sm:$0xff]
      %v1143 = vld [vmem:[#allocation2 + $0x18] sm:$0x3]
      %v1144 = vld [vmem:[#allocation2 + $0x20] sm:$0xff]
      %v1145 = vld [vmem:[#allocation2 + $0x28] sm:$0x3]
      %v1146 = vld [vmem:[#allocation3] sm:$0xff]
      %v1147 = vld [vmem:[#allocation3 + $0x8] sm:$0x1]
      %v1148 = vld [vmem:[#allocation3 + $0x10] sm:$0xff]
      %v1149 = vld [vmem:[#allocation3 + $0x18] sm:$0x1]
      %v1150 = vld [vmem:[#allocation3 + $0x20] sm:$0xff]
      %v1151 = vld [vmem:[#allocation3 + $0x28] sm:$0x1]
      %v1152 = vmul.f32 %v1140, 6.0
      %v1153 = vmul.f32 %v1141, 6.0
      %v1154 = vmul.f32 %v1142, 6.0
      %v1155 = vmul.f32 %v1143, 6.0
      %v1156 = vmul.f32 %v1144, 6.0
      %v1157 = vmul.f32 %v1145, 6.0
      %v1164 = vrot.slane %v1152, 1
      %v1165 = vrot.slane %v1153, 1
      %v1166 = vsel %vm692, %v1164, %v1165
      %v1167 = vrot.slane %v1154, 1
      %v1168 = vrot.slane %v1155, 1
      %v1169 = vsel %vm692, %v1167, %v1168
      %v1170 = vrot.slane %v1156, 1
      %v1171 = vrot.slane %v1157, 1
      %v1172 = vsel %vm692, %v1170, %v1171
      %v1176 = vadd.f32 %v1140, %v1166
      %v1177 = vadd.f32 %v1142, %v1169
      %v1178 = vadd.f32 %v1144, %v1172
      %v1185 = vrot.slane %v1140, 2
      %v1186 = vrot.slane %v1141, 2
      %v1187 = vsel %vm714, %v1185, %v1186
      %v1188 = vrot.slane %v1142, 2
      %v1189 = vrot.slane %v1143, 2
      %v1190 = vsel %vm714, %v1188, %v1189
      %v1191 = vrot.slane %v1144, 2
      %v1192 = vrot.slane %v1145, 2
      %v1193 = vsel %vm714, %v1191, %v1192
      %v1197 = vadd.f32 %v1176, %v1187
      %v1198 = vadd.f32 %v1177, %v1190
      %v1199 = vadd.f32 %v1178, %v1193
      %v1206 = vrot.slane %v1146, 1
      %v1207 = vrot.slane %v1147, 1
      %v1208 = vsel %vm692, %v1206, %v1207
      %v1209 = vrot.slane %v1148, 1
      %v1210 = vrot.slane %v1149, 1
      %v1211 = vsel %vm692, %v1209, %v1210
      %v1212 = vrot.slane %v1150, 1
      %v1213 = vrot.slane %v1151, 1
      %v1214 = vsel %vm692, %v1212, %v1213
      %v1218 = vadd.f32 %v1146, %v1208
      %v1219 = vadd.f32 %v1148, %v1211
      %v1220 = vadd.f32 %v1150, %v1214
      %v1221 = vmul.f32 %v1218, 4.0
      %v1222 = vmul.f32 %v1219, 4.0
      %v1223 = vmul.f32 %v1220, 4.0
      %v1224 = vadd.f32 %v1197, %v1221
      %v1225 = vadd.f32 %v1198, %v1222
      %v1226 = vadd.f32 %v1199, %v1223
      %v1227 = vmul.f32 %v1224, 0.0625
      %v1228 = vmul.f32 %v1225, 0.0625
      %v1229 = vmul.f32 %v1226, 0.0625
      %v1231 = vsel %vm649, %v1227, 0
      %v1234 = vsel %vm649, %v1228, 0
      %v1237 = vsel %vm649, %v1229, 0
      %1239 = vmatprep.subr.mxu0 0.0
      %1240 = vmatpush1.msra.mxu0 %v457
      %1241 = vmatprep.subr.mxu0 0.0
      %1242 = vmatpush1.msra.mxu0 0.0
      %1243 = vmatprep.subr.mxu0 0.0
      %1244 = vmatpush1.msra.mxu0 0.0
      %1245 = vmatprep.subr.mxu0 0.0
      %1246 = vmatpush1.msra.mxu0 0.0
      %1247 = vmatprep.subr.mxu0 0.0
      %1248 = vmatpush1.msra.mxu0 0.0
      %1249 = vmatprep.subr.mxu0 0.0
      %1250 = vmatpush1.msra.mxu0 0.0
      %1251 = vmatprep.subr.mxu0 0.0
      %1252 = vmatpush1.msra.mxu0 0.0
      %1253 = vmatprep.subr.mxu0 0.0
      %1254 = vmatpush1.msra.mxu0 0.0
      %1255 = vmatprep.subr.mxu0 0.0
      %1256 = vmatpush1.msra.mxu0 0.0
      %1257 = vmatprep.subr.mxu0 0.0
      %1258 = vmatpush1.msra.mxu0 0.0
      %1259 = vmatprep.subr.mxu0 0.0
      %1260 = vmatpush1.msra.mxu0 0.0
      %1261 = vmatprep.subr.mxu0 0.0
      %1262 = vmatpush1.msra.mxu0 0.0
      %1263 = vmatprep.subr.mxu0 0.0
      %1264 = vmatpush1.msra.mxu0 0.0
      %1265 = vmatprep.subr.mxu0 0.0
      %1266 = vmatpush1.msra.mxu0 0.0
      %1267 = vmatprep.subr.mxu0 0.0
      %1268 = vmatpush1.msra.mxu0 0.0
      %1269 = vmatprep.subr.mxu0 0.0
      %1270 = vmatpush1.msra.mxu0 0.0
      %1271 = vmatprep.subr.mxu0 0.0
      %1272 = vmatpush1.msra.mxu0 0.0
      %1273 = vmatprep.subr.mxu0 0.0
      %1274 = vmatpush1.msra.mxu0 0.0
      %1275 = vmatprep.subr.mxu0 0.0
      %1276 = vmatpush1.msra.mxu0 0.0
      %1277 = vmatprep.subr.mxu0 0.0
      %1278 = vmatpush1.msra.mxu0 0.0
      %1279 = vmatprep.subr.mxu0 0.0
      %1280 = vmatpush1.msra.mxu0 0.0
      %1281 = vmatprep.subr.mxu0 0.0
      %1282 = vmatpush1.msra.mxu0 0.0
      %1283 = vmatprep.subr.mxu0 0.0
      %1284 = vmatpush1.msra.mxu0 0.0
      %1285 = vmatprep.subr.mxu0 0.0
      %1286 = vmatpush1.msra.mxu0 0.0
      %1287 = vmatprep.subr.mxu0 0.0
      %1288 = vmatpush1.msra.mxu0 0.0
      %1289 = vmatprep.subr.mxu0 0.0
      %1290 = vmatpush1.msra.mxu0 0.0
      %1291 = vmatprep.subr.mxu0 0.0
      %1292 = vmatpush1.msra.mxu0 0.0
      %1293 = vmatprep.subr.mxu0 0.0
      %1294 = vmatpush1.msra.mxu0 0.0
      %1295 = vmatprep.subr.mxu0 0.0
      %1296 = vmatpush1.msra.mxu0 0.0
      %1297 = vmatprep.subr.mxu0 0.0
      %1298 = vmatpush1.msra.mxu0 0.0
      %1299 = vmatprep.subr.mxu0 0.0
      %1300 = vmatpush1.msra.mxu0 0.0
      %1301 = vmatprep.subr.mxu0 0.0
      %1302 = vmatpush1.msra.mxu0 0.0
      %1303 = vmatprep.mubr.f32.mxu0 0.0
      %1304 = vmatmul.mubr.f32.gmra.mrb[0].mxu0 %v1231
      %v1305 = vpop.f32.mrb[0].mxu0
      %v1306 = vadd.f32 0.0, %v1305
      %v1307 = vpop.f32.mrb[0].mxu0
      %1308 = vmatprep.mubr.f32.mxu0 0.0
      %1309 = vmatmul.mubr.f32.gmra.mrb[0].mxu0 %v1234
      %v1310 = vpop.f32.mrb[0].mxu0
      %v1311 = vadd.f32 0.0, %v1310
      %v1312 = vpop.f32.mrb[0].mxu0
      %1313 = vmatprep.mubr.f32.mxu0 0.0
      %1314 = vmatmul.mubr.f32.gmra.mrb[0].mxu0 %v1237
      %v1315 = vpop.f32.mrb[0].mxu0
      %v1316 = vadd.f32 0.0, %v1315
      %v1317 = vpop.f32.mrb[0].mxu0
      %1318 = vdwg.mxu0
      %1319 = vst.msk [vmem:[#allocation4 + $0x1] sm:$0xff] %vm470, %v1306
      %1320 = vst.msk [vmem:[#allocation4 + $0x11] sm:$0xff] %vm470, %v1311
      %1321 = vst.msk [vmem:[#allocation4 + $0x21] sm:$0xff] %vm470, %v1316
      %1322 = vst.msk [vmem:[#allocation4 - $0x1] sm:$0x2] %vm852, %v1306
      %1323 = vst.msk [vmem:[#allocation4 + $0xf] sm:$0x2] %vm852, %v1311
      %1324 = vst.msk [vmem:[#allocation4 + $0x1f] sm:$0x2] %vm852, %v1316
      %1325 = vst.msk [vmem:[#allocation4 + $0x2] sm:$0x80] %vm856, %v1306
      %1326 = vst.msk [vmem:[#allocation4 + $0x12] sm:$0x80] %vm856, %v1311
      %1327 = vst.msk [vmem:[#allocation4 + $0x22] sm:$0x80] %vm856, %v1316
      %v1328 = vld [vmem:[#allocation4] sm:$0xff]
      %v1329 = vld [vmem:[#allocation4 + $0x8] sm:$0x3]
      %v1330 = vld [vmem:[#allocation4 + $0x10] sm:$0xff]
      %v1331 = vld [vmem:[#allocation4 + $0x18] sm:$0x3]
      %v1332 = vld [vmem:[#allocation4 + $0x20] sm:$0xff]
      %v1333 = vld [vmem:[#allocation4 + $0x28] sm:$0x3]
      %v1334 = vmul.f32 %v1328, 6.0
      %v1335 = vmul.f32 %v1329, 6.0
      %v1336 = vmul.f32 %v1330, 6.0
      %v1337 = vmul.f32 %v1331, 6.0
      %v1338 = vmul.f32 %v1332, 6.0
      %v1339 = vmul.f32 %v1333, 6.0
      %v1346 = vrot.slane %v1334, 1
      %v1347 = vrot.slane %v1335, 1
      %v1348 = vsel %vm692, %v1346, %v1347
      %v1349 = vrot.slane %v1336, 1
      %v1350 = vrot.slane %v1337, 1
      %v1351 = vsel %vm692, %v1349, %v1350
      %v1352 = vrot.slane %v1338, 1
      %v1353 = vrot.slane %v1339, 1
      %v1354 = vsel %vm692, %v1352, %v1353
      %v1358 = vadd.f32 %v1328, %v1348
      %v1359 = vadd.f32 %v1330, %v1351
      %v1360 = vadd.f32 %v1332, %v1354
      %v1367 = vrot.slane %v1328, 2
      %v1368 = vrot.slane %v1329, 2
      %v1369 = vsel %vm714, %v1367, %v1368
      %v1370 = vrot.slane %v1330, 2
      %v1371 = vrot.slane %v1331, 2
      %v1372 = vsel %vm714, %v1370, %v1371
      %v1373 = vrot.slane %v1332, 2
      %v1374 = vrot.slane %v1333, 2
      %v1375 = vsel %vm714, %v1373, %v1374
      %v1379 = vadd.f32 %v1358, %v1369
      %v1380 = vadd.f32 %v1359, %v1372
      %v1381 = vadd.f32 %v1360, %v1375
      %v1382 = vmul.f32 %v1379, 0.125
      %v1383 = vmul.f32 %v1380, 0.125
      %v1384 = vmul.f32 %v1381, 0.125
      %v1385 = vrot.slane %v1328, 1
      %v1386 = vrot.slane %v1329, 1
      %v1387 = vsel %vm692, %v1385, %v1386
      %v1388 = vrot.slane %v1330, 1
      %v1389 = vrot.slane %v1331, 1
      %v1390 = vsel %vm692, %v1388, %v1389
      %v1391 = vrot.slane %v1332, 1
      %v1392 = vrot.slane %v1333, 1
      %v1393 = vsel %vm692, %v1391, %v1392
      %v1400 = vadd.f32 %v1328, %v1387
      %v1401 = vadd.f32 %v1329, %v1386
      %v1402 = vadd.f32 %v1330, %v1390
      %v1403 = vadd.f32 %v1331, %v1389
      %v1404 = vadd.f32 %v1332, %v1393
      %v1405 = vadd.f32 %v1333, %v1392
      %v1406 = vmul.f32 %v1400, 0.5
      %v1407 = vmul.f32 %v1401, 0.5
      %v1408 = vmul.f32 %v1402, 0.5
      %v1409 = vmul.f32 %v1403, 0.5
      %v1410 = vmul.f32 %v1404, 0.5
      %v1411 = vmul.f32 %v1405, 0.5
      %1412 = vst.msk [vmem:[%s442] sm:$0xff] %vm649, %v1227
      %1413 = vst.msk [vmem:[%s442 + $0x8] sm:$0xff] %vm649, %v1228
      %1414 = vst.msk [vmem:[%s442 + $0x10] sm:$0xff] %vm649, %v1229
      %v1415 = vsub.f32 %v458, %v914
      %v1416 = vsub.f32 %v459, %v915
      %v1417 = vsub.f32 %v460, %v916
      %v1418 = vsub.f32 %v464, %v1382
      %v1419 = vsub.f32 %v465, %v1383
      %v1420 = vsub.f32 %v466, %v1384
      %v1421 = vsub.f32 %v1415, %v1418
      %v1422 = vsub.f32 %v1416, %v1419
      %v1423 = vsub.f32 %v1417, %v1420
      %v1430 = vrot.slane %v938, 1
      %v1431 = vrot.slane %v939, 1
      %v1432 = vsel %vm692, %v1430, %v1431
      %v1433 = vrot.slane %v940, 1
      %v1434 = vrot.slane %v941, 1
      %v1435 = vsel %vm692, %v1433, %v1434
      %v1436 = vrot.slane %v942, 1
      %v1437 = vrot.slane %v943, 1
      %v1438 = vsel %vm692, %v1436, %v1437
      %v1442 = vsub.f32 %v461, %v1432
      %v1443 = vsub.f32 %v462, %v1435
      %v1444 = vsub.f32 %v463, %v1438
      %v1451 = vrot.slane %v1406, 1
      %v1452 = vrot.slane %v1407, 1
      %v1453 = vsel %vm692, %v1451, %v1452
      %v1454 = vrot.slane %v1408, 1
      %v1455 = vrot.slane %v1409, 1
      %v1456 = vsel %vm692, %v1454, %v1455
      %v1457 = vrot.slane %v1410, 1
      %v1458 = vrot.slane %v1411, 1
      %v1459 = vsel %vm692, %v1457, %v1458
      %v1463 = vsub.f32 %v467, %v1453
      %v1464 = vsub.f32 %v468, %v1456
      %v1465 = vsub.f32 %v469, %v1459
      %v1466 = vsub.f32 %v1442, %v1463
      %v1467 = vsub.f32 %v1443, %v1464
      %v1468 = vsub.f32 %v1444, %v1465
      %v1469 = vld [vmem:[%s448] sm:$0xff]
      %v1470 = vand.u32 2147483647, %v1421
      %v1471 = vand.u32 2147483647, %v1422
      %v1472 = vand.u32 2147483647, %v1423
      %v1473 = vand.u32 2147483647, %v1466
      %v1474 = vand.u32 2147483647, %v1467
      %v1475 = vand.u32 2147483647, %v1468
      %v1476 = vadd.f32 %v1470, %v1473
      %v1477 = vadd.f32 %v1471, %v1474
      %v1478 = vadd.f32 %v1472, %v1475
      %v1479 = vsel %vm470, %v1476, 0.0
      %v1480 = vsel %vm470, %v1477, 0.0
      %v1481 = vadd.f32 %v1479, %v1480
      %v1482 = vsel %vm470, %v1478, 0.0
      %v1483 = vadd.f32 %v1481, %v1482
      %v1484 = vadd.f32 %v1469, %v1483
      %1485 = vst.msk [vmem:[%s448] sm:$0xff] %vm470, %v1484
      %s1486 = sadd.s32 %s24, %s25
      %s1487 = smul.u32 3, %s1486
      %p1488 = scmp.lt.s32.totalorder %s1487, 5
      %s1489 = scalar_select %p1488, %s1487, 5
      %s1490 = smul.addr %s1489, 8
      %s1491 = scalar_lea.vmem %s6, %s1490
      %s1492 = sadd.s32 %s24, %s25
      %s1493 = smul.u32 3, %s1492
      %p1494 = scmp.lt.s32.totalorder %s1493, 5
      %s1495 = scalar_select %p1494, %s1493, 5
      %s1496 = smul.addr %s1495, 8
      %s1497 = scalar_lea.vmem %s7, %s1496
      %p1498 = scmp.lt.s32.totalorder %s24, 1
      %s1499 = scalar_select %p1498, %s24, 1
      %s1500 = smul.addr %s1499, 8
      %s1501 = scalar_lea.vmem %s8, %s1500
      // Predicated region
      $region49: #{total_loss.6} parent=43 // pred_check
        %p1502 = pneg %p206
      $region50: #{total_loss.6} parent=43 // pred_check_branch
        %1504 = sbr.rel (%p1502) target = $region52
      $region51: #{total_loss.6} parent=43 // pred_region
        %s1505 = sadd.s32 %s24, %s25
        %s1506 = smul.u32 3, %s1505
      $region52: #{total_loss.6} parent=43 // pred_fallthru
        _
      // Predicated region
      $region53: #{total_loss.6} parent=43 // pred_check
        %p1507 = pneg %p234
      $region54: #{total_loss.6} parent=43 // pred_check_branch
        %1509 = sbr.rel (%p1507) target = $region56
      $region55: #{total_loss.6} parent=43 // pred_region
        %s1510 = sadd.s32 %s24, %s25
        %s1511 = smul.u32 3, %s1510
      $region56: #{total_loss.6} parent=43 // pred_fallthru
        _
      // Predicated region
      $region57: #{total_loss.6} parent=43 // pred_check
        %p1512 = pneg %p260
      $region58: #{total_loss.6} parent=43 // pred_check_branch
        %1514 = sbr.rel (%p1512) target = $region60
      $region59: #{total_loss.6} parent=43 // pred_region
        _
      $region60: #{total_loss.6} parent=43 // pred_fallthru
        _
    $region44: #{total_loss.6} parent=5 // pred_fallthru
      _
    %p1515 = scmp.le.s32.totalorder 2, %s15
    // Predicated region
    $region61: #{total_loss.6} parent=5 // pred_check
      %p1516 = pneg %p1515
    $region62: #{total_loss.6} parent=5 // pred_check_branch
      %1518 = sbr.rel (%p1516) target = $region64
    $region63: #{total_loss.6} parent=5 // pred_region
      %s1519 = ssub.s32 %s15, 2
      // Predicated region
      $region65: #{total_loss.6} parent=63 // pred_check
        %p1520 = pneg %p212
      $region66: #{total_loss.6} parent=63 // pred_check_branch
        %1522 = sbr.rel (%p1520) target = $region68
      $region67: #{total_loss.6} parent=63 // pred_region
        %s1523 = sadd.s32 %s26, %s27
        %s1524 = smul.u32 3, %s1523
        %p1525 = scmp.lt.s32.totalorder %s1524, 5
        %s1526 = scalar_select %p1525, %s1524, 5
        %s1527 = smul.addr %s1526, 8
        %s1528 = scalar_lea.vmem %s6, %s1527
      $region68: #{total_loss.6} parent=63 // pred_fallthru
        _
      // Predicated region
      $region69: #{total_loss.6} parent=63 // pred_check
        %p1529 = pneg %p240
      $region70: #{total_loss.6} parent=63 // pred_check_branch
        %1531 = sbr.rel (%p1529) target = $region72
      $region71: #{total_loss.6} parent=63 // pred_region
        %s1532 = sadd.s32 %s26, %s27
        %s1533 = smul.u32 3, %s1532
        %p1534 = scmp.lt.s32.totalorder %s1533, 5
        %s1535 = scalar_select %p1534, %s1533, 5
        %s1536 = smul.addr %s1535, 8
        %s1537 = scalar_lea.vmem %s7, %s1536
      $region72: #{total_loss.6} parent=63 // pred_fallthru
        _
      // Predicated region
      $region73: #{total_loss.6} parent=63 // pred_check
        %p1538 = pneg %p266
      $region74: #{total_loss.6} parent=63 // pred_check_branch
        %1540 = sbr.rel (%p1538) target = $region76
      $region75: #{total_loss.6} parent=63 // pred_region
        %p1541 = scmp.lt.s32.totalorder %s26, 1
        %s1542 = scalar_select %p1541, %s26, 1
        %s1543 = smul.addr %s1542, 8
        %s1544 = scalar_lea.vmem %s8, %s1543
      $region76: #{total_loss.6} parent=63 // pred_fallthru
        _
    $region64: #{total_loss.6} parent=5 // pred_fallthru
      _
  $region6: #{total_loss.6} parent=0 // loop_footer
    %s19 = sadd.s32 1, %s15
  $region7: #{total_loss.6} parent=0 // loop_footer_branch
    %14 = sbr.rel target = $region3
  $region8: #{total_loss.6} parent=0 // loop_exit
    _

// kernel: total_loss.7
$region0: #{total_loss.7}
  #allocation0 [shape = 'u32[]', space=smem, size = 0x4, offset = 0x4, fixed_abs, tag = 'smem constant byte address 0x4 - core index']
  #allocation1 [shape = 'u32[144,128]{1,0:T(1,128)}', space=vmem, size = 0x12000, scoped, tag = 'internal scratch']
  #allocation2 [shape = 'f32[3,6,4]{2,1,0:T(8,128)}', space=vmem, size = 0x3000, scoped, tag = 'scratch operand']
  #allocation3 [shape = 'f32[3,5,4]{2,1,0:T(8,128)}', space=vmem, size = 0x3000, scoped, tag = 'scratch operand']
  #allocation4 [shape = 'f32[3,6,8]{2,1,0:T(8,128)}', space=vmem, size = 0x3000, scoped, tag = 'scratch operand']
  %s0 = inlined_call_operand.vmem [shape: f32[6,4,8], index: 0, kind: input, shape index: {}]
  %s1 = inlined_call_operand.vmem [shape: f32[6,4,8], index: 1, kind: input, shape index: {}]
  %s2 = inlined_call_operand.vmem [shape: f32[6,4,8], index: 2, kind: input, shape index: {}]
  %s3 = inlined_call_operand.vmem [shape: f32[6,4,8], index: 3, kind: input, shape index: {}]
  %s4 = inlined_call_operand.vmem [shape: f32[8,4], index: 4, kind: input, shape index: {}]
  %s5 = inlined_call_operand.vmem [shape: f32[4,8], index: 5, kind: input, shape index: {}]
  %s6 = inlined_call_operand.vmem [shape: f32[6,4,4], index: 6, kind: output, shape index: {0}]
  %s7 = inlined_call_operand.vmem [shape: f32[6,4,4], index: 7, kind: output, shape index: {1}]
  %s8 = inlined_call_operand.vmem [shape: f32[2,4,8], index: 8, kind: output, shape index: {2}]
  %9 = xla_tuple %s6, %s7, %s8
  %s10 = sld [smem:[#allocation0]]
  $region77: #{total_loss.7} parent=0
    _
  %s12 = ssub.s32 1, %s10
  %s13 = scalar_select 0, %s12, %s10
  loop: start=0, step=1, limit=4
  $region2: #{total_loss.7} parent=0 // loop_pre_header
    _
  $region3: #{total_loss.7} parent=0 // loop_header
    %s15 = sphi 0, %s19
    %p16 = scmp.ge.s32.totalorder %s15, 4
    %s22 = sphi 0, %s34
    %s23 = sphi 0, %s30
    %s24 = sphi 0, %s22
    %s25 = sphi 0, %s23
    %s26 = sphi 0, %s24
    %s27 = sphi 0, %s25
    %s39 = sphi 0, %s41
    %s42 = sphi 0, %s39
    %s43 = sphi 0, %s42
    %s59 = sphi 0, %s43
    %s67 = sphi 0, %s69
    %s70 = sphi 0, %s67
    %s71 = sphi 0, %s70
    %s87 = sphi 0, %s71
    %s95 = sphi 0, %s97
    %s98 = sphi 0, %s95
    %s99 = sphi 0, %s98
    %s115 = sphi 0, %s99
    %s123 = sphi 0, %s125
    %s126 = sphi 0, %s123
    %s127 = sphi 0, %s126
    %s143 = sphi 0, %s127
    %s147 = sphi 0, %s147
    %s149 = sphi 0, %s147
    %s150 = sphi 0, %s149
    %s164 = sphi 0, %s150
    %s168 = sphi 0, %s168
    %s170 = sphi 0, %s168
    %s171 = sphi 0, %s170
    %s185 = sphi 0, %s171
    %s193 = sphi 0, %s195
    %s196 = sphi 0, %s193
    %s197 = sphi 0, %s196
    %s213 = sphi 0, %s197
    %s221 = sphi 0, %s223
    %s224 = sphi 0, %s221
    %s225 = sphi 0, %s224
    %s241 = sphi 0, %s225
    %s247 = sphi 0, %s249
    %s250 = sphi 0, %s247
    %s251 = sphi 0, %s250
    %s267 = sphi 0, %s251
  $region4: #{total_loss.7} parent=0 // loop_header_branch
    %18 = sbr.rel (%p16) target = $region8
  $region5: #{total_loss.7} parent=0 // loop_body
    %s20 = ssub.s32 %s15, 1
    %s21 = ssub.s32 %s15, 2
    %s28 = sadd.s32 1, %s23
    %p29 = scmp.ge.s32.totalorder %s28, 1
    %s30 = scalar_select %p29, 0, %s28
    %s31 = sadd.s32 1, %s22
    %s32 = scalar_select %p29, %s31, %s22
    %p33 = scmp.ge.s32.totalorder %s32, 2
    %s34 = scalar_select %p33, 0, %s32
    %s35 = sadd.s32 %s22, %s23
    %s36 = sadd.s32 %s34, %s30
    %s37 = ssub.s32 %s35, %s36
    %p38 = scmp.eq.s32.totalorder %s37, 0
    %s40 = sadd.s32 %s39, 1
    %s41 = scalar_select %p38, %s39, %s40
    %p44 = pneg %p38
    %p45 = scmp.eq.s32.totalorder %s15, 1
    %p46 = por %p44, %p45
    %p47 = scmp.ne.s32.totalorder %s39, %s42
    %p48 = scmp.eq.s32.totalorder %s15, 0
    %p49 = por %p47, %p48
    %p50 = scmp.ne.s32.totalorder %s39, %s42
    %p51 = scmp.eq.s32.totalorder %s20, 1
    %p52 = por %p50, %p51
    %p53 = scmp.ne.s32.totalorder %s42, %s43
    %p54 = scmp.eq.s32.totalorder %s20, 0
    %p55 = por %p53, %p54
    %p56 = scmp.ne.s32.totalorder %s42, %s43
    %p57 = scmp.eq.s32.totalorder %s21, 1
    %p58 = por %p56, %p57
    %p60 = scmp.ne.s32.totalorder %s43, %s59
    %p61 = scmp.eq.s32.totalorder %s21, 0
    %p62 = por %p60, %p61
    %s63 = sadd.s32 %s22, %s23
    %s64 = sadd.s32 %s34, %s30
    %s65 = ssub.s32 %s63, %s64
    %p66 = scmp.eq.s32.totalorder %s65, 0
    %s68 = sadd.s32 %s67, 1
    %s69 = scalar_select %p66, %s67, %s68
    %p72 = pneg %p66
    %p73 = scmp.eq.s32.totalorder %s15, 1
    %p74 = por %p72, %p73
    %p75 = scmp.ne.s32.totalorder %s67, %s70
    %p76 = scmp.eq.s32.totalorder %s15, 0
    %p77 = por %p75, %p76
    %p78 = scmp.ne.s32.totalorder %s67, %s70
    %p79 = scmp.eq.s32.totalorder %s20, 1
    %p80 = por %p78, %p79
    %p81 = scmp.ne.s32.totalorder %s70, %s71
    %p82 = scmp.eq.s32.totalorder %s20, 0
    %p83 = por %p81, %p82
    %p84 = scmp.ne.s32.totalorder %s70, %s71
    %p85 = scmp.eq.s32.totalorder %s21, 1
    %p86 = por %p84, %p85
    %p88 = scmp.ne.s32.totalorder %s71, %s87
    %p89 = scmp.eq.s32.totalorder %s21, 0
    %p90 = por %p88, %p89
    %s91 = sadd.s32 %s22, %s23
    %s92 = sadd.s32 %s34, %s30
    %s93 = ssub.s32 %s91, %s92
    %p94 = scmp.eq.s32.totalorder %s93, 0
    %s96 = sadd.s32 %s95, 1
    %s97 = scalar_select %p94, %s95, %s96
    %p100 = pneg %p94
    %p101 = scmp.eq.s32.totalorder %s15, 1
    %p102 = por %p100, %p101
    %p103 = scmp.ne.s32.totalorder %s95, %s98
    %p104 = scmp.eq.s32.totalorder %s15, 0
    %p105 = por %p103, %p104
    %p106 = scmp.ne.s32.totalorder %s95, %s98
    %p107 = scmp.eq.s32.totalorder %s20, 1
    %p108 = por %p106, %p107
    %p109 = scmp.ne.s32.totalorder %s98, %s99
    %p110 = scmp.eq.s32.totalorder %s20, 0
    %p111 = por %p109, %p110
    %p112 = scmp.ne.s32.totalorder %s98, %s99
    %p113 = scmp.eq.s32.totalorder %s21, 1
    %p114 = por %p112, %p113
    %p116 = scmp.ne.s32.totalorder %s99, %s115
    %p117 = scmp.eq.s32.totalorder %s21, 0
    %p118 = por %p116, %p117
    %s119 = sadd.s32 %s22, %s23
    %s120 = sadd.s32 %s34, %s30
    %s121 = ssub.s32 %s119, %s120
    %p122 = scmp.eq.s32.totalorder %s121, 0
    %s124 = sadd.s32 %s123, 1
    %s125 = scalar_select %p122, %s123, %s124
    %p128 = pneg %p122
    %p129 = scmp.eq.s32.totalorder %s15, 1
    %p130 = por %p128, %p129
    %p131 = scmp.ne.s32.totalorder %s123, %s126
    %p132 = scmp.eq.s32.totalorder %s15, 0
    %p133 = por %p131, %p132
    %p134 = scmp.ne.s32.totalorder %s123, %s126
    %p135 = scmp.eq.s32.totalorder %s20, 1
    %p136 = por %p134, %p135
    %p137 = scmp.ne.s32.totalorder %s126, %s127
    %p138 = scmp.eq.s32.totalorder %s20, 0
    %p139 = por %p137, %p138
    %p140 = scmp.ne.s32.totalorder %s126, %s127
    %p141 = scmp.eq.s32.totalorder %s21, 1
    %p142 = por %p140, %p141
    %p144 = scmp.ne.s32.totalorder %s127, %s143
    %p145 = scmp.eq.s32.totalorder %s21, 0
    %p146 = por %p144, %p145
    %s148 = sadd.s32 %s147, 1
    %p151 = scmp.eq.s32.totalorder %s15, 1
    %p152 = scmp.ne.s32.totalorder %s147, %s149
    %p153 = scmp.eq.s32.totalorder %s15, 0
    %p154 = por %p152, %p153
    %p155 = scmp.ne.s32.totalorder %s147, %s149
    %p156 = scmp.eq.s32.totalorder %s20, 1
    %p157 = por %p155, %p156
    %p158 = scmp.ne.s32.totalorder %s149, %s150
    %p159 = scmp.eq.s32.totalorder %s20, 0
    %p160 = por %p158, %p159
    %p161 = scmp.ne.s32.totalorder %s149, %s150
    %p162 = scmp.eq.s32.totalorder %s21, 1
    %p163 = por %p161, %p162
    %p165 = scmp.ne.s32.totalorder %s150, %s164
    %p166 = scmp.eq.s32.totalorder %s21, 0
    %p167 = por %p165, %p166
    %s169 = sadd.s32 %s168, 1
    %p172 = scmp.eq.s32.totalorder %s15, 1
    %p173 = scmp.ne.s32.totalorder %s168, %s170
    %p174 = scmp.eq.s32.totalorder %s15, 0
    %p175 = por %p173, %p174
    %p176 = scmp.ne.s32.totalorder %s168, %s170
    %p177 = scmp.eq.s32.totalorder %s20, 1
    %p178 = por %p176, %p177
    %p179 = scmp.ne.s32.totalorder %s170, %s171
    %p180 = scmp.eq.s32.totalorder %s20, 0
    %p181 = por %p179, %p180
    %p182 = scmp.ne.s32.totalorder %s170, %s171
    %p183 = scmp.eq.s32.totalorder %s21, 1
    %p184 = por %p182, %p183
    %p186 = scmp.ne.s32.totalorder %s171, %s185
    %p187 = scmp.eq.s32.totalorder %s21, 0
    %p188 = por %p186, %p187
    %s189 = sadd.s32 %s22, %s23
    %s190 = sadd.s32 %s34, %s30
    %s191 = ssub.s32 %s189, %s190
    %p192 = scmp.eq.s32.totalorder %s191, 0
    %s194 = sadd.s32 %s193, 1
    %s195 = scalar_select %p192, %s193, %s194
    %p198 = pneg %p192
    %p199 = scmp.eq.s32.totalorder %s15, 1
    %p200 = por %p198, %p199
    %p201 = scmp.ne.s32.totalorder %s193, %s196
    %p202 = scmp.eq.s32.totalorder %s15, 0
    %p203 = por %p201, %p202
    %p204 = scmp.ne.s32.totalorder %s193, %s196
    %p205 = scmp.eq.s32.totalorder %s20, 1
    %p206 = por %p204, %p205
    %p207 = scmp.ne.s32.totalorder %s196, %s197
    %p208 = scmp.eq.s32.totalorder %s20, 0
    %p209 = por %p207, %p208
    %p210 = scmp.ne.s32.totalorder %s196, %s197
    %p211 = scmp.eq.s32.totalorder %s21, 1
    %p212 = por %p210, %p211
    %p214 = scmp.ne.s32.totalorder %s197, %s213
    %p215 = scmp.eq.s32.totalorder %s21, 0
    %p216 = por %p214, %p215
    %s217 = sadd.s32 %s22, %s23
    %s218 = sadd.s32 %s34, %s30
    %s219 = ssub.s32 %s217, %s218
    %p220 = scmp.eq.s32.totalorder %s219, 0
    %s222 = sadd.s32 %s221, 1
    %s223 = scalar_select %p220, %s221, %s222
    %p226 = pneg %p220
    %p227 = scmp.eq.s32.totalorder %s15, 1
    %p228 = por %p226, %p227
    %p229 = scmp.ne.s32.totalorder %s221, %s224
    %p230 = scmp.eq.s32.totalorder %s15, 0
    %p231 = por %p229, %p230
    %p232 = scmp.ne.s32.totalorder %s221, %s224
    %p233 = scmp.eq.s32.totalorder %s20, 1
    %p234 = por %p232, %p233
    %p235 = scmp.ne.s32.totalorder %s224, %s225
    %p236 = scmp.eq.s32.totalorder %s20, 0
    %p237 = por %p235, %p236
    %p238 = scmp.ne.s32.totalorder %s224, %s225
    %p239 = scmp.eq.s32.totalorder %s21, 1
    %p240 = por %p238, %p239
    %p242 = scmp.ne.s32.totalorder %s225, %s241
    %p243 = scmp.eq.s32.totalorder %s21, 0
    %p244 = por %p242, %p243
    %s245 = ssub.s32 %s22, %s34
    %p246 = scmp.eq.s32.totalorder %s245, 0
    %s248 = sadd.s32 %s247, 1
    %s249 = scalar_select %p246, %s247, %s248
    %p252 = pneg %p246
    %p253 = scmp.eq.s32.totalorder %s15, 1
    %p254 = por %p252, %p253
    %p255 = scmp.ne.s32.totalorder %s247, %s250
    %p256 = scmp.eq.s32.totalorder %s15, 0
    %p257 = por %p255, %p256
    %p258 = scmp.ne.s32.totalorder %s247, %s250
    %p259 = scmp.eq.s32.totalorder %s20, 1
    %p260 = por %p258, %p259
    %p261 = scmp.ne.s32.totalorder %s250, %s251
    %p262 = scmp.eq.s32.totalorder %s20, 0
    %p263 = por %p261, %p262
    %p264 = scmp.ne.s32.totalorder %s250, %s251
    %p265 = scmp.eq.s32.totalorder %s21, 1
    %p266 = por %p264, %p265
    %p268 = scmp.ne.s32.totalorder %s251, %s267
    %p269 = scmp.eq.s32.totalorder %s21, 0
    %p270 = por %p268, %p269
    %p271 = scmp.le.s32.totalorder 1, %s15
    %p272 = scmp.lt.s32.totalorder %s15, 3
    %p273 = pnand %p271, %p272
    %p274 = pneg %p273
    // Predicated region
    $region9: #{total_loss.7} parent=5 // pred_check
      _
    $region10: #{total_loss.7} parent=5 // pred_check_branch
      %276 = sbr.rel (%p273) target = $region12
    $region11: #{total_loss.7} parent=5 // pred_region
      %s277 = ssub.s32 %s15, 1
      // Predicated region
      $region13: #{total_loss.7} parent=11 // pred_check
        %p278 = pneg %p160
      $region14: #{total_loss.7} parent=11 // pred_check_branch
        %280 = sbr.rel (%p278) target = $region16
      $region15: #{total_loss.7} parent=11 // pred_region
        _
      $region16: #{total_loss.7} parent=11 // pred_fallthru
        _
      // Predicated region
      $region17: #{total_loss.7} parent=11 // pred_check
        %p281 = pneg %p181
      $region18: #{total_loss.7} parent=11 // pred_check_branch
        %283 = sbr.rel (%p281) target = $region20
      $region19: #{total_loss.7} parent=11 // pred_region
        _
      $region20: #{total_loss.7} parent=11 // pred_fallthru
        _
    $region12: #{total_loss.7} parent=5 // pred_fallthru
      _
    %p284 = scmp.lt.s32.totalorder %s15, 2
    // Predicated region
    $region21: #{total_loss.7} parent=5 // pred_check
      %p285 = pneg %p284
    $region22: #{total_loss.7} parent=5 // pred_check_branch
      %287 = sbr.rel (%p285) target = $region24
    $region23: #{total_loss.7} parent=5 // pred_region
      // Predicated region
      $region25: #{total_loss.7} parent=23 // pred_check
        %p288 = pneg %p49
      $region26: #{total_loss.7} parent=23 // pred_check_branch
        %290 = sbr.rel (%p288) target = $region28
      $region27: #{total_loss.7} parent=23 // pred_region
        %s291 = sadd.s32 %s22, %s23
        %s292 = smul.u32 3, %s291
        %p293 = scmp.lt.s32.totalorder %s292, 5
        %s294 = scalar_select %p293, %s292, 5
        %s295 = smul.addr %s294, 4
        %s296 = scalar_lea.vmem %s0, %s295
        %s297 = sadd.s32 %s22, %s23
        %s298 = smul.u32 3, %s297
      $region28: #{total_loss.7} parent=23 // pred_fallthru
        _
      // Predicated region
      $region29: #{total_loss.7} parent=23 // pred_check
        %p299 = pneg %p77
      $region30: #{total_loss.7} parent=23 // pred_check_branch
        %301 = sbr.rel (%p299) target = $region32
      $region31: #{total_loss.7} parent=23 // pred_region
        %s302 = sadd.s32 %s22, %s23
        %s303 = smul.u32 3, %s302
        %p304 = scmp.lt.s32.totalorder %s303, 5
        %s305 = scalar_select %p304, %s303, 5
        %s306 = smul.addr %s305, 4
        %s307 = scalar_lea.vmem %s1, %s306
        %s308 = sadd.s32 %s22, %s23
        %s309 = smul.u32 3, %s308
      $region32: #{total_loss.7} parent=23 // pred_fallthru
        _
      // Predicated region
      $region33: #{total_loss.7} parent=23 // pred_check
        %p310 = pneg %p105
      $region34: #{total_loss.7} parent=23 // pred_check_branch
        %312 = sbr.rel (%p310) target = $region36
      $region35: #{total_loss.7} parent=23 // pred_region
        %s313 = sadd.s32 %s22, %s23
        %s314 = smul.u32 3, %s313
        %p315 = scmp.lt.s32.totalorder %s314, 5
        %s316 = scalar_select %p315, %s314, 5
        %s317 = smul.addr %s316, 4
        %s318 = scalar_lea.vmem %s2, %s317
        %s319 = sadd.s32 %s22, %s23
        %s320 = smul.u32 3, %s319
      $region36: #{total_loss.7} parent=23 // pred_fallthru
        _
      // Predicated region
      $region37: #{total_loss.7} parent=23 // pred_check
        %p321 = pneg %p133
      $region38: #{total_loss.7} parent=23 // pred_check_branch
        %323 = sbr.rel (%p321) target = $region40
      $region39: #{total_loss.7} parent=23 // pred_region
        %s324 = sadd.s32 %s22, %s23
        %s325 = smul.u32 3, %s324
        %p326 = scmp.lt.s32.totalorder %s325, 5
        %s327 = scalar_select %p326, %s325, 5
        %s328 = smul.addr %s327, 4
        %s329 = scalar_lea.vmem %s3, %s328
        %s330 = sadd.s32 %s22, %s23
        %s331 = smul.u32 3, %s330
      $region40: #{total_loss.7} parent=23 // pred_fallthru
        _
    $region24: #{total_loss.7} parent=5 // pred_fallthru
      _
    %p332 = scmp.le.s32.totalorder 1, %s15
    %p333 = scmp.lt.s32.totalorder %s15, 3
    %p334 = pnand %p332, %p333
    %p335 = pneg %p334
    // Predicated region
    $region41: #{total_loss.7} parent=5 // pred_check
      _
    $region42: #{total_loss.7} parent=5 // pred_check_branch
      %337 = sbr.rel (%p334) target = $region44
    $region43: #{total_loss.7} parent=5 // pred_region
      %s338 = ssub.s32 %s15, 1
      %s339 = sadd.s32 %s24, %s25
      %s340 = smul.u32 3, %s339
      %p341 = scmp.lt.s32.totalorder %s340, 5
      %s342 = scalar_select %p341, %s340, 5
      %s343 = smul.addr %s342, 4
      %s344 = scalar_lea.vmem %s0, %s343
      %p345 = pneg %p55
      %p346 = pneg %p52
      %s347 = sadd.s32 %s24, %s25
      %s348 = smul.u32 3, %s347
      %p349 = scmp.lt.s32.totalorder %s348, 5
      %s350 = scalar_select %p349, %s348, 5
      %s351 = smul.addr %s350, 4
      %s352 = scalar_lea.vmem %s1, %s351
      %p353 = pneg %p83
      %p354 = pneg %p80
      %s355 = sadd.s32 %s24, %s25
      %s356 = smul.u32 3, %s355
      %p357 = scmp.lt.s32.totalorder %s356, 5
      %s358 = scalar_select %p357, %s356, 5
      %s359 = smul.addr %s358, 4
      %s360 = scalar_lea.vmem %s2, %s359
      %p361 = pneg %p111
      %p362 = pneg %p108
      %s363 = sadd.s32 %s24, %s25
      %s364 = smul.u32 3, %s363
      %p365 = scmp.lt.s32.totalorder %s364, 5
      %s366 = scalar_select %p365, %s364, 5
      %s367 = smul.addr %s366, 4
      %s368 = scalar_lea.vmem %s3, %s367
      %p369 = pneg %p139
      %p370 = pneg %p136
      %p371 = pneg %p160
      %p372 = pneg %p157
      %p373 = pneg %p181
      %p374 = pneg %p178
      %p375 = pneg %p209
      %p376 = pneg %p206
      %s377 = sadd.s32 %s24, %s25
      %s378 = smul.u32 3, %s377
      %p379 = scmp.lt.s32.totalorder %s378, 5
      %s380 = scalar_select %p379, %s378, 5
      %s381 = smul.addr %s380, 4
      %s382 = scalar_lea.vmem %s6, %s381
      %p383 = pneg %p237
      %p384 = pneg %p234
      %s385 = sadd.s32 %s24, %s25
      %s386 = smul.u32 3, %s385
      %p387 = scmp.lt.s32.totalorder %s386, 5
      %s388 = scalar_select %p387, %s386, 5
      %s389 = smul.addr %s388, 4
      %s390 = scalar_lea.vmem %s7, %s389
      %p391 = pneg %p263
      %p392 = pneg %p260
      %p393 = scmp.lt.s32.totalorder %s24, 1
      %s394 = scalar_select %p393, %s24, 1
      %s395 = smul.addr %s394, 4
      %s396 = scalar_lea.vmem %s8, %s395
      %s397 = sadd.s32 %s24, %s25
      %s398 = smul.u32 3, %s397
      %p399 = scmp.lt.s32.totalorder %s398, 5
      %s400 = scalar_select %p399, %s398, 5
      %s401 = smul.addr %s400, 4
      %s402 = scalar_lea.vmem %s0, %s401
      %s403 = sadd.s32 %s24, %s25
      %s404 = smul.u32 3, %s403
      %s405 = sadd.s32 %s24, %s25
      %s406 = smul.u32 3, %s405
      %p407 = scmp.lt.s32.totalorder %s406, 5
      %s408 = scalar_select %p407, %s406, 5
      %s409 = smul.addr %s408, 4
      %s410 = scalar_lea.vmem %s1, %s409
      %s411 = sadd.s32 %s24, %s25
      %s412 = smul.u32 3, %s411
      %s413 = sadd.s32 %s24, %s25
      %s414 = smul.u32 3, %s413
      %p415 = scmp.lt.s32.totalorder %s414, 5
      %s416 = scalar_select %p415, %s414, 5
      %s417 = smul.addr %s416, 4
      %s418 = scalar_lea.vmem %s2, %s417
      %s419 = sadd.s32 %s24, %s25
      %s420 = smul.u32 3, %s419
      %s421 = sadd.s32 %s24, %s25
      %s422 = smul.u32 3, %s421
      %p423 = scmp.lt.s32.totalorder %s422, 5
      %s424 = scalar_select %p423, %s422, 5
      %s425 = smul.addr %s424, 4
      %s426 = scalar_lea.vmem %s3, %s425
      %s427 = sadd.s32 %s24, %s25
      %s428 = smul.u32 3, %s427
      %s429 = sadd.s32 %s24, %s25
      %s430 = smul.u32 3, %s429
      %p431 = scmp.lt.s32.totalorder %s430, 5
      %s432 = scalar_select %p431, %s430, 5
      %s433 = smul.addr %s432, 4
      %s434 = scalar_lea.vmem %s6, %s433
      %s435 = sadd.s32 %s24, %s25
      %s436 = smul.u32 3, %s435
      %s437 = sadd.s32 %s24, %s25
      %s438 = smul.u32 3, %s437
      %p439 = scmp.lt.s32.totalorder %s438, 5
      %s440 = scalar_select %p439, %s438, 5
      %s441 = smul.addr %s440, 4
      %s442 = scalar_lea.vmem %s7, %s441
      %s443 = sadd.s32 %s24, %s25
      %s444 = smul.u32 3, %s443
      %p445 = scmp.lt.s32.totalorder %s24, 1
      %s446 = scalar_select %p445, %s24, 1
      %s447 = smul.addr %s446, 4
      %s448 = scalar_lea.vmem %s8, %s447
      %p449 = scmp.eq.s32.totalorder %s25, 0
      // Predicated region
      $region45: #{total_loss.7} parent=43 // pred_check
        %p450 = pneg %p449
      $region46: #{total_loss.7} parent=43 // pred_check_branch
        %452 = sbr.rel (%p450) target = $region48
      $region47: #{total_loss.7} parent=43 // pred_region
        %vm453 = vcmask 60416
        %454 = vst.msk [vmem:[%s448] sm:$0xf] %vm453, 0.0
      $region48: #{total_loss.7} parent=43 // pred_fallthru
        _
      %v455 = vld [vmem:[%s4] sm:$0xff]
      %v456 = vld [vmem:[%s5] sm:$0xf]
      %v457 = vld [vmem:[%s402] sm:$0xf]
      %v458 = vld [vmem:[%s402 + $0x4] sm:$0xf]
      %v459 = vld [vmem:[%s402 + $0x8] sm:$0xf]
      %v460 = vld [vmem:[%s410] sm:$0xf]
      %v461 = vld [vmem:[%s410 + $0x4] sm:$0xf]
      %v462 = vld [vmem:[%s410 + $0x8] sm:$0xf]
      %v463 = vld [vmem:[%s418] sm:$0xf]
      %v464 = vld [vmem:[%s418 + $0x4] sm:$0xf]
      %v465 = vld [vmem:[%s418 + $0x8] sm:$0xf]
      %v466 = vld [vmem:[%s426] sm:$0xf]
      %v467 = vld [vmem:[%s426 + $0x4] sm:$0xf]
      %v468 = vld [vmem:[%s426 + $0x8] sm:$0xf]
      %v472 = vcombine.low %v457, %v458
      %vm473 = vcmask 64512
      %v474 = vsel %vm473, %v472, 0
      %v476 = vsel %vm473, %v459, 0
      %478 = vmatprep.subr.mxu0 0.0
      %479 = vmatpush1.msra.mxu0 %v455
      %480 = vmatprep.subr.mxu0 0.0
      %481 = vmatpush1.msra.mxu0 0.0
      %482 = vmatprep.subr.mxu0 0.0
      %483 = vmatpush1.msra.mxu0 0.0
      %484 = vmatprep.subr.mxu0 0.0
      %485 = vmatpush1.msra.mxu0 0.0
      %486 = vmatprep.subr.mxu0 0.0
      %487 = vmatpush1.msra.mxu0 0.0
      %488 = vmatprep.subr.mxu0 0.0
      %489 = vmatpush1.msra.mxu0 0.0
      %490 = vmatprep.subr.mxu0 0.0
      %491 = vmatpush1.msra.mxu0 0.0
      %492 = vmatprep.subr.mxu0 0.0
      %493 = vmatpush1.msra.mxu0 0.0
      %494 = vmatprep.subr.mxu0 0.0
      %495 = vmatpush1.msra.mxu0 0.0
      %496 = vmatprep.subr.mxu0 0.0
      %497 = vmatpush1.msra.mxu0 0.0
      %498 = vmatprep.subr.mxu0 0.0
      %499 = vmatpush1.msra.mxu0 0.0
      %500 = vmatprep.subr.mxu0 0.0
      %501 = vmatpush1.msra.mxu0 0.0
      %502 = vmatprep.subr.mxu0 0.0
      %503 = vmatpush1.msra.mxu0 0.0
      %504 = vmatprep.subr.mxu0 0.0
      %505 = vmatpush1.msra.mxu0 0.0
      %506 = vmatprep.subr.mxu0 0.0
      %507 = vmatpush1.msra.mxu0 0.0
      %508 = vmatprep.subr.mxu0 0.0
      %509 = vmatpush1.msra.mxu0 0.0
      %510 = vmatprep.subr.mxu0 0.0
      %511 = vmatpush1.msra.mxu0 0.0
      %512 = vmatprep.subr.mxu0 0.0
      %513 = vmatpush1.msra.mxu0 0.0
      %514 = vmatprep.subr.mxu0 0.0
      %515 = vmatpush1.msra.mxu0 0.0
      %516 = vmatprep.subr.mxu0 0.0
      %517 = vmatpush1.msra.mxu0 0.0
      %518 = vmatprep.subr.mxu0 0.0
      %519 = vmatpush1.msra.mxu0 0.0
      %520 = vmatprep.subr.mxu0 0.0
      %521 = vmatpush1.msra.mxu0 0.0
      %522 = vmatprep.subr.mxu0 0.0
      %523 = vmatpush1.msra.mxu0 0.0
      %524 = vmatprep.subr.mxu0 0.0
      %525 = vmatpush1.msra.mxu0 0.0
      %526 = vmatprep.subr.mxu0 0.0
      %527 = vmatpush1.msra.mxu0 0.0
      %528 = vmatprep.subr.mxu0 0.0
      %529 = vmatpush1.msra.mxu0 0.0
      %530 = vmatprep.subr.mxu0 0.0
      %531 = vmatpush1.msra.mxu0 0.0
      %532 = vmatprep.subr.mxu0 0.0
      %533 = vmatpush1.msra.mxu0 0.0
      %534 = vmatprep.subr.mxu0 0.0
      %535 = vmatpush1.msra.mxu0 0.0
      %536 = vmatprep.subr.mxu0 0.0
      %537 = vmatpush1.msra.mxu0 0.0
      %538 = vmatprep.subr.mxu0 0.0
      %539 = vmatpush1.msra.mxu0 0.0
      %540 = vmatprep.subr.mxu0 0.0
      %541 = vmatpush1.msra.mxu0 0.0
      %542 = vmatprep.mubr.f32.mxu0 0.0
      %543 = vmatmul.mubr.f32.gmra.mrb[0].mxu0 %v474
      %v544 = vpop.f32.mrb[0].mxu0
      %v545 = vadd.f32 0.0, %v544
      %v546 = vpop.f32.mrb[0].mxu0
      %547 = vmatprep.mubr.f32.mxu0 0.0
      %548 = vmatmul.mubr.f32.gmra.mrb[0].mxu0 %v476
      %v549 = vpop.f32.mrb[0].mxu0
      %v550 = vadd.f32 0.0, %v549
      %v551 = vpop.f32.mrb[0].mxu0
      %552 = vdwg.mxu0
      %v554 = vcombine.high %v545, %v545
      %v559 = vcombine.low %v460, %v461
      %v560 = vsel %vm473, %v559, 0
      %v562 = vsel %vm473, %v462, 0
      %564 = vmatprep.subr.mxu0 0.0
      %565 = vmatpush1.msra.mxu0 %v455
      %566 = vmatprep.subr.mxu0 0.0
      %567 = vmatpush1.msra.mxu0 0.0
      %568 = vmatprep.subr.mxu0 0.0
      %569 = vmatpush1.msra.mxu0 0.0
      %570 = vmatprep.subr.mxu0 0.0
      %571 = vmatpush1.msra.mxu0 0.0
      %572 = vmatprep.subr.mxu0 0.0
      %573 = vmatpush1.msra.mxu0 0.0
      %574 = vmatprep.subr.mxu0 0.0
      %575 = vmatpush1.msra.mxu0 0.0
      %576 = vmatprep.subr.mxu0 0.0
      %577 = vmatpush1.msra.mxu0 0.0
      %578 = vmatprep.subr.mxu0 0.0
      %579 = vmatpush1.msra.mxu0 0.0
      %580 = vmatprep.subr.mxu0 0.0
      %581 = vmatpush1.msra.mxu0 0.0
      %582 = vmatprep.subr.mxu0 0.0
      %583 = vmatpush1.msra.mxu0 0.0
      %584 = vmatprep.subr.mxu0 0.0
      %585 = vmatpush1.msra.mxu0 0.0
      %586 = vmatprep.subr.mxu0 0.0
      %587 = vmatpush1.msra.mxu0 0.0
      %588 = vmatprep.subr.mxu0 0.0
      %589 = vmatpush1.msra.mxu0 0.0
      %590 = vmatprep.subr.mxu0 0.0
      %591 = vmatpush1.msra.mxu0 0.0
      %592 = vmatprep.subr.mxu0 0.0
      %593 = vmatpush1.msra.mxu0 0.0
      %594 = vmatprep.subr.mxu0 0.0
      %595 = vmatpush1.msra.mxu0 0.0
      %596 = vmatprep.subr.mxu0 0.0
      %597 = vmatpush1.msra.mxu0 0.0
      %598 = vmatprep.subr.mxu0 0.0
      %599 = vmatpush1.msra.mxu0 0.0
      %600 = vmatprep.subr.mxu0 0.0
      %601 = vmatpush1.msra.mxu0 0.0
      %602 = vmatprep.subr.mxu0 0.0
      %603 = vmatpush1.msra.mxu0 0.0
      %604 = vmatprep.subr.mxu0 0.0
      %605 = vmatpush1.msra.mxu0 0.0
      %606 = vmatprep.subr.mxu0 0.0
      %607 = vmatpush1.msra.mxu0 0.0
      %608 = vmatprep.subr.mxu0 0.0
      %609 = vmatpush1.msra.mxu0 0.0
      %610 = vmatprep.subr.mxu0 0.0
      %611 = vmatpush1.msra.mxu0 0.0
      %612 = vmatprep.subr.mxu0 0.0
      %613 = vmatpush1.msra.mxu0 0.0
      %614 = vmatprep.subr.mxu0 0.0
      %615 = vmatpush1.msra.mxu0 0.0
      %616 = vmatprep.subr.mxu0 0.0
      %617 = vmatpush1.msra.mxu0 0.0
      %618 = vmatprep.subr.mxu0 0.0
      %619 = vmatpush1.msra.mxu0 0.0
      %620 = vmatprep.subr.mxu0 0.0
      %621 = vmatpush1.msra.mxu0 0.0
      %622 = vmatprep.subr.mxu0 0.0
      %623 = vmatpush1.msra.mxu0 0.0
      %624 = vmatprep.subr.mxu0 0.0
      %625 = vmatpush1.msra.mxu0 0.0
      %626 = vmatprep.subr.mxu0 0.0
      %627 = vmatpush1.msra.mxu0 0.0
      %628 = vmatprep.mubr.f32.mxu0 0.0
      %629 = vmatmul.mubr.f32.gmra.mrb[0].mxu0 %v560
      %v630 = vpop.f32.mrb[0].mxu0
      %v631 = vadd.f32 0.0, %v630
      %v632 = vpop.f32.mrb[0].mxu0
      %633 = vmatprep.mubr.f32.mxu0 0.0
      %634 = vmatmul.mubr.f32.gmra.mrb[0].mxu0 %v562
      %v635 = vpop.f32.mrb[0].mxu0
      %v636 = vadd.f32 0.0, %v635
      %v637 = vpop.f32.mrb[0].mxu0
      %638 = vdwg.mxu0
      %v640 = vcombine.high %v631, %v631
      %vm642 = vcmask 27648
      %643 = vst.msk [vmem:[#allocation2 + $0x1] sm:$0xf] %vm642, %v545
      %644 = vst.msk [vmem:[#allocation2 + $0x9] sm:$0xf] %vm642, %v554
      %645 = vst.msk [vmem:[#allocation2 + $0x11] sm:$0xf] %vm642, %v550
      %vm646 = vcmask 25601
      %647 = vst.msk [vmem:[#allocation2 - $0x1] sm:$0x2] %vm646, %v545
      %648 = vst.msk [vmem:[#allocation2 + $0x7] sm:$0x2] %vm646, %v554
      %649 = vst.msk [vmem:[#allocation2 + $0xf] sm:$0x2] %vm646, %v550
      %vm650 = vcmask 27651
      %651 = vst.msk [vmem:[#allocation2 + $0x2] sm:$0x8] %vm650, %v545
      %652 = vst.msk [vmem:[#allocation2 + $0xa] sm:$0x8] %vm650, %v554
      %653 = vst.msk [vmem:[#allocation2 + $0x12] sm:$0x8] %vm650, %v550
      %654 = vst.msk [vmem:[#allocation3 + $0x1] sm:$0xf] %vm642, %v631
      %655 = vst.msk [vmem:[#allocation3 + $0x9] sm:$0xf] %vm642, %v640
      %656 = vst.msk [vmem:[#allocation3 + $0x11] sm:$0xf] %vm642, %v636
      %vm657 = vcmask 24576
      %658 = vst.msk [vmem:[#allocation3] sm:$0x1] %vm657, %v631
      %659 = vst.msk [vmem:[#allocation3 + $0x8] sm:$0x1] %vm657, %v640
      %660 = vst.msk [vmem:[#allocation3 + $0x10] sm:$0x1] %vm657, %v636
      %v661 = vld [vmem:[#allocation2] sm:$0x3f]
      %v662 = vld [vmem:[#allocation2 + $0x8] sm:$0x3f]
      %v663 = vld [vmem:[#allocation2 + $0x10] sm:$0x3f]
      %v664 = vld [vmem:[#allocation3] sm:$0x1f]
      %v665 = vld [vmem:[#allocation3 + $0x8] sm:$0x1f]
      %v666 = vld [vmem:[#allocation3 + $0x10] sm:$0x1f]
      %v667 = vmul.f32 %v661, 6.0
      %v668 = vmul.f32 %v662, 6.0
      %v669 = vmul.f32 %v663, 6.0
      %v673 = vrot.slane %v667, 1
      %v674 = vrot.slane %v668, 1
      %v675 = vrot.slane %v669, 1
      %v679 = vadd.f32 %v661, %v673
      %v680 = vadd.f32 %v662, %v674
      %v681 = vadd.f32 %v663, %v675
      %v685 = vrot.slane %v661, 2
      %v686 = vrot.slane %v662, 2
      %v687 = vrot.slane %v663, 2
      %v691 = vadd.f32 %v679, %v685
      %v692 = vadd.f32 %v680, %v686
      %v693 = vadd.f32 %v681, %v687
      %v697 = vrot.slane %v664, 1
      %v698 = vrot.slane %v665, 1
      %v699 = vrot.slane %v666, 1
      %v703 = vadd.f32 %v664, %v697
      %v704 = vadd.f32 %v665, %v698
      %v705 = vadd.f32 %v666, %v699
      %v706 = vmul.f32 %v703, 4.0
      %v707 = vmul.f32 %v704, 4.0
      %v708 = vmul.f32 %v705, 4.0
      %v709 = vadd.f32 %v691, %v706
      %v710 = vadd.f32 %v692, %v707
      %v711 = vadd.f32 %v693, %v708
      %v712 = vmul.f32 %v709, 0.0625
      %v713 = vmul.f32 %v710, 0.0625
      %v714 = vmul.f32 %v711, 0.0625
      %v718 = vcombine.low %v712, %v713
      %vm719 = vcmask 31744
      %v720 = vsel %vm719, %v718, 0
      %v722 = vsel %vm719, %v714, 0
      %vm724 = vcmask 1043456
      %v726 = vsel %vm724, %v456, 0
      %728 = vmatprep.subr.mxu0 0.0
      %729 = vmatpush1.msra.mxu0 %v726
      %730 = vmatprep.subr.mxu0 0.0
      %731 = vmatpush1.msra.mxu0 0.0
      %732 = vmatprep.subr.mxu0 0.0
      %733 = vmatpush1.msra.mxu0 0.0
      %734 = vmatprep.subr.mxu0 0.0
      %735 = vmatpush1.msra.mxu0 0.0
      %736 = vmatprep.subr.mxu0 0.0
      %737 = vmatpush1.msra.mxu0 0.0
      %738 = vmatprep.subr.mxu0 0.0
      %739 = vmatpush1.msra.mxu0 0.0
      %740 = vmatprep.subr.mxu0 0.0
      %741 = vmatpush1.msra.mxu0 0.0
      %742 = vmatprep.subr.mxu0 0.0
      %743 = vmatpush1.msra.mxu0 0.0
      %744 = vmatprep.subr.mxu0 0.0
      %745 = vmatpush1.msra.mxu0 0.0
      %746 = vmatprep.subr.mxu0 0.0
      %747 = vmatpush1.msra.mxu0 0.0
      %748 = vmatprep.subr.mxu0 0.0
      %749 = vmatpush1.msra.mxu0 0.0
      %750 = vmatprep.subr.mxu0 0.0
      %751 = vmatpush1.msra.mxu0 0.0
      %752 = vmatprep.subr.mxu0 0.0
      %753 = vmatpush1.msra.mxu0 0.0
      %754 = vmatprep.subr.mxu0 0.0
      %755 = vmatpush1.msra.mxu0 0.0
      %756 = vmatprep.subr.mxu0 0.0
      %757 = vmatpush1.msra.mxu0 0.0
      %758 = vmatprep.subr.mxu0 0.0
      %759 = vmatpush1.msra.mxu0 0.0
      %760 = vmatprep.subr.mxu0 0.0
      %761 = vmatpush1.msra.mxu0 0.0
      %762 = vmatprep.subr.mxu0 0.0
      %763 = vmatpush1.msra.mxu0 0.0
      %764 = vmatprep.subr.mxu0 0.0
      %765 = vmatpush1.msra.mxu0 0.0
      %766 = vmatprep.subr.mxu0 0.0
      %767 = vmatpush1.msra.mxu0 0.0
      %768 = vmatprep.subr.mxu0 0.0
      %769 = vmatpush1.msra.mxu0 0.0
      %770 = vmatprep.subr.mxu0 0.0
      %771 = vmatpush1.msra.mxu0 0.0
      %772 = vmatprep.subr.mxu0 0.0
      %773 = vmatpush1.msra.mxu0 0.0
      %774 = vmatprep.subr.mxu0 0.0
      %775 = vmatpush1.msra.mxu0 0.0
      %776 = vmatprep.subr.mxu0 0.0
      %777 = vmatpush1.msra.mxu0 0.0
      %778 = vmatprep.subr.mxu0 0.0
      %779 = vmatpush1.msra.mxu0 0.0
      %780 = vmatprep.subr.mxu0 0.0
      %781 = vmatpush1.msra.mxu0 0.0
      %782 = vmatprep.subr.mxu0 0.0
      %783 = vmatpush1.msra.mxu0 0.0
      %784 = vmatprep.subr.mxu0 0.0
      %785 = vmatpush1.msra.mxu0 0.0
      %786 = vmatprep.subr.mxu0 0.0
      %787 = vmatpush1.msra.mxu0 0.0
      %788 = vmatprep.subr.mxu0 0.0
      %789 = vmatpush1.msra.mxu0 0.0
      %790 = vmatprep.subr.mxu0 0.0
      %791 = vmatpush1.msra.mxu0 0.0
      %792 = vmatprep.mubr.f32.mxu0 0.0
      %793 = vmatmul.mubr.f32.gmra.mrb[0].mxu0 %v720
      %v794 = vpop.f32.mrb[0].mxu0
      %v795 = vadd.f32 0.0, %v794
      %v796 = vpop.f32.mrb[0].mxu0
      %797 = vmatprep.mubr.f32.mxu0 0.0
      %798 = vmatmul.mubr.f32.gmra.mrb[0].mxu0 %v722
      %v799 = vpop.f32.mrb[0].mxu0
      %v800 = vadd.f32 0.0, %v799
      %v801 = vpop.f32.mrb[0].mxu0
      %802 = vdwg.mxu0
      %v804 = vcombine.high %v795, %v795
      %vm806 = vcmask 60416
      %807 = vst.msk [vmem:[#allocation4 + $0x1] sm:$0xf] %vm806, %v795
      %808 = vst.msk [vmem:[#allocation4 + $0x9] sm:$0xf] %vm806, %v804
      %809 = vst.msk [vmem:[#allocation4 + $0x11] sm:$0xf] %vm806, %v800
      %vm810 = vcmask 58369
      %811 = vst.msk [vmem:[#allocation4 - $0x1] sm:$0x2] %vm810, %v795
      %812 = vst.msk [vmem:[#allocation4 + $0x7] sm:$0x2] %vm810, %v804
      %813 = vst.msk [vmem:[#allocation4 + $0xf] sm:$0x2] %vm810, %v800
      %vm814 = vcmask 60419
      %815 = vst.msk [vmem:[#allocation4 + $0x2] sm:$0x8] %vm814, %v795
      %816 = vst.msk [vmem:[#allocation4 + $0xa] sm:$0x8] %vm814, %v804
      %817 = vst.msk [vmem:[#allocation4 + $0x12] sm:$0x8] %vm814, %v800
      %v818 = vld [vmem:[#allocation4] sm:$0x3f]
      %v819 = vld [vmem:[#allocation4 + $0x8] sm:$0x3f]
      %v820 = vld [vmem:[#allocation4 + $0x10] sm:$0x3f]
      %v821 = vmul.f32 %v818, 6.0
      %v822 = vmul.f32 %v819, 6.0
      %v823 = vmul.f32 %v820, 6.0
      %v827 = vrot.slane %v821, 1
      %v828 = vrot.slane %v822, 1
      %v829 = vrot.slane %v823, 1
      %v833 = vadd.f32 %v818, %v827
      %v834 = vadd.f32 %v819, %v828
      %v835 = vadd.f32 %v820, %v829
      %v839 = vrot.slane %v818, 2
      %v840 = vrot.slane %v819, 2
      %v841 = vrot.slane %v820, 2
      %v845 = vadd.f32 %v833, %v839
      %v846 = vadd.f32 %v834, %v840
      %v847 = vadd.f32 %v835, %v841
      %v848 = vmul.f32 %v845, 0.125
      %v849 = vmul.f32 %v846, 0.125
      %v850 = vmul.f32 %v847, 0.125
      %v851 = vrot.slane %v818, 1
      %v852 = vrot.slane %v819, 1
      %v853 = vrot.slane %v820, 1
      %v857 = vadd.f32 %v818, %v851
      %v858 = vadd.f32 %v819, %v852
      %v859 = vadd.f32 %v820, %v853
      %v860 = vmul.f32 %v857, 0.5
      %v861 = vmul.f32 %v858, 0.5
      %v862 = vmul.f32 %v859, 0.5
      %863 = vst.msk [vmem:[%s434] sm:$0xf] %vm642, %v712
      %864 = vst.msk [vmem:[%s434 + $0x4] sm:$0xf] %vm642, %v713
      %865 = vst.msk [vmem:[%s434 + $0x8] sm:$0xf] %vm642, %v714
      %v869 = vcombine.low %v463, %v464
      %v870 = vsel %vm473, %v869, 0
      %v872 = vsel %vm473, %v465, 0
      %874 = vmatprep.subr.mxu0 0.0
      %875 = vmatpush1.msra.mxu0 %v455
      %876 = vmatprep.subr.mxu0 0.0
      %877 = vmatpush1.msra.mxu0 0.0
      %878 = vmatprep.subr.mxu0 0.0
      %879 = vmatpush1.msra.mxu0 0.0
      %880 = vmatprep.subr.mxu0 0.0
      %881 = vmatpush1.msra.mxu0 0.0
      %882 = vmatprep.subr.mxu0 0.0
      %883 = vmatpush1.msra.mxu0 0.0
      %884 = vmatprep.subr.mxu0 0.0
      %885 = vmatpush1.msra.mxu0 0.0
      %886 = vmatprep.subr.mxu0 0.0
      %887 = vmatpush1.msra.mxu0 0.0
      %888 = vmatprep.subr.mxu0 0.0
      %889 = vmatpush1.msra.mxu0 0.0
      %890 = vmatprep.subr.mxu0 0.0
      %891 = vmatpush1.msra.mxu0 0.0
      %892 = vmatprep.subr.mxu0 0.0
      %893 = vmatpush1.msra.mxu0 0.0
      %894 = vmatprep.subr.mxu0 0.0
      %895 = vmatpush1.msra.mxu0 0.0
      %896 = vmatprep.subr.mxu0 0.0
      %897 = vmatpush1.msra.mxu0 0.0
      %898 = vmatprep.subr.mxu0 0.0
      %899 = vmatpush1.msra.mxu0 0.0
      %900 = vmatprep.subr.mxu0 0.0
      %901 = vmatpush1.msra.mxu0 0.0
      %902 = vmatprep.subr.mxu0 0.0
      %903 = vmatpush1.msra.mxu0 0.0
      %904 = vmatprep.subr.mxu0 0.0
      %905 = vmatpush1.msra.mxu0 0.0
      %906 = vmatprep.subr.mxu0 0.0
      %907 = vmatpush1.msra.mxu0 0.0
      %908 = vmatprep.subr.mxu0 0.0
      %909 = vmatpush1.msra.mxu0 0.0
      %910 = vmatprep.subr.mxu0 0.0
      %911 = vmatpush1.msra.mxu0 0.0
      %912 = vmatprep.subr.mxu0 0.0
      %913 = vmatpush1.msra.mxu0 0.0
      %914 = vmatprep.subr.mxu0 0.0
      %915 = vmatpush1.msra.mxu0 0.0
      %916 = vmatprep.subr.mxu0 0.0
      %917 = vmatpush1.msra.mxu0 0.0
      %918 = vmatprep.subr.mxu0 0.0
      %919 = vmatpush1.msra.mxu0 0.0
      %920 = vmatprep.subr.mxu0 0.0
      %921 = vmatpush1.msra.mxu0 0.0
      %922 = vmatprep.subr.mxu0 0.0
      %923 = vmatpush1.msra.mxu0 0.0
      %924 = vmatprep.subr.mxu0 0.0
      %925 = vmatpush1.msra.mxu0 0.0
      %926 = vmatprep.subr.mxu0 0.0
      %927 = vmatpush1.msra.mxu0 0.0
      %928 = vmatprep.subr.mxu0 0.0
      %929 = vmatpush1.msra.mxu0 0.0
      %930 = vmatprep.subr.mxu0 0.0
      %931 = vmatpush1.msra.mxu0 0.0
      %932 = vmatprep.subr.mxu0 0.0
      %933 = vmatpush1.msra.mxu0 0.0
      %934 = vmatprep.subr.mxu0 0.0
      %935 = vmatpush1.msra.mxu0 0.0
      %936 = vmatprep.subr.mxu0 0.0
      %937 = vmatpush1.msra.mxu0 0.0
      %938 = vmatprep.mubr.f32.mxu0 0.0
      %939 = vmatmul.mubr.f32.gmra.mrb[0].mxu0 %v870
      %v940 = vpop.f32.mrb[0].mxu0
      %v941 = vadd.f32 0.0, %v940
      %v942 = vpop.f32.mrb[0].mxu0
      %943 = vmatprep.mubr.f32.mxu0 0.0
      %944 = vmatmul.mubr.f32.gmra.mrb[0].mxu0 %v872
      %v945 = vpop.f32.mrb[0].mxu0
      %v946 = vadd.f32 0.0, %v945
      %v947 = vpop.f32.mrb[0].mxu0
      %948 = vdwg.mxu0
      %v950 = vcombine.high %v941, %v941
      %v955 = vcombine.low %v466, %v467
      %v956 = vsel %vm473, %v955, 0
      %v958 = vsel %vm473, %v468, 0
      %960 = vmatprep.subr.mxu0 0.0
      %961 = vmatpush1.msra.mxu0 %v455
      %962 = vmatprep.subr.mxu0 0.0
      %963 = vmatpush1.msra.mxu0 0.0
      %964 = vmatprep.subr.mxu0 0.0
      %965 = vmatpush1.msra.mxu0 0.0
      %966 = vmatprep.subr.mxu0 0.0
      %967 = vmatpush1.msra.mxu0 0.0
      %968 = vmatprep.subr.mxu0 0.0
      %969 = vmatpush1.msra.mxu0 0.0
      %970 = vmatprep.subr.mxu0 0.0
      %971 = vmatpush1.msra.mxu0 0.0
      %972 = vmatprep.subr.mxu0 0.0
      %973 = vmatpush1.msra.mxu0 0.0
      %974 = vmatprep.subr.mxu0 0.0
      %975 = vmatpush1.msra.mxu0 0.0
      %976 = vmatprep.subr.mxu0 0.0
      %977 = vmatpush1.msra.mxu0 0.0
      %978 = vmatprep.subr.mxu0 0.0
      %979 = vmatpush1.msra.mxu0 0.0
      %980 = vmatprep.subr.mxu0 0.0
      %981 = vmatpush1.msra.mxu0 0.0
      %982 = vmatprep.subr.mxu0 0.0
      %983 = vmatpush1.msra.mxu0 0.0
      %984 = vmatprep.subr.mxu0 0.0
      %985 = vmatpush1.msra.mxu0 0.0
      %986 = vmatprep.subr.mxu0 0.0
      %987 = vmatpush1.msra.mxu0 0.0
      %988 = vmatprep.subr.mxu0 0.0
      %989 = vmatpush1.msra.mxu0 0.0
      %990 = vmatprep.subr.mxu0 0.0
      %991 = vmatpush1.msra.mxu0 0.0
      %992 = vmatprep.subr.mxu0 0.0
      %993 = vmatpush1.msra.mxu0 0.0
      %994 = vmatprep.subr.mxu0 0.0
      %995 = vmatpush1.msra.mxu0 0.0
      %996 = vmatprep.subr.mxu0 0.0
      %997 = vmatpush1.msra.mxu0 0.0
      %998 = vmatprep.subr.mxu0 0.0
      %999 = vmatpush1.msra.mxu0 0.0
      %1000 = vmatprep.subr.mxu0 0.0
      %1001 = vmatpush1.msra.mxu0 0.0
      %1002 = vmatprep.subr.mxu0 0.0
      %1003 = vmatpush1.msra.mxu0 0.0
      %1004 = vmatprep.subr.mxu0 0.0
      %1005 = vmatpush1.msra.mxu0 0.0
      %1006 = vmatprep.subr.mxu0 0.0
      %1007 = vmatpush1.msra.mxu0 0.0
      %1008 = vmatprep.subr.mxu0 0.0
      %1009 = vmatpush1.msra.mxu0 0.0
      %1010 = vmatprep.subr.mxu0 0.0
      %1011 = vmatpush1.msra.mxu0 0.0
      %1012 = vmatprep.subr.mxu0 0.0
      %1013 = vmatpush1.msra.mxu0 0.0
      %1014 = vmatprep.subr.mxu0 0.0
      %1015 = vmatpush1.msra.mxu0 0.0
      %1016 = vmatprep.subr.mxu0 0.0
      %1017 = vmatpush1.msra.mxu0 0.0
      %1018 = vmatprep.subr.mxu0 0.0
      %1019 = vmatpush1.msra.mxu0 0.0
      %1020 = vmatprep.subr.mxu0 0.0
      %1021 = vmatpush1.msra.mxu0 0.0
      %1022 = vmatprep.subr.mxu0 0.0
      %1023 = vmatpush1.msra.mxu0 0.0
      %1024 = vmatprep.mubr.f32.mxu0 0.0
      %1025 = vmatmul.mubr.f32.gmra.mrb[0].mxu0 %v956
      %v1026 = vpop.f32.mrb[0].mxu0
      %v1027 = vadd.f32 0.0, %v1026
      %v1028 = vpop.f32.mrb[0].mxu0
      %1029 = vmatprep.mubr.f32.mxu0 0.0
      %1030 = vmatmul.mubr.f32.gmra.mrb[0].mxu0 %v958
      %v1031 = vpop.f32.mrb[0].mxu0
      %v1032 = vadd.f32 0.0, %v1031
      %v1033 = vpop.f32.mrb[0].mxu0
      %1034 = vdwg.mxu0
      %v1036 = vcombine.high %v1027, %v1027
      %1038 = vst.msk [vmem:[#allocation2 + $0x1] sm:$0xf] %vm642, %v941
      %1039 = vst.msk [vmem:[#allocation2 + $0x9] sm:$0xf] %vm642, %v950
      %1040 = vst.msk [vmem:[#allocation2 + $0x11] sm:$0xf] %vm642, %v946
      %1041 = vst.msk [vmem:[#allocation2 - $0x1] sm:$0x2] %vm646, %v941
      %1042 = vst.msk [vmem:[#allocation2 + $0x7] sm:$0x2] %vm646, %v950
      %1043 = vst.msk [vmem:[#allocation2 + $0xf] sm:$0x2] %vm646, %v946
      %1044 = vst.msk [vmem:[#allocation2 + $0x2] sm:$0x8] %vm650, %v941
      %1045 = vst.msk [vmem:[#allocation2 + $0xa] sm:$0x8] %vm650, %v950
      %1046 = vst.msk [vmem:[#allocation2 + $0x12] sm:$0x8] %vm650, %v946
      %1047 = vst.msk [vmem:[#allocation3 + $0x1] sm:$0xf] %vm642, %v1027
      %1048 = vst.msk [vmem:[#allocation3 + $0x9] sm:$0xf] %vm642, %v1036
      %1049 = vst.msk [vmem:[#allocation3 + $0x11] sm:$0xf] %vm642, %v1032
      %1050 = vst.msk [vmem:[#allocation3] sm:$0x1] %vm657, %v1027
      %1051 = vst.msk [vmem:[#allocation3 + $0x8] sm:$0x1] %vm657, %v1036
      %1052 = vst.msk [vmem:[#allocation3 + $0x10] sm:$0x1] %vm657, %v1032
      %v1053 = vld [vmem:[#allocation2] sm:$0x3f]
      %v1054 = vld [vmem:[#allocation2 + $0x8] sm:$0x3f]
      %v1055 = vld [vmem:[#allocation2 + $0x10] sm:$0x3f]
      %v1056 = vld [vmem:[#allocation3] sm:$0x1f]
      %v1057 = vld [vmem:[#allocation3 + $0x8] sm:$0x1f]
      %v1058 = vld [vmem:[#allocation3 + $0x10] sm:$0x1f]
      %v1059 = vmul.f32 %v1053, 6.0
      %v1060 = vmul.f32 %v1054, 6.0
      %v1061 = vmul.f32 %v1055, 6.0
      %v1065 = vrot.slane %v1059, 1
      %v1066 = vrot.slane %v1060, 1
      %v1067 = vrot.slane %v1061, 1
      %v1071 = vadd.f32 %v1053, %v1065
      %v1072 = vadd.f32 %v1054, %v1066
      %v1073 = vadd.f32 %v1055, %v1067
      %v1077 = vrot.slane %v1053, 2
      %v1078 = vrot.slane %v1054, 2
      %v1079 = vrot.slane %v1055, 2
      %v1083 = vadd.f32 %v1071, %v1077
      %v1084 = vadd.f32 %v1072, %v1078
      %v1085 = vadd.f32 %v1073, %v1079
      %v1089 = vrot.slane %v1056, 1
      %v1090 = vrot.slane %v1057, 1
      %v1091 = vrot.slane %v1058, 1
      %v1095 = vadd.f32 %v1056, %v1089
      %v1096 = vadd.f32 %v1057, %v1090
      %v1097 = vadd.f32 %v1058, %v1091
      %v1098 = vmul.f32 %v1095, 4.0
      %v1099 = vmul.f32 %v1096, 4.0
      %v1100 = vmul.f32 %v1097, 4.0
      %v1101 = vadd.f32 %v1083, %v1098
      %v1102 = vadd.f32 %v1084, %v1099
      %v1103 = vadd.f32 %v1085, %v1100
      %v1104 = vmul.f32 %v1101, 0.0625
      %v1105 = vmul.f32 %v1102, 0.0625
      %v1106 = vmul.f32 %v1103, 0.0625
      %v1110 = vcombine.low %v1104, %v1105
      %v1111 = vsel %vm719, %v1110, 0
      %v1113 = vsel %vm719, %v1106, 0
      %1115 = vmatprep.subr.mxu0 0.0
      %1116 = vmatpush1.msra.mxu0 %v726
      %1117 = vmatprep.subr.mxu0 0.0
      %1118 = vmatpush1.msra.mxu0 0.0
      %1119 = vmatprep.subr.mxu0 0.0
      %1120 = vmatpush1.msra.mxu0 0.0
      %1121 = vmatprep.subr.mxu0 0.0
      %1122 = vmatpush1.msra.mxu0 0.0
      %1123 = vmatprep.subr.mxu0 0.0
      %1124 = vmatpush1.msra.mxu0 0.0
      %1125 = vmatprep.subr.mxu0 0.0
      %1126 = vmatpush1.msra.mxu0 0.0
      %1127 = vmatprep.subr.mxu0 0.0
      %1128 = vmatpush1.msra.mxu0 0.0
      %1129 = vmatprep.subr.mxu0 0.0
      %1130 = vmatpush1.msra.mxu0 0.0
      %1131 = vmatprep.subr.mxu0 0.0
      %1132 = vmatpush1.msra.mxu0 0.0
      %1133 = vmatprep.subr.mxu0 0.0
      %1134 = vmatpush1.msra.mxu0 0.0
      %1135 = vmatprep.subr.mxu0 0.0
      %1136 = vmatpush1.msra.mxu0 0.0
      %1137 = vmatprep.subr.mxu0 0.0
      %1138 = vmatpush1.msra.mxu0 0.0
      %1139 = vmatprep.subr.mxu0 0.0
      %1140 = vmatpush1.msra.mxu0 0.0
      %1141 = vmatprep.subr.mxu0 0.0
      %1142 = vmatpush1.msra.mxu0 0.0
      %1143 = vmatprep.subr.mxu0 0.0
      %1144 = vmatpush1.msra.mxu0 0.0
      %1145 = vmatprep.subr.mxu0 0.0
      %1146 = vmatpush1.msra.mxu0 0.0
      %1147 = vmatprep.subr.mxu0 0.0
      %1148 = vmatpush1.msra.mxu0 0.0
      %1149 = vmatprep.subr.mxu0 0.0
      %1150 = vmatpush1.msra.mxu0 0.0
      %1151 = vmatprep.subr.mxu0 0.0
      %1152 = vmatpush1.msra.mxu0 0.0
      %1153 = vmatprep.subr.mxu0 0.0
      %1154 = vmatpush1.msra.mxu0 0.0
      %1155 = vmatprep.subr.mxu0 0.0
      %1156 = vmatpush1.msra.mxu0 0.0
      %1157 = vmatprep.subr.mxu0 0.0
      %1158 = vmatpush1.msra.mxu0 0.0
      %1159 = vmatprep.subr.mxu0 0.0
      %1160 = vmatpush1.msra.mxu0 0.0
      %1161 = vmatprep.subr.mxu0 0.0
      %1162 = vmatpush1.msra.mxu0 0.0
      %1163 = vmatprep.subr.mxu0 0.0
      %1164 = vmatpush1.msra.mxu0 0.0
      %1165 = vmatprep.subr.mxu0 0.0
      %1166 = vmatpush1.msra.mxu0 0.0
      %1167 = vmatprep.subr.mxu0 0.0
      %1168 = vmatpush1.msra.mxu0 0.0
      %1169 = vmatprep.subr.mxu0 0.0
      %1170 = vmatpush1.msra.mxu0 0.0
      %1171 = vmatprep.subr.mxu0 0.0
      %1172 = vmatpush1.msra.mxu0 0.0
      %1173 = vmatprep.subr.mxu0 0.0
      %1174 = vmatpush1.msra.mxu0 0.0
      %1175 = vmatprep.subr.mxu0 0.0
      %1176 = vmatpush1.msra.mxu0 0.0
      %1177 = vmatprep.subr.mxu0 0.0
      %1178 = vmatpush1.msra.mxu0 0.0
      %1179 = vmatprep.mubr.f32.mxu0 0.0
      %1180 = vmatmul.mubr.f32.gmra.mrb[0].mxu0 %v1111
      %v1181 = vpop.f32.mrb[0].mxu0
      %v1182 = vadd.f32 0.0, %v1181
      %v1183 = vpop.f32.mrb[0].mxu0
      %1184 = vmatprep.mubr.f32.mxu0 0.0
      %1185 = vmatmul.mubr.f32.gmra.mrb[0].mxu0 %v1113
      %v1186 = vpop.f32.mrb[0].mxu0
      %v1187 = vadd.f32 0.0, %v1186
      %v1188 = vpop.f32.mrb[0].mxu0
      %1189 = vdwg.mxu0
      %v1191 = vcombine.high %v1182, %v1182
      %1193 = vst.msk [vmem:[#allocation4 + $0x1] sm:$0xf] %vm806, %v1182
      %1194 = vst.msk [vmem:[#allocation4 + $0x9] sm:$0xf] %vm806, %v1191
      %1195 = vst.msk [vmem:[#allocation4 + $0x11] sm:$0xf] %vm806, %v1187
      %1196 = vst.msk [vmem:[#allocation4 - $0x1] sm:$0x2] %vm810, %v1182
      %1197 = vst.msk [vmem:[#allocation4 + $0x7] sm:$0x2] %vm810, %v1191
      %1198 = vst.msk [vmem:[#allocation4 + $0xf] sm:$0x2] %vm810, %v1187
      %1199 = vst.msk [vmem:[#allocation4 + $0x2] sm:$0x8] %vm814, %v1182
      %1200 = vst.msk [vmem:[#allocation4 + $0xa] sm:$0x8] %vm814, %v1191
      %1201 = vst.msk [vmem:[#allocation4 + $0x12] sm:$0x8] %vm814, %v1187
      %v1202 = vld [vmem:[#allocation4] sm:$0x3f]
      %v1203 = vld [vmem:[#allocation4 + $0x8] sm:$0x3f]
      %v1204 = vld [vmem:[#allocation4 + $0x10] sm:$0x3f]
      %v1205 = vmul.f32 %v1202, 6.0
      %v1206 = vmul.f32 %v1203, 6.0
      %v1207 = vmul.f32 %v1204, 6.0
      %v1211 = vrot.slane %v1205, 1
      %v1212 = vrot.slane %v1206, 1
      %v1213 = vrot.slane %v1207, 1
      %v1217 = vadd.f32 %v1202, %v1211
      %v1218 = vadd.f32 %v1203, %v1212
      %v1219 = vadd.f32 %v1204, %v1213
      %v1223 = vrot.slane %v1202, 2
      %v1224 = vrot.slane %v1203, 2
      %v1225 = vrot.slane %v1204, 2
      %v1229 = vadd.f32 %v1217, %v1223
      %v1230 = vadd.f32 %v1218, %v1224
      %v1231 = vadd.f32 %v1219, %v1225
      %v1232 = vmul.f32 %v1229, 0.125
      %v1233 = vmul.f32 %v1230, 0.125
      %v1234 = vmul.f32 %v1231, 0.125
      %v1235 = vrot.slane %v1202, 1
      %v1236 = vrot.slane %v1203, 1
      %v1237 = vrot.slane %v1204, 1
      %v1241 = vadd.f32 %v1202, %v1235
      %v1242 = vadd.f32 %v1203, %v1236
      %v1243 = vadd.f32 %v1204, %v1237
      %v1244 = vmul.f32 %v1241, 0.5
      %v1245 = vmul.f32 %v1242, 0.5
      %v1246 = vmul.f32 %v1243, 0.5
      %1247 = vst.msk [vmem:[%s442] sm:$0xf] %vm642, %v1104
      %1248 = vst.msk [vmem:[%s442 + $0x4] sm:$0xf] %vm642, %v1105
      %1249 = vst.msk [vmem:[%s442 + $0x8] sm:$0xf] %vm642, %v1106
      %v1250 = vsub.f32 %v457, %v848
      %v1251 = vsub.f32 %v458, %v849
      %v1252 = vsub.f32 %v459, %v850
      %v1253 = vsub.f32 %v463, %v1232
      %v1254 = vsub.f32 %v464, %v1233
      %v1255 = vsub.f32 %v465, %v1234
      %v1256 = vsub.f32 %v1250, %v1253
      %v1257 = vsub.f32 %v1251, %v1254
      %v1258 = vsub.f32 %v1252, %v1255
      %v1262 = vrot.slane %v860, 1
      %v1263 = vrot.slane %v861, 1
      %v1264 = vrot.slane %v862, 1
      %v1268 = vsub.f32 %v460, %v1262
      %v1269 = vsub.f32 %v461, %v1263
      %v1270 = vsub.f32 %v462, %v1264
      %v1274 = vrot.slane %v1244, 1
      %v1275 = vrot.slane %v1245, 1
      %v1276 = vrot.slane %v1246, 1
      %v1280 = vsub.f32 %v466, %v1274
      %v1281 = vsub.f32 %v467, %v1275
      %v1282 = vsub.f32 %v468, %v1276
      %v1283 = vsub.f32 %v1268, %v1280
      %v1284 = vsub.f32 %v1269, %v1281
      %v1285 = vsub.f32 %v1270, %v1282
      %v1286 = vld [vmem:[%s448] sm:$0xf]
      %v1287 = vand.u32 2147483647, %v1256
      %v1288 = vand.u32 2147483647, %v1257
      %v1289 = vand.u32 2147483647, %v1258
      %v1290 = vand.u32 2147483647, %v1283
      %v1291 = vand.u32 2147483647, %v1284
      %v1292 = vand.u32 2147483647, %v1285
      %v1293 = vadd.f32 %v1287, %v1290
      %v1294 = vadd.f32 %v1288, %v1291
      %v1295 = vadd.f32 %v1289, %v1292
      %v1296 = vsel %vm806, %v1293, 0.0
      %v1297 = vsel %vm806, %v1294, 0.0
      %v1298 = vadd.f32 %v1296, %v1297
      %v1299 = vsel %vm806, %v1295, 0.0
      %v1300 = vadd.f32 %v1298, %v1299
      %v1301 = vadd.f32 %v1286, %v1300
      %1302 = vst.msk [vmem:[%s448] sm:$0xf] %vm806, %v1301
      %s1303 = sadd.s32 %s24, %s25
      %s1304 = smul.u32 3, %s1303
      %p1305 = scmp.lt.s32.totalorder %s1304, 5
      %s1306 = scalar_select %p1305, %s1304, 5
      %s1307 = smul.addr %s1306, 4
      %s1308 = scalar_lea.vmem %s6, %s1307
      %s1309 = sadd.s32 %s24, %s25
      %s1310 = smul.u32 3, %s1309
      %p1311 = scmp.lt.s32.totalorder %s1310, 5
      %s1312 = scalar_select %p1311, %s1310, 5
      %s1313 = smul.addr %s1312, 4
      %s1314 = scalar_lea.vmem %s7, %s1313
      %p1315 = scmp.lt.s32.totalorder %s24, 1
      %s1316 = scalar_select %p1315, %s24, 1
      %s1317 = smul.addr %s1316, 4
      %s1318 = scalar_lea.vmem %s8, %s1317
      // Predicated region
      $region49: #{total_loss.7} parent=43 // pred_check
        %p1319 = pneg %p206
      $region50: #{total_loss.7} parent=43 // pred_check_branch
        %1321 = sbr.rel (%p1319) target = $region52
      $region51: #{total_loss.7} parent=43 // pred_region
        %s1322 = sadd.s32 %s24, %s25
        %s1323 = smul.u32 3, %s1322
      $region52: #{total_loss.7} parent=43 // pred_fallthru
        _
      // Predicated region
      $region53: #{total_loss.7} parent=43 // pred_check
        %p1324 = pneg %p234
      $region54: #{total_loss.7} parent=43 // pred_check_branch
        %1326 = sbr.rel (%p1324) target = $region56
      $region55: #{total_loss.7} parent=43 // pred_region
        %s1327 = sadd.s32 %s24, %s25
        %s1328 = smul.u32 3, %s1327
      $region56: #{total_loss.7} parent=43 // pred_fallthru
        _
      // Predicated region
      $region57: #{total_loss.7} parent=43 // pred_check
        %p1329 = pneg %p260
      $region58: #{total_loss.7} parent=43 // pred_check_branch
        %1331 = sbr.rel (%p1329) target = $region60
      $region59: #{total_loss.7} parent=43 // pred_region
        _
      $region60: #{total_loss.7} parent=43 // pred_fallthru
        _
    $region44: #{total_loss.7} parent=5 // pred_fallthru
      _
    %p1332 = scmp.le.s32.totalorder 2, %s15
    // Predicated region
    $region61: #{total_loss.7} parent=5 // pred_check
      %p1333 = pneg %p1332
    $region62: #{total_loss.7} parent=5 // pred_check_branch
      %1335 = sbr.rel (%p1333) target = $region64
    $region63: #{total_loss.7} parent=5 // pred_region
      %s1336 = ssub.s32 %s15, 2
      // Predicated region
      $region65: #{total_loss.7} parent=63 // pred_check
        %p1337 = pneg %p212
      $region66: #{total_loss.7} parent=63 // pred_check_branch
        %1339 = sbr.rel (%p1337) target = $region68
      $region67: #{total_loss.7} parent=63 // pred_region
        %s1340 = sadd.s32 %s26, %s27
        %s1341 = smul.u32 3, %s1340
        %p1342 = scmp.lt.s32.totalorder %s1341, 5
        %s1343 = scalar_select %p1342, %s1341, 5
        %s1344 = smul.addr %s1343, 4
        %s1345 = scalar_lea.vmem %s6, %s1344
      $region68: #{total_loss.7} parent=63 // pred_fallthru
        _
      // Predicated region
      $region69: #{total_loss.7} parent=63 // pred_check
        %p1346 = pneg %p240
      $region70: #{total_loss.7} parent=63 // pred_check_branch
        %1348 = sbr.rel (%p1346) target = $region72
      $region71: #{total_loss.7} parent=63 // pred_region
        %s1349 = sadd.s32 %s26, %s27
        %s1350 = smul.u32 3, %s1349
        %p1351 = scmp.lt.s32.totalorder %s1350, 5
        %s1352 = scalar_select %p1351, %s1350, 5
        %s1353 = smul.addr %s1352, 4
        %s1354 = scalar_lea.vmem %s7, %s1353
      $region72: #{total_loss.7} parent=63 // pred_fallthru
        _
      // Predicated region
      $region73: #{total_loss.7} parent=63 // pred_check
        %p1355 = pneg %p266
      $region74: #{total_loss.7} parent=63 // pred_check_branch
        %1357 = sbr.rel (%p1355) target = $region76
      $region75: #{total_loss.7} parent=63 // pred_region
        %p1358 = scmp.lt.s32.totalorder %s26, 1
        %s1359 = scalar_select %p1358, %s26, 1
        %s1360 = smul.addr %s1359, 4
        %s1361 = scalar_lea.vmem %s8, %s1360
      $region76: #{total_loss.7} parent=63 // pred_fallthru
        _
    $region64: #{total_loss.7} parent=5 // pred_fallthru
      _
  $region6: #{total_loss.7} parent=0 // loop_footer
    %s19 = sadd.s32 1, %s15
  $region7: #{total_loss.7} parent=0 // loop_footer_branch
    %14 = sbr.rel target = $region3
  $region8: #{total_loss.7} parent=0 // loop_exit
    _

// kernel: total_loss.5
$region0: #{total_loss.5}
  #allocation0 [shape = 'u32[]', space=smem, size = 0x4, offset = 0x4, fixed_abs, tag = 'smem constant byte address 0x4 - core index']
  #allocation1 [shape = 'u32[144,128]{1,0:T(1,128)}', space=vmem, size = 0x12000, scoped, tag = 'internal scratch']
  %s0 = inlined_call_operand.vmem [shape: f32[16,128], index: 0, kind: input, shape index: {}]
  %s1 = inlined_call_operand.vmem [shape: f32[16,128], index: 1, kind: input, shape index: {}]
  %s2 = inlined_call_operand.vmem [shape: f32[16,128], index: 2, kind: input, shape index: {}]
  %s3 = inlined_call_operand.vmem [shape: f32[16,128], index: 3, kind: input, shape index: {}]
  %s4 = inlined_call_operand.vmem [shape: f32[16,128], index: 4, kind: input, shape index: {}]
  %s5 = inlined_call_operand.vmem [shape: f32[16,128], index: 5, kind: input, shape index: {}]
  %s6 = inlined_call_operand.vmem [shape: f32[16,128], index: 6, kind: input, shape index: {}]
  %s7 = inlined_call_operand.vmem [shape: f32[16,128], index: 7, kind: input, shape index: {}]
  %s8 = inlined_call_operand.vmem [shape: f32[2,4,8,128], index: 8, kind: output, shape index: {}]
  %s9 = sld [smem:[#allocation0]]
  $region69: #{total_loss.5} parent=0
    _
  %s11 = ssub.s32 1, %s9
  %s12 = scalar_select 0, %s11, %s9
  loop: start=0, step=1, limit=4
  $region2: #{total_loss.5} parent=0 // loop_pre_header
    _
  $region3: #{total_loss.5} parent=0 // loop_header
    %s14 = sphi 0, %s18
    %p15 = scmp.ge.s32.totalorder %s14, 4
    %s21 = sphi 0, %s33
    %s22 = sphi 0, %s29
    %s23 = sphi 0, %s21
    %s24 = sphi 0, %s22
    %s25 = sphi 0, %s23
    %s26 = sphi 0, %s24
    %s38 = sphi 0, %s40
    %s41 = sphi 0, %s38
    %s42 = sphi 0, %s41
    %s58 = sphi 0, %s42
    %s66 = sphi 0, %s68
    %s69 = sphi 0, %s66
    %s70 = sphi 0, %s69
    %s86 = sphi 0, %s70
    %s94 = sphi 0, %s96
    %s97 = sphi 0, %s94
    %s98 = sphi 0, %s97
    %s114 = sphi 0, %s98
    %s122 = sphi 0, %s124
    %s125 = sphi 0, %s122
    %s126 = sphi 0, %s125
    %s142 = sphi 0, %s126
    %s150 = sphi 0, %s152
    %s153 = sphi 0, %s150
    %s154 = sphi 0, %s153
    %s170 = sphi 0, %s154
    %s178 = sphi 0, %s180
    %s181 = sphi 0, %s178
    %s182 = sphi 0, %s181
    %s198 = sphi 0, %s182
    %s206 = sphi 0, %s208
    %s209 = sphi 0, %s206
    %s210 = sphi 0, %s209
    %s226 = sphi 0, %s210
    %s234 = sphi 0, %s236
    %s237 = sphi 0, %s234
    %s238 = sphi 0, %s237
    %s254 = sphi 0, %s238
    %s260 = sphi 0, %s262
    %s263 = sphi 0, %s260
    %s264 = sphi 0, %s263
    %s280 = sphi 0, %s264
  $region4: #{total_loss.5} parent=0 // loop_header_branch
    %17 = sbr.rel (%p15) target = $region8
  $region5: #{total_loss.5} parent=0 // loop_body
    %s19 = ssub.s32 %s14, 1
    %s20 = ssub.s32 %s14, 2
    %s27 = sadd.s32 1, %s22
    %p28 = scmp.ge.s32.totalorder %s27, 1
    %s29 = scalar_select %p28, 0, %s27
    %s30 = sadd.s32 1, %s21
    %s31 = scalar_select %p28, %s30, %s21
    %p32 = scmp.ge.s32.totalorder %s31, 2
    %s33 = scalar_select %p32, 0, %s31
    %s34 = sadd.s32 %s21, %s22
    %s35 = sadd.s32 %s33, %s29
    %s36 = ssub.s32 %s34, %s35
    %p37 = scmp.eq.s32.totalorder %s36, 0
    %s39 = sadd.s32 %s38, 1
    %s40 = scalar_select %p37, %s38, %s39
    %p43 = pneg %p37
    %p44 = scmp.eq.s32.totalorder %s14, 1
    %p45 = por %p43, %p44
    %p46 = scmp.ne.s32.totalorder %s38, %s41
    %p47 = scmp.eq.s32.totalorder %s14, 0
    %p48 = por %p46, %p47
    %p49 = scmp.ne.s32.totalorder %s38, %s41
    %p50 = scmp.eq.s32.totalorder %s19, 1
    %p51 = por %p49, %p50
    %p52 = scmp.ne.s32.totalorder %s41, %s42
    %p53 = scmp.eq.s32.totalorder %s19, 0
    %p54 = por %p52, %p53
    %p55 = scmp.ne.s32.totalorder %s41, %s42
    %p56 = scmp.eq.s32.totalorder %s20, 1
    %p57 = por %p55, %p56
    %p59 = scmp.ne.s32.totalorder %s42, %s58
    %p60 = scmp.eq.s32.totalorder %s20, 0
    %p61 = por %p59, %p60
    %s62 = sadd.s32 %s21, %s22
    %s63 = sadd.s32 %s33, %s29
    %s64 = ssub.s32 %s62, %s63
    %p65 = scmp.eq.s32.totalorder %s64, 0
    %s67 = sadd.s32 %s66, 1
    %s68 = scalar_select %p65, %s66, %s67
    %p71 = pneg %p65
    %p72 = scmp.eq.s32.totalorder %s14, 1
    %p73 = por %p71, %p72
    %p74 = scmp.ne.s32.totalorder %s66, %s69
    %p75 = scmp.eq.s32.totalorder %s14, 0
    %p76 = por %p74, %p75
    %p77 = scmp.ne.s32.totalorder %s66, %s69
    %p78 = scmp.eq.s32.totalorder %s19, 1
    %p79 = por %p77, %p78
    %p80 = scmp.ne.s32.totalorder %s69, %s70
    %p81 = scmp.eq.s32.totalorder %s19, 0
    %p82 = por %p80, %p81
    %p83 = scmp.ne.s32.totalorder %s69, %s70
    %p84 = scmp.eq.s32.totalorder %s20, 1
    %p85 = por %p83, %p84
    %p87 = scmp.ne.s32.totalorder %s70, %s86
    %p88 = scmp.eq.s32.totalorder %s20, 0
    %p89 = por %p87, %p88
    %s90 = sadd.s32 %s21, %s22
    %s91 = sadd.s32 %s33, %s29
    %s92 = ssub.s32 %s90, %s91
    %p93 = scmp.eq.s32.totalorder %s92, 0
    %s95 = sadd.s32 %s94, 1
    %s96 = scalar_select %p93, %s94, %s95
    %p99 = pneg %p93
    %p100 = scmp.eq.s32.totalorder %s14, 1
    %p101 = por %p99, %p100
    %p102 = scmp.ne.s32.totalorder %s94, %s97
    %p103 = scmp.eq.s32.totalorder %s14, 0
    %p104 = por %p102, %p103
    %p105 = scmp.ne.s32.totalorder %s94, %s97
    %p106 = scmp.eq.s32.totalorder %s19, 1
    %p107 = por %p105, %p106
    %p108 = scmp.ne.s32.totalorder %s97, %s98
    %p109 = scmp.eq.s32.totalorder %s19, 0
    %p110 = por %p108, %p109
    %p111 = scmp.ne.s32.totalorder %s97, %s98
    %p112 = scmp.eq.s32.totalorder %s20, 1
    %p113 = por %p111, %p112
    %p115 = scmp.ne.s32.totalorder %s98, %s114
    %p116 = scmp.eq.s32.totalorder %s20, 0
    %p117 = por %p115, %p116
    %s118 = sadd.s32 %s21, %s22
    %s119 = sadd.s32 %s33, %s29
    %s120 = ssub.s32 %s118, %s119
    %p121 = scmp.eq.s32.totalorder %s120, 0
    %s123 = sadd.s32 %s122, 1
    %s124 = scalar_select %p121, %s122, %s123
    %p127 = pneg %p121
    %p128 = scmp.eq.s32.totalorder %s14, 1
    %p129 = por %p127, %p128
    %p130 = scmp.ne.s32.totalorder %s122, %s125
    %p131 = scmp.eq.s32.totalorder %s14, 0
    %p132 = por %p130, %p131
    %p133 = scmp.ne.s32.totalorder %s122, %s125
    %p134 = scmp.eq.s32.totalorder %s19, 1
    %p135 = por %p133, %p134
    %p136 = scmp.ne.s32.totalorder %s125, %s126
    %p137 = scmp.eq.s32.totalorder %s19, 0
    %p138 = por %p136, %p137
    %p139 = scmp.ne.s32.totalorder %s125, %s126
    %p140 = scmp.eq.s32.totalorder %s20, 1
    %p141 = por %p139, %p140
    %p143 = scmp.ne.s32.totalorder %s126, %s142
    %p144 = scmp.eq.s32.totalorder %s20, 0
    %p145 = por %p143, %p144
    %s146 = sadd.s32 %s21, %s22
    %s147 = sadd.s32 %s33, %s29
    %s148 = ssub.s32 %s146, %s147
    %p149 = scmp.eq.s32.totalorder %s148, 0
    %s151 = sadd.s32 %s150, 1
    %s152 = scalar_select %p149, %s150, %s151
    %p155 = pneg %p149
    %p156 = scmp.eq.s32.totalorder %s14, 1
    %p157 = por %p155, %p156
    %p158 = scmp.ne.s32.totalorder %s150, %s153
    %p159 = scmp.eq.s32.totalorder %s14, 0
    %p160 = por %p158, %p159
    %p161 = scmp.ne.s32.totalorder %s150, %s153
    %p162 = scmp.eq.s32.totalorder %s19, 1
    %p163 = por %p161, %p162
    %p164 = scmp.ne.s32.totalorder %s153, %s154
    %p165 = scmp.eq.s32.totalorder %s19, 0
    %p166 = por %p164, %p165
    %p167 = scmp.ne.s32.totalorder %s153, %s154
    %p168 = scmp.eq.s32.totalorder %s20, 1
    %p169 = por %p167, %p168
    %p171 = scmp.ne.s32.totalorder %s154, %s170
    %p172 = scmp.eq.s32.totalorder %s20, 0
    %p173 = por %p171, %p172
    %s174 = sadd.s32 %s21, %s22
    %s175 = sadd.s32 %s33, %s29
    %s176 = ssub.s32 %s174, %s175
    %p177 = scmp.eq.s32.totalorder %s176, 0
    %s179 = sadd.s32 %s178, 1
    %s180 = scalar_select %p177, %s178, %s179
    %p183 = pneg %p177
    %p184 = scmp.eq.s32.totalorder %s14, 1
    %p185 = por %p183, %p184
    %p186 = scmp.ne.s32.totalorder %s178, %s181
    %p187 = scmp.eq.s32.totalorder %s14, 0
    %p188 = por %p186, %p187
    %p189 = scmp.ne.s32.totalorder %s178, %s181
    %p190 = scmp.eq.s32.totalorder %s19, 1
    %p191 = por %p189, %p190
    %p192 = scmp.ne.s32.totalorder %s181, %s182
    %p193 = scmp.eq.s32.totalorder %s19, 0
    %p194 = por %p192, %p193
    %p195 = scmp.ne.s32.totalorder %s181, %s182
    %p196 = scmp.eq.s32.totalorder %s20, 1
    %p197 = por %p195, %p196
    %p199 = scmp.ne.s32.totalorder %s182, %s198
    %p200 = scmp.eq.s32.totalorder %s20, 0
    %p201 = por %p199, %p200
    %s202 = sadd.s32 %s21, %s22
    %s203 = sadd.s32 %s33, %s29
    %s204 = ssub.s32 %s202, %s203
    %p205 = scmp.eq.s32.totalorder %s204, 0
    %s207 = sadd.s32 %s206, 1
    %s208 = scalar_select %p205, %s206, %s207
    %p211 = pneg %p205
    %p212 = scmp.eq.s32.totalorder %s14, 1
    %p213 = por %p211, %p212
    %p214 = scmp.ne.s32.totalorder %s206, %s209
    %p215 = scmp.eq.s32.totalorder %s14, 0
    %p216 = por %p214, %p215
    %p217 = scmp.ne.s32.totalorder %s206, %s209
    %p218 = scmp.eq.s32.totalorder %s19, 1
    %p219 = por %p217, %p218
    %p220 = scmp.ne.s32.totalorder %s209, %s210
    %p221 = scmp.eq.s32.totalorder %s19, 0
    %p222 = por %p220, %p221
    %p223 = scmp.ne.s32.totalorder %s209, %s210
    %p224 = scmp.eq.s32.totalorder %s20, 1
    %p225 = por %p223, %p224
    %p227 = scmp.ne.s32.totalorder %s210, %s226
    %p228 = scmp.eq.s32.totalorder %s20, 0
    %p229 = por %p227, %p228
    %s230 = sadd.s32 %s21, %s22
    %s231 = sadd.s32 %s33, %s29
    %s232 = ssub.s32 %s230, %s231
    %p233 = scmp.eq.s32.totalorder %s232, 0
    %s235 = sadd.s32 %s234, 1
    %s236 = scalar_select %p233, %s234, %s235
    %p239 = pneg %p233
    %p240 = scmp.eq.s32.totalorder %s14, 1
    %p241 = por %p239, %p240
    %p242 = scmp.ne.s32.totalorder %s234, %s237
    %p243 = scmp.eq.s32.totalorder %s14, 0
    %p244 = por %p242, %p243
    %p245 = scmp.ne.s32.totalorder %s234, %s237
    %p246 = scmp.eq.s32.totalorder %s19, 1
    %p247 = por %p245, %p246
    %p248 = scmp.ne.s32.totalorder %s237, %s238
    %p249 = scmp.eq.s32.totalorder %s19, 0
    %p250 = por %p248, %p249
    %p251 = scmp.ne.s32.totalorder %s237, %s238
    %p252 = scmp.eq.s32.totalorder %s20, 1
    %p253 = por %p251, %p252
    %p255 = scmp.ne.s32.totalorder %s238, %s254
    %p256 = scmp.eq.s32.totalorder %s20, 0
    %p257 = por %p255, %p256
    %s258 = ssub.s32 %s21, %s33
    %p259 = scmp.eq.s32.totalorder %s258, 0
    %s261 = sadd.s32 %s260, 1
    %s262 = scalar_select %p259, %s260, %s261
    %p265 = pneg %p259
    %p266 = scmp.eq.s32.totalorder %s14, 1
    %p267 = por %p265, %p266
    %p268 = scmp.ne.s32.totalorder %s260, %s263
    %p269 = scmp.eq.s32.totalorder %s14, 0
    %p270 = por %p268, %p269
    %p271 = scmp.ne.s32.totalorder %s260, %s263
    %p272 = scmp.eq.s32.totalorder %s19, 1
    %p273 = por %p271, %p272
    %p274 = scmp.ne.s32.totalorder %s263, %s264
    %p275 = scmp.eq.s32.totalorder %s19, 0
    %p276 = por %p274, %p275
    %p277 = scmp.ne.s32.totalorder %s263, %s264
    %p278 = scmp.eq.s32.totalorder %s20, 1
    %p279 = por %p277, %p278
    %p281 = scmp.ne.s32.totalorder %s264, %s280
    %p282 = scmp.eq.s32.totalorder %s20, 0
    %p283 = por %p281, %p282
    %p284 = scmp.le.s32.totalorder 1, %s14
    %p285 = scmp.lt.s32.totalorder %s14, 3
    %p286 = pnand %p284, %p285
    %p287 = pneg %p286
    // Predicated region
    $region9: #{total_loss.5} parent=5 // pred_check
      _
    $region10: #{total_loss.5} parent=5 // pred_check_branch
      %289 = sbr.rel (%p286) target = $region12
    $region11: #{total_loss.5} parent=5 // pred_region
      %s290 = ssub.s32 %s14, 1
    $region12: #{total_loss.5} parent=5 // pred_fallthru
      _
    %p291 = scmp.lt.s32.totalorder %s14, 2
    // Predicated region
    $region13: #{total_loss.5} parent=5 // pred_check
      %p292 = pneg %p291
    $region14: #{total_loss.5} parent=5 // pred_check_branch
      %294 = sbr.rel (%p292) target = $region16
    $region15: #{total_loss.5} parent=5 // pred_region
      // Predicated region
      $region17: #{total_loss.5} parent=15 // pred_check
        %p295 = pneg %p48
      $region18: #{total_loss.5} parent=15 // pred_check_branch
        %297 = sbr.rel (%p295) target = $region20
      $region19: #{total_loss.5} parent=15 // pred_region
        %s298 = sadd.s32 %s21, %s22
        %p299 = scmp.lt.s32.totalorder %s298, 1
        %s300 = scalar_select %p299, %s298, 1
        %s301 = smul.addr %s300, 8
        %s302 = scalar_lea.vmem %s0, %s301
        %s303 = sadd.s32 %s21, %s22
      $region20: #{total_loss.5} parent=15 // pred_fallthru
        _
      // Predicated region
      $region21: #{total_loss.5} parent=15 // pred_check
        %p304 = pneg %p76
      $region22: #{total_loss.5} parent=15 // pred_check_branch
        %306 = sbr.rel (%p304) target = $region24
      $region23: #{total_loss.5} parent=15 // pred_region
        %s307 = sadd.s32 %s21, %s22
        %p308 = scmp.lt.s32.totalorder %s307, 1
        %s309 = scalar_select %p308, %s307, 1
        %s310 = smul.addr %s309, 8
        %s311 = scalar_lea.vmem %s1, %s310
        %s312 = sadd.s32 %s21, %s22
      $region24: #{total_loss.5} parent=15 // pred_fallthru
        _
      // Predicated region
      $region25: #{total_loss.5} parent=15 // pred_check
        %p313 = pneg %p104
      $region26: #{total_loss.5} parent=15 // pred_check_branch
        %315 = sbr.rel (%p313) target = $region28
      $region27: #{total_loss.5} parent=15 // pred_region
        %s316 = sadd.s32 %s21, %s22
        %p317 = scmp.lt.s32.totalorder %s316, 1
        %s318 = scalar_select %p317, %s316, 1
        %s319 = smul.addr %s318, 8
        %s320 = scalar_lea.vmem %s2, %s319
        %s321 = sadd.s32 %s21, %s22
      $region28: #{total_loss.5} parent=15 // pred_fallthru
        _
      // Predicated region
      $region29: #{total_loss.5} parent=15 // pred_check
        %p322 = pneg %p132
      $region30: #{total_loss.5} parent=15 // pred_check_branch
        %324 = sbr.rel (%p322) target = $region32
      $region31: #{total_loss.5} parent=15 // pred_region
        %s325 = sadd.s32 %s21, %s22
        %p326 = scmp.lt.s32.totalorder %s325, 1
        %s327 = scalar_select %p326, %s325, 1
        %s328 = smul.addr %s327, 8
        %s329 = scalar_lea.vmem %s3, %s328
        %s330 = sadd.s32 %s21, %s22
      $region32: #{total_loss.5} parent=15 // pred_fallthru
        _
      // Predicated region
      $region33: #{total_loss.5} parent=15 // pred_check
        %p331 = pneg %p160
      $region34: #{total_loss.5} parent=15 // pred_check_branch
        %333 = sbr.rel (%p331) target = $region36
      $region35: #{total_loss.5} parent=15 // pred_region
        %s334 = sadd.s32 %s21, %s22
        %p335 = scmp.lt.s32.totalorder %s334, 1
        %s336 = scalar_select %p335, %s334, 1
        %s337 = smul.addr %s336, 8
        %s338 = scalar_lea.vmem %s4, %s337
        %s339 = sadd.s32 %s21, %s22
      $region36: #{total_loss.5} parent=15 // pred_fallthru
        _
      // Predicated region
      $region37: #{total_loss.5} parent=15 // pred_check
        %p340 = pneg %p188
      $region38: #{total_loss.5} parent=15 // pred_check_branch
        %342 = sbr.rel (%p340) target = $region40
      $region39: #{total_loss.5} parent=15 // pred_region
        %s343 = sadd.s32 %s21, %s22
        %p344 = scmp.lt.s32.totalorder %s343, 1
        %s345 = scalar_select %p344, %s343, 1
        %s346 = smul.addr %s345, 8
        %s347 = scalar_lea.vmem %s5, %s346
        %s348 = sadd.s32 %s21, %s22
      $region40: #{total_loss.5} parent=15 // pred_fallthru
        _
      // Predicated region
      $region41: #{total_loss.5} parent=15 // pred_check
        %p349 = pneg %p216
      $region42: #{total_loss.5} parent=15 // pred_check_branch
        %351 = sbr.rel (%p349) target = $region44
      $region43: #{total_loss.5} parent=15 // pred_region
        %s352 = sadd.s32 %s21, %s22
        %p353 = scmp.lt.s32.totalorder %s352, 1
        %s354 = scalar_select %p353, %s352, 1
        %s355 = smul.addr %s354, 8
        %s356 = scalar_lea.vmem %s6, %s355
        %s357 = sadd.s32 %s21, %s22
      $region44: #{total_loss.5} parent=15 // pred_fallthru
        _
      // Predicated region
      $region45: #{total_loss.5} parent=15 // pred_check
        %p358 = pneg %p244
      $region46: #{total_loss.5} parent=15 // pred_check_branch
        %360 = sbr.rel (%p358) target = $region48
      $region47: #{total_loss.5} parent=15 // pred_region
        %s361 = sadd.s32 %s21, %s22
        %p362 = scmp.lt.s32.totalorder %s361, 1
        %s363 = scalar_select %p362, %s361, 1
        %s364 = smul.addr %s363, 8
        %s365 = scalar_lea.vmem %s7, %s364
        %s366 = sadd.s32 %s21, %s22
      $region48: #{total_loss.5} parent=15 // pred_fallthru
        _
    $region16: #{total_loss.5} parent=5 // pred_fallthru
      _
    %p367 = scmp.le.s32.totalorder 1, %s14
    %p368 = scmp.lt.s32.totalorder %s14, 3
    %p369 = pnand %p367, %p368
    %p370 = pneg %p369
    // Predicated region
    $region49: #{total_loss.5} parent=5 // pred_check
      _
    $region50: #{total_loss.5} parent=5 // pred_check_branch
      %372 = sbr.rel (%p369) target = $region52
    $region51: #{total_loss.5} parent=5 // pred_region
      %s373 = ssub.s32 %s14, 1
      %s374 = sadd.s32 %s23, %s24
      %p375 = scmp.lt.s32.totalorder %s374, 1
      %s376 = scalar_select %p375, %s374, 1
      %s377 = smul.addr %s376, 8
      %s378 = scalar_lea.vmem %s0, %s377
      %p379 = pneg %p54
      %p380 = pneg %p51
      %s381 = sadd.s32 %s23, %s24
      %p382 = scmp.lt.s32.totalorder %s381, 1
      %s383 = scalar_select %p382, %s381, 1
      %s384 = smul.addr %s383, 8
      %s385 = scalar_lea.vmem %s1, %s384
      %p386 = pneg %p82
      %p387 = pneg %p79
      %s388 = sadd.s32 %s23, %s24
      %p389 = scmp.lt.s32.totalorder %s388, 1
      %s390 = scalar_select %p389, %s388, 1
      %s391 = smul.addr %s390, 8
      %s392 = scalar_lea.vmem %s2, %s391
      %p393 = pneg %p110
      %p394 = pneg %p107
      %s395 = sadd.s32 %s23, %s24
      %p396 = scmp.lt.s32.totalorder %s395, 1
      %s397 = scalar_select %p396, %s395, 1
      %s398 = smul.addr %s397, 8
      %s399 = scalar_lea.vmem %s3, %s398
      %p400 = pneg %p138
      %p401 = pneg %p135
      %s402 = sadd.s32 %s23, %s24
      %p403 = scmp.lt.s32.totalorder %s402, 1
      %s404 = scalar_select %p403, %s402, 1
      %s405 = smul.addr %s404, 8
      %s406 = scalar_lea.vmem %s4, %s405
      %p407 = pneg %p166
      %p408 = pneg %p163
      %s409 = sadd.s32 %s23, %s24
      %p410 = scmp.lt.s32.totalorder %s409, 1
      %s411 = scalar_select %p410, %s409, 1
      %s412 = smul.addr %s411, 8
      %s413 = scalar_lea.vmem %s5, %s412
      %p414 = pneg %p194
      %p415 = pneg %p191
      %s416 = sadd.s32 %s23, %s24
      %p417 = scmp.lt.s32.totalorder %s416, 1
      %s418 = scalar_select %p417, %s416, 1
      %s419 = smul.addr %s418, 8
      %s420 = scalar_lea.vmem %s6, %s419
      %p421 = pneg %p222
      %p422 = pneg %p219
      %s423 = sadd.s32 %s23, %s24
      %p424 = scmp.lt.s32.totalorder %s423, 1
      %s425 = scalar_select %p424, %s423, 1
      %s426 = smul.addr %s425, 8
      %s427 = scalar_lea.vmem %s7, %s426
      %p428 = pneg %p250
      %p429 = pneg %p247
      %p430 = pneg %p276
      %p431 = pneg %p273
      %p432 = scmp.lt.s32.totalorder %s23, 1
      %s433 = scalar_select %p432, %s23, 1
      %s434 = smul.addr %s433, 4
      %s435 = smul.addr %s434, 8
      %s436 = scalar_lea.vmem %s8, %s435
      %s437 = sadd.s32 %s23, %s24
      %p438 = scmp.lt.s32.totalorder %s437, 1
      %s439 = scalar_select %p438, %s437, 1
      %s440 = smul.addr %s439, 8
      %s441 = scalar_lea.vmem %s0, %s440
      %s442 = sadd.s32 %s23, %s24
      %s443 = sadd.s32 %s23, %s24
      %p444 = scmp.lt.s32.totalorder %s443, 1
      %s445 = scalar_select %p444, %s443, 1
      %s446 = smul.addr %s445, 8
      %s447 = scalar_lea.vmem %s1, %s446
      %s448 = sadd.s32 %s23, %s24
      %s449 = sadd.s32 %s23, %s24
      %p450 = scmp.lt.s32.totalorder %s449, 1
      %s451 = scalar_select %p450, %s449, 1
      %s452 = smul.addr %s451, 8
      %s453 = scalar_lea.vmem %s2, %s452
      %s454 = sadd.s32 %s23, %s24
      %s455 = sadd.s32 %s23, %s24
      %p456 = scmp.lt.s32.totalorder %s455, 1
      %s457 = scalar_select %p456, %s455, 1
      %s458 = smul.addr %s457, 8
      %s459 = scalar_lea.vmem %s3, %s458
      %s460 = sadd.s32 %s23, %s24
      %s461 = sadd.s32 %s23, %s24
      %p462 = scmp.lt.s32.totalorder %s461, 1
      %s463 = scalar_select %p462, %s461, 1
      %s464 = smul.addr %s463, 8
      %s465 = scalar_lea.vmem %s4, %s464
      %s466 = sadd.s32 %s23, %s24
      %s467 = sadd.s32 %s23, %s24
      %p468 = scmp.lt.s32.totalorder %s467, 1
      %s469 = scalar_select %p468, %s467, 1
      %s470 = smul.addr %s469, 8
      %s471 = scalar_lea.vmem %s5, %s470
      %s472 = sadd.s32 %s23, %s24
      %s473 = sadd.s32 %s23, %s24
      %p474 = scmp.lt.s32.totalorder %s473, 1
      %s475 = scalar_select %p474, %s473, 1
      %s476 = smul.addr %s475, 8
      %s477 = scalar_lea.vmem %s6, %s476
      %s478 = sadd.s32 %s23, %s24
      %s479 = sadd.s32 %s23, %s24
      %p480 = scmp.lt.s32.totalorder %s479, 1
      %s481 = scalar_select %p480, %s479, 1
      %s482 = smul.addr %s481, 8
      %s483 = scalar_lea.vmem %s7, %s482
      %s484 = sadd.s32 %s23, %s24
      %p485 = scmp.lt.s32.totalorder %s23, 1
      %s486 = scalar_select %p485, %s23, 1
      %s487 = smul.addr %s486, 4
      %s488 = smul.addr %s487, 8
      %s489 = scalar_lea.vmem %s8, %s488
      %p490 = scmp.eq.s32.totalorder %s24, 0
      // Predicated region
      $region53: #{total_loss.5} parent=51 // pred_check
        %p491 = pneg %p490
      $region54: #{total_loss.5} parent=51 // pred_check_branch
        %493 = sbr.rel (%p491) target = $region56
      $region55: #{total_loss.5} parent=51 // pred_region
        %494 = vst [vmem:[%s489] sm:$0xff] 0.0
        %495 = vst [vmem:[%s489 + $0x8] sm:$0xff] 0.0
        %496 = vst [vmem:[%s489 + $0x10] sm:$0xff] 0.0
        %497 = vst [vmem:[%s489 + $0x18] sm:$0xff] 0.0
      $region56: #{total_loss.5} parent=51 // pred_fallthru
        _
      %s498 = sadd.s32 %s23, %s24
      %s499 = smul.u32 %s498, 1024
      %v500 = vlaneseq
      %v501 = vshrl.u32 %v500, 7
      %v502 = vmul.u32 %v501, 128
      %v503 = vlaneseq
      %v504 = vand.u32 %v503, 127
      %v505 = vadd.s32 %v502, %v504
      %v506 = vstv %s499
      %v507 = vadd.s32 %v505, %v506
      %vm508 = vcmp.lt.s32.totalorder %v507, 1536
      %v509 = vld [vmem:[%s441] sm:$0xff]
      %v510 = vld [vmem:[%s447] sm:$0xff]
      %v511 = vsub.f32 %v509, %v510
      %v512 = vmul.f32 %v511, %v511
      %v513 = vadd.f32 %v512, 1e-06
      %v514 = vrsqrt.pop %v513
      %v515 = vmul.f32 %v513, %v514
      %vm516 = vcmp.eq.f32.partialorder %v513, inf
      %v517 = vsel %vm516, %v513, %v515
      %vm518 = vcmp.eq.f32.partialorder %v513, 0.0
      %v519 = vand.u32 %v513, 2147483648
      %v520 = vsel %vm518, %v519, %v517
      %v521 = vsel %vm508, %v520, 0.0
      %v522 = vadd.f32 %v521, 0.0
      %v523 = vld [vmem:[%s453] sm:$0xff]
      %v524 = vld [vmem:[%s459] sm:$0xff]
      %v525 = vsub.f32 %v523, %v524
      %v526 = vmul.f32 %v525, %v525
      %v527 = vadd.f32 %v526, 1e-06
      %v528 = vrsqrt.pop %v527
      %v529 = vmul.f32 %v527, %v528
      %vm530 = vcmp.eq.f32.partialorder %v527, inf
      %v531 = vsel %vm530, %v527, %v529
      %vm532 = vcmp.eq.f32.partialorder %v527, 0.0
      %v533 = vand.u32 %v527, 2147483648
      %v534 = vsel %vm532, %v533, %v531
      %v535 = vsel %vm508, %v534, 0.0
      %v536 = vadd.f32 %v535, 0.0
      %v537 = vld [vmem:[%s465] sm:$0xff]
      %v538 = vld [vmem:[%s471] sm:$0xff]
      %v539 = vsub.f32 %v537, %v538
      %v540 = vmul.f32 %v539, %v539
      %v541 = vadd.f32 %v540, 1e-06
      %v542 = vrsqrt.pop %v541
      %v543 = vmul.f32 %v541, %v542
      %vm544 = vcmp.eq.f32.partialorder %v541, inf
      %v545 = vsel %vm544, %v541, %v543
      %vm546 = vcmp.eq.f32.partialorder %v541, 0.0
      %v547 = vand.u32 %v541, 2147483648
      %v548 = vsel %vm546, %v547, %v545
      %v549 = vsel %vm508, %v548, 0.0
      %v550 = vadd.f32 %v549, 0.0
      %v551 = vld [vmem:[%s477] sm:$0xff]
      %v552 = vld [vmem:[%s483] sm:$0xff]
      %v553 = vsub.f32 %v551, %v552
      %v554 = vmul.f32 %v553, %v553
      %v555 = vadd.f32 %v554, 1e-06
      %v556 = vrsqrt.pop %v555
      %v557 = vmul.f32 %v555, %v556
      %vm558 = vcmp.eq.f32.partialorder %v555, inf
      %v559 = vsel %vm558, %v555, %v557
      %vm560 = vcmp.eq.f32.partialorder %v555, 0.0
      %v561 = vand.u32 %v555, 2147483648
      %v562 = vsel %vm560, %v561, %v559
      %v563 = vsel %vm508, %v562, 0.0
      %v564 = vadd.f32 %v563, 0.0
      %v565 = vld [vmem:[%s489] sm:$0xff]
      %v566 = vld [vmem:[%s489 + $0x8] sm:$0xff]
      %v567 = vld [vmem:[%s489 + $0x10] sm:$0xff]
      %v568 = vld [vmem:[%s489 + $0x18] sm:$0xff]
      %v569 = vadd.f32 %v565, %v522
      %v570 = vadd.f32 %v566, %v536
      %v571 = vadd.f32 %v567, %v550
      %v572 = vadd.f32 %v568, %v564
      %573 = vst [vmem:[%s489] sm:$0xff] %v569
      %574 = vst [vmem:[%s489 + $0x8] sm:$0xff] %v570
      %575 = vst [vmem:[%s489 + $0x10] sm:$0xff] %v571
      %576 = vst [vmem:[%s489 + $0x18] sm:$0xff] %v572
      %p577 = scmp.lt.s32.totalorder %s23, 1
      %s578 = scalar_select %p577, %s23, 1
      %s579 = smul.addr %s578, 4
      %s580 = smul.addr %s579, 8
      %s581 = scalar_lea.vmem %s8, %s580
      // Predicated region
      $region57: #{total_loss.5} parent=51 // pred_check
        %p582 = pneg %p273
      $region58: #{total_loss.5} parent=51 // pred_check_branch
        %584 = sbr.rel (%p582) target = $region60
      $region59: #{total_loss.5} parent=51 // pred_region
        _
      $region60: #{total_loss.5} parent=51 // pred_fallthru
        _
    $region52: #{total_loss.5} parent=5 // pred_fallthru
      _
    %p585 = scmp.le.s32.totalorder 2, %s14
    // Predicated region
    $region61: #{total_loss.5} parent=5 // pred_check
      %p586 = pneg %p585
    $region62: #{total_loss.5} parent=5 // pred_check_branch
      %588 = sbr.rel (%p586) target = $region64
    $region63: #{total_loss.5} parent=5 // pred_region
      %s589 = ssub.s32 %s14, 2
      // Predicated region
      $region65: #{total_loss.5} parent=63 // pred_check
        %p590 = pneg %p279
      $region66: #{total_loss.5} parent=63 // pred_check_branch
        %592 = sbr.rel (%p590) target = $region68
      $region67: #{total_loss.5} parent=63 // pred_region
        %p593 = scmp.lt.s32.totalorder %s25, 1
        %s594 = scalar_select %p593, %s25, 1
        %s595 = smul.addr %s594, 4
        %s596 = smul.addr %s595, 8
        %s597 = scalar_lea.vmem %s8, %s596
      $region68: #{total_loss.5} parent=63 // pred_fallthru
        _
    $region64: #{total_loss.5} parent=5 // pred_fallthru
      _
  $region6: #{total_loss.5} parent=0 // loop_footer
    %s18 = sadd.s32 1, %s14
  $region7: #{total_loss.5} parent=0 // loop_footer_branch
    %13 = sbr.rel target = $region3
  $region8: #{total_loss.5} parent=0 // loop_exit
    _

// kernel: total_loss.8
$region0: #{total_loss.8}
  #allocation0 [shape = 'u32[]', space=smem, size = 0x4, offset = 0x4, fixed_abs, tag = 'smem constant byte address 0x4 - core index']
  #allocation1 [shape = 'u32[144,128]{1,0:T(1,128)}', space=vmem, size = 0x12000, scoped, tag = 'internal scratch']
  #allocation2 [shape = 'f32[3,4,2]{2,1,0:T(4,128)}', space=vmem, size = 0x1800, scoped, tag = 'scratch operand']
  #allocation3 [shape = 'f32[3,3,2]{2,1,0:T(4,128)}', space=vmem, size = 0x1800, scoped, tag = 'scratch operand']
  #allocation4 [shape = 'f32[3,4,4]{2,1,0:T(4,128)}', space=vmem, size = 0x1800, scoped, tag = 'scratch operand']
  %s0 = inlined_call_operand.vmem [shape: f32[6,2,4], index: 0, kind: input, shape index: {}]
  %s1 = inlined_call_operand.vmem [shape: f32[6,2,4], index: 1, kind: input, shape index: {}]
  %s2 = inlined_call_operand.vmem [shape: f32[6,2,4], index: 2, kind: input, shape index: {}]
  %s3 = inlined_call_operand.vmem [shape: f32[6,2,4], index: 3, kind: input, shape index: {}]
  %s4 = inlined_call_operand.vmem [shape: f32[4,2], index: 4, kind: input, shape index: {}]
  %s5 = inlined_call_operand.vmem [shape: f32[2,4], index: 5, kind: input, shape index: {}]
  %s6 = inlined_call_operand.hbm [shape: f32[6,2,2], index: 6, kind: output, shape index: {0}]
  %s7 = inlined_call_operand.hbm [shape: f32[6,2,2], index: 7, kind: output, shape index: {1}]
  %s8 = inlined_call_operand.vmem [shape: f32[2,2,4], index: 8, kind: output, shape index: {2}]
  %9 = xla_tuple %s6, %s7, %s8
  %s10 = sld [smem:[#allocation0]]
  $region77: #{total_loss.8} parent=0
    _
  %s12 = ssub.s32 1, %s10
  %s13 = scalar_select 0, %s12, %s10
  $region1: #{total_loss.8} parent=0
    #allocation5 [shape = 'u8[6144]{0}', space=vmem, size = 0x1800, scoped, tag = 'output window, operand 0']
    #allocation6 [shape = 's32[2]{0}', space=sflag, size = 0x8, scoped, tag = 'scoped memory for total_loss.8']
    #allocation7 [shape = 'u8[6144]{0}', space=vmem, size = 0x1800, scoped, tag = 'output window, operand 1']
    #allocation8 [shape = 's32[2]{0}', space=sflag, size = 0x8, scoped, tag = 'scoped memory for total_loss.8']
    %14 = vsyncpa [#allocation6], 0
    %s15 = scalar_lea.sflag [#allocation6], 1
    %16 = vsyncpa %s15, 0
    %17 = vsyncpa [#allocation8], 0
    %s18 = scalar_lea.sflag [#allocation8], 1
    %19 = vsyncpa %s18, 0
    loop: start=0, step=1, limit=4
    $region2: #{total_loss.8} parent=1 // loop_pre_header
      _
    $region3: #{total_loss.8} parent=1 // loop_header
      %s21 = sphi 0, %s25
      %p22 = scmp.ge.s32.totalorder %s21, 4
      %s28 = sphi 0, %s40
      %s29 = sphi 0, %s36
      %s30 = sphi 0, %s28
      %s31 = sphi 0, %s29
      %s32 = sphi 0, %s30
      %s33 = sphi 0, %s31
      %s45 = sphi 0, %s47
      %s48 = sphi 0, %s45
      %s49 = sphi 0, %s48
      %s65 = sphi 0, %s49
      %s73 = sphi 0, %s75
      %s76 = sphi 0, %s73
      %s77 = sphi 0, %s76
      %s93 = sphi 0, %s77
      %s101 = sphi 0, %s103
      %s104 = sphi 0, %s101
      %s105 = sphi 0, %s104
      %s121 = sphi 0, %s105
      %s129 = sphi 0, %s131
      %s132 = sphi 0, %s129
      %s133 = sphi 0, %s132
      %s149 = sphi 0, %s133
      %s153 = sphi 0, %s153
      %s155 = sphi 0, %s153
      %s156 = sphi 0, %s155
      %s170 = sphi 0, %s156
      %s174 = sphi 0, %s174
      %s176 = sphi 0, %s174
      %s177 = sphi 0, %s176
      %s191 = sphi 0, %s177
      %s199 = sphi 0, %s201
      %s202 = sphi 0, %s199
      %s203 = sphi 0, %s202
      %s219 = sphi 0, %s203
      %s227 = sphi 0, %s229
      %s230 = sphi 0, %s227
      %s231 = sphi 0, %s230
      %s247 = sphi 0, %s231
      %s253 = sphi 0, %s255
      %s256 = sphi 0, %s253
      %s257 = sphi 0, %s256
      %s273 = sphi 0, %s257
    $region4: #{total_loss.8} parent=1 // loop_header_branch
      %24 = sbr.rel (%p22) target = $region8
    $region5: #{total_loss.8} parent=1 // loop_body
      %s26 = ssub.s32 %s21, 1
      %s27 = ssub.s32 %s21, 2
      %s34 = sadd.s32 1, %s29
      %p35 = scmp.ge.s32.totalorder %s34, 1
      %s36 = scalar_select %p35, 0, %s34
      %s37 = sadd.s32 1, %s28
      %s38 = scalar_select %p35, %s37, %s28
      %p39 = scmp.ge.s32.totalorder %s38, 2
      %s40 = scalar_select %p39, 0, %s38
      %s41 = sadd.s32 %s28, %s29
      %s42 = sadd.s32 %s40, %s36
      %s43 = ssub.s32 %s41, %s42
      %p44 = scmp.eq.s32.totalorder %s43, 0
      %s46 = sadd.s32 %s45, 1
      %s47 = scalar_select %p44, %s45, %s46
      %p50 = pneg %p44
      %p51 = scmp.eq.s32.totalorder %s21, 1
      %p52 = por %p50, %p51
      %p53 = scmp.ne.s32.totalorder %s45, %s48
      %p54 = scmp.eq.s32.totalorder %s21, 0
      %p55 = por %p53, %p54
      %p56 = scmp.ne.s32.totalorder %s45, %s48
      %p57 = scmp.eq.s32.totalorder %s26, 1
      %p58 = por %p56, %p57
      %p59 = scmp.ne.s32.totalorder %s48, %s49
      %p60 = scmp.eq.s32.totalorder %s26, 0
      %p61 = por %p59, %p60
      %p62 = scmp.ne.s32.totalorder %s48, %s49
      %p63 = scmp.eq.s32.totalorder %s27, 1
      %p64 = por %p62, %p63
      %p66 = scmp.ne.s32.totalorder %s49, %s65
      %p67 = scmp.eq.s32.totalorder %s27, 0
      %p68 = por %p66, %p67
      %s69 = sadd.s32 %s28, %s29
      %s70 = sadd.s32 %s40, %s36
      %s71 = ssub.s32 %s69, %s70
      %p72 = scmp.eq.s32.totalorder %s71, 0
      %s74 = sadd.s32 %s73, 1
      %s75 = scalar_select %p72, %s73, %s74
      %p78 = pneg %p72
      %p79 = scmp.eq.s32.totalorder %s21, 1
      %p80 = por %p78, %p79
      %p81 = scmp.ne.s32.totalorder %s73, %s76
      %p82 = scmp.eq.s32.totalorder %s21, 0
      %p83 = por %p81, %p82
      %p84 = scmp.ne.s32.totalorder %s73, %s76
      %p85 = scmp.eq.s32.totalorder %s26, 1
      %p86 = por %p84, %p85
      %p87 = scmp.ne.s32.totalorder %s76, %s77
      %p88 = scmp.eq.s32.totalorder %s26, 0
      %p89 = por %p87, %p88
      %p90 = scmp.ne.s32.totalorder %s76, %s77
      %p91 = scmp.eq.s32.totalorder %s27, 1
      %p92 = por %p90, %p91
      %p94 = scmp.ne.s32.totalorder %s77, %s93
      %p95 = scmp.eq.s32.totalorder %s27, 0
      %p96 = por %p94, %p95
      %s97 = sadd.s32 %s28, %s29
      %s98 = sadd.s32 %s40, %s36
      %s99 = ssub.s32 %s97, %s98
      %p100 = scmp.eq.s32.totalorder %s99, 0
      %s102 = sadd.s32 %s101, 1
      %s103 = scalar_select %p100, %s101, %s102
      %p106 = pneg %p100
      %p107 = scmp.eq.s32.totalorder %s21, 1
      %p108 = por %p106, %p107
      %p109 = scmp.ne.s32.totalorder %s101, %s104
      %p110 = scmp.eq.s32.totalorder %s21, 0
      %p111 = por %p109, %p110
      %p112 = scmp.ne.s32.totalorder %s101, %s104
      %p113 = scmp.eq.s32.totalorder %s26, 1
      %p114 = por %p112, %p113
      %p115 = scmp.ne.s32.totalorder %s104, %s105
      %p116 = scmp.eq.s32.totalorder %s26, 0
      %p117 = por %p115, %p116
      %p118 = scmp.ne.s32.totalorder %s104, %s105
      %p119 = scmp.eq.s32.totalorder %s27, 1
      %p120 = por %p118, %p119
      %p122 = scmp.ne.s32.totalorder %s105, %s121
      %p123 = scmp.eq.s32.totalorder %s27, 0
      %p124 = por %p122, %p123
      %s125 = sadd.s32 %s28, %s29
      %s126 = sadd.s32 %s40, %s36
      %s127 = ssub.s32 %s125, %s126
      %p128 = scmp.eq.s32.totalorder %s127, 0
      %s130 = sadd.s32 %s129, 1
      %s131 = scalar_select %p128, %s129, %s130
      %p134 = pneg %p128
      %p135 = scmp.eq.s32.totalorder %s21, 1
      %p136 = por %p134, %p135
      %p137 = scmp.ne.s32.totalorder %s129, %s132
      %p138 = scmp.eq.s32.totalorder %s21, 0
      %p139 = por %p137, %p138
      %p140 = scmp.ne.s32.totalorder %s129, %s132
      %p141 = scmp.eq.s32.totalorder %s26, 1
      %p142 = por %p140, %p141
      %p143 = scmp.ne.s32.totalorder %s132, %s133
      %p144 = scmp.eq.s32.totalorder %s26, 0
      %p145 = por %p143, %p144
      %p146 = scmp.ne.s32.totalorder %s132, %s133
      %p147 = scmp.eq.s32.totalorder %s27, 1
      %p148 = por %p146, %p147
      %p150 = scmp.ne.s32.totalorder %s133, %s149
      %p151 = scmp.eq.s32.totalorder %s27, 0
      %p152 = por %p150, %p151
      %s154 = sadd.s32 %s153, 1
      %p157 = scmp.eq.s32.totalorder %s21, 1
      %p158 = scmp.ne.s32.totalorder %s153, %s155
      %p159 = scmp.eq.s32.totalorder %s21, 0
      %p160 = por %p158, %p159
      %p161 = scmp.ne.s32.totalorder %s153, %s155
      %p162 = scmp.eq.s32.totalorder %s26, 1
      %p163 = por %p161, %p162
      %p164 = scmp.ne.s32.totalorder %s155, %s156
      %p165 = scmp.eq.s32.totalorder %s26, 0
      %p166 = por %p164, %p165
      %p167 = scmp.ne.s32.totalorder %s155, %s156
      %p168 = scmp.eq.s32.totalorder %s27, 1
      %p169 = por %p167, %p168
      %p171 = scmp.ne.s32.totalorder %s156, %s170
      %p172 = scmp.eq.s32.totalorder %s27, 0
      %p173 = por %p171, %p172
      %s175 = sadd.s32 %s174, 1
      %p178 = scmp.eq.s32.totalorder %s21, 1
      %p179 = scmp.ne.s32.totalorder %s174, %s176
      %p180 = scmp.eq.s32.totalorder %s21, 0
      %p181 = por %p179, %p180
      %p182 = scmp.ne.s32.totalorder %s174, %s176
      %p183 = scmp.eq.s32.totalorder %s26, 1
      %p184 = por %p182, %p183
      %p185 = scmp.ne.s32.totalorder %s176, %s177
      %p186 = scmp.eq.s32.totalorder %s26, 0
      %p187 = por %p185, %p186
      %p188 = scmp.ne.s32.totalorder %s176, %s177
      %p189 = scmp.eq.s32.totalorder %s27, 1
      %p190 = por %p188, %p189
      %p192 = scmp.ne.s32.totalorder %s177, %s191
      %p193 = scmp.eq.s32.totalorder %s27, 0
      %p194 = por %p192, %p193
      %s195 = sadd.s32 %s28, %s29
      %s196 = sadd.s32 %s40, %s36
      %s197 = ssub.s32 %s195, %s196
      %p198 = scmp.eq.s32.totalorder %s197, 0
      %s200 = sadd.s32 %s199, 1
      %s201 = scalar_select %p198, %s199, %s200
      %p204 = pneg %p198
      %p205 = scmp.eq.s32.totalorder %s21, 1
      %p206 = por %p204, %p205
      %p207 = scmp.ne.s32.totalorder %s199, %s202
      %p208 = scmp.eq.s32.totalorder %s21, 0
      %p209 = por %p207, %p208
      %p210 = scmp.ne.s32.totalorder %s199, %s202
      %p211 = scmp.eq.s32.totalorder %s26, 1
      %p212 = por %p210, %p211
      %p213 = scmp.ne.s32.totalorder %s202, %s203
      %p214 = scmp.eq.s32.totalorder %s26, 0
      %p215 = por %p213, %p214
      %p216 = scmp.ne.s32.totalorder %s202, %s203
      %p217 = scmp.eq.s32.totalorder %s27, 1
      %p218 = por %p216, %p217
      %p220 = scmp.ne.s32.totalorder %s203, %s219
      %p221 = scmp.eq.s32.totalorder %s27, 0
      %p222 = por %p220, %p221
      %s223 = sadd.s32 %s28, %s29
      %s224 = sadd.s32 %s40, %s36
      %s225 = ssub.s32 %s223, %s224
      %p226 = scmp.eq.s32.totalorder %s225, 0
      %s228 = sadd.s32 %s227, 1
      %s229 = scalar_select %p226, %s227, %s228
      %p232 = pneg %p226
      %p233 = scmp.eq.s32.totalorder %s21, 1
      %p234 = por %p232, %p233
      %p235 = scmp.ne.s32.totalorder %s227, %s230
      %p236 = scmp.eq.s32.totalorder %s21, 0
      %p237 = por %p235, %p236
      %p238 = scmp.ne.s32.totalorder %s227, %s230
      %p239 = scmp.eq.s32.totalorder %s26, 1
      %p240 = por %p238, %p239
      %p241 = scmp.ne.s32.totalorder %s230, %s231
      %p242 = scmp.eq.s32.totalorder %s26, 0
      %p243 = por %p241, %p242
      %p244 = scmp.ne.s32.totalorder %s230, %s231
      %p245 = scmp.eq.s32.totalorder %s27, 1
      %p246 = por %p244, %p245
      %p248 = scmp.ne.s32.totalorder %s231, %s247
      %p249 = scmp.eq.s32.totalorder %s27, 0
      %p250 = por %p248, %p249
      %s251 = ssub.s32 %s28, %s40
      %p252 = scmp.eq.s32.totalorder %s251, 0
      %s254 = sadd.s32 %s253, 1
      %s255 = scalar_select %p252, %s253, %s254
      %p258 = pneg %p252
      %p259 = scmp.eq.s32.totalorder %s21, 1
      %p260 = por %p258, %p259
      %p261 = scmp.ne.s32.totalorder %s253, %s256
      %p262 = scmp.eq.s32.totalorder %s21, 0
      %p263 = por %p261, %p262
      %p264 = scmp.ne.s32.totalorder %s253, %s256
      %p265 = scmp.eq.s32.totalorder %s26, 1
      %p266 = por %p264, %p265
      %p267 = scmp.ne.s32.totalorder %s256, %s257
      %p268 = scmp.eq.s32.totalorder %s26, 0
      %p269 = por %p267, %p268
      %p270 = scmp.ne.s32.totalorder %s256, %s257
      %p271 = scmp.eq.s32.totalorder %s27, 1
      %p272 = por %p270, %p271
      %p274 = scmp.ne.s32.totalorder %s257, %s273
      %p275 = scmp.eq.s32.totalorder %s27, 0
      %p276 = por %p274, %p275
      %p277 = scmp.le.s32.totalorder 1, %s21
      %p278 = scmp.lt.s32.totalorder %s21, 3
      %p279 = pnand %p277, %p278
      %p280 = pneg %p279
      // Predicated region
      $region9: #{total_loss.8} parent=5 // pred_check
        _
      $region10: #{total_loss.8} parent=5 // pred_check_branch
        %282 = sbr.rel (%p279) target = $region12
      $region11: #{total_loss.8} parent=5 // pred_region
        %s283 = ssub.s32 %s21, 1
        // Predicated region
        $region13: #{total_loss.8} parent=11 // pred_check
          %p284 = pneg %p166
        $region14: #{total_loss.8} parent=11 // pred_check_branch
          %286 = sbr.rel (%p284) target = $region16
        $region15: #{total_loss.8} parent=11 // pred_region
          _
        $region16: #{total_loss.8} parent=11 // pred_fallthru
          _
        // Predicated region
        $region17: #{total_loss.8} parent=11 // pred_check
          %p287 = pneg %p187
        $region18: #{total_loss.8} parent=11 // pred_check_branch
          %289 = sbr.rel (%p287) target = $region20
        $region19: #{total_loss.8} parent=11 // pred_region
          _
        $region20: #{total_loss.8} parent=11 // pred_fallthru
          _
      $region12: #{total_loss.8} parent=5 // pred_fallthru
        _
      %p290 = scmp.lt.s32.totalorder %s21, 2
      // Predicated region
      $region21: #{total_loss.8} parent=5 // pred_check
        %p291 = pneg %p290
      $region22: #{total_loss.8} parent=5 // pred_check_branch
        %293 = sbr.rel (%p291) target = $region24
      $region23: #{total_loss.8} parent=5 // pred_region
        // Predicated region
        $region25: #{total_loss.8} parent=23 // pred_check
          %p294 = pneg %p55
        $region26: #{total_loss.8} parent=23 // pred_check_branch
          %296 = sbr.rel (%p294) target = $region28
        $region27: #{total_loss.8} parent=23 // pred_region
          %s297 = sadd.s32 %s28, %s29
          %s298 = smul.u32 3, %s297
          %p299 = scmp.lt.s32.totalorder %s298, 5
          %s300 = scalar_select %p299, %s298, 5
          %s301 = smul.addr %s300, 2
          %s302 = scalar_lea.vmem %s0, %s301
          %s303 = sadd.s32 %s28, %s29
          %s304 = smul.u32 3, %s303
        $region28: #{total_loss.8} parent=23 // pred_fallthru
          _
        // Predicated region
        $region29: #{total_loss.8} parent=23 // pred_check
          %p305 = pneg %p83
        $region30: #{total_loss.8} parent=23 // pred_check_branch
          %307 = sbr.rel (%p305) target = $region32
        $region31: #{total_loss.8} parent=23 // pred_region
          %s308 = sadd.s32 %s28, %s29
          %s309 = smul.u32 3, %s308
          %p310 = scmp.lt.s32.totalorder %s309, 5
          %s311 = scalar_select %p310, %s309, 5
          %s312 = smul.addr %s311, 2
          %s313 = scalar_lea.vmem %s1, %s312
          %s314 = sadd.s32 %s28, %s29
          %s315 = smul.u32 3, %s314
        $region32: #{total_loss.8} parent=23 // pred_fallthru
          _
        // Predicated region
        $region33: #{total_loss.8} parent=23 // pred_check
          %p316 = pneg %p111
        $region34: #{total_loss.8} parent=23 // pred_check_branch
          %318 = sbr.rel (%p316) target = $region36
        $region35: #{total_loss.8} parent=23 // pred_region
          %s319 = sadd.s32 %s28, %s29
          %s320 = smul.u32 3, %s319
          %p321 = scmp.lt.s32.totalorder %s320, 5
          %s322 = scalar_select %p321, %s320, 5
          %s323 = smul.addr %s322, 2
          %s324 = scalar_lea.vmem %s2, %s323
          %s325 = sadd.s32 %s28, %s29
          %s326 = smul.u32 3, %s325
        $region36: #{total_loss.8} parent=23 // pred_fallthru
          _
        // Predicated region
        $region37: #{total_loss.8} parent=23 // pred_check
          %p327 = pneg %p139
        $region38: #{total_loss.8} parent=23 // pred_check_branch
          %329 = sbr.rel (%p327) target = $region40
        $region39: #{total_loss.8} parent=23 // pred_region
          %s330 = sadd.s32 %s28, %s29
          %s331 = smul.u32 3, %s330
          %p332 = scmp.lt.s32.totalorder %s331, 5
          %s333 = scalar_select %p332, %s331, 5
          %s334 = smul.addr %s333, 2
          %s335 = scalar_lea.vmem %s3, %s334
          %s336 = sadd.s32 %s28, %s29
          %s337 = smul.u32 3, %s336
        $region40: #{total_loss.8} parent=23 // pred_fallthru
          _
      $region24: #{total_loss.8} parent=5 // pred_fallthru
        _
      %p338 = scmp.le.s32.totalorder 1, %s21
      %p339 = scmp.lt.s32.totalorder %s21, 3
      %p340 = pnand %p338, %p339
      %p341 = pneg %p340
      // Predicated region
      $region41: #{total_loss.8} parent=5 // pred_check
        _
      $region42: #{total_loss.8} parent=5 // pred_check_branch
        %343 = sbr.rel (%p340) target = $region44
      $region43: #{total_loss.8} parent=5 // pred_region
        %s344 = ssub.s32 %s21, 1
        %s345 = sadd.s32 %s30, %s31
        %s346 = smul.u32 3, %s345
        %p347 = scmp.lt.s32.totalorder %s346, 5
        %s348 = scalar_select %p347, %s346, 5
        %s349 = smul.addr %s348, 2
        %s350 = scalar_lea.vmem %s0, %s349
        %p351 = pneg %p61
        %p352 = pneg %p58
        %s353 = sadd.s32 %s30, %s31
        %s354 = smul.u32 3, %s353
        %p355 = scmp.lt.s32.totalorder %s354, 5
        %s356 = scalar_select %p355, %s354, 5
        %s357 = smul.addr %s356, 2
        %s358 = scalar_lea.vmem %s1, %s357
        %p359 = pneg %p89
        %p360 = pneg %p86
        %s361 = sadd.s32 %s30, %s31
        %s362 = smul.u32 3, %s361
        %p363 = scmp.lt.s32.totalorder %s362, 5
        %s364 = scalar_select %p363, %s362, 5
        %s365 = smul.addr %s364, 2
        %s366 = scalar_lea.vmem %s2, %s365
        %p367 = pneg %p117
        %p368 = pneg %p114
        %s369 = sadd.s32 %s30, %s31
        %s370 = smul.u32 3, %s369
        %p371 = scmp.lt.s32.totalorder %s370, 5
        %s372 = scalar_select %p371, %s370, 5
        %s373 = smul.addr %s372, 2
        %s374 = scalar_lea.vmem %s3, %s373
        %p375 = pneg %p145
        %p376 = pneg %p142
        %p377 = pneg %p166
        %p378 = pneg %p163
        %p379 = pneg %p187
        %p380 = pneg %p184
        %p381 = pneg %p215
        %p382 = pneg %p212
        %s383 = sand.u32 %s202, 1
        %s384 = scalar_lea.sflag [#allocation6], %s383
        %s385 = sand.u32 %s202, 1
        %s386 = smul.addr %s385, 6
        %s387 = scalar_lea.vmem [#allocation5], %s386
        %p388 = pneg %p243
        %p389 = pneg %p240
        %s390 = sand.u32 %s230, 1
        %s391 = scalar_lea.sflag [#allocation8], %s390
        %s392 = sand.u32 %s230, 1
        %s393 = smul.addr %s392, 6
        %s394 = scalar_lea.vmem [#allocation7], %s393
        %p395 = pneg %p269
        %p396 = pneg %p266
        %p397 = scmp.lt.s32.totalorder %s30, 1
        %s398 = scalar_select %p397, %s30, 1
        %s399 = smul.addr %s398, 2
        %s400 = scalar_lea.vmem %s8, %s399
        %s401 = sadd.s32 %s30, %s31
        %s402 = smul.u32 3, %s401
        %p403 = scmp.lt.s32.totalorder %s402, 5
        %s404 = scalar_select %p403, %s402, 5
        %s405 = smul.addr %s404, 2
        %s406 = scalar_lea.vmem %s0, %s405
        %s407 = sadd.s32 %s30, %s31
        %s408 = smul.u32 3, %s407
        %s409 = sadd.s32 %s30, %s31
        %s410 = smul.u32 3, %s409
        %p411 = scmp.lt.s32.totalorder %s410, 5
        %s412 = scalar_select %p411, %s410, 5
        %s413 = smul.addr %s412, 2
        %s414 = scalar_lea.vmem %s1, %s413
        %s415 = sadd.s32 %s30, %s31
        %s416 = smul.u32 3, %s415
        %s417 = sadd.s32 %s30, %s31
        %s418 = smul.u32 3, %s417
        %p419 = scmp.lt.s32.totalorder %s418, 5
        %s420 = scalar_select %p419, %s418, 5
        %s421 = smul.addr %s420, 2
        %s422 = scalar_lea.vmem %s2, %s421
        %s423 = sadd.s32 %s30, %s31
        %s424 = smul.u32 3, %s423
        %s425 = sadd.s32 %s30, %s31
        %s426 = smul.u32 3, %s425
        %p427 = scmp.lt.s32.totalorder %s426, 5
        %s428 = scalar_select %p427, %s426, 5
        %s429 = smul.addr %s428, 2
        %s430 = scalar_lea.vmem %s3, %s429
        %s431 = sadd.s32 %s30, %s31
        %s432 = smul.u32 3, %s431
        %s433 = sadd.s32 %s30, %s31
        %s434 = smul.u32 3, %s433
        %s435 = sadd.s32 %s30, %s31
        %s436 = smul.u32 3, %s435
        %p437 = scmp.lt.s32.totalorder %s30, 1
        %s438 = scalar_select %p437, %s30, 1
        %s439 = smul.addr %s438, 2
        %s440 = scalar_lea.vmem %s8, %s439
        %p441 = scmp.eq.s32.totalorder %s31, 0
        // Predicated region
        $region45: #{total_loss.8} parent=43 // pred_check
          %p442 = pneg %p441
        $region46: #{total_loss.8} parent=43 // pred_check_branch
          %444 = sbr.rel (%p442) target = $region48
        $region47: #{total_loss.8} parent=43 // pred_region
          %vm445 = vcmask 25600
          %446 = vst.msk [vmem:[%s440] sm:$0x3] %vm445, 0.0
        $region48: #{total_loss.8} parent=43 // pred_fallthru
          _
        %v447 = vld [vmem:[%s4] sm:$0xf]
        %v448 = vld [vmem:[%s5] sm:$0x3]
        %v449 = vld [vmem:[%s406] sm:$0x3]
        %v450 = vld [vmem:[%s406 + $0x2] sm:$0x3]
        %v451 = vld [vmem:[%s406 + $0x4] sm:$0x3]
        %v452 = vld [vmem:[%s414] sm:$0x3]
        %v453 = vld [vmem:[%s414 + $0x2] sm:$0x3]
        %v454 = vld [vmem:[%s414 + $0x4] sm:$0x3]
        %v455 = vld [vmem:[%s422] sm:$0x3]
        %v456 = vld [vmem:[%s422 + $0x2] sm:$0x3]
        %v457 = vld [vmem:[%s422 + $0x4] sm:$0x3]
        %v458 = vld [vmem:[%s430] sm:$0x3]
        %v459 = vld [vmem:[%s430 + $0x2] sm:$0x3]
        %v460 = vld [vmem:[%s430 + $0x4] sm:$0x3]
        %v464 = vcombine.low %v449, %v450
        %v466 = vunpack.c.l.s4 1983009808
        %v467 = vunpack.c.0.s8 %v466
        %v468 = vlaneseq
        %v469 = vshrl.u32 %v468, 7
        %v470 = vsub.s32 %v467, %v469
        %v471 = vrot.slane %v464, %v470
        %v473 = vunpack.c.l.s4 1983009808
        %v474 = vunpack.c.0.s8 %v473
        %v475 = vlaneseq
        %v476 = vshrl.u32 %v475, 7
        %v477 = vsub.s32 %v474, %v476
        %v478 = vrot.slane %v451, %v477
        %v479 = vcombine.low %v471, %v478
        %vm480 = vcmask 31744
        %v481 = vsel %vm480, %v479, 0
        %vm483 = vcmask 1043456
        %v485 = vsel %vm483, %v447, 0
        %487 = vmatprep.subr.mxu0 0.0
        %488 = vmatpush1.msra.mxu0 %v485
        %489 = vmatprep.subr.mxu0 0.0
        %490 = vmatpush1.msra.mxu0 0.0
        %491 = vmatprep.subr.mxu0 0.0
        %492 = vmatpush1.msra.mxu0 0.0
        %493 = vmatprep.subr.mxu0 0.0
        %494 = vmatpush1.msra.mxu0 0.0
        %495 = vmatprep.subr.mxu0 0.0
        %496 = vmatpush1.msra.mxu0 0.0
        %497 = vmatprep.subr.mxu0 0.0
        %498 = vmatpush1.msra.mxu0 0.0
        %499 = vmatprep.subr.mxu0 0.0
        %500 = vmatpush1.msra.mxu0 0.0
        %501 = vmatprep.subr.mxu0 0.0
        %502 = vmatpush1.msra.mxu0 0.0
        %503 = vmatprep.subr.mxu0 0.0
        %504 = vmatpush1.msra.mxu0 0.0
        %505 = vmatprep.subr.mxu0 0.0
        %506 = vmatpush1.msra.mxu0 0.0
        %507 = vmatprep.subr.mxu0 0.0
        %508 = vmatpush1.msra.mxu0 0.0
        %509 = vmatprep.subr.mxu0 0.0
        %510 = vmatpush1.msra.mxu0 0.0
        %511 = vmatprep.subr.mxu0 0.0
        %512 = vmatpush1.msra.mxu0 0.0
        %513 = vmatprep.subr.mxu0 0.0
        %514 = vmatpush1.msra.mxu0 0.0
        %515 = vmatprep.subr.mxu0 0.0
        %516 = vmatpush1.msra.mxu0 0.0
        %517 = vmatprep.subr.mxu0 0.0
        %518 = vmatpush1.msra.mxu0 0.0
        %519 = vmatprep.subr.mxu0 0.0
        %520 = vmatpush1.msra.mxu0 0.0
        %521 = vmatprep.subr.mxu0 0.0
        %522 = vmatpush1.msra.mxu0 0.0
        %523 = vmatprep.subr.mxu0 0.0
        %524 = vmatpush1.msra.mxu0 0.0
        %525 = vmatprep.subr.mxu0 0.0
        %526 = vmatpush1.msra.mxu0 0.0
        %527 = vmatprep.subr.mxu0 0.0
        %528 = vmatpush1.msra.mxu0 0.0
        %529 = vmatprep.subr.mxu0 0.0
        %530 = vmatpush1.msra.mxu0 0.0
        %531 = vmatprep.subr.mxu0 0.0
        %532 = vmatpush1.msra.mxu0 0.0
        %533 = vmatprep.subr.mxu0 0.0
        %534 = vmatpush1.msra.mxu0 0.0
        %535 = vmatprep.subr.mxu0 0.0
        %536 = vmatpush1.msra.mxu0 0.0
        %537 = vmatprep.subr.mxu0 0.0
        %538 = vmatpush1.msra.mxu0 0.0
        %539 = vmatprep.subr.mxu0 0.0
        %540 = vmatpush1.msra.mxu0 0.0
        %541 = vmatprep.subr.mxu0 0.0
        %542 = vmatpush1.msra.mxu0 0.0
        %543 = vmatprep.subr.mxu0 0.0
        %544 = vmatpush1.msra.mxu0 0.0
        %545 = vmatprep.subr.mxu0 0.0
        %546 = vmatpush1.msra.mxu0 0.0
        %547 = vmatprep.subr.mxu0 0.0
        %548 = vmatpush1.msra.mxu0 0.0
        %549 = vmatprep.subr.mxu0 0.0
        %550 = vmatpush1.msra.mxu0 0.0
        %551 = vmatprep.mubr.f32.mxu0 0.0
        %552 = vmatmul.mubr.f32.gmra.mrb[0].mxu0 %v481
        %v553 = vpop.f32.mrb[0].mxu0
        %v554 = vadd.f32 0.0, %v553
        %v555 = vpop.f32.mrb[0].mxu0
        %556 = vdwg.mxu0
        %v558 = vcombine.high %v554, %v554
        %v560 = vunpack.c.l.s4 1983009808
        %v561 = vunpack.c.0.s8 %v560
        %v562 = vlaneseq
        %v563 = vshrl.u32 %v562, 7
        %v564 = vsub.s32 %v561, %v563
        %v565 = vrot.slane %v554, %v564
        %v567 = vunpack.c.l.s4 1983009808
        %v568 = vunpack.c.0.s8 %v567
        %v569 = vlaneseq
        %v570 = vshrl.u32 %v569, 7
        %v571 = vsub.s32 %v568, %v570
        %v572 = vrot.slane %v558, %v571
        %v573 = vcombine.high %v565, %v565
        %v580 = vcombine.low %v452, %v453
        %v582 = vunpack.c.l.s4 1983009808
        %v583 = vunpack.c.0.s8 %v582
        %v584 = vlaneseq
        %v585 = vshrl.u32 %v584, 7
        %v586 = vsub.s32 %v583, %v585
        %v587 = vrot.slane %v580, %v586
        %v589 = vunpack.c.l.s4 1983009808
        %v590 = vunpack.c.0.s8 %v589
        %v591 = vlaneseq
        %v592 = vshrl.u32 %v591, 7
        %v593 = vsub.s32 %v590, %v592
        %v594 = vrot.slane %v454, %v593
        %v595 = vcombine.low %v587, %v594
        %v596 = vsel %vm480, %v595, 0
        %598 = vmatprep.subr.mxu0 0.0
        %599 = vmatpush1.msra.mxu0 %v485
        %600 = vmatprep.subr.mxu0 0.0
        %601 = vmatpush1.msra.mxu0 0.0
        %602 = vmatprep.subr.mxu0 0.0
        %603 = vmatpush1.msra.mxu0 0.0
        %604 = vmatprep.subr.mxu0 0.0
        %605 = vmatpush1.msra.mxu0 0.0
        %606 = vmatprep.subr.mxu0 0.0
        %607 = vmatpush1.msra.mxu0 0.0
        %608 = vmatprep.subr.mxu0 0.0
        %609 = vmatpush1.msra.mxu0 0.0
        %610 = vmatprep.subr.mxu0 0.0
        %611 = vmatpush1.msra.mxu0 0.0
        %612 = vmatprep.subr.mxu0 0.0
        %613 = vmatpush1.msra.mxu0 0.0
        %614 = vmatprep.subr.mxu0 0.0
        %615 = vmatpush1.msra.mxu0 0.0
        %616 = vmatprep.subr.mxu0 0.0
        %617 = vmatpush1.msra.mxu0 0.0
        %618 = vmatprep.subr.mxu0 0.0
        %619 = vmatpush1.msra.mxu0 0.0
        %620 = vmatprep.subr.mxu0 0.0
        %621 = vmatpush1.msra.mxu0 0.0
        %622 = vmatprep.subr.mxu0 0.0
        %623 = vmatpush1.msra.mxu0 0.0
        %624 = vmatprep.subr.mxu0 0.0
        %625 = vmatpush1.msra.mxu0 0.0
        %626 = vmatprep.subr.mxu0 0.0
        %627 = vmatpush1.msra.mxu0 0.0
        %628 = vmatprep.subr.mxu0 0.0
        %629 = vmatpush1.msra.mxu0 0.0
        %630 = vmatprep.subr.mxu0 0.0
        %631 = vmatpush1.msra.mxu0 0.0
        %632 = vmatprep.subr.mxu0 0.0
        %633 = vmatpush1.msra.mxu0 0.0
        %634 = vmatprep.subr.mxu0 0.0
        %635 = vmatpush1.msra.mxu0 0.0
        %636 = vmatprep.subr.mxu0 0.0
        %637 = vmatpush1.msra.mxu0 0.0
        %638 = vmatprep.subr.mxu0 0.0
        %639 = vmatpush1.msra.mxu0 0.0
        %640 = vmatprep.subr.mxu0 0.0
        %641 = vmatpush1.msra.mxu0 0.0
        %642 = vmatprep.subr.mxu0 0.0
        %643 = vmatpush1.msra.mxu0 0.0
        %644 = vmatprep.subr.mxu0 0.0
        %645 = vmatpush1.msra.mxu0 0.0
        %646 = vmatprep.subr.mxu0 0.0
        %647 = vmatpush1.msra.mxu0 0.0
        %648 = vmatprep.subr.mxu0 0.0
        %649 = vmatpush1.msra.mxu0 0.0
        %650 = vmatprep.subr.mxu0 0.0
        %651 = vmatpush1.msra.mxu0 0.0
        %652 = vmatprep.subr.mxu0 0.0
        %653 = vmatpush1.msra.mxu0 0.0
        %654 = vmatprep.subr.mxu0 0.0
        %655 = vmatpush1.msra.mxu0 0.0
        %656 = vmatprep.subr.mxu0 0.0
        %657 = vmatpush1.msra.mxu0 0.0
        %658 = vmatprep.subr.mxu0 0.0
        %659 = vmatpush1.msra.mxu0 0.0
        %660 = vmatprep.subr.mxu0 0.0
        %661 = vmatpush1.msra.mxu0 0.0
        %662 = vmatprep.mubr.f32.mxu0 0.0
        %663 = vmatmul.mubr.f32.gmra.mrb[0].mxu0 %v596
        %v664 = vpop.f32.mrb[0].mxu0
        %v665 = vadd.f32 0.0, %v664
        %v666 = vpop.f32.mrb[0].mxu0
        %667 = vdwg.mxu0
        %v669 = vcombine.high %v665, %v665
        %v671 = vunpack.c.l.s4 1983009808
        %v672 = vunpack.c.0.s8 %v671
        %v673 = vlaneseq
        %v674 = vshrl.u32 %v673, 7
        %v675 = vsub.s32 %v672, %v674
        %v676 = vrot.slane %v665, %v675
        %v678 = vunpack.c.l.s4 1983009808
        %v679 = vunpack.c.0.s8 %v678
        %v680 = vlaneseq
        %v681 = vshrl.u32 %v680, 7
        %v682 = vsub.s32 %v679, %v681
        %v683 = vrot.slane %v669, %v682
        %v684 = vcombine.high %v676, %v676
        %vm688 = vcmask 9216
        %689 = vst.msk [vmem:[#allocation2 + $0x1] sm:$0x3] %vm688, %v565
        %690 = vst.msk [vmem:[#allocation2 + $0x5] sm:$0x3] %vm688, %v573
        %691 = vst.msk [vmem:[#allocation2 + $0x9] sm:$0x3] %vm688, %v572
        %vm692 = vcmask 9217
        %693 = vst.msk [vmem:[#allocation2 - $0x1] sm:$0x2] %vm692, %v565
        %694 = vst.msk [vmem:[#allocation2 + $0x3] sm:$0x2] %vm692, %v573
        %695 = vst.msk [vmem:[#allocation2 + $0x7] sm:$0x2] %vm692, %v572
        %696 = vst.msk [vmem:[#allocation2 + $0x2] sm:$0x2] %vm692, %v565
        %697 = vst.msk [vmem:[#allocation2 + $0x6] sm:$0x2] %vm692, %v573
        %698 = vst.msk [vmem:[#allocation2 + $0xa] sm:$0x2] %vm692, %v572
        %699 = vst.msk [vmem:[#allocation3 + $0x1] sm:$0x3] %vm688, %v676
        %700 = vst.msk [vmem:[#allocation3 + $0x5] sm:$0x3] %vm688, %v684
        %701 = vst.msk [vmem:[#allocation3 + $0x9] sm:$0x3] %vm688, %v683
        %vm702 = vcmask 8192
        %703 = vst.msk [vmem:[#allocation3] sm:$0x1] %vm702, %v676
        %704 = vst.msk [vmem:[#allocation3 + $0x4] sm:$0x1] %vm702, %v684
        %705 = vst.msk [vmem:[#allocation3 + $0x8] sm:$0x1] %vm702, %v683
        %v706 = vld [vmem:[#allocation2] sm:$0xf]
        %v707 = vld [vmem:[#allocation2 + $0x4] sm:$0xf]
        %v708 = vld [vmem:[#allocation2 + $0x8] sm:$0xf]
        %v709 = vld [vmem:[#allocation3] sm:$0x7]
        %v710 = vld [vmem:[#allocation3 + $0x4] sm:$0x7]
        %v711 = vld [vmem:[#allocation3 + $0x8] sm:$0x7]
        %v712 = vmul.f32 %v706, 6.0
        %v713 = vmul.f32 %v707, 6.0
        %v714 = vmul.f32 %v708, 6.0
        %v718 = vrot.slane %v712, 1
        %v719 = vrot.slane %v713, 1
        %v720 = vrot.slane %v714, 1
        %v724 = vadd.f32 %v706, %v718
        %v725 = vadd.f32 %v707, %v719
        %v726 = vadd.f32 %v708, %v720
        %v730 = vrot.slane %v706, 2
        %v731 = vrot.slane %v707, 2
        %v732 = vrot.slane %v708, 2
        %v736 = vadd.f32 %v724, %v730
        %v737 = vadd.f32 %v725, %v731
        %v738 = vadd.f32 %v726, %v732
        %v742 = vrot.slane %v709, 1
        %v743 = vrot.slane %v710, 1
        %v744 = vrot.slane %v711, 1
        %v748 = vadd.f32 %v709, %v742
        %v749 = vadd.f32 %v710, %v743
        %v750 = vadd.f32 %v711, %v744
        %v751 = vmul.f32 %v748, 4.0
        %v752 = vmul.f32 %v749, 4.0
        %v753 = vmul.f32 %v750, 4.0
        %v754 = vadd.f32 %v736, %v751
        %v755 = vadd.f32 %v737, %v752
        %v756 = vadd.f32 %v738, %v753
        %v757 = vmul.f32 %v754, 0.0625
        %v758 = vmul.f32 %v755, 0.0625
        %v759 = vmul.f32 %v756, 0.0625
        %v763 = vcombine.low %v757, %v758
        %v765 = vunpack.c.l.s4 1983009808
        %v766 = vunpack.c.0.s8 %v765
        %v767 = vlaneseq
        %v768 = vshrl.u32 %v767, 7
        %v769 = vsub.s32 %v766, %v768
        %v770 = vrot.slane %v763, %v769
        %v772 = vunpack.c.l.s4 1983009808
        %v773 = vunpack.c.0.s8 %v772
        %v774 = vlaneseq
        %v775 = vshrl.u32 %v774, 7
        %v776 = vsub.s32 %v773, %v775
        %v777 = vrot.slane %v759, %v776
        %v778 = vcombine.low %v770, %v777
        %vm779 = vcmask 15360
        %v780 = vsel %vm779, %v778, 0
        %vm782 = vcmask 1041408
        %v784 = vsel %vm782, %v448, 0
        %786 = vmatprep.subr.mxu0 0.0
        %787 = vmatpush1.msra.mxu0 %v784
        %788 = vmatprep.subr.mxu0 0.0
        %789 = vmatpush1.msra.mxu0 0.0
        %790 = vmatprep.subr.mxu0 0.0
        %791 = vmatpush1.msra.mxu0 0.0
        %792 = vmatprep.subr.mxu0 0.0
        %793 = vmatpush1.msra.mxu0 0.0
        %794 = vmatprep.subr.mxu0 0.0
        %795 = vmatpush1.msra.mxu0 0.0
        %796 = vmatprep.subr.mxu0 0.0
        %797 = vmatpush1.msra.mxu0 0.0
        %798 = vmatprep.subr.mxu0 0.0
        %799 = vmatpush1.msra.mxu0 0.0
        %800 = vmatprep.subr.mxu0 0.0
        %801 = vmatpush1.msra.mxu0 0.0
        %802 = vmatprep.subr.mxu0 0.0
        %803 = vmatpush1.msra.mxu0 0.0
        %804 = vmatprep.subr.mxu0 0.0
        %805 = vmatpush1.msra.mxu0 0.0
        %806 = vmatprep.subr.mxu0 0.0
        %807 = vmatpush1.msra.mxu0 0.0
        %808 = vmatprep.subr.mxu0 0.0
        %809 = vmatpush1.msra.mxu0 0.0
        %810 = vmatprep.subr.mxu0 0.0
        %811 = vmatpush1.msra.mxu0 0.0
        %812 = vmatprep.subr.mxu0 0.0
        %813 = vmatpush1.msra.mxu0 0.0
        %814 = vmatprep.subr.mxu0 0.0
        %815 = vmatpush1.msra.mxu0 0.0
        %816 = vmatprep.subr.mxu0 0.0
        %817 = vmatpush1.msra.mxu0 0.0
        %818 = vmatprep.subr.mxu0 0.0
        %819 = vmatpush1.msra.mxu0 0.0
        %820 = vmatprep.subr.mxu0 0.0
        %821 = vmatpush1.msra.mxu0 0.0
        %822 = vmatprep.subr.mxu0 0.0
        %823 = vmatpush1.msra.mxu0 0.0
        %824 = vmatprep.subr.mxu0 0.0
        %825 = vmatpush1.msra.mxu0 0.0
        %826 = vmatprep.subr.mxu0 0.0
        %827 = vmatpush1.msra.mxu0 0.0
        %828 = vmatprep.subr.mxu0 0.0
        %829 = vmatpush1.msra.mxu0 0.0
        %830 = vmatprep.subr.mxu0 0.0
        %831 = vmatpush1.msra.mxu0 0.0
        %832 = vmatprep.subr.mxu0 0.0
        %833 = vmatpush1.msra.mxu0 0.0
        %834 = vmatprep.subr.mxu0 0.0
        %835 = vmatpush1.msra.mxu0 0.0
        %836 = vmatprep.subr.mxu0 0.0
        %837 = vmatpush1.msra.mxu0 0.0
        %838 = vmatprep.subr.mxu0 0.0
        %839 = vmatpush1.msra.mxu0 0.0
        %840 = vmatprep.subr.mxu0 0.0
        %841 = vmatpush1.msra.mxu0 0.0
        %842 = vmatprep.subr.mxu0 0.0
        %843 = vmatpush1.msra.mxu0 0.0
        %844 = vmatprep.subr.mxu0 0.0
        %845 = vmatpush1.msra.mxu0 0.0
        %846 = vmatprep.subr.mxu0 0.0
        %847 = vmatpush1.msra.mxu0 0.0
        %848 = vmatprep.subr.mxu0 0.0
        %849 = vmatpush1.msra.mxu0 0.0
        %850 = vmatprep.mubr.f32.mxu0 0.0
        %851 = vmatmul.mubr.f32.gmra.mrb[0].mxu0 %v780
        %v852 = vpop.f32.mrb[0].mxu0
        %v853 = vadd.f32 0.0, %v852
        %v854 = vpop.f32.mrb[0].mxu0
        %855 = vdwg.mxu0
        %v857 = vcombine.high %v853, %v853
        %v859 = vunpack.c.l.s4 1983009808
        %v860 = vunpack.c.0.s8 %v859
        %v861 = vlaneseq
        %v862 = vshrl.u32 %v861, 7
        %v863 = vsub.s32 %v860, %v862
        %v864 = vrot.slane %v853, %v863
        %v866 = vunpack.c.l.s4 1983009808
        %v867 = vunpack.c.0.s8 %v866
        %v868 = vlaneseq
        %v869 = vshrl.u32 %v868, 7
        %v870 = vsub.s32 %v867, %v869
        %v871 = vrot.slane %v857, %v870
        %v872 = vcombine.high %v864, %v864
        %vm876 = vcmask 25600
        %877 = vst.msk [vmem:[#allocation4 + $0x1] sm:$0x3] %vm876, %v864
        %878 = vst.msk [vmem:[#allocation4 + $0x5] sm:$0x3] %vm876, %v872
        %879 = vst.msk [vmem:[#allocation4 + $0x9] sm:$0x3] %vm876, %v871
        %vm880 = vcmask 25601
        %881 = vst.msk [vmem:[#allocation4 - $0x1] sm:$0x2] %vm880, %v864
        %882 = vst.msk [vmem:[#allocation4 + $0x3] sm:$0x2] %vm880, %v872
        %883 = vst.msk [vmem:[#allocation4 + $0x7] sm:$0x2] %vm880, %v871
        %884 = vst.msk [vmem:[#allocation4 + $0x2] sm:$0x2] %vm880, %v864
        %885 = vst.msk [vmem:[#allocation4 + $0x6] sm:$0x2] %vm880, %v872
        %886 = vst.msk [vmem:[#allocation4 + $0xa] sm:$0x2] %vm880, %v871
        %v887 = vld [vmem:[#allocation4] sm:$0xf]
        %v888 = vld [vmem:[#allocation4 + $0x4] sm:$0xf]
        %v889 = vld [vmem:[#allocation4 + $0x8] sm:$0xf]
        %v890 = vmul.f32 %v887, 6.0
        %v891 = vmul.f32 %v888, 6.0
        %v892 = vmul.f32 %v889, 6.0
        %v896 = vrot.slane %v890, 1
        %v897 = vrot.slane %v891, 1
        %v898 = vrot.slane %v892, 1
        %v902 = vadd.f32 %v887, %v896
        %v903 = vadd.f32 %v888, %v897
        %v904 = vadd.f32 %v889, %v898
        %v908 = vrot.slane %v887, 2
        %v909 = vrot.slane %v888, 2
        %v910 = vrot.slane %v889, 2
        %v914 = vadd.f32 %v902, %v908
        %v915 = vadd.f32 %v903, %v909
        %v916 = vadd.f32 %v904, %v910
        %v917 = vmul.f32 %v914, 0.125
        %v918 = vmul.f32 %v915, 0.125
        %v919 = vmul.f32 %v916, 0.125
        %v920 = vrot.slane %v887, 1
        %v921 = vrot.slane %v888, 1
        %v922 = vrot.slane %v889, 1
        %v926 = vadd.f32 %v887, %v920
        %v927 = vadd.f32 %v888, %v921
        %v928 = vadd.f32 %v889, %v922
        %v929 = vmul.f32 %v926, 0.5
        %v930 = vmul.f32 %v927, 0.5
        %v931 = vmul.f32 %v928, 0.5
        %932 = vst.msk [vmem:[%s387] sm:$0x3] %vm688, %v757
        %933 = vst.msk [vmem:[%s387 + $0x2] sm:$0x3] %vm688, %v758
        %934 = vst.msk [vmem:[%s387 + $0x4] sm:$0x3] %vm688, %v759
        %v938 = vcombine.low %v455, %v456
        %v940 = vunpack.c.l.s4 1983009808
        %v941 = vunpack.c.0.s8 %v940
        %v942 = vlaneseq
        %v943 = vshrl.u32 %v942, 7
        %v944 = vsub.s32 %v941, %v943
        %v945 = vrot.slane %v938, %v944
        %v947 = vunpack.c.l.s4 1983009808
        %v948 = vunpack.c.0.s8 %v947
        %v949 = vlaneseq
        %v950 = vshrl.u32 %v949, 7
        %v951 = vsub.s32 %v948, %v950
        %v952 = vrot.slane %v457, %v951
        %v953 = vcombine.low %v945, %v952
        %v954 = vsel %vm480, %v953, 0
        %956 = vmatprep.subr.mxu0 0.0
        %957 = vmatpush1.msra.mxu0 %v485
        %958 = vmatprep.subr.mxu0 0.0
        %959 = vmatpush1.msra.mxu0 0.0
        %960 = vmatprep.subr.mxu0 0.0
        %961 = vmatpush1.msra.mxu0 0.0
        %962 = vmatprep.subr.mxu0 0.0
        %963 = vmatpush1.msra.mxu0 0.0
        %964 = vmatprep.subr.mxu0 0.0
        %965 = vmatpush1.msra.mxu0 0.0
        %966 = vmatprep.subr.mxu0 0.0
        %967 = vmatpush1.msra.mxu0 0.0
        %968 = vmatprep.subr.mxu0 0.0
        %969 = vmatpush1.msra.mxu0 0.0
        %970 = vmatprep.subr.mxu0 0.0
        %971 = vmatpush1.msra.mxu0 0.0
        %972 = vmatprep.subr.mxu0 0.0
        %973 = vmatpush1.msra.mxu0 0.0
        %974 = vmatprep.subr.mxu0 0.0
        %975 = vmatpush1.msra.mxu0 0.0
        %976 = vmatprep.subr.mxu0 0.0
        %977 = vmatpush1.msra.mxu0 0.0
        %978 = vmatprep.subr.mxu0 0.0
        %979 = vmatpush1.msra.mxu0 0.0
        %980 = vmatprep.subr.mxu0 0.0
        %981 = vmatpush1.msra.mxu0 0.0
        %982 = vmatprep.subr.mxu0 0.0
        %983 = vmatpush1.msra.mxu0 0.0
        %984 = vmatprep.subr.mxu0 0.0
        %985 = vmatpush1.msra.mxu0 0.0
        %986 = vmatprep.subr.mxu0 0.0
        %987 = vmatpush1.msra.mxu0 0.0
        %988 = vmatprep.subr.mxu0 0.0
        %989 = vmatpush1.msra.mxu0 0.0
        %990 = vmatprep.subr.mxu0 0.0
        %991 = vmatpush1.msra.mxu0 0.0
        %992 = vmatprep.subr.mxu0 0.0
        %993 = vmatpush1.msra.mxu0 0.0
        %994 = vmatprep.subr.mxu0 0.0
        %995 = vmatpush1.msra.mxu0 0.0
        %996 = vmatprep.subr.mxu0 0.0
        %997 = vmatpush1.msra.mxu0 0.0
        %998 = vmatprep.subr.mxu0 0.0
        %999 = vmatpush1.msra.mxu0 0.0
        %1000 = vmatprep.subr.mxu0 0.0
        %1001 = vmatpush1.msra.mxu0 0.0
        %1002 = vmatprep.subr.mxu0 0.0
        %1003 = vmatpush1.msra.mxu0 0.0
        %1004 = vmatprep.subr.mxu0 0.0
        %1005 = vmatpush1.msra.mxu0 0.0
        %1006 = vmatprep.subr.mxu0 0.0
        %1007 = vmatpush1.msra.mxu0 0.0
        %1008 = vmatprep.subr.mxu0 0.0
        %1009 = vmatpush1.msra.mxu0 0.0
        %1010 = vmatprep.subr.mxu0 0.0
        %1011 = vmatpush1.msra.mxu0 0.0
        %1012 = vmatprep.subr.mxu0 0.0
        %1013 = vmatpush1.msra.mxu0 0.0
        %1014 = vmatprep.subr.mxu0 0.0
        %1015 = vmatpush1.msra.mxu0 0.0
        %1016 = vmatprep.subr.mxu0 0.0
        %1017 = vmatpush1.msra.mxu0 0.0
        %1018 = vmatprep.subr.mxu0 0.0
        %1019 = vmatpush1.msra.mxu0 0.0
        %1020 = vmatprep.mubr.f32.mxu0 0.0
        %1021 = vmatmul.mubr.f32.gmra.mrb[0].mxu0 %v954
        %v1022 = vpop.f32.mrb[0].mxu0
        %v1023 = vadd.f32 0.0, %v1022
        %v1024 = vpop.f32.mrb[0].mxu0
        %1025 = vdwg.mxu0
        %v1027 = vcombine.high %v1023, %v1023
        %v1029 = vunpack.c.l.s4 1983009808
        %v1030 = vunpack.c.0.s8 %v1029
        %v1031 = vlaneseq
        %v1032 = vshrl.u32 %v1031, 7
        %v1033 = vsub.s32 %v1030, %v1032
        %v1034 = vrot.slane %v1023, %v1033
        %v1036 = vunpack.c.l.s4 1983009808
        %v1037 = vunpack.c.0.s8 %v1036
        %v1038 = vlaneseq
        %v1039 = vshrl.u32 %v1038, 7
        %v1040 = vsub.s32 %v1037, %v1039
        %v1041 = vrot.slane %v1027, %v1040
        %v1042 = vcombine.high %v1034, %v1034
        %v1049 = vcombine.low %v458, %v459
        %v1051 = vunpack.c.l.s4 1983009808
        %v1052 = vunpack.c.0.s8 %v1051
        %v1053 = vlaneseq
        %v1054 = vshrl.u32 %v1053, 7
        %v1055 = vsub.s32 %v1052, %v1054
        %v1056 = vrot.slane %v1049, %v1055
        %v1058 = vunpack.c.l.s4 1983009808
        %v1059 = vunpack.c.0.s8 %v1058
        %v1060 = vlaneseq
        %v1061 = vshrl.u32 %v1060, 7
        %v1062 = vsub.s32 %v1059, %v1061
        %v1063 = vrot.slane %v460, %v1062
        %v1064 = vcombine.low %v1056, %v1063
        %v1065 = vsel %vm480, %v1064, 0
        %1067 = vmatprep.subr.mxu0 0.0
        %1068 = vmatpush1.msra.mxu0 %v485
        %1069 = vmatprep.subr.mxu0 0.0
        %1070 = vmatpush1.msra.mxu0 0.0
        %1071 = vmatprep.subr.mxu0 0.0
        %1072 = vmatpush1.msra.mxu0 0.0
        %1073 = vmatprep.subr.mxu0 0.0
        %1074 = vmatpush1.msra.mxu0 0.0
        %1075 = vmatprep.subr.mxu0 0.0
        %1076 = vmatpush1.msra.mxu0 0.0
        %1077 = vmatprep.subr.mxu0 0.0
        %1078 = vmatpush1.msra.mxu0 0.0
        %1079 = vmatprep.subr.mxu0 0.0
        %1080 = vmatpush1.msra.mxu0 0.0
        %1081 = vmatprep.subr.mxu0 0.0
        %1082 = vmatpush1.msra.mxu0 0.0
        %1083 = vmatprep.subr.mxu0 0.0
        %1084 = vmatpush1.msra.mxu0 0.0
        %1085 = vmatprep.subr.mxu0 0.0
        %1086 = vmatpush1.msra.mxu0 0.0
        %1087 = vmatprep.subr.mxu0 0.0
        %1088 = vmatpush1.msra.mxu0 0.0
        %1089 = vmatprep.subr.mxu0 0.0
        %1090 = vmatpush1.msra.mxu0 0.0
        %1091 = vmatprep.subr.mxu0 0.0
        %1092 = vmatpush1.msra.mxu0 0.0
        %1093 = vmatprep.subr.mxu0 0.0
        %1094 = vmatpush1.msra.mxu0 0.0
        %1095 = vmatprep.subr.mxu0 0.0
        %1096 = vmatpush1.msra.mxu0 0.0
        %1097 = vmatprep.subr.mxu0 0.0
        %1098 = vmatpush1.msra.mxu0 0.0
        %1099 = vmatprep.subr.mxu0 0.0
        %1100 = vmatpush1.msra.mxu0 0.0
        %1101 = vmatprep.subr.mxu0 0.0
        %1102 = vmatpush1.msra.mxu0 0.0
        %1103 = vmatprep.subr.mxu0 0.0
        %1104 = vmatpush1.msra.mxu0 0.0
        %1105 = vmatprep.subr.mxu0 0.0
        %1106 = vmatpush1.msra.mxu0 0.0
        %1107 = vmatprep.subr.mxu0 0.0
        %1108 = vmatpush1.msra.mxu0 0.0
        %1109 = vmatprep.subr.mxu0 0.0
        %1110 = vmatpush1.msra.mxu0 0.0
        %1111 = vmatprep.subr.mxu0 0.0
        %1112 = vmatpush1.msra.mxu0 0.0
        %1113 = vmatprep.subr.mxu0 0.0
        %1114 = vmatpush1.msra.mxu0 0.0
        %1115 = vmatprep.subr.mxu0 0.0
        %1116 = vmatpush1.msra.mxu0 0.0
        %1117 = vmatprep.subr.mxu0 0.0
        %1118 = vmatpush1.msra.mxu0 0.0
        %1119 = vmatprep.subr.mxu0 0.0
        %1120 = vmatpush1.msra.mxu0 0.0
        %1121 = vmatprep.subr.mxu0 0.0
        %1122 = vmatpush1.msra.mxu0 0.0
        %1123 = vmatprep.subr.mxu0 0.0
        %1124 = vmatpush1.msra.mxu0 0.0
        %1125 = vmatprep.subr.mxu0 0.0
        %1126 = vmatpush1.msra.mxu0 0.0
        %1127 = vmatprep.subr.mxu0 0.0
        %1128 = vmatpush1.msra.mxu0 0.0
        %1129 = vmatprep.subr.mxu0 0.0
        %1130 = vmatpush1.msra.mxu0 0.0
        %1131 = vmatprep.mubr.f32.mxu0 0.0
        %1132 = vmatmul.mubr.f32.gmra.mrb[0].mxu0 %v1065
        %v1133 = vpop.f32.mrb[0].mxu0
        %v1134 = vadd.f32 0.0, %v1133
        %v1135 = vpop.f32.mrb[0].mxu0
        %1136 = vdwg.mxu0
        %v1138 = vcombine.high %v1134, %v1134
        %v1140 = vunpack.c.l.s4 1983009808
        %v1141 = vunpack.c.0.s8 %v1140
        %v1142 = vlaneseq
        %v1143 = vshrl.u32 %v1142, 7
        %v1144 = vsub.s32 %v1141, %v1143
        %v1145 = vrot.slane %v1134, %v1144
        %v1147 = vunpack.c.l.s4 1983009808
        %v1148 = vunpack.c.0.s8 %v1147
        %v1149 = vlaneseq
        %v1150 = vshrl.u32 %v1149, 7
        %v1151 = vsub.s32 %v1148, %v1150
        %v1152 = vrot.slane %v1138, %v1151
        %v1153 = vcombine.high %v1145, %v1145
        %1157 = vst.msk [vmem:[#allocation2 + $0x1] sm:$0x3] %vm688, %v1034
        %1158 = vst.msk [vmem:[#allocation2 + $0x5] sm:$0x3] %vm688, %v1042
        %1159 = vst.msk [vmem:[#allocation2 + $0x9] sm:$0x3] %vm688, %v1041
        %1160 = vst.msk [vmem:[#allocation2 - $0x1] sm:$0x2] %vm692, %v1034
        %1161 = vst.msk [vmem:[#allocation2 + $0x3] sm:$0x2] %vm692, %v1042
        %1162 = vst.msk [vmem:[#allocation2 + $0x7] sm:$0x2] %vm692, %v1041
        %1163 = vst.msk [vmem:[#allocation2 + $0x2] sm:$0x2] %vm692, %v1034
        %1164 = vst.msk [vmem:[#allocation2 + $0x6] sm:$0x2] %vm692, %v1042
        %1165 = vst.msk [vmem:[#allocation2 + $0xa] sm:$0x2] %vm692, %v1041
        %1166 = vst.msk [vmem:[#allocation3 + $0x1] sm:$0x3] %vm688, %v1145
        %1167 = vst.msk [vmem:[#allocation3 + $0x5] sm:$0x3] %vm688, %v1153
        %1168 = vst.msk [vmem:[#allocation3 + $0x9] sm:$0x3] %vm688, %v1152
        %1169 = vst.msk [vmem:[#allocation3] sm:$0x1] %vm702, %v1145
        %1170 = vst.msk [vmem:[#allocation3 + $0x4] sm:$0x1] %vm702, %v1153
        %1171 = vst.msk [vmem:[#allocation3 + $0x8] sm:$0x1] %vm702, %v1152
        %v1172 = vld [vmem:[#allocation2] sm:$0xf]
        %v1173 = vld [vmem:[#allocation2 + $0x4] sm:$0xf]
        %v1174 = vld [vmem:[#allocation2 + $0x8] sm:$0xf]
        %v1175 = vld [vmem:[#allocation3] sm:$0x7]
        %v1176 = vld [vmem:[#allocation3 + $0x4] sm:$0x7]
        %v1177 = vld [vmem:[#allocation3 + $0x8] sm:$0x7]
        %v1178 = vmul.f32 %v1172, 6.0
        %v1179 = vmul.f32 %v1173, 6.0
        %v1180 = vmul.f32 %v1174, 6.0
        %v1184 = vrot.slane %v1178, 1
        %v1185 = vrot.slane %v1179, 1
        %v1186 = vrot.slane %v1180, 1
        %v1190 = vadd.f32 %v1172, %v1184
        %v1191 = vadd.f32 %v1173, %v1185
        %v1192 = vadd.f32 %v1174, %v1186
        %v1196 = vrot.slane %v1172, 2
        %v1197 = vrot.slane %v1173, 2
        %v1198 = vrot.slane %v1174, 2
        %v1202 = vadd.f32 %v1190, %v1196
        %v1203 = vadd.f32 %v1191, %v1197
        %v1204 = vadd.f32 %v1192, %v1198
        %v1208 = vrot.slane %v1175, 1
        %v1209 = vrot.slane %v1176, 1
        %v1210 = vrot.slane %v1177, 1
        %v1214 = vadd.f32 %v1175, %v1208
        %v1215 = vadd.f32 %v1176, %v1209
        %v1216 = vadd.f32 %v1177, %v1210
        %v1217 = vmul.f32 %v1214, 4.0
        %v1218 = vmul.f32 %v1215, 4.0
        %v1219 = vmul.f32 %v1216, 4.0
        %v1220 = vadd.f32 %v1202, %v1217
        %v1221 = vadd.f32 %v1203, %v1218
        %v1222 = vadd.f32 %v1204, %v1219
        %v1223 = vmul.f32 %v1220, 0.0625
        %v1224 = vmul.f32 %v1221, 0.0625
        %v1225 = vmul.f32 %v1222, 0.0625
        %v1229 = vcombine.low %v1223, %v1224
        %v1231 = vunpack.c.l.s4 1983009808
        %v1232 = vunpack.c.0.s8 %v1231
        %v1233 = vlaneseq
        %v1234 = vshrl.u32 %v1233, 7
        %v1235 = vsub.s32 %v1232, %v1234
        %v1236 = vrot.slane %v1229, %v1235
        %v1238 = vunpack.c.l.s4 1983009808
        %v1239 = vunpack.c.0.s8 %v1238
        %v1240 = vlaneseq
        %v1241 = vshrl.u32 %v1240, 7
        %v1242 = vsub.s32 %v1239, %v1241
        %v1243 = vrot.slane %v1225, %v1242
        %v1244 = vcombine.low %v1236, %v1243
        %v1245 = vsel %vm779, %v1244, 0
        %1247 = vmatprep.subr.mxu0 0.0
        %1248 = vmatpush1.msra.mxu0 %v784
        %1249 = vmatprep.subr.mxu0 0.0
        %1250 = vmatpush1.msra.mxu0 0.0
        %1251 = vmatprep.subr.mxu0 0.0
        %1252 = vmatpush1.msra.mxu0 0.0
        %1253 = vmatprep.subr.mxu0 0.0
        %1254 = vmatpush1.msra.mxu0 0.0
        %1255 = vmatprep.subr.mxu0 0.0
        %1256 = vmatpush1.msra.mxu0 0.0
        %1257 = vmatprep.subr.mxu0 0.0
        %1258 = vmatpush1.msra.mxu0 0.0
        %1259 = vmatprep.subr.mxu0 0.0
        %1260 = vmatpush1.msra.mxu0 0.0
        %1261 = vmatprep.subr.mxu0 0.0
        %1262 = vmatpush1.msra.mxu0 0.0
        %1263 = vmatprep.subr.mxu0 0.0
        %1264 = vmatpush1.msra.mxu0 0.0
        %1265 = vmatprep.subr.mxu0 0.0
        %1266 = vmatpush1.msra.mxu0 0.0
        %1267 = vmatprep.subr.mxu0 0.0
        %1268 = vmatpush1.msra.mxu0 0.0
        %1269 = vmatprep.subr.mxu0 0.0
        %1270 = vmatpush1.msra.mxu0 0.0
        %1271 = vmatprep.subr.mxu0 0.0
        %1272 = vmatpush1.msra.mxu0 0.0
        %1273 = vmatprep.subr.mxu0 0.0
        %1274 = vmatpush1.msra.mxu0 0.0
        %1275 = vmatprep.subr.mxu0 0.0
        %1276 = vmatpush1.msra.mxu0 0.0
        %1277 = vmatprep.subr.mxu0 0.0
        %1278 = vmatpush1.msra.mxu0 0.0
        %1279 = vmatprep.subr.mxu0 0.0
        %1280 = vmatpush1.msra.mxu0 0.0
        %1281 = vmatprep.subr.mxu0 0.0
        %1282 = vmatpush1.msra.mxu0 0.0
        %1283 = vmatprep.subr.mxu0 0.0
        %1284 = vmatpush1.msra.mxu0 0.0
        %1285 = vmatprep.subr.mxu0 0.0
        %1286 = vmatpush1.msra.mxu0 0.0
        %1287 = vmatprep.subr.mxu0 0.0
        %1288 = vmatpush1.msra.mxu0 0.0
        %1289 = vmatprep.subr.mxu0 0.0
        %1290 = vmatpush1.msra.mxu0 0.0
        %1291 = vmatprep.subr.mxu0 0.0
        %1292 = vmatpush1.msra.mxu0 0.0
        %1293 = vmatprep.subr.mxu0 0.0
        %1294 = vmatpush1.msra.mxu0 0.0
        %1295 = vmatprep.subr.mxu0 0.0
        %1296 = vmatpush1.msra.mxu0 0.0
        %1297 = vmatprep.subr.mxu0 0.0
        %1298 = vmatpush1.msra.mxu0 0.0
        %1299 = vmatprep.subr.mxu0 0.0
        %1300 = vmatpush1.msra.mxu0 0.0
        %1301 = vmatprep.subr.mxu0 0.0
        %1302 = vmatpush1.msra.mxu0 0.0
        %1303 = vmatprep.subr.mxu0 0.0
        %1304 = vmatpush1.msra.mxu0 0.0
        %1305 = vmatprep.subr.mxu0 0.0
        %1306 = vmatpush1.msra.mxu0 0.0
        %1307 = vmatprep.subr.mxu0 0.0
        %1308 = vmatpush1.msra.mxu0 0.0
        %1309 = vmatprep.subr.mxu0 0.0
        %1310 = vmatpush1.msra.mxu0 0.0
        %1311 = vmatprep.mubr.f32.mxu0 0.0
        %1312 = vmatmul.mubr.f32.gmra.mrb[0].mxu0 %v1245
        %v1313 = vpop.f32.mrb[0].mxu0
        %v1314 = vadd.f32 0.0, %v1313
        %v1315 = vpop.f32.mrb[0].mxu0
        %1316 = vdwg.mxu0
        %v1318 = vcombine.high %v1314, %v1314
        %v1320 = vunpack.c.l.s4 1983009808
        %v1321 = vunpack.c.0.s8 %v1320
        %v1322 = vlaneseq
        %v1323 = vshrl.u32 %v1322, 7
        %v1324 = vsub.s32 %v1321, %v1323
        %v1325 = vrot.slane %v1314, %v1324
        %v1327 = vunpack.c.l.s4 1983009808
        %v1328 = vunpack.c.0.s8 %v1327
        %v1329 = vlaneseq
        %v1330 = vshrl.u32 %v1329, 7
        %v1331 = vsub.s32 %v1328, %v1330
        %v1332 = vrot.slane %v1318, %v1331
        %v1333 = vcombine.high %v1325, %v1325
        %1337 = vst.msk [vmem:[#allocation4 + $0x1] sm:$0x3] %vm876, %v1325
        %1338 = vst.msk [vmem:[#allocation4 + $0x5] sm:$0x3] %vm876, %v1333
        %1339 = vst.msk [vmem:[#allocation4 + $0x9] sm:$0x3] %vm876, %v1332
        %1340 = vst.msk [vmem:[#allocation4 - $0x1] sm:$0x2] %vm880, %v1325
        %1341 = vst.msk [vmem:[#allocation4 + $0x3] sm:$0x2] %vm880, %v1333
        %1342 = vst.msk [vmem:[#allocation4 + $0x7] sm:$0x2] %vm880, %v1332
        %1343 = vst.msk [vmem:[#allocation4 + $0x2] sm:$0x2] %vm880, %v1325
        %1344 = vst.msk [vmem:[#allocation4 + $0x6] sm:$0x2] %vm880, %v1333
        %1345 = vst.msk [vmem:[#allocation4 + $0xa] sm:$0x2] %vm880, %v1332
        %v1346 = vld [vmem:[#allocation4] sm:$0xf]
        %v1347 = vld [vmem:[#allocation4 + $0x4] sm:$0xf]
        %v1348 = vld [vmem:[#allocation4 + $0x8] sm:$0xf]
        %v1349 = vmul.f32 %v1346, 6.0
        %v1350 = vmul.f32 %v1347, 6.0
        %v1351 = vmul.f32 %v1348, 6.0
        %v1355 = vrot.slane %v1349, 1
        %v1356 = vrot.slane %v1350, 1
        %v1357 = vrot.slane %v1351, 1
        %v1361 = vadd.f32 %v1346, %v1355
        %v1362 = vadd.f32 %v1347, %v1356
        %v1363 = vadd.f32 %v1348, %v1357
        %v1367 = vrot.slane %v1346, 2
        %v1368 = vrot.slane %v1347, 2
        %v1369 = vrot.slane %v1348, 2
        %v1373 = vadd.f32 %v1361, %v1367
        %v1374 = vadd.f32 %v1362, %v1368
        %v1375 = vadd.f32 %v1363, %v1369
        %v1376 = vmul.f32 %v1373, 0.125
        %v1377 = vmul.f32 %v1374, 0.125
        %v1378 = vmul.f32 %v1375, 0.125
        %v1379 = vrot.slane %v1346, 1
        %v1380 = vrot.slane %v1347, 1
        %v1381 = vrot.slane %v1348, 1
        %v1385 = vadd.f32 %v1346, %v1379
        %v1386 = vadd.f32 %v1347, %v1380
        %v1387 = vadd.f32 %v1348, %v1381
        %v1388 = vmul.f32 %v1385, 0.5
        %v1389 = vmul.f32 %v1386, 0.5
        %v1390 = vmul.f32 %v1387, 0.5
        %1391 = vst.msk [vmem:[%s394] sm:$0x3] %vm688, %v1223
        %1392 = vst.msk [vmem:[%s394 + $0x2] sm:$0x3] %vm688, %v1224
        %1393 = vst.msk [vmem:[%s394 + $0x4] sm:$0x3] %vm688, %v1225
        %v1394 = vsub.f32 %v449, %v917
        %v1395 = vsub.f32 %v450, %v918
        %v1396 = vsub.f32 %v451, %v919
        %v1397 = vsub.f32 %v455, %v1376
        %v1398 = vsub.f32 %v456, %v1377
        %v1399 = vsub.f32 %v457, %v1378
        %v1400 = vsub.f32 %v1394, %v1397
        %v1401 = vsub.f32 %v1395, %v1398
        %v1402 = vsub.f32 %v1396, %v1399
        %v1406 = vrot.slane %v929, 1
        %v1407 = vrot.slane %v930, 1
        %v1408 = vrot.slane %v931, 1
        %v1412 = vsub.f32 %v452, %v1406
        %v1413 = vsub.f32 %v453, %v1407
        %v1414 = vsub.f32 %v454, %v1408
        %v1418 = vrot.slane %v1388, 1
        %v1419 = vrot.slane %v1389, 1
        %v1420 = vrot.slane %v1390, 1
        %v1424 = vsub.f32 %v458, %v1418
        %v1425 = vsub.f32 %v459, %v1419
        %v1426 = vsub.f32 %v460, %v1420
        %v1427 = vsub.f32 %v1412, %v1424
        %v1428 = vsub.f32 %v1413, %v1425
        %v1429 = vsub.f32 %v1414, %v1426
        %v1430 = vld [vmem:[%s440] sm:$0x3]
        %v1431 = vand.u32 2147483647, %v1400
        %v1432 = vand.u32 2147483647, %v1401
        %v1433 = vand.u32 2147483647, %v1402
        %v1434 = vand.u32 2147483647, %v1427
        %v1435 = vand.u32 2147483647, %v1428
        %v1436 = vand.u32 2147483647, %v1429
        %v1437 = vadd.f32 %v1431, %v1434
        %v1438 = vadd.f32 %v1432, %v1435
        %v1439 = vadd.f32 %v1433, %v1436
        %v1440 = vsel %vm876, %v1437, 0.0
        %v1441 = vsel %vm876, %v1438, 0.0
        %v1442 = vadd.f32 %v1440, %v1441
        %v1443 = vsel %vm876, %v1439, 0.0
        %v1444 = vadd.f32 %v1442, %v1443
        %v1445 = vadd.f32 %v1430, %v1444
        %1446 = vst.msk [vmem:[%s440] sm:$0x3] %vm876, %v1445
        %s1447 = sand.u32 %s202, 1
        %s1448 = scalar_lea.sflag [#allocation6], %s1447
        %s1449 = sand.u32 %s202, 1
        %s1450 = smul.addr %s1449, 6
        %s1451 = scalar_lea.vmem [#allocation5], %s1450
        %s1452 = sand.u32 %s230, 1
        %s1453 = scalar_lea.sflag [#allocation8], %s1452
        %s1454 = sand.u32 %s230, 1
        %s1455 = smul.addr %s1454, 6
        %s1456 = scalar_lea.vmem [#allocation7], %s1455
        %p1457 = scmp.lt.s32.totalorder %s30, 1
        %s1458 = scalar_select %p1457, %s30, 1
        %s1459 = smul.addr %s1458, 2
        %s1460 = scalar_lea.vmem %s8, %s1459
        // Predicated region
        $region49: #{total_loss.8} parent=43 // pred_check
          %p1461 = pneg %p212
        $region50: #{total_loss.8} parent=43 // pred_check_branch
          %1463 = sbr.rel (%p1461) target = $region52
        $region51: #{total_loss.8} parent=43 // pred_region
          %s1464 = sadd.s32 %s30, %s31
          %s1465 = smul.u32 3, %s1464
          %s1467 = ssub.s32 96, 96
          %1468 = vsyncadd %s1448, %s1467
          %s1469 = smul.addr %s1465, 32
          %s1470 = scalar_lea.hbm %s6, %s1469
          %s1471 = sshll.u32 %s1451, 4
          %s1472 = int_to_ptr.vmem [resolvable:$true] %s1471
          %1477 = dma.vmem_to_hbm [thread:$0]  %s1472, 96, %s1470, %s1448, 32, 32, 2
        $region52: #{total_loss.8} parent=43 // pred_fallthru
          _
        // Predicated region
        $region53: #{total_loss.8} parent=43 // pred_check
          %p1478 = pneg %p240
        $region54: #{total_loss.8} parent=43 // pred_check_branch
          %1480 = sbr.rel (%p1478) target = $region56
        $region55: #{total_loss.8} parent=43 // pred_region
          %s1481 = sadd.s32 %s30, %s31
          %s1482 = smul.u32 3, %s1481
          %s1484 = ssub.s32 96, 96
          %1485 = vsyncadd %s1453, %s1484
          %s1486 = smul.addr %s1482, 32
          %s1487 = scalar_lea.hbm %s7, %s1486
          %s1488 = sshll.u32 %s1456, 4
          %s1489 = int_to_ptr.vmem [resolvable:$true] %s1488
          %1494 = dma.vmem_to_hbm [thread:$0]  %s1489, 96, %s1487, %s1453, 32, 32, 2
        $region56: #{total_loss.8} parent=43 // pred_fallthru
          _
        // Predicated region
        $region57: #{total_loss.8} parent=43 // pred_check
          %p1495 = pneg %p266
        $region58: #{total_loss.8} parent=43 // pred_check_branch
          %1497 = sbr.rel (%p1495) target = $region60
        $region59: #{total_loss.8} parent=43 // pred_region
          _
        $region60: #{total_loss.8} parent=43 // pred_fallthru
          _
      $region44: #{total_loss.8} parent=5 // pred_fallthru
        _
      %p1498 = scmp.le.s32.totalorder 2, %s21
      // Predicated region
      $region61: #{total_loss.8} parent=5 // pred_check
        %p1499 = pneg %p1498
      $region62: #{total_loss.8} parent=5 // pred_check_branch
        %1501 = sbr.rel (%p1499) target = $region64
      $region63: #{total_loss.8} parent=5 // pred_region
        %s1502 = ssub.s32 %s21, 2
        // Predicated region
        $region65: #{total_loss.8} parent=63 // pred_check
          %p1503 = pneg %p218
        $region66: #{total_loss.8} parent=63 // pred_check_branch
          %1505 = sbr.rel (%p1503) target = $region68
        $region67: #{total_loss.8} parent=63 // pred_region
          %s1506 = sand.u32 %s203, 1
          %s1507 = scalar_lea.sflag [#allocation6], %s1506
          %s1508 = sand.u32 %s203, 1
          %s1509 = smul.addr %s1508, 6
          %s1510 = scalar_lea.vmem [#allocation5], %s1509
          %1511 = dma.done %s1507, 96
        $region68: #{total_loss.8} parent=63 // pred_fallthru
          _
        // Predicated region
        $region69: #{total_loss.8} parent=63 // pred_check
          %p1512 = pneg %p246
        $region70: #{total_loss.8} parent=63 // pred_check_branch
          %1514 = sbr.rel (%p1512) target = $region72
        $region71: #{total_loss.8} parent=63 // pred_region
          %s1515 = sand.u32 %s231, 1
          %s1516 = scalar_lea.sflag [#allocation8], %s1515
          %s1517 = sand.u32 %s231, 1
          %s1518 = smul.addr %s1517, 6
          %s1519 = scalar_lea.vmem [#allocation7], %s1518
          %1520 = dma.done %s1516, 96
        $region72: #{total_loss.8} parent=63 // pred_fallthru
          _
        // Predicated region
        $region73: #{total_loss.8} parent=63 // pred_check
          %p1521 = pneg %p272
        $region74: #{total_loss.8} parent=63 // pred_check_branch
          %1523 = sbr.rel (%p1521) target = $region76
        $region75: #{total_loss.8} parent=63 // pred_region
          %p1524 = scmp.lt.s32.totalorder %s32, 1
          %s1525 = scalar_select %p1524, %s32, 1
          %s1526 = smul.addr %s1525, 2
          %s1527 = scalar_lea.vmem %s8, %s1526
        $region76: #{total_loss.8} parent=63 // pred_fallthru
          _
      $region64: #{total_loss.8} parent=5 // pred_fallthru
        _
    $region6: #{total_loss.8} parent=1 // loop_footer
      %s25 = sadd.s32 1, %s21
    $region7: #{total_loss.8} parent=1 // loop_footer_branch
      %20 = sbr.rel target = $region3
    $region8: #{total_loss.8} parent=1 // loop_exit
      _
    %1528 = vsyncpa [#allocation6], 1
    %s1529 = scalar_lea.sflag [#allocation6], 1
    %1530 = vsyncpa %s1529, 1
    %1531 = vsyncpa [#allocation8], 1
    %s1532 = scalar_lea.sflag [#allocation8], 1
    %1533 = vsyncpa %s1532, 1

// kernel: total_loss.9
$region0: #{total_loss.9}
  #allocation0 [shape = 'u32[]', space=smem, size = 0x4, offset = 0x4, fixed_abs, tag = 'smem constant byte address 0x4 - core index']
  #allocation1 [shape = 'u32[144,128]{1,0:T(1,128)}', space=vmem, size = 0x12000, scoped, tag = 'internal scratch']
  %s0 = inlined_call_operand.vmem [shape: f32[8,16,16], index: 0, kind: input, shape index: {}]
  %s1 = inlined_call_operand.vmem [shape: f32[2,15,16], index: 1, kind: output, shape index: {0}]
  %s2 = inlined_call_operand.vmem [shape: f32[2,16,15], index: 2, kind: output, shape index: {1}]
  %3 = xla_tuple %s1, %s2
  %s4 = sld [smem:[#allocation0]]
  $region49: #{total_loss.9} parent=0
    _
  %s6 = ssub.s32 1, %s4
  %s7 = scalar_select 0, %s6, %s4
  loop: start=0, step=1, limit=4
  $region2: #{total_loss.9} parent=0 // loop_pre_header
    _
  $region3: #{total_loss.9} parent=0 // loop_header
    %s9 = sphi 0, %s13
    %p10 = scmp.ge.s32.totalorder %s9, 4
    %s16 = sphi 0, %s28
    %s17 = sphi 0, %s24
    %s18 = sphi 0, %s16
    %s19 = sphi 0, %s17
    %s20 = sphi 0, %s18
    %s21 = sphi 0, %s19
    %s33 = sphi 0, %s35
    %s36 = sphi 0, %s33
    %s37 = sphi 0, %s36
    %s53 = sphi 0, %s37
    %s59 = sphi 0, %s61
    %s62 = sphi 0, %s59
    %s63 = sphi 0, %s62
    %s79 = sphi 0, %s63
    %s85 = sphi 0, %s87
    %s88 = sphi 0, %s85
    %s89 = sphi 0, %s88
    %s105 = sphi 0, %s89
  $region4: #{total_loss.9} parent=0 // loop_header_branch
    %12 = sbr.rel (%p10) target = $region8
  $region5: #{total_loss.9} parent=0 // loop_body
    %s14 = ssub.s32 %s9, 1
    %s15 = ssub.s32 %s9, 2
    %s22 = sadd.s32 1, %s17
    %p23 = scmp.ge.s32.totalorder %s22, 1
    %s24 = scalar_select %p23, 0, %s22
    %s25 = sadd.s32 1, %s16
    %s26 = scalar_select %p23, %s25, %s16
    %p27 = scmp.ge.s32.totalorder %s26, 2
    %s28 = scalar_select %p27, 0, %s26
    %s29 = sadd.s32 %s16, %s17
    %s30 = sadd.s32 %s28, %s24
    %s31 = ssub.s32 %s29, %s30
    %p32 = scmp.eq.s32.totalorder %s31, 0
    %s34 = sadd.s32 %s33, 1
    %s35 = scalar_select %p32, %s33, %s34
    %p38 = pneg %p32
    %p39 = scmp.eq.s32.totalorder %s9, 1
    %p40 = por %p38, %p39
    %p41 = scmp.ne.s32.totalorder %s33, %s36
    %p42 = scmp.eq.s32.totalorder %s9, 0
    %p43 = por %p41, %p42
    %p44 = scmp.ne.s32.totalorder %s33, %s36
    %p45 = scmp.eq.s32.totalorder %s14, 1
    %p46 = por %p44, %p45
    %p47 = scmp.ne.s32.totalorder %s36, %s37
    %p48 = scmp.eq.s32.totalorder %s14, 0
    %p49 = por %p47, %p48
    %p50 = scmp.ne.s32.totalorder %s36, %s37
    %p51 = scmp.eq.s32.totalorder %s15, 1
    %p52 = por %p50, %p51
    %p54 = scmp.ne.s32.totalorder %s37, %s53
    %p55 = scmp.eq.s32.totalorder %s15, 0
    %p56 = por %p54, %p55
    %s57 = ssub.s32 %s16, %s28
    %p58 = scmp.eq.s32.totalorder %s57, 0
    %s60 = sadd.s32 %s59, 1
    %s61 = scalar_select %p58, %s59, %s60
    %p64 = pneg %p58
    %p65 = scmp.eq.s32.totalorder %s9, 1
    %p66 = por %p64, %p65
    %p67 = scmp.ne.s32.totalorder %s59, %s62
    %p68 = scmp.eq.s32.totalorder %s9, 0
    %p69 = por %p67, %p68
    %p70 = scmp.ne.s32.totalorder %s59, %s62
    %p71 = scmp.eq.s32.totalorder %s14, 1
    %p72 = por %p70, %p71
    %p73 = scmp.ne.s32.totalorder %s62, %s63
    %p74 = scmp.eq.s32.totalorder %s14, 0
    %p75 = por %p73, %p74
    %p76 = scmp.ne.s32.totalorder %s62, %s63
    %p77 = scmp.eq.s32.totalorder %s15, 1
    %p78 = por %p76, %p77
    %p80 = scmp.ne.s32.totalorder %s63, %s79
    %p81 = scmp.eq.s32.totalorder %s15, 0
    %p82 = por %p80, %p81
    %s83 = ssub.s32 %s16, %s28
    %p84 = scmp.eq.s32.totalorder %s83, 0
    %s86 = sadd.s32 %s85, 1
    %s87 = scalar_select %p84, %s85, %s86
    %p90 = pneg %p84
    %p91 = scmp.eq.s32.totalorder %s9, 1
    %p92 = por %p90, %p91
    %p93 = scmp.ne.s32.totalorder %s85, %s88
    %p94 = scmp.eq.s32.totalorder %s9, 0
    %p95 = por %p93, %p94
    %p96 = scmp.ne.s32.totalorder %s85, %s88
    %p97 = scmp.eq.s32.totalorder %s14, 1
    %p98 = por %p96, %p97
    %p99 = scmp.ne.s32.totalorder %s88, %s89
    %p100 = scmp.eq.s32.totalorder %s14, 0
    %p101 = por %p99, %p100
    %p102 = scmp.ne.s32.totalorder %s88, %s89
    %p103 = scmp.eq.s32.totalorder %s15, 1
    %p104 = por %p102, %p103
    %p106 = scmp.ne.s32.totalorder %s89, %s105
    %p107 = scmp.eq.s32.totalorder %s15, 0
    %p108 = por %p106, %p107
    %p109 = scmp.le.s32.totalorder 1, %s9
    %p110 = scmp.lt.s32.totalorder %s9, 3
    %p111 = pnand %p109, %p110
    %p112 = pneg %p111
    // Predicated region
    $region9: #{total_loss.9} parent=5 // pred_check
      _
    $region10: #{total_loss.9} parent=5 // pred_check_branch
      %114 = sbr.rel (%p111) target = $region12
    $region11: #{total_loss.9} parent=5 // pred_region
      %s115 = ssub.s32 %s9, 1
    $region12: #{total_loss.9} parent=5 // pred_fallthru
      _
    %p116 = scmp.lt.s32.totalorder %s9, 2
    // Predicated region
    $region13: #{total_loss.9} parent=5 // pred_check
      %p117 = pneg %p116
    $region14: #{total_loss.9} parent=5 // pred_check_branch
      %119 = sbr.rel (%p117) target = $region16
    $region15: #{total_loss.9} parent=5 // pred_region
      // Predicated region
      $region17: #{total_loss.9} parent=15 // pred_check
        %p120 = pneg %p43
      $region18: #{total_loss.9} parent=15 // pred_check_branch
        %122 = sbr.rel (%p120) target = $region20
      $region19: #{total_loss.9} parent=15 // pred_region
        %s123 = sadd.s32 %s16, %s17
        %s124 = smul.u32 4, %s123
        %p125 = scmp.lt.s32.totalorder %s124, 7
        %s126 = scalar_select %p125, %s124, 7
        %s127 = smul.addr %s126, 2
        %s128 = smul.addr %s127, 8
        %s129 = scalar_lea.vmem %s0, %s128
        %s130 = sadd.s32 %s16, %s17
        %s131 = smul.u32 4, %s130
      $region20: #{total_loss.9} parent=15 // pred_fallthru
        _
    $region16: #{total_loss.9} parent=5 // pred_fallthru
      _
    %p132 = scmp.le.s32.totalorder 1, %s9
    %p133 = scmp.lt.s32.totalorder %s9, 3
    %p134 = pnand %p132, %p133
    %p135 = pneg %p134
    // Predicated region
    $region21: #{total_loss.9} parent=5 // pred_check
      _
    $region22: #{total_loss.9} parent=5 // pred_check_branch
      %137 = sbr.rel (%p134) target = $region24
    $region23: #{total_loss.9} parent=5 // pred_region
      %s138 = ssub.s32 %s9, 1
      %s139 = sadd.s32 %s18, %s19
      %s140 = smul.u32 4, %s139
      %p141 = scmp.lt.s32.totalorder %s140, 7
      %s142 = scalar_select %p141, %s140, 7
      %s143 = smul.addr %s142, 2
      %s144 = smul.addr %s143, 8
      %s145 = scalar_lea.vmem %s0, %s144
      %p146 = pneg %p49
      %p147 = pneg %p46
      %p148 = pneg %p75
      %p149 = pneg %p72
      %p150 = scmp.lt.s32.totalorder %s18, 1
      %s151 = scalar_select %p150, %s18, 1
      %s152 = smul.addr %s151, 2
      %s153 = smul.addr %s152, 8
      %s154 = scalar_lea.vmem %s1, %s153
      %p155 = pneg %p101
      %p156 = pneg %p98
      %p157 = scmp.lt.s32.totalorder %s18, 1
      %s158 = scalar_select %p157, %s18, 1
      %s159 = smul.addr %s158, 2
      %s160 = smul.addr %s159, 8
      %s161 = scalar_lea.vmem %s2, %s160
      %s162 = sadd.s32 %s18, %s19
      %s163 = smul.u32 4, %s162
      %p164 = scmp.lt.s32.totalorder %s163, 7
      %s165 = scalar_select %p164, %s163, 7
      %s166 = smul.addr %s165, 2
      %s167 = smul.addr %s166, 8
      %s168 = scalar_lea.vmem %s0, %s167
      %s169 = sadd.s32 %s18, %s19
      %s170 = smul.u32 4, %s169
      %p171 = scmp.lt.s32.totalorder %s18, 1
      %s172 = scalar_select %p171, %s18, 1
      %s173 = smul.addr %s172, 2
      %s174 = smul.addr %s173, 8
      %s175 = scalar_lea.vmem %s1, %s174
      %p176 = scmp.lt.s32.totalorder %s18, 1
      %s177 = scalar_select %p176, %s18, 1
      %s178 = smul.addr %s177, 2
      %s179 = smul.addr %s178, 8
      %s180 = scalar_lea.vmem %s2, %s179
      %p181 = scmp.eq.s32.totalorder %s19, 0
      // Predicated region
      $region25: #{total_loss.9} parent=23 // pred_check
        %p182 = pneg %p181
      $region26: #{total_loss.9} parent=23 // pred_check_branch
        %184 = sbr.rel (%p182) target = $region28
      $region27: #{total_loss.9} parent=23 // pred_region
        %vm185 = vcmask 130048
        %186 = vst.msk [vmem:[%s175] sm:$0xff] %vm185, 0.0
        %vm187 = vcmask 129024
        %188 = vst.msk [vmem:[%s175 + $0x8] sm:$0x7f] %vm187, 0.0
        %vm189 = vcmask 121856
        %190 = vst.msk [vmem:[%s180] sm:$0xff] %vm189, 0.0
        %191 = vst.msk [vmem:[%s180 + $0x8] sm:$0xff] %vm189, 0.0
      $region28: #{total_loss.9} parent=23 // pred_fallthru
        _
      %v192 = vld [vmem:[%s168] sm:$0xff]
      %v193 = vld [vmem:[%s168 + $0x8] sm:$0xff]
      %v194 = vld [vmem:[%s168 + $0x10] sm:$0xff]
      %v195 = vld [vmem:[%s168 + $0x18] sm:$0xff]
      %v196 = vld [vmem:[%s168 + $0x20] sm:$0xff]
      %v197 = vld [vmem:[%s168 + $0x28] sm:$0xff]
      %v198 = vld [vmem:[%s168 + $0x30] sm:$0xff]
      %v199 = vld [vmem:[%s168 + $0x38] sm:$0xff]
      %vm208 = vcmask 1040384
      %v209 = vrot.slane %v192, 7
      %v210 = vrot.slane %v193, 7
      %v211 = vsel %vm208, %v209, %v210
      %v212 = vrot.slane %v194, 7
      %v213 = vrot.slane %v195, 7
      %v214 = vsel %vm208, %v212, %v213
      %v215 = vrot.slane %v196, 7
      %v216 = vrot.slane %v197, 7
      %v217 = vsel %vm208, %v215, %v216
      %v218 = vrot.slane %v198, 7
      %v219 = vrot.slane %v199, 7
      %v220 = vsel %vm208, %v218, %v219
      %v229 = vsub.f32 %v192, %v209
      %v230 = vsub.f32 %v193, %v211
      %v231 = vsub.f32 %v194, %v212
      %v232 = vsub.f32 %v195, %v214
      %v233 = vsub.f32 %v196, %v215
      %v234 = vsub.f32 %v197, %v217
      %v235 = vsub.f32 %v198, %v218
      %v236 = vsub.f32 %v199, %v220
      %v237 = vand.u32 2147483647, %v229
      %v238 = vand.u32 2147483647, %v230
      %v239 = vand.u32 2147483647, %v231
      %v240 = vand.u32 2147483647, %v232
      %v241 = vand.u32 2147483647, %v233
      %v242 = vand.u32 2147483647, %v234
      %v243 = vand.u32 2147483647, %v235
      %v244 = vand.u32 2147483647, %v236
      %245 = vrot.lane.b32.xlu0 %v192, 1
      %v246 = vpop.permute.xlu0 %245
      %247 = vrot.lane.b32.xlu0 %v193, 1
      %v248 = vpop.permute.xlu0 %247
      %249 = vrot.lane.b32.xlu0 %v194, 1
      %v250 = vpop.permute.xlu0 %249
      %251 = vrot.lane.b32.xlu0 %v195, 1
      %v252 = vpop.permute.xlu0 %251
      %253 = vrot.lane.b32.xlu0 %v196, 1
      %v254 = vpop.permute.xlu0 %253
      %255 = vrot.lane.b32.xlu0 %v197, 1
      %v256 = vpop.permute.xlu0 %255
      %257 = vrot.lane.b32.xlu0 %v198, 1
      %v258 = vpop.permute.xlu0 %257
      %259 = vrot.lane.b32.xlu0 %v199, 1
      %v260 = vpop.permute.xlu0 %259
      %v269 = vsub.f32 %v192, %v246
      %v270 = vsub.f32 %v193, %v248
      %v271 = vsub.f32 %v194, %v250
      %v272 = vsub.f32 %v195, %v252
      %v273 = vsub.f32 %v196, %v254
      %v274 = vsub.f32 %v197, %v256
      %v275 = vsub.f32 %v198, %v258
      %v276 = vsub.f32 %v199, %v260
      %v277 = vand.u32 2147483647, %v269
      %v278 = vand.u32 2147483647, %v270
      %v279 = vand.u32 2147483647, %v271
      %v280 = vand.u32 2147483647, %v272
      %v281 = vand.u32 2147483647, %v273
      %v282 = vand.u32 2147483647, %v274
      %v283 = vand.u32 2147483647, %v275
      %v284 = vand.u32 2147483647, %v276
      %v285 = vld [vmem:[%s175] sm:$0xff]
      %v286 = vld [vmem:[%s175 + $0x8] sm:$0x7f]
      %vm287 = vcmask 130049
      %v288 = vsel %vm287, %v237, 0.0
      %v289 = vsel %vm287, %v239, 0.0
      %v290 = vadd.f32 %v288, %v289
      %v291 = vsel %vm287, %v241, 0.0
      %v292 = vadd.f32 %v290, %v291
      %v293 = vsel %vm287, %v243, 0.0
      %v294 = vadd.f32 %v292, %v293
      %vm295 = vcmask 130048
      %v296 = vsel %vm295, %v238, 0.0
      %v297 = vsel %vm295, %v240, 0.0
      %v298 = vadd.f32 %v296, %v297
      %v299 = vsel %vm295, %v242, 0.0
      %v300 = vadd.f32 %v298, %v299
      %v301 = vsel %vm295, %v244, 0.0
      %v302 = vadd.f32 %v300, %v301
      %vm305 = vcmask 1046528
      %v306 = vrot.slane %v294, 1
      %v307 = vrot.slane %v302, 1
      %v308 = vsel %vm305, %v306, %v307
      %v311 = vadd.f32 %v285, %v308
      %v312 = vadd.f32 %v286, %v307
      %313 = vst.msk [vmem:[%s175] sm:$0xff] %vm295, %v311
      %vm314 = vcmask 129024
      %315 = vst.msk [vmem:[%s175 + $0x8] sm:$0x7f] %vm314, %v312
      %v316 = vld [vmem:[%s180] sm:$0xff]
      %v317 = vld [vmem:[%s180 + $0x8] sm:$0xff]
      %vm318 = vcmask 130056
      %v319 = vsel %vm318, %v277, 0.0
      %v320 = vsel %vm318, %v279, 0.0
      %v321 = vadd.f32 %v319, %v320
      %v322 = vsel %vm318, %v281, 0.0
      %v323 = vadd.f32 %v321, %v322
      %v324 = vsel %vm318, %v283, 0.0
      %v325 = vadd.f32 %v323, %v324
      %v326 = vsel %vm318, %v278, 0.0
      %v327 = vsel %vm318, %v280, 0.0
      %v328 = vadd.f32 %v326, %v327
      %v329 = vsel %vm318, %v282, 0.0
      %v330 = vadd.f32 %v328, %v329
      %v331 = vsel %vm318, %v284, 0.0
      %v332 = vadd.f32 %v330, %v331
      %335 = vrot.lane.b32.xlu0 %v325, 127
      %v336 = vpop.permute.xlu0 %335
      %337 = vrot.lane.b32.xlu0 %v332, 127
      %v338 = vpop.permute.xlu0 %337
      %v341 = vadd.f32 %v316, %v336
      %v342 = vadd.f32 %v317, %v338
      %vm343 = vcmask 121856
      %344 = vst.msk [vmem:[%s180] sm:$0xff] %vm343, %v341
      %345 = vst.msk [vmem:[%s180 + $0x8] sm:$0xff] %vm343, %v342
      %p346 = scmp.lt.s32.totalorder %s18, 1
      %s347 = scalar_select %p346, %s18, 1
      %s348 = smul.addr %s347, 2
      %s349 = smul.addr %s348, 8
      %s350 = scalar_lea.vmem %s1, %s349
      %p351 = scmp.lt.s32.totalorder %s18, 1
      %s352 = scalar_select %p351, %s18, 1
      %s353 = smul.addr %s352, 2
      %s354 = smul.addr %s353, 8
      %s355 = scalar_lea.vmem %s2, %s354
      // Predicated region
      $region29: #{total_loss.9} parent=23 // pred_check
        %p356 = pneg %p72
      $region30: #{total_loss.9} parent=23 // pred_check_branch
        %358 = sbr.rel (%p356) target = $region32
      $region31: #{total_loss.9} parent=23 // pred_region
        _
      $region32: #{total_loss.9} parent=23 // pred_fallthru
        _
      // Predicated region
      $region33: #{total_loss.9} parent=23 // pred_check
        %p359 = pneg %p98
      $region34: #{total_loss.9} parent=23 // pred_check_branch
        %361 = sbr.rel (%p359) target = $region36
      $region35: #{total_loss.9} parent=23 // pred_region
        _
      $region36: #{total_loss.9} parent=23 // pred_fallthru
        _
    $region24: #{total_loss.9} parent=5 // pred_fallthru
      _
    %p362 = scmp.le.s32.totalorder 2, %s9
    // Predicated region
    $region37: #{total_loss.9} parent=5 // pred_check
      %p363 = pneg %p362
    $region38: #{total_loss.9} parent=5 // pred_check_branch
      %365 = sbr.rel (%p363) target = $region40
    $region39: #{total_loss.9} parent=5 // pred_region
      %s366 = ssub.s32 %s9, 2
      // Predicated region
      $region41: #{total_loss.9} parent=39 // pred_check
        %p367 = pneg %p78
      $region42: #{total_loss.9} parent=39 // pred_check_branch
        %369 = sbr.rel (%p367) target = $region44
      $region43: #{total_loss.9} parent=39 // pred_region
        %p370 = scmp.lt.s32.totalorder %s20, 1
        %s371 = scalar_select %p370, %s20, 1
        %s372 = smul.addr %s371, 2
        %s373 = smul.addr %s372, 8
        %s374 = scalar_lea.vmem %s1, %s373
      $region44: #{total_loss.9} parent=39 // pred_fallthru
        _
      // Predicated region
      $region45: #{total_loss.9} parent=39 // pred_check
        %p375 = pneg %p104
      $region46: #{total_loss.9} parent=39 // pred_check_branch
        %377 = sbr.rel (%p375) target = $region48
      $region47: #{total_loss.9} parent=39 // pred_region
        %p378 = scmp.lt.s32.totalorder %s20, 1
        %s379 = scalar_select %p378, %s20, 1
        %s380 = smul.addr %s379, 2
        %s381 = smul.addr %s380, 8
        %s382 = scalar_lea.vmem %s2, %s381
      $region48: #{total_loss.9} parent=39 // pred_fallthru
        _
    $region40: #{total_loss.9} parent=5 // pred_fallthru
      _
  $region6: #{total_loss.9} parent=0 // loop_footer
    %s13 = sadd.s32 1, %s9
  $region7: #{total_loss.9} parent=0 // loop_footer_branch
    %8 = sbr.rel target = $region3
  $region8: #{total_loss.9} parent=0 // loop_exit
    _

</llo_original>
